<compile_context>
chip_gen: v7x
topology: tpu7x:2x2x1
jax: 0.10.0
libtpu: 0.0.40
codegen_flags: <defaults>
</compile_context>

<pallas_src>
import math
from functools import partial

import jax
import jax.numpy as jnp
from jax.experimental import pallas as pl
from jax.experimental.pallas import tpu as pltpu

# ----- model hyper-parameters (small, synthetic) -----
VOCAB = 128
TYPE_VOCAB = 2
MAX_POS = 64
SEQ = 8
HIDDEN = 32
FFN = 64
HEADS = 2
LAYERS = 2
EPS = 1e-12


def _layer_norm(x, g, b):
    mu = jnp.mean(x, axis=-1, keepdims=True)
    var = jnp.mean((x - mu) ** 2, axis=-1, keepdims=True)
    return (x - mu) * jax.lax.rsqrt(var + EPS) * g + b


# ---------------------------------------------------------------------------
# Fused encoder kernel: embedding LayerNorm + all transformer layers + CLS
# extraction, whole batch resident in VMEM.  One invocation (grid=(1,)).
# ---------------------------------------------------------------------------
def _encoder_kernel(emb_ref, neg_ref, embln_ref,
                    wqkv_ref, bqkv_ref, wo_ref, w1_ref, b1_ref, w2_ref,
                    small_ref, cls_ref):
    B, S, H = emb_ref.shape
    BS = B * S
    dh = H // HEADS
    scale = 1.0 / math.sqrt(dh)

    # ---- embedding LayerNorm ----
    x = emb_ref[...].reshape(BS, H)                 # whole batch as sublanes
    h = _layer_norm(x, embln_ref[0:1, :], embln_ref[1:2, :])

    neg = neg_ref[...]                              # (B, 1, S) additive mask

    # ---- transformer layers (static unrolled loop, weights resident) ----
    for l in range(LAYERS):
        wqkv = wqkv_ref[l]                          # (H, 3H)
        bqkv = bqkv_ref[l]                          # (1, 3H)
        wo = wo_ref[l]                              # (H, H)
        w1 = w1_ref[l]                              # (H, F)
        b1 = b1_ref[l]                              # (1, F)
        w2 = w2_ref[l]                              # (F, H)
        small = small_ref[l]                        # (6, H)
        bo = small[0:1, :]
        b2 = small[1:2, :]
        ln1g, ln1b = small[2:3, :], small[3:4, :]
        ln2g, ln2b = small[4:5, :], small[5:6, :]

        # fused QKV projection: one matmul, 3H output lanes
        qkv = jnp.dot(h, wqkv, preferred_element_type=jnp.float32) + bqkv
        q3 = qkv[:, 0:H].reshape(B, S, H)
        k3 = qkv[:, H:2 * H].reshape(B, S, H)
        v3 = qkv[:, 2 * H:3 * H].reshape(B, S, H)

        # masked softmax attention, batched over the batch dimension
        attn = jnp.zeros((BS, H), jnp.float32)
        for hh in range(HEADS):                     # static, tiny head loop
            lo, hi = hh * dh, (hh + 1) * dh
            qh = q3[:, :, lo:hi]
            kh = k3[:, :, lo:hi]
            vh = v3[:, :, lo:hi]
            sc = jnp.einsum("bqd,bkd->bqk", qh, kh,
                            preferred_element_type=jnp.float32) * scale + neg
            sc = sc - jnp.max(sc, axis=-1, keepdims=True)
            p = jnp.exp(sc)
            p = p * pl.reciprocal(jnp.sum(p, axis=-1, keepdims=True),
                                  approx=True)
            ctx = jnp.einsum("bqk,bkd->bqd", p, vh,
                             preferred_element_type=jnp.float32)
            # ctx @ Wo == sum over heads of ctx_h @ Wo[h*dh:(h+1)*dh, :]
            attn = attn + jnp.dot(ctx.reshape(BS, dh), wo[lo:hi, :],
                                  preferred_element_type=jnp.float32)
        attn = attn + bo

        h1 = _layer_norm(h + attn, ln1g, ln1b)

        ff = jnp.dot(h1, w1, preferred_element_type=jnp.float32) + b1
        ff = jax.nn.gelu(ff, approximate=True)
        ff = jnp.dot(ff, w2, preferred_element_type=jnp.float32) + b2

        h = _layer_norm(h1 + ff, ln2g, ln2b)

    # ---- fused CLS extraction: only last_hidden_state[:, 0, :] leaves VMEM ----
    cls_ref[...] = h.reshape(B, S, H)[:, 0, :]


def _pack_encoder_params(params):
    """Stack per-layer weights along a leading layer axis + pack small vectors."""
    layers = params["layers"]
    wqkv = jnp.stack([jnp.concatenate([lp["wq"], lp["wk"], lp["wv"]], axis=1)
                      for lp in layers])                        # (L, H, 3H)
    bqkv = jnp.stack([jnp.concatenate([lp["bq"], lp["bk"], lp["bv"]], axis=1)
                      for lp in layers])                        # (L, 1, 3H)
    wo = jnp.stack([lp["wo"] for lp in layers])                 # (L, H, H)
    w1 = jnp.stack([lp["w1"] for lp in layers])                 # (L, H, F)
    b1 = jnp.stack([lp["b1"] for lp in layers])                 # (L, 1, F)
    w2 = jnp.stack([lp["w2"] for lp in layers])                 # (L, F, H)
    small = jnp.stack([jnp.concatenate(
        [lp["bo"], lp["b2"], lp["ln1g"], lp["ln1b"], lp["ln2g"], lp["ln2b"]],
        axis=0) for lp in layers])                              # (L, 6, H)
    embln = jnp.concatenate([params["emb_ln_g"], params["emb_ln_b"]], axis=0)
    return embln, wqkv, bqkv, wo, w1, b1, w2, small


def encoder_cls_pallas(params, emb, attention_mask):
    """emb: (B, S, H) summed embeddings; returns CLS embedding (B, H)."""
    B, S, H = emb.shape
    L, F_ = LAYERS, FFN
    embln, wqkv, bqkv, wo, w1, b1, w2, small = _pack_encoder_params(params)

    # additive key mask (B, 1, S): 0 for real tokens, -1e9 for padding
    neg = jnp.where(attention_mask[:, None, :] > 0, 0.0, -1e9).astype(jnp.float32)

    def full(shape):
        return pl.BlockSpec(shape, lambda i, _n=len(shape): (0,) * _n)

    return pl.pallas_call(
        _encoder_kernel,
        out_shape=jax.ShapeDtypeStruct((B, H), jnp.float32),
        grid=(1,),
        in_specs=[
            full((B, S, H)),        # summed embeddings
            full((B, 1, S)),        # additive attention mask
            full((2, H)),           # embedding LN gamma/beta
            full((L, H, 3 * H)),    # fused Wqkv
            full((L, 1, 3 * H)),    # fused bqkv
            full((L, H, H)),        # Wo
            full((L, H, F_)),       # W1
            full((L, 1, F_)),       # b1
            full((L, F_, H)),       # W2
            full((L, 6, H)),        # packed bo,b2,ln1g,ln1b,ln2g,ln2b
        ],
        out_specs=full((B, H)),
        compiler_params=pltpu.CompilerParams(
            dimension_semantics=("arbitrary",)),
    )(emb, neg, embln, wqkv, bqkv, wo, w1, b1, w2, small)


# ---------------------------------------------------------------------------
# Encoder (embedding glue + fused Pallas kernel) -> CLS embedding
# ---------------------------------------------------------------------------
def encode_pallas(params, input_ids, attention_mask, token_type_ids):
    B, S = input_ids.shape
    pos = jnp.arange(S)
    # embedding-table gathers stay in plain JAX (data-dependent gather glue)
    emb = (params["word_emb"][input_ids]
           + params["pos_emb"][pos][None, :, :]
           + params["type_emb"][token_type_ids])
    return encoder_cls_pallas(params, emb, attention_mask)


@jax.jit
def dual_encoder_forward(q_params, d_params,
                         query_input_ids, query_attention_mask, query_token_type_ids,
                         doc_input_ids, doc_attention_mask, doc_token_type_ids):
    # NOTE: on v7x (2 TCs/chip) the two encoders could additionally be sharded
    # across cores; on v5e/v6e (1 TC) two sequential fused calls are optimal.
    query_embedding = encode_pallas(q_params, query_input_ids,
                                    query_attention_mask, query_token_type_ids)
    doc_embedding = encode_pallas(d_params, doc_input_ids,
                                  doc_attention_mask, doc_token_type_ids)
    return query_embedding, doc_embedding


# ---------------------------------------------------------------------------
# Pure-JAX reference (for a correctness check)
# ---------------------------------------------------------------------------
def _ref_layer(h, mask, lp):
    B, S, H = h.shape
    dh = H // HEADS
    q = h @ lp["wq"] + lp["bq"]
    k = h @ lp["wk"] + lp["bk"]
    v = h @ lp["wv"] + lp["bv"]
    neg = jnp.where(mask[:, None, :] > 0.5, 0.0, -1e9)
    attn = jnp.zeros_like(h)
    for hh in range(HEADS):
        qh = q[..., hh * dh:(hh + 1) * dh]
        kh = k[..., hh * dh:(hh + 1) * dh]
        vh = v[..., hh * dh:(hh + 1) * dh]
        scores = jnp.einsum("bqd,bkd->bqk", qh, kh) / math.sqrt(dh) + neg
        p = jax.nn.softmax(scores, axis=-1)
        ctx = jnp.einsum("bqk,bkd->bqd", p, vh)
        attn = attn + ctx @ lp["wo"][hh * dh:(hh + 1) * dh, :]
    attn = attn + lp["bo"]
    h1 = _layer_norm(h + attn, lp["ln1g"], lp["ln1b"])
    ff = jax.nn.gelu(h1 @ lp["w1"] + lp["b1"], approximate=True)
    ff = ff @ lp["w2"] + lp["b2"]
    return _layer_norm(h1 + ff, lp["ln2g"], lp["ln2b"])


def encode_ref(params, input_ids, attention_mask, token_type_ids):
    B, S = input_ids.shape
    pos = jnp.arange(S)
    emb = (params["word_emb"][input_ids]
           + params["pos_emb"][pos][None, :, :]
           + params["type_emb"][token_type_ids])
    h = _layer_norm(emb, params["emb_ln_g"], params["emb_ln_b"])
    mask = attention_mask.astype(jnp.float32)
    for lp in params["layers"]:
        h = _ref_layer(h, mask, lp)
    return h[:, 0, :]


# ---------------------------------------------------------------------------
# Deterministic parameter init (two independent encoders, shapes from __init__)
# ---------------------------------------------------------------------------
def init_encoder_params(key):
    ks = jax.random.split(key, 3 + LAYERS)

    def nrm(k, shape):
        return jax.random.normal(k, shape, jnp.float32) * 0.02

    params = {
        "word_emb": nrm(ks[0], (VOCAB, HIDDEN)),
        "pos_emb": nrm(ks[1], (MAX_POS, HIDDEN)),
        "type_emb": nrm(ks[2], (TYPE_VOCAB, HIDDEN)),
        "emb_ln_g": jnp.ones((1, HIDDEN), jnp.float32),
        "emb_ln_b": jnp.zeros((1, HIDDEN), jnp.float32),
        "layers": [],
    }
    for i in range(LAYERS):
        lk = jax.random.split(ks[3 + i], 12)
        params["layers"].append({
            "wq": nrm(lk[0], (HIDDEN, HIDDEN)), "bq": nrm(lk[1], (1, HIDDEN)),
            "wk": nrm(lk[2], (HIDDEN, HIDDEN)), "bk": nrm(lk[3], (1, HIDDEN)),
            "wv": nrm(lk[4], (HIDDEN, HIDDEN)), "bv": nrm(lk[5], (1, HIDDEN)),
            "wo": nrm(lk[6], (HIDDEN, HIDDEN)), "bo": nrm(lk[7], (1, HIDDEN)),
            "ln1g": jnp.ones((1, HIDDEN), jnp.float32),
            "ln1b": jnp.zeros((1, HIDDEN), jnp.float32),
            "w1": nrm(lk[8], (HIDDEN, FFN)), "b1": nrm(lk[9], (1, FFN)),
            "w2": nrm(lk[10], (FFN, HIDDEN)), "b2": nrm(lk[11], (1, HIDDEN)),
            "ln2g": jnp.ones((1, HIDDEN), jnp.float32),
            "ln2b": jnp.zeros((1, HIDDEN), jnp.float32),
        })
    return params


if __name__ == "__main__":
    key = jax.random.PRNGKey(0)
    kq, kd, k1, k2, k3 = jax.random.split(key, 5)

    q_params = init_encoder_params(kq)
    d_params = init_encoder_params(kd)

    bs, n_doc, seq = 2, 2, SEQ

    query_input_ids = jax.random.randint(k1, (bs, seq), 0, VOCAB, dtype=jnp.int32)
    doc_input_ids = jax.random.randint(k2, (bs * n_doc, seq), 0, VOCAB, dtype=jnp.int32)

    # masks: first `valid` tokens are real, rest padding (CLS always unmasked)
    q_valid = jnp.array([seq, seq - 3], dtype=jnp.int32)
    d_valid = jnp.array([seq, seq - 2, seq - 4, seq], dtype=jnp.int32)
    query_attention_mask = (jnp.arange(seq)[None, :] < q_valid[:, None]).astype(jnp.int32)
    doc_attention_mask = (jnp.arange(seq)[None, :] < d_valid[:, None]).astype(jnp.int32)

    query_token_type_ids = jnp.zeros((bs, seq), dtype=jnp.int32)
    doc_token_type_ids = jax.random.randint(k3, (bs * n_doc, seq), 0, TYPE_VOCAB,
                                            dtype=jnp.int32)

    q_emb, d_emb = dual_encoder_forward(
        q_params, d_params,
        query_input_ids, query_attention_mask, query_token_type_ids,
        doc_input_ids, doc_attention_mask, doc_token_type_ids)
    jax.block_until_ready((q_emb, d_emb))

    assert q_emb.shape == (bs, HIDDEN)
    assert d_emb.shape == (bs * n_doc, HIDDEN)

    # correctness check against a pure-JAX reference
    q_ref = encode_ref(q_params, query_input_ids, query_attention_mask,
                       query_token_type_ids)
    d_ref = encode_ref(d_params, doc_input_ids, doc_attention_mask,
                       doc_token_type_ids)
    assert jnp.allclose(q_emb, q_ref, atol=1e-2, rtol=1e-2)
    assert jnp.allclose(d_emb, d_ref, atol=1e-2, rtol=1e-2)

    print("KERNEL_OK")
</pallas_src>

<mosaic_0001>
module attributes {stable_mosaic.version = 11 : i64} {
  func.func @_encoder_kernel(%arg0: i32, %arg1: memref<4x8x32xf32, #tpu.memory_space<vmem>>, %arg2: memref<4x1x8xf32, #tpu.memory_space<vmem>>, %arg3: memref<2x32xf32, #tpu.memory_space<vmem>>, %arg4: memref<2x32x96xf32, #tpu.memory_space<vmem>>, %arg5: memref<2x1x96xf32, #tpu.memory_space<vmem>>, %arg6: memref<2x32x32xf32, #tpu.memory_space<vmem>>, %arg7: memref<2x32x64xf32, #tpu.memory_space<vmem>>, %arg8: memref<2x1x64xf32, #tpu.memory_space<vmem>>, %arg9: memref<2x64x32xf32, #tpu.memory_space<vmem>>, %arg10: memref<2x6x32xf32, #tpu.memory_space<vmem>>, %arg11: memref<4x32xf32, #tpu.memory_space<vmem>>) attributes {dimension_semantics = [#tpu.dimension_semantics<arbitrary>], iteration_bounds = array<i64: 1>, scalar_prefetch = 0 : i64, scratch_operands = 0 : i64, tpu.core_type = #tpu.core_type<tc>, window_params = [{pipeline_mode = #tpu.pipeline_mode<synchronous>, transform_indices = @transform_0, window_bounds = array<i64: 4, 8, 32>}, {pipeline_mode = #tpu.pipeline_mode<synchronous>, transform_indices = @transform_1, window_bounds = array<i64: 4, 1, 8>}, {pipeline_mode = #tpu.pipeline_mode<synchronous>, transform_indices = @transform_2, window_bounds = array<i64: 2, 32>}, {pipeline_mode = #tpu.pipeline_mode<synchronous>, transform_indices = @transform_3, window_bounds = array<i64: 2, 32, 96>}, {pipeline_mode = #tpu.pipeline_mode<synchronous>, transform_indices = @transform_4, window_bounds = array<i64: 2, 1, 96>}, {pipeline_mode = #tpu.pipeline_mode<synchronous>, transform_indices = @transform_5, window_bounds = array<i64: 2, 32, 32>}, {pipeline_mode = #tpu.pipeline_mode<synchronous>, transform_indices = @transform_6, window_bounds = array<i64: 2, 32, 64>}, {pipeline_mode = #tpu.pipeline_mode<synchronous>, transform_indices = @transform_7, window_bounds = array<i64: 2, 1, 64>}, {pipeline_mode = #tpu.pipeline_mode<synchronous>, transform_indices = @transform_8, window_bounds = array<i64: 2, 64, 32>}, {pipeline_mode = #tpu.pipeline_mode<synchronous>, transform_indices = @transform_9, window_bounds = array<i64: 2, 6, 32>}, {pipeline_mode = #tpu.pipeline_mode<synchronous>, transform_indices = @transform_10, window_bounds = array<i64: 4, 32>}]} {
    %c0 = arith.constant 0 : index
    %c0_0 = arith.constant 0 : index
    %c0_1 = arith.constant 0 : index
    %0 = vector.load %arg1[%c0, %c0_0, %c0_1] : memref<4x8x32xf32, #tpu.memory_space<vmem>>, vector<4x8x32xf32>
    %1 = vector.shape_cast %0 : vector<4x8x32xf32> to vector<32x32xf32>
    %c0_2 = arith.constant 0 : index
    %c0_3 = arith.constant 0 : index
    %2 = vector.load %arg3[%c0_2, %c0_3] : memref<2x32xf32, #tpu.memory_space<vmem>>, vector<1x32xf32>
    %c1 = arith.constant 1 : index
    %c0_4 = arith.constant 0 : index
    %3 = vector.load %arg3[%c1, %c0_4] : memref<2x32xf32, #tpu.memory_space<vmem>>, vector<1x32xf32>
    %cst = arith.constant dense<0.000000e+00> : vector<32xf32>
    %4 = vector.multi_reduction <add>, %1, %cst [1] : vector<32x32xf32> to vector<32xf32>
    %5 = vector.shape_cast %4 : vector<32xf32> to vector<32x1xf32>
    %cst_5 = arith.constant 3.200000e+01 : f32
    %6 = vector.broadcast %cst_5 : f32 to vector<32x1xf32>
    %7 = arith.divf %5, %6 : vector<32x1xf32>
    %8 = vector.broadcast %7 : vector<32x1xf32> to vector<32x32xf32>
    %9 = arith.subf %1, %8 : vector<32x32xf32>
    %10 = arith.mulf %9, %9 : vector<32x32xf32>
    %cst_6 = arith.constant dense<0.000000e+00> : vector<32xf32>
    %11 = vector.multi_reduction <add>, %10, %cst_6 [1] : vector<32x32xf32> to vector<32xf32>
    %12 = vector.shape_cast %11 : vector<32xf32> to vector<32x1xf32>
    %cst_7 = arith.constant 3.200000e+01 : f32
    %13 = vector.broadcast %cst_7 : f32 to vector<32x1xf32>
    %14 = arith.divf %12, %13 : vector<32x1xf32>
    %15 = vector.broadcast %7 : vector<32x1xf32> to vector<32x32xf32>
    %16 = arith.subf %1, %15 : vector<32x32xf32>
    %cst_8 = arith.constant 9.99999996E-13 : f32
    %17 = vector.broadcast %cst_8 : f32 to vector<32x1xf32>
    %18 = arith.addf %14, %17 : vector<32x1xf32>
    %19 = math.rsqrt %18 : vector<32x1xf32>
    %20 = vector.broadcast %19 : vector<32x1xf32> to vector<32x32xf32>
    %21 = arith.mulf %16, %20 : vector<32x32xf32>
    %22 = vector.broadcast %2 : vector<1x32xf32> to vector<32x32xf32>
    %23 = arith.mulf %21, %22 : vector<32x32xf32>
    %24 = vector.broadcast %3 : vector<1x32xf32> to vector<32x32xf32>
    %25 = arith.addf %23, %24 : vector<32x32xf32>
    %c0_9 = arith.constant 0 : index
    %c0_10 = arith.constant 0 : index
    %c0_11 = arith.constant 0 : index
    %26 = vector.load %arg2[%c0_9, %c0_10, %c0_11] : memref<4x1x8xf32, #tpu.memory_space<vmem>>, vector<4x1x8xf32>
    %c0_12 = arith.constant 0 : index
    %c0_13 = arith.constant 0 : index
    %c0_14 = arith.constant 0 : index
    %27 = vector.load %arg4[%c0_12, %c0_13, %c0_14] : memref<2x32x96xf32, #tpu.memory_space<vmem>>, vector<1x32x96xf32>
    %28 = vector.shape_cast %27 : vector<1x32x96xf32> to vector<32x96xf32>
    %c0_15 = arith.constant 0 : index
    %c0_16 = arith.constant 0 : index
    %c0_17 = arith.constant 0 : index
    %29 = vector.load %arg5[%c0_15, %c0_16, %c0_17] : memref<2x1x96xf32, #tpu.memory_space<vmem>>, vector<1x1x96xf32>
    %30 = vector.shape_cast %29 : vector<1x1x96xf32> to vector<1x96xf32>
    %c0_18 = arith.constant 0 : index
    %c0_19 = arith.constant 0 : index
    %c0_20 = arith.constant 0 : index
    %31 = vector.load %arg6[%c0_18, %c0_19, %c0_20] : memref<2x32x32xf32, #tpu.memory_space<vmem>>, vector<1x32x32xf32>
    %32 = vector.shape_cast %31 : vector<1x32x32xf32> to vector<32x32xf32>
    %c0_21 = arith.constant 0 : index
    %c0_22 = arith.constant 0 : index
    %c0_23 = arith.constant 0 : index
    %33 = vector.load %arg7[%c0_21, %c0_22, %c0_23] : memref<2x32x64xf32, #tpu.memory_space<vmem>>, vector<1x32x64xf32>
    %34 = vector.shape_cast %33 : vector<1x32x64xf32> to vector<32x64xf32>
    %c0_24 = arith.constant 0 : index
    %c0_25 = arith.constant 0 : index
    %c0_26 = arith.constant 0 : index
    %35 = vector.load %arg8[%c0_24, %c0_25, %c0_26] : memref<2x1x64xf32, #tpu.memory_space<vmem>>, vector<1x1x64xf32>
    %36 = vector.shape_cast %35 : vector<1x1x64xf32> to vector<1x64xf32>
    %c0_27 = arith.constant 0 : index
    %c0_28 = arith.constant 0 : index
    %c0_29 = arith.constant 0 : index
    %37 = vector.load %arg9[%c0_27, %c0_28, %c0_29] : memref<2x64x32xf32, #tpu.memory_space<vmem>>, vector<1x64x32xf32>
    %38 = vector.shape_cast %37 : vector<1x64x32xf32> to vector<64x32xf32>
    %c0_30 = arith.constant 0 : index
    %c0_31 = arith.constant 0 : index
    %c0_32 = arith.constant 0 : index
    %39 = vector.load %arg10[%c0_30, %c0_31, %c0_32] : memref<2x6x32xf32, #tpu.memory_space<vmem>>, vector<1x6x32xf32>
    %40 = vector.shape_cast %39 : vector<1x6x32xf32> to vector<6x32xf32>
    %41 = vector.extract_strided_slice %40 {offsets = [0, 0], sizes = [1, 32], strides = [1, 1]} : vector<6x32xf32> to vector<1x32xf32>
    %42 = vector.extract_strided_slice %40 {offsets = [1, 0], sizes = [1, 32], strides = [1, 1]} : vector<6x32xf32> to vector<1x32xf32>
    %43 = vector.extract_strided_slice %40 {offsets = [2, 0], sizes = [1, 32], strides = [1, 1]} : vector<6x32xf32> to vector<1x32xf32>
    %44 = vector.extract_strided_slice %40 {offsets = [3, 0], sizes = [1, 32], strides = [1, 1]} : vector<6x32xf32> to vector<1x32xf32>
    %45 = vector.extract_strided_slice %40 {offsets = [4, 0], sizes = [1, 32], strides = [1, 1]} : vector<6x32xf32> to vector<1x32xf32>
    %46 = vector.extract_strided_slice %40 {offsets = [5, 0], sizes = [1, 32], strides = [1, 1]} : vector<6x32xf32> to vector<1x32xf32>
    %cst_33 = arith.constant dense<0.000000e+00> : vector<32x96xf32>
    %47 = tpu.matmul %25, %28, %cst_33 {dimension_numbers = #tpu.dot_dimension_numbers<[1], [0], [0], [1], [0, 0, 1, 1], [], []>} : vector<32x32xf32>, vector<32x96xf32>, vector<32x96xf32> -> vector<32x96xf32>
    %48 = vector.broadcast %30 : vector<1x96xf32> to vector<32x96xf32>
    %49 = arith.addf %47, %48 : vector<32x96xf32>
    %50 = vector.extract_strided_slice %49 {offsets = [0, 0], sizes = [32, 32], strides = [1, 1]} : vector<32x96xf32> to vector<32x32xf32>
    %51 = vector.shape_cast %50 : vector<32x32xf32> to vector<4x8x32xf32>
    %52 = vector.extract_strided_slice %49 {offsets = [0, 32], sizes = [32, 32], strides = [1, 1]} : vector<32x96xf32> to vector<32x32xf32>
    %53 = vector.shape_cast %52 : vector<32x32xf32> to vector<4x8x32xf32>
    %54 = vector.extract_strided_slice %49 {offsets = [0, 64], sizes = [32, 32], strides = [1, 1]} : vector<32x96xf32> to vector<32x32xf32>
    %55 = vector.shape_cast %54 : vector<32x32xf32> to vector<4x8x32xf32>
    %cst_34 = arith.constant 0.000000e+00 : f32
    %56 = vector.broadcast %cst_34 : f32 to vector<32x32xf32>
    %57 = vector.extract_strided_slice %51 {offsets = [0, 0, 0], sizes = [4, 8, 16], strides = [1, 1, 1]} : vector<4x8x32xf32> to vector<4x8x16xf32>
    %58 = vector.extract_strided_slice %53 {offsets = [0, 0, 0], sizes = [4, 8, 16], strides = [1, 1, 1]} : vector<4x8x32xf32> to vector<4x8x16xf32>
    %59 = vector.extract_strided_slice %55 {offsets = [0, 0, 0], sizes = [4, 8, 16], strides = [1, 1, 1]} : vector<4x8x32xf32> to vector<4x8x16xf32>
    "tpu.trace_start"() <{level = 10 : i32, message = "bqd,bkd->bqk"}> : () -> ()
    %cst_35 = arith.constant dense<0.000000e+00> : vector<4x8x8xf32>
    %60 = tpu.matmul %57, %58, %cst_35 {dimension_numbers = #tpu.dot_dimension_numbers<[2], [2], [1], [1], [0, 0, 0, 1, 1, 1], [0], [0]>} : vector<4x8x16xf32>, vector<4x8x16xf32>, vector<4x8x8xf32> -> vector<4x8x8xf32>
    "tpu.trace_stop"() : () -> ()
    %cst_36 = arith.constant 2.500000e-01 : f32
    %61 = vector.broadcast %cst_36 : f32 to vector<4x8x8xf32>
    %62 = arith.mulf %60, %61 : vector<4x8x8xf32>
    %63 = vector.broadcast %26 : vector<4x1x8xf32> to vector<4x8x8xf32>
    %64 = arith.addf %62, %63 : vector<4x8x8xf32>
    %cst_37 = arith.constant dense<0xFF800000> : vector<4x8xf32>
    %65 = vector.multi_reduction <maximumf>, %64, %cst_37 [2] : vector<4x8x8xf32> to vector<4x8xf32>
    %66 = vector.shape_cast %65 : vector<4x8xf32> to vector<4x8x1xf32>
    %67 = vector.broadcast %66 : vector<4x8x1xf32> to vector<4x8x8xf32>
    %68 = arith.subf %64, %67 : vector<4x8x8xf32>
    %69 = math.exp %68 : vector<4x8x8xf32>
    %cst_38 = arith.constant dense<0.000000e+00> : vector<4x8xf32>
    %70 = vector.multi_reduction <add>, %69, %cst_38 [2] : vector<4x8x8xf32> to vector<4x8xf32>
    %71 = vector.shape_cast %70 : vector<4x8xf32> to vector<4x8x1xf32>
    %72 = tpu.reciprocal %71 {approx = true} : vector<4x8x1xf32> -> vector<4x8x1xf32>
    %73 = vector.broadcast %72 : vector<4x8x1xf32> to vector<4x8x8xf32>
    %74 = arith.mulf %69, %73 : vector<4x8x8xf32>
    "tpu.trace_start"() <{level = 10 : i32, message = "bqk,bkd->bqd"}> : () -> ()
    %cst_39 = arith.constant dense<0.000000e+00> : vector<4x8x16xf32>
    %75 = tpu.matmul %74, %59, %cst_39 {dimension_numbers = #tpu.dot_dimension_numbers<[2], [1], [1], [2], [0, 0, 0, 1, 1, 2], [0], [0]>} : vector<4x8x8xf32>, vector<4x8x16xf32>, vector<4x8x16xf32> -> vector<4x8x16xf32>
    "tpu.trace_stop"() : () -> ()
    %76 = vector.shape_cast %75 : vector<4x8x16xf32> to vector<32x16xf32>
    %77 = vector.extract_strided_slice %32 {offsets = [0, 0], sizes = [16, 32], strides = [1, 1]} : vector<32x32xf32> to vector<16x32xf32>
    %cst_40 = arith.constant dense<0.000000e+00> : vector<32x32xf32>
    %78 = tpu.matmul %76, %77, %cst_40 {dimension_numbers = #tpu.dot_dimension_numbers<[1], [0], [0], [1], [0, 0, 1, 1], [], []>} : vector<32x16xf32>, vector<16x32xf32>, vector<32x32xf32> -> vector<32x32xf32>
    %79 = arith.addf %56, %78 : vector<32x32xf32>
    %80 = vector.extract_strided_slice %51 {offsets = [0, 0, 16], sizes = [4, 8, 16], strides = [1, 1, 1]} : vector<4x8x32xf32> to vector<4x8x16xf32>
    %81 = vector.extract_strided_slice %53 {offsets = [0, 0, 16], sizes = [4, 8, 16], strides = [1, 1, 1]} : vector<4x8x32xf32> to vector<4x8x16xf32>
    %82 = vector.extract_strided_slice %55 {offsets = [0, 0, 16], sizes = [4, 8, 16], strides = [1, 1, 1]} : vector<4x8x32xf32> to vector<4x8x16xf32>
    "tpu.trace_start"() <{level = 10 : i32, message = "bqd,bkd->bqk"}> : () -> ()
    %cst_41 = arith.constant dense<0.000000e+00> : vector<4x8x8xf32>
    %83 = tpu.matmul %80, %81, %cst_41 {dimension_numbers = #tpu.dot_dimension_numbers<[2], [2], [1], [1], [0, 0, 0, 1, 1, 1], [0], [0]>} : vector<4x8x16xf32>, vector<4x8x16xf32>, vector<4x8x8xf32> -> vector<4x8x8xf32>
    "tpu.trace_stop"() : () -> ()
    %cst_42 = arith.constant 2.500000e-01 : f32
    %84 = vector.broadcast %cst_42 : f32 to vector<4x8x8xf32>
    %85 = arith.mulf %83, %84 : vector<4x8x8xf32>
    %86 = vector.broadcast %26 : vector<4x1x8xf32> to vector<4x8x8xf32>
    %87 = arith.addf %85, %86 : vector<4x8x8xf32>
    %cst_43 = arith.constant dense<0xFF800000> : vector<4x8xf32>
    %88 = vector.multi_reduction <maximumf>, %87, %cst_43 [2] : vector<4x8x8xf32> to vector<4x8xf32>
    %89 = vector.shape_cast %88 : vector<4x8xf32> to vector<4x8x1xf32>
    %90 = vector.broadcast %89 : vector<4x8x1xf32> to vector<4x8x8xf32>
    %91 = arith.subf %87, %90 : vector<4x8x8xf32>
    %92 = math.exp %91 : vector<4x8x8xf32>
    %cst_44 = arith.constant dense<0.000000e+00> : vector<4x8xf32>
    %93 = vector.multi_reduction <add>, %92, %cst_44 [2] : vector<4x8x8xf32> to vector<4x8xf32>
    %94 = vector.shape_cast %93 : vector<4x8xf32> to vector<4x8x1xf32>
    %95 = tpu.reciprocal %94 {approx = true} : vector<4x8x1xf32> -> vector<4x8x1xf32>
    %96 = vector.broadcast %95 : vector<4x8x1xf32> to vector<4x8x8xf32>
    %97 = arith.mulf %92, %96 : vector<4x8x8xf32>
    "tpu.trace_start"() <{level = 10 : i32, message = "bqk,bkd->bqd"}> : () -> ()
    %cst_45 = arith.constant dense<0.000000e+00> : vector<4x8x16xf32>
    %98 = tpu.matmul %97, %82, %cst_45 {dimension_numbers = #tpu.dot_dimension_numbers<[2], [1], [1], [2], [0, 0, 0, 1, 1, 2], [0], [0]>} : vector<4x8x8xf32>, vector<4x8x16xf32>, vector<4x8x16xf32> -> vector<4x8x16xf32>
    "tpu.trace_stop"() : () -> ()
    %99 = vector.shape_cast %98 : vector<4x8x16xf32> to vector<32x16xf32>
    %100 = vector.extract_strided_slice %32 {offsets = [16, 0], sizes = [16, 32], strides = [1, 1]} : vector<32x32xf32> to vector<16x32xf32>
    %cst_46 = arith.constant dense<0.000000e+00> : vector<32x32xf32>
    %101 = tpu.matmul %99, %100, %cst_46 {dimension_numbers = #tpu.dot_dimension_numbers<[1], [0], [0], [1], [0, 0, 1, 1], [], []>} : vector<32x16xf32>, vector<16x32xf32>, vector<32x32xf32> -> vector<32x32xf32>
    %102 = arith.addf %79, %101 : vector<32x32xf32>
    %103 = vector.broadcast %41 : vector<1x32xf32> to vector<32x32xf32>
    %104 = arith.addf %102, %103 : vector<32x32xf32>
    %105 = arith.addf %25, %104 : vector<32x32xf32>
    %cst_47 = arith.constant dense<0.000000e+00> : vector<32xf32>
    %106 = vector.multi_reduction <add>, %105, %cst_47 [1] : vector<32x32xf32> to vector<32xf32>
    %107 = vector.shape_cast %106 : vector<32xf32> to vector<32x1xf32>
    %cst_48 = arith.constant 3.200000e+01 : f32
    %108 = vector.broadcast %cst_48 : f32 to vector<32x1xf32>
    %109 = arith.divf %107, %108 : vector<32x1xf32>
    %110 = vector.broadcast %109 : vector<32x1xf32> to vector<32x32xf32>
    %111 = arith.subf %105, %110 : vector<32x32xf32>
    %112 = arith.mulf %111, %111 : vector<32x32xf32>
    %cst_49 = arith.constant dense<0.000000e+00> : vector<32xf32>
    %113 = vector.multi_reduction <add>, %112, %cst_49 [1] : vector<32x32xf32> to vector<32xf32>
    %114 = vector.shape_cast %113 : vector<32xf32> to vector<32x1xf32>
    %cst_50 = arith.constant 3.200000e+01 : f32
    %115 = vector.broadcast %cst_50 : f32 to vector<32x1xf32>
    %116 = arith.divf %114, %115 : vector<32x1xf32>
    %117 = vector.broadcast %109 : vector<32x1xf32> to vector<32x32xf32>
    %118 = arith.subf %105, %117 : vector<32x32xf32>
    %cst_51 = arith.constant 9.99999996E-13 : f32
    %119 = vector.broadcast %cst_51 : f32 to vector<32x1xf32>
    %120 = arith.addf %116, %119 : vector<32x1xf32>
    %121 = math.rsqrt %120 : vector<32x1xf32>
    %122 = vector.broadcast %121 : vector<32x1xf32> to vector<32x32xf32>
    %123 = arith.mulf %118, %122 : vector<32x32xf32>
    %124 = vector.broadcast %43 : vector<1x32xf32> to vector<32x32xf32>
    %125 = arith.mulf %123, %124 : vector<32x32xf32>
    %126 = vector.broadcast %44 : vector<1x32xf32> to vector<32x32xf32>
    %127 = arith.addf %125, %126 : vector<32x32xf32>
    %cst_52 = arith.constant dense<0.000000e+00> : vector<32x64xf32>
    %128 = tpu.matmul %127, %34, %cst_52 {dimension_numbers = #tpu.dot_dimension_numbers<[1], [0], [0], [1], [0, 0, 1, 1], [], []>} : vector<32x32xf32>, vector<32x64xf32>, vector<32x64xf32> -> vector<32x64xf32>
    %129 = vector.broadcast %36 : vector<1x64xf32> to vector<32x64xf32>
    %130 = arith.addf %128, %129 : vector<32x64xf32>
    %131 = arith.mulf %130, %130 : vector<32x64xf32>
    %132 = arith.mulf %130, %131 : vector<32x64xf32>
    %cst_53 = arith.constant 4.471500e-02 : f32
    %133 = vector.broadcast %cst_53 : f32 to vector<32x64xf32>
    %134 = arith.mulf %133, %132 : vector<32x64xf32>
    %135 = arith.addf %130, %134 : vector<32x64xf32>
    %cst_54 = arith.constant 0.797884583 : f32
    %136 = vector.broadcast %cst_54 : f32 to vector<32x64xf32>
    %137 = arith.mulf %136, %135 : vector<32x64xf32>
    %138 = math.tanh %137 : vector<32x64xf32>
    %cst_55 = arith.constant 1.000000e+00 : f32
    %139 = vector.broadcast %cst_55 : f32 to vector<32x64xf32>
    %140 = arith.addf %139, %138 : vector<32x64xf32>
    %cst_56 = arith.constant 5.000000e-01 : f32
    %141 = vector.broadcast %cst_56 : f32 to vector<32x64xf32>
    %142 = arith.mulf %141, %140 : vector<32x64xf32>
    %143 = arith.mulf %130, %142 : vector<32x64xf32>
    %cst_57 = arith.constant dense<0.000000e+00> : vector<32x32xf32>
    %144 = tpu.matmul %143, %38, %cst_57 {dimension_numbers = #tpu.dot_dimension_numbers<[1], [0], [0], [1], [0, 0, 1, 1], [], []>} : vector<32x64xf32>, vector<64x32xf32>, vector<32x32xf32> -> vector<32x32xf32>
    %145 = vector.broadcast %42 : vector<1x32xf32> to vector<32x32xf32>
    %146 = arith.addf %144, %145 : vector<32x32xf32>
    %147 = arith.addf %127, %146 : vector<32x32xf32>
    %cst_58 = arith.constant dense<0.000000e+00> : vector<32xf32>
    %148 = vector.multi_reduction <add>, %147, %cst_58 [1] : vector<32x32xf32> to vector<32xf32>
    %149 = vector.shape_cast %148 : vector<32xf32> to vector<32x1xf32>
    %cst_59 = arith.constant 3.200000e+01 : f32
    %150 = vector.broadcast %cst_59 : f32 to vector<32x1xf32>
    %151 = arith.divf %149, %150 : vector<32x1xf32>
    %152 = vector.broadcast %151 : vector<32x1xf32> to vector<32x32xf32>
    %153 = arith.subf %147, %152 : vector<32x32xf32>
    %154 = arith.mulf %153, %153 : vector<32x32xf32>
    %cst_60 = arith.constant dense<0.000000e+00> : vector<32xf32>
    %155 = vector.multi_reduction <add>, %154, %cst_60 [1] : vector<32x32xf32> to vector<32xf32>
    %156 = vector.shape_cast %155 : vector<32xf32> to vector<32x1xf32>
    %cst_61 = arith.constant 3.200000e+01 : f32
    %157 = vector.broadcast %cst_61 : f32 to vector<32x1xf32>
    %158 = arith.divf %156, %157 : vector<32x1xf32>
    %159 = vector.broadcast %151 : vector<32x1xf32> to vector<32x32xf32>
    %160 = arith.subf %147, %159 : vector<32x32xf32>
    %cst_62 = arith.constant 9.99999996E-13 : f32
    %161 = vector.broadcast %cst_62 : f32 to vector<32x1xf32>
    %162 = arith.addf %158, %161 : vector<32x1xf32>
    %163 = math.rsqrt %162 : vector<32x1xf32>
    %164 = vector.broadcast %163 : vector<32x1xf32> to vector<32x32xf32>
    %165 = arith.mulf %160, %164 : vector<32x32xf32>
    %166 = vector.broadcast %45 : vector<1x32xf32> to vector<32x32xf32>
    %167 = arith.mulf %165, %166 : vector<32x32xf32>
    %168 = vector.broadcast %46 : vector<1x32xf32> to vector<32x32xf32>
    %169 = arith.addf %167, %168 : vector<32x32xf32>
    %c1_63 = arith.constant 1 : index
    %c0_64 = arith.constant 0 : index
    %c0_65 = arith.constant 0 : index
    %170 = vector.load %arg4[%c1_63, %c0_64, %c0_65] : memref<2x32x96xf32, #tpu.memory_space<vmem>>, vector<1x32x96xf32>
    %171 = vector.shape_cast %170 : vector<1x32x96xf32> to vector<32x96xf32>
    %c1_66 = arith.constant 1 : index
    %c0_67 = arith.constant 0 : index
    %c0_68 = arith.constant 0 : index
    %172 = vector.load %arg5[%c1_66, %c0_67, %c0_68] : memref<2x1x96xf32, #tpu.memory_space<vmem>>, vector<1x1x96xf32>
    %173 = vector.shape_cast %172 : vector<1x1x96xf32> to vector<1x96xf32>
    %c1_69 = arith.constant 1 : index
    %c0_70 = arith.constant 0 : index
    %c0_71 = arith.constant 0 : index
    %174 = vector.load %arg6[%c1_69, %c0_70, %c0_71] : memref<2x32x32xf32, #tpu.memory_space<vmem>>, vector<1x32x32xf32>
    %175 = vector.shape_cast %174 : vector<1x32x32xf32> to vector<32x32xf32>
    %c1_72 = arith.constant 1 : index
    %c0_73 = arith.constant 0 : index
    %c0_74 = arith.constant 0 : index
    %176 = vector.load %arg7[%c1_72, %c0_73, %c0_74] : memref<2x32x64xf32, #tpu.memory_space<vmem>>, vector<1x32x64xf32>
    %177 = vector.shape_cast %176 : vector<1x32x64xf32> to vector<32x64xf32>
    %c1_75 = arith.constant 1 : index
    %c0_76 = arith.constant 0 : index
    %c0_77 = arith.constant 0 : index
    %178 = vector.load %arg8[%c1_75, %c0_76, %c0_77] : memref<2x1x64xf32, #tpu.memory_space<vmem>>, vector<1x1x64xf32>
    %179 = vector.shape_cast %178 : vector<1x1x64xf32> to vector<1x64xf32>
    %c1_78 = arith.constant 1 : index
    %c0_79 = arith.constant 0 : index
    %c0_80 = arith.constant 0 : index
    %180 = vector.load %arg9[%c1_78, %c0_79, %c0_80] : memref<2x64x32xf32, #tpu.memory_space<vmem>>, vector<1x64x32xf32>
    %181 = vector.shape_cast %180 : vector<1x64x32xf32> to vector<64x32xf32>
    %c1_81 = arith.constant 1 : index
    %c0_82 = arith.constant 0 : index
    %c0_83 = arith.constant 0 : index
    %182 = vector.load %arg10[%c1_81, %c0_82, %c0_83] : memref<2x6x32xf32, #tpu.memory_space<vmem>>, vector<1x6x32xf32>
    %183 = vector.shape_cast %182 : vector<1x6x32xf32> to vector<6x32xf32>
    %184 = vector.extract_strided_slice %183 {offsets = [0, 0], sizes = [1, 32], strides = [1, 1]} : vector<6x32xf32> to vector<1x32xf32>
    %185 = vector.extract_strided_slice %183 {offsets = [1, 0], sizes = [1, 32], strides = [1, 1]} : vector<6x32xf32> to vector<1x32xf32>
    %186 = vector.extract_strided_slice %183 {offsets = [2, 0], sizes = [1, 32], strides = [1, 1]} : vector<6x32xf32> to vector<1x32xf32>
    %187 = vector.extract_strided_slice %183 {offsets = [3, 0], sizes = [1, 32], strides = [1, 1]} : vector<6x32xf32> to vector<1x32xf32>
    %188 = vector.extract_strided_slice %183 {offsets = [4, 0], sizes = [1, 32], strides = [1, 1]} : vector<6x32xf32> to vector<1x32xf32>
    %189 = vector.extract_strided_slice %183 {offsets = [5, 0], sizes = [1, 32], strides = [1, 1]} : vector<6x32xf32> to vector<1x32xf32>
    %cst_84 = arith.constant dense<0.000000e+00> : vector<32x96xf32>
    %190 = tpu.matmul %169, %171, %cst_84 {dimension_numbers = #tpu.dot_dimension_numbers<[1], [0], [0], [1], [0, 0, 1, 1], [], []>} : vector<32x32xf32>, vector<32x96xf32>, vector<32x96xf32> -> vector<32x96xf32>
    %191 = vector.broadcast %173 : vector<1x96xf32> to vector<32x96xf32>
    %192 = arith.addf %190, %191 : vector<32x96xf32>
    %193 = vector.extract_strided_slice %192 {offsets = [0, 0], sizes = [32, 32], strides = [1, 1]} : vector<32x96xf32> to vector<32x32xf32>
    %194 = vector.shape_cast %193 : vector<32x32xf32> to vector<4x8x32xf32>
    %195 = vector.extract_strided_slice %192 {offsets = [0, 32], sizes = [32, 32], strides = [1, 1]} : vector<32x96xf32> to vector<32x32xf32>
    %196 = vector.shape_cast %195 : vector<32x32xf32> to vector<4x8x32xf32>
    %197 = vector.extract_strided_slice %192 {offsets = [0, 64], sizes = [32, 32], strides = [1, 1]} : vector<32x96xf32> to vector<32x32xf32>
    %198 = vector.shape_cast %197 : vector<32x32xf32> to vector<4x8x32xf32>
    %cst_85 = arith.constant 0.000000e+00 : f32
    %199 = vector.broadcast %cst_85 : f32 to vector<32x32xf32>
    %200 = vector.extract_strided_slice %194 {offsets = [0, 0, 0], sizes = [4, 8, 16], strides = [1, 1, 1]} : vector<4x8x32xf32> to vector<4x8x16xf32>
    %201 = vector.extract_strided_slice %196 {offsets = [0, 0, 0], sizes = [4, 8, 16], strides = [1, 1, 1]} : vector<4x8x32xf32> to vector<4x8x16xf32>
    %202 = vector.extract_strided_slice %198 {offsets = [0, 0, 0], sizes = [4, 8, 16], strides = [1, 1, 1]} : vector<4x8x32xf32> to vector<4x8x16xf32>
    "tpu.trace_start"() <{level = 10 : i32, message = "bqd,bkd->bqk"}> : () -> ()
    %cst_86 = arith.constant dense<0.000000e+00> : vector<4x8x8xf32>
    %203 = tpu.matmul %200, %201, %cst_86 {dimension_numbers = #tpu.dot_dimension_numbers<[2], [2], [1], [1], [0, 0, 0, 1, 1, 1], [0], [0]>} : vector<4x8x16xf32>, vector<4x8x16xf32>, vector<4x8x8xf32> -> vector<4x8x8xf32>
    "tpu.trace_stop"() : () -> ()
    %cst_87 = arith.constant 2.500000e-01 : f32
    %204 = vector.broadcast %cst_87 : f32 to vector<4x8x8xf32>
    %205 = arith.mulf %203, %204 : vector<4x8x8xf32>
    %206 = vector.broadcast %26 : vector<4x1x8xf32> to vector<4x8x8xf32>
    %207 = arith.addf %205, %206 : vector<4x8x8xf32>
    %cst_88 = arith.constant dense<0xFF800000> : vector<4x8xf32>
    %208 = vector.multi_reduction <maximumf>, %207, %cst_88 [2] : vector<4x8x8xf32> to vector<4x8xf32>
    %209 = vector.shape_cast %208 : vector<4x8xf32> to vector<4x8x1xf32>
    %210 = vector.broadcast %209 : vector<4x8x1xf32> to vector<4x8x8xf32>
    %211 = arith.subf %207, %210 : vector<4x8x8xf32>
    %212 = math.exp %211 : vector<4x8x8xf32>
    %cst_89 = arith.constant dense<0.000000e+00> : vector<4x8xf32>
    %213 = vector.multi_reduction <add>, %212, %cst_89 [2] : vector<4x8x8xf32> to vector<4x8xf32>
    %214 = vector.shape_cast %213 : vector<4x8xf32> to vector<4x8x1xf32>
    %215 = tpu.reciprocal %214 {approx = true} : vector<4x8x1xf32> -> vector<4x8x1xf32>
    %216 = vector.broadcast %215 : vector<4x8x1xf32> to vector<4x8x8xf32>
    %217 = arith.mulf %212, %216 : vector<4x8x8xf32>
    "tpu.trace_start"() <{level = 10 : i32, message = "bqk,bkd->bqd"}> : () -> ()
    %cst_90 = arith.constant dense<0.000000e+00> : vector<4x8x16xf32>
    %218 = tpu.matmul %217, %202, %cst_90 {dimension_numbers = #tpu.dot_dimension_numbers<[2], [1], [1], [2], [0, 0, 0, 1, 1, 2], [0], [0]>} : vector<4x8x8xf32>, vector<4x8x16xf32>, vector<4x8x16xf32> -> vector<4x8x16xf32>
    "tpu.trace_stop"() : () -> ()
    %219 = vector.shape_cast %218 : vector<4x8x16xf32> to vector<32x16xf32>
    %220 = vector.extract_strided_slice %175 {offsets = [0, 0], sizes = [16, 32], strides = [1, 1]} : vector<32x32xf32> to vector<16x32xf32>
    %cst_91 = arith.constant dense<0.000000e+00> : vector<32x32xf32>
    %221 = tpu.matmul %219, %220, %cst_91 {dimension_numbers = #tpu.dot_dimension_numbers<[1], [0], [0], [1], [0, 0, 1, 1], [], []>} : vector<32x16xf32>, vector<16x32xf32>, vector<32x32xf32> -> vector<32x32xf32>
    %222 = arith.addf %199, %221 : vector<32x32xf32>
    %223 = vector.extract_strided_slice %194 {offsets = [0, 0, 16], sizes = [4, 8, 16], strides = [1, 1, 1]} : vector<4x8x32xf32> to vector<4x8x16xf32>
    %224 = vector.extract_strided_slice %196 {offsets = [0, 0, 16], sizes = [4, 8, 16], strides = [1, 1, 1]} : vector<4x8x32xf32> to vector<4x8x16xf32>
    %225 = vector.extract_strided_slice %198 {offsets = [0, 0, 16], sizes = [4, 8, 16], strides = [1, 1, 1]} : vector<4x8x32xf32> to vector<4x8x16xf32>
    "tpu.trace_start"() <{level = 10 : i32, message = "bqd,bkd->bqk"}> : () -> ()
    %cst_92 = arith.constant dense<0.000000e+00> : vector<4x8x8xf32>
    %226 = tpu.matmul %223, %224, %cst_92 {dimension_numbers = #tpu.dot_dimension_numbers<[2], [2], [1], [1], [0, 0, 0, 1, 1, 1], [0], [0]>} : vector<4x8x16xf32>, vector<4x8x16xf32>, vector<4x8x8xf32> -> vector<4x8x8xf32>
    "tpu.trace_stop"() : () -> ()
    %cst_93 = arith.constant 2.500000e-01 : f32
    %227 = vector.broadcast %cst_93 : f32 to vector<4x8x8xf32>
    %228 = arith.mulf %226, %227 : vector<4x8x8xf32>
    %229 = vector.broadcast %26 : vector<4x1x8xf32> to vector<4x8x8xf32>
    %230 = arith.addf %228, %229 : vector<4x8x8xf32>
    %cst_94 = arith.constant dense<0xFF800000> : vector<4x8xf32>
    %231 = vector.multi_reduction <maximumf>, %230, %cst_94 [2] : vector<4x8x8xf32> to vector<4x8xf32>
    %232 = vector.shape_cast %231 : vector<4x8xf32> to vector<4x8x1xf32>
    %233 = vector.broadcast %232 : vector<4x8x1xf32> to vector<4x8x8xf32>
    %234 = arith.subf %230, %233 : vector<4x8x8xf32>
    %235 = math.exp %234 : vector<4x8x8xf32>
    %cst_95 = arith.constant dense<0.000000e+00> : vector<4x8xf32>
    %236 = vector.multi_reduction <add>, %235, %cst_95 [2] : vector<4x8x8xf32> to vector<4x8xf32>
    %237 = vector.shape_cast %236 : vector<4x8xf32> to vector<4x8x1xf32>
    %238 = tpu.reciprocal %237 {approx = true} : vector<4x8x1xf32> -> vector<4x8x1xf32>
    %239 = vector.broadcast %238 : vector<4x8x1xf32> to vector<4x8x8xf32>
    %240 = arith.mulf %235, %239 : vector<4x8x8xf32>
    "tpu.trace_start"() <{level = 10 : i32, message = "bqk,bkd->bqd"}> : () -> ()
    %cst_96 = arith.constant dense<0.000000e+00> : vector<4x8x16xf32>
    %241 = tpu.matmul %240, %225, %cst_96 {dimension_numbers = #tpu.dot_dimension_numbers<[2], [1], [1], [2], [0, 0, 0, 1, 1, 2], [0], [0]>} : vector<4x8x8xf32>, vector<4x8x16xf32>, vector<4x8x16xf32> -> vector<4x8x16xf32>
    "tpu.trace_stop"() : () -> ()
    %242 = vector.shape_cast %241 : vector<4x8x16xf32> to vector<32x16xf32>
    %243 = vector.extract_strided_slice %175 {offsets = [16, 0], sizes = [16, 32], strides = [1, 1]} : vector<32x32xf32> to vector<16x32xf32>
    %cst_97 = arith.constant dense<0.000000e+00> : vector<32x32xf32>
    %244 = tpu.matmul %242, %243, %cst_97 {dimension_numbers = #tpu.dot_dimension_numbers<[1], [0], [0], [1], [0, 0, 1, 1], [], []>} : vector<32x16xf32>, vector<16x32xf32>, vector<32x32xf32> -> vector<32x32xf32>
    %245 = arith.addf %222, %244 : vector<32x32xf32>
    %246 = vector.broadcast %184 : vector<1x32xf32> to vector<32x32xf32>
    %247 = arith.addf %245, %246 : vector<32x32xf32>
    %248 = arith.addf %169, %247 : vector<32x32xf32>
    %cst_98 = arith.constant dense<0.000000e+00> : vector<32xf32>
    %249 = vector.multi_reduction <add>, %248, %cst_98 [1] : vector<32x32xf32> to vector<32xf32>
    %250 = vector.shape_cast %249 : vector<32xf32> to vector<32x1xf32>
    %cst_99 = arith.constant 3.200000e+01 : f32
    %251 = vector.broadcast %cst_99 : f32 to vector<32x1xf32>
    %252 = arith.divf %250, %251 : vector<32x1xf32>
    %253 = vector.broadcast %252 : vector<32x1xf32> to vector<32x32xf32>
    %254 = arith.subf %248, %253 : vector<32x32xf32>
    %255 = arith.mulf %254, %254 : vector<32x32xf32>
    %cst_100 = arith.constant dense<0.000000e+00> : vector<32xf32>
    %256 = vector.multi_reduction <add>, %255, %cst_100 [1] : vector<32x32xf32> to vector<32xf32>
    %257 = vector.shape_cast %256 : vector<32xf32> to vector<32x1xf32>
    %cst_101 = arith.constant 3.200000e+01 : f32
    %258 = vector.broadcast %cst_101 : f32 to vector<32x1xf32>
    %259 = arith.divf %257, %258 : vector<32x1xf32>
    %260 = vector.broadcast %252 : vector<32x1xf32> to vector<32x32xf32>
    %261 = arith.subf %248, %260 : vector<32x32xf32>
    %cst_102 = arith.constant 9.99999996E-13 : f32
    %262 = vector.broadcast %cst_102 : f32 to vector<32x1xf32>
    %263 = arith.addf %259, %262 : vector<32x1xf32>
    %264 = math.rsqrt %263 : vector<32x1xf32>
    %265 = vector.broadcast %264 : vector<32x1xf32> to vector<32x32xf32>
    %266 = arith.mulf %261, %265 : vector<32x32xf32>
    %267 = vector.broadcast %186 : vector<1x32xf32> to vector<32x32xf32>
    %268 = arith.mulf %266, %267 : vector<32x32xf32>
    %269 = vector.broadcast %187 : vector<1x32xf32> to vector<32x32xf32>
    %270 = arith.addf %268, %269 : vector<32x32xf32>
    %cst_103 = arith.constant dense<0.000000e+00> : vector<32x64xf32>
    %271 = tpu.matmul %270, %177, %cst_103 {dimension_numbers = #tpu.dot_dimension_numbers<[1], [0], [0], [1], [0, 0, 1, 1], [], []>} : vector<32x32xf32>, vector<32x64xf32>, vector<32x64xf32> -> vector<32x64xf32>
    %272 = vector.broadcast %179 : vector<1x64xf32> to vector<32x64xf32>
    %273 = arith.addf %271, %272 : vector<32x64xf32>
    %274 = arith.mulf %273, %273 : vector<32x64xf32>
    %275 = arith.mulf %273, %274 : vector<32x64xf32>
    %cst_104 = arith.constant 4.471500e-02 : f32
    %276 = vector.broadcast %cst_104 : f32 to vector<32x64xf32>
    %277 = arith.mulf %276, %275 : vector<32x64xf32>
    %278 = arith.addf %273, %277 : vector<32x64xf32>
    %cst_105 = arith.constant 0.797884583 : f32
    %279 = vector.broadcast %cst_105 : f32 to vector<32x64xf32>
    %280 = arith.mulf %279, %278 : vector<32x64xf32>
    %281 = math.tanh %280 : vector<32x64xf32>
    %cst_106 = arith.constant 1.000000e+00 : f32
    %282 = vector.broadcast %cst_106 : f32 to vector<32x64xf32>
    %283 = arith.addf %282, %281 : vector<32x64xf32>
    %cst_107 = arith.constant 5.000000e-01 : f32
    %284 = vector.broadcast %cst_107 : f32 to vector<32x64xf32>
    %285 = arith.mulf %284, %283 : vector<32x64xf32>
    %286 = arith.mulf %273, %285 : vector<32x64xf32>
    %cst_108 = arith.constant dense<0.000000e+00> : vector<32x32xf32>
    %287 = tpu.matmul %286, %181, %cst_108 {dimension_numbers = #tpu.dot_dimension_numbers<[1], [0], [0], [1], [0, 0, 1, 1], [], []>} : vector<32x64xf32>, vector<64x32xf32>, vector<32x32xf32> -> vector<32x32xf32>
    %288 = vector.broadcast %185 : vector<1x32xf32> to vector<32x32xf32>
    %289 = arith.addf %287, %288 : vector<32x32xf32>
    %290 = arith.addf %270, %289 : vector<32x32xf32>
    %cst_109 = arith.constant dense<0.000000e+00> : vector<32xf32>
    %291 = vector.multi_reduction <add>, %290, %cst_109 [1] : vector<32x32xf32> to vector<32xf32>
    %292 = vector.shape_cast %291 : vector<32xf32> to vector<32x1xf32>
    %cst_110 = arith.constant 3.200000e+01 : f32
    %293 = vector.broadcast %cst_110 : f32 to vector<32x1xf32>
    %294 = arith.divf %292, %293 : vector<32x1xf32>
    %295 = vector.broadcast %294 : vector<32x1xf32> to vector<32x32xf32>
    %296 = arith.subf %290, %295 : vector<32x32xf32>
    %297 = arith.mulf %296, %296 : vector<32x32xf32>
    %cst_111 = arith.constant dense<0.000000e+00> : vector<32xf32>
    %298 = vector.multi_reduction <add>, %297, %cst_111 [1] : vector<32x32xf32> to vector<32xf32>
    %299 = vector.shape_cast %298 : vector<32xf32> to vector<32x1xf32>
    %cst_112 = arith.constant 3.200000e+01 : f32
    %300 = vector.broadcast %cst_112 : f32 to vector<32x1xf32>
    %301 = arith.divf %299, %300 : vector<32x1xf32>
    %302 = vector.broadcast %294 : vector<32x1xf32> to vector<32x32xf32>
    %303 = arith.subf %290, %302 : vector<32x32xf32>
    %cst_113 = arith.constant 9.99999996E-13 : f32
    %304 = vector.broadcast %cst_113 : f32 to vector<32x1xf32>
    %305 = arith.addf %301, %304 : vector<32x1xf32>
    %306 = math.rsqrt %305 : vector<32x1xf32>
    %307 = vector.broadcast %306 : vector<32x1xf32> to vector<32x32xf32>
    %308 = arith.mulf %303, %307 : vector<32x32xf32>
    %309 = vector.broadcast %188 : vector<1x32xf32> to vector<32x32xf32>
    %310 = arith.mulf %308, %309 : vector<32x32xf32>
    %311 = vector.broadcast %189 : vector<1x32xf32> to vector<32x32xf32>
    %312 = arith.addf %310, %311 : vector<32x32xf32>
    %313 = vector.shape_cast %312 : vector<32x32xf32> to vector<4x8x32xf32>
    %314 = vector.extract_strided_slice %313 {offsets = [0, 0, 0], sizes = [4, 1, 32], strides = [1, 1, 1]} : vector<4x8x32xf32> to vector<4x1x32xf32>
    %315 = vector.shape_cast %314 : vector<4x1x32xf32> to vector<4x32xf32>
    %c0_114 = arith.constant 0 : index
    %c0_115 = arith.constant 0 : index
    %316 = vector.load %arg11[%c0_114, %c0_115] : memref<4x32xf32, #tpu.memory_space<vmem>>, vector<4x32xf32>
    tpu.vector_store %arg11[%c0_114, %c0_115], %315 {strides = array<i32>} : memref<4x32xf32, #tpu.memory_space<vmem>>, vector<4x32xf32>,
    return
  }
  func.func @transform_0(%arg0: i32) -> (i32, i32, i32) {
    %c0_i32 = arith.constant 0 : i32
    %c0_i32_0 = arith.constant 0 : i32
    %c0_i32_1 = arith.constant 0 : i32
    %c0_i32_2 = arith.constant 0 : i32
    return %c0_i32, %c0_i32_0, %c0_i32_1 : i32, i32, i32
  }
  func.func @transform_1(%arg0: i32) -> (i32, i32, i32) {
    %c0_i32 = arith.constant 0 : i32
    %c0_i32_0 = arith.constant 0 : i32
    %c0_i32_1 = arith.constant 0 : i32
    %c0_i32_2 = arith.constant 0 : i32
    return %c0_i32, %c0_i32_0, %c0_i32_1 : i32, i32, i32
  }
  func.func @transform_2(%arg0: i32) -> (i32, i32) {
    %c0_i32 = arith.constant 0 : i32
    %c0_i32_0 = arith.constant 0 : i32
    %c0_i32_1 = arith.constant 0 : i32
    return %c0_i32, %c0_i32_0 : i32, i32
  }
  func.func @transform_3(%arg0: i32) -> (i32, i32, i32) {
    %c0_i32 = arith.constant 0 : i32
    %c0_i32_0 = arith.constant 0 : i32
    %c0_i32_1 = arith.constant 0 : i32
    %c0_i32_2 = arith.constant 0 : i32
    return %c0_i32, %c0_i32_0, %c0_i32_1 : i32, i32, i32
  }
  func.func @transform_4(%arg0: i32) -> (i32, i32, i32) {
    %c0_i32 = arith.constant 0 : i32
    %c0_i32_0 = arith.constant 0 : i32
    %c0_i32_1 = arith.constant 0 : i32
    %c0_i32_2 = arith.constant 0 : i32
    return %c0_i32, %c0_i32_0, %c0_i32_1 : i32, i32, i32
  }
  func.func @transform_5(%arg0: i32) -> (i32, i32, i32) {
    %c0_i32 = arith.constant 0 : i32
    %c0_i32_0 = arith.constant 0 : i32
    %c0_i32_1 = arith.constant 0 : i32
    %c0_i32_2 = arith.constant 0 : i32
    return %c0_i32, %c0_i32_0, %c0_i32_1 : i32, i32, i32
  }
  func.func @transform_6(%arg0: i32) -> (i32, i32, i32) {
    %c0_i32 = arith.constant 0 : i32
    %c0_i32_0 = arith.constant 0 : i32
    %c0_i32_1 = arith.constant 0 : i32
    %c0_i32_2 = arith.constant 0 : i32
    return %c0_i32, %c0_i32_0, %c0_i32_1 : i32, i32, i32
  }
  func.func @transform_7(%arg0: i32) -> (i32, i32, i32) {
    %c0_i32 = arith.constant 0 : i32
    %c0_i32_0 = arith.constant 0 : i32
    %c0_i32_1 = arith.constant 0 : i32
    %c0_i32_2 = arith.constant 0 : i32
    return %c0_i32, %c0_i32_0, %c0_i32_1 : i32, i32, i32
  }
  func.func @transform_8(%arg0: i32) -> (i32, i32, i32) {
    %c0_i32 = arith.constant 0 : i32
    %c0_i32_0 = arith.constant 0 : i32
    %c0_i32_1 = arith.constant 0 : i32
    %c0_i32_2 = arith.constant 0 : i32
    return %c0_i32, %c0_i32_0, %c0_i32_1 : i32, i32, i32
  }
  func.func @transform_9(%arg0: i32) -> (i32, i32, i32) {
    %c0_i32 = arith.constant 0 : i32
    %c0_i32_0 = arith.constant 0 : i32
    %c0_i32_1 = arith.constant 0 : i32
    %c0_i32_2 = arith.constant 0 : i32
    return %c0_i32, %c0_i32_0, %c0_i32_1 : i32, i32, i32
  }
  func.func @transform_10(%arg0: i32) -> (i32, i32) {
    %c0_i32 = arith.constant 0 : i32
    %c0_i32_0 = arith.constant 0 : i32
    %c0_i32_1 = arith.constant 0 : i32
    return %c0_i32, %c0_i32_0 : i32, i32
  }
}

module attributes {stable_mosaic.version = 11 : i64} {
  func.func @_encoder_kernel(%arg0: i32, %arg1: memref<2x8x32xf32, #tpu.memory_space<vmem>>, %arg2: memref<2x1x8xf32, #tpu.memory_space<vmem>>, %arg3: memref<2x32xf32, #tpu.memory_space<vmem>>, %arg4: memref<2x32x96xf32, #tpu.memory_space<vmem>>, %arg5: memref<2x1x96xf32, #tpu.memory_space<vmem>>, %arg6: memref<2x32x32xf32, #tpu.memory_space<vmem>>, %arg7: memref<2x32x64xf32, #tpu.memory_space<vmem>>, %arg8: memref<2x1x64xf32, #tpu.memory_space<vmem>>, %arg9: memref<2x64x32xf32, #tpu.memory_space<vmem>>, %arg10: memref<2x6x32xf32, #tpu.memory_space<vmem>>, %arg11: memref<2x32xf32, #tpu.memory_space<vmem>>) attributes {dimension_semantics = [#tpu.dimension_semantics<arbitrary>], iteration_bounds = array<i64: 1>, scalar_prefetch = 0 : i64, scratch_operands = 0 : i64, tpu.core_type = #tpu.core_type<tc>, window_params = [{pipeline_mode = #tpu.pipeline_mode<synchronous>, transform_indices = @transform_0, window_bounds = array<i64: 2, 8, 32>}, {pipeline_mode = #tpu.pipeline_mode<synchronous>, transform_indices = @transform_1, window_bounds = array<i64: 2, 1, 8>}, {pipeline_mode = #tpu.pipeline_mode<synchronous>, transform_indices = @transform_2, window_bounds = array<i64: 2, 32>}, {pipeline_mode = #tpu.pipeline_mode<synchronous>, transform_indices = @transform_3, window_bounds = array<i64: 2, 32, 96>}, {pipeline_mode = #tpu.pipeline_mode<synchronous>, transform_indices = @transform_4, window_bounds = array<i64: 2, 1, 96>}, {pipeline_mode = #tpu.pipeline_mode<synchronous>, transform_indices = @transform_5, window_bounds = array<i64: 2, 32, 32>}, {pipeline_mode = #tpu.pipeline_mode<synchronous>, transform_indices = @transform_6, window_bounds = array<i64: 2, 32, 64>}, {pipeline_mode = #tpu.pipeline_mode<synchronous>, transform_indices = @transform_7, window_bounds = array<i64: 2, 1, 64>}, {pipeline_mode = #tpu.pipeline_mode<synchronous>, transform_indices = @transform_8, window_bounds = array<i64: 2, 64, 32>}, {pipeline_mode = #tpu.pipeline_mode<synchronous>, transform_indices = @transform_9, window_bounds = array<i64: 2, 6, 32>}, {pipeline_mode = #tpu.pipeline_mode<synchronous>, transform_indices = @transform_10, window_bounds = array<i64: 2, 32>}]} {
    %c0 = arith.constant 0 : index
    %c0_0 = arith.constant 0 : index
    %c0_1 = arith.constant 0 : index
    %0 = vector.load %arg1[%c0, %c0_0, %c0_1] : memref<2x8x32xf32, #tpu.memory_space<vmem>>, vector<2x8x32xf32>
    %1 = vector.shape_cast %0 : vector<2x8x32xf32> to vector<16x32xf32>
    %c0_2 = arith.constant 0 : index
    %c0_3 = arith.constant 0 : index
    %2 = vector.load %arg3[%c0_2, %c0_3] : memref<2x32xf32, #tpu.memory_space<vmem>>, vector<1x32xf32>
    %c1 = arith.constant 1 : index
    %c0_4 = arith.constant 0 : index
    %3 = vector.load %arg3[%c1, %c0_4] : memref<2x32xf32, #tpu.memory_space<vmem>>, vector<1x32xf32>
    %cst = arith.constant dense<0.000000e+00> : vector<16xf32>
    %4 = vector.multi_reduction <add>, %1, %cst [1] : vector<16x32xf32> to vector<16xf32>
    %5 = vector.shape_cast %4 : vector<16xf32> to vector<16x1xf32>
    %cst_5 = arith.constant 3.200000e+01 : f32
    %6 = vector.broadcast %cst_5 : f32 to vector<16x1xf32>
    %7 = arith.divf %5, %6 : vector<16x1xf32>
    %8 = vector.broadcast %7 : vector<16x1xf32> to vector<16x32xf32>
    %9 = arith.subf %1, %8 : vector<16x32xf32>
    %10 = arith.mulf %9, %9 : vector<16x32xf32>
    %cst_6 = arith.constant dense<0.000000e+00> : vector<16xf32>
    %11 = vector.multi_reduction <add>, %10, %cst_6 [1] : vector<16x32xf32> to vector<16xf32>
    %12 = vector.shape_cast %11 : vector<16xf32> to vector<16x1xf32>
    %cst_7 = arith.constant 3.200000e+01 : f32
    %13 = vector.broadcast %cst_7 : f32 to vector<16x1xf32>
    %14 = arith.divf %12, %13 : vector<16x1xf32>
    %15 = vector.broadcast %7 : vector<16x1xf32> to vector<16x32xf32>
    %16 = arith.subf %1, %15 : vector<16x32xf32>
    %cst_8 = arith.constant 9.99999996E-13 : f32
    %17 = vector.broadcast %cst_8 : f32 to vector<16x1xf32>
    %18 = arith.addf %14, %17 : vector<16x1xf32>
    %19 = math.rsqrt %18 : vector<16x1xf32>
    %20 = vector.broadcast %19 : vector<16x1xf32> to vector<16x32xf32>
    %21 = arith.mulf %16, %20 : vector<16x32xf32>
    %22 = vector.broadcast %2 : vector<1x32xf32> to vector<16x32xf32>
    %23 = arith.mulf %21, %22 : vector<16x32xf32>
    %24 = vector.broadcast %3 : vector<1x32xf32> to vector<16x32xf32>
    %25 = arith.addf %23, %24 : vector<16x32xf32>
    %c0_9 = arith.constant 0 : index
    %c0_10 = arith.constant 0 : index
    %c0_11 = arith.constant 0 : index
    %26 = vector.load %arg2[%c0_9, %c0_10, %c0_11] : memref<2x1x8xf32, #tpu.memory_space<vmem>>, vector<2x1x8xf32>
    %c0_12 = arith.constant 0 : index
    %c0_13 = arith.constant 0 : index
    %c0_14 = arith.constant 0 : index
    %27 = vector.load %arg4[%c0_12, %c0_13, %c0_14] : memref<2x32x96xf32, #tpu.memory_space<vmem>>, vector<1x32x96xf32>
    %28 = vector.shape_cast %27 : vector<1x32x96xf32> to vector<32x96xf32>
    %c0_15 = arith.constant 0 : index
    %c0_16 = arith.constant 0 : index
    %c0_17 = arith.constant 0 : index
    %29 = vector.load %arg5[%c0_15, %c0_16, %c0_17] : memref<2x1x96xf32, #tpu.memory_space<vmem>>, vector<1x1x96xf32>
    %30 = vector.shape_cast %29 : vector<1x1x96xf32> to vector<1x96xf32>
    %c0_18 = arith.constant 0 : index
    %c0_19 = arith.constant 0 : index
    %c0_20 = arith.constant 0 : index
    %31 = vector.load %arg6[%c0_18, %c0_19, %c0_20] : memref<2x32x32xf32, #tpu.memory_space<vmem>>, vector<1x32x32xf32>
    %32 = vector.shape_cast %31 : vector<1x32x32xf32> to vector<32x32xf32>
    %c0_21 = arith.constant 0 : index
    %c0_22 = arith.constant 0 : index
    %c0_23 = arith.constant 0 : index
    %33 = vector.load %arg7[%c0_21, %c0_22, %c0_23] : memref<2x32x64xf32, #tpu.memory_space<vmem>>, vector<1x32x64xf32>
    %34 = vector.shape_cast %33 : vector<1x32x64xf32> to vector<32x64xf32>
    %c0_24 = arith.constant 0 : index
    %c0_25 = arith.constant 0 : index
    %c0_26 = arith.constant 0 : index
    %35 = vector.load %arg8[%c0_24, %c0_25, %c0_26] : memref<2x1x64xf32, #tpu.memory_space<vmem>>, vector<1x1x64xf32>
    %36 = vector.shape_cast %35 : vector<1x1x64xf32> to vector<1x64xf32>
    %c0_27 = arith.constant 0 : index
    %c0_28 = arith.constant 0 : index
    %c0_29 = arith.constant 0 : index
    %37 = vector.load %arg9[%c0_27, %c0_28, %c0_29] : memref<2x64x32xf32, #tpu.memory_space<vmem>>, vector<1x64x32xf32>
    %38 = vector.shape_cast %37 : vector<1x64x32xf32> to vector<64x32xf32>
    %c0_30 = arith.constant 0 : index
    %c0_31 = arith.constant 0 : index
    %c0_32 = arith.constant 0 : index
    %39 = vector.load %arg10[%c0_30, %c0_31, %c0_32] : memref<2x6x32xf32, #tpu.memory_space<vmem>>, vector<1x6x32xf32>
    %40 = vector.shape_cast %39 : vector<1x6x32xf32> to vector<6x32xf32>
    %41 = vector.extract_strided_slice %40 {offsets = [0, 0], sizes = [1, 32], strides = [1, 1]} : vector<6x32xf32> to vector<1x32xf32>
    %42 = vector.extract_strided_slice %40 {offsets = [1, 0], sizes = [1, 32], strides = [1, 1]} : vector<6x32xf32> to vector<1x32xf32>
    %43 = vector.extract_strided_slice %40 {offsets = [2, 0], sizes = [1, 32], strides = [1, 1]} : vector<6x32xf32> to vector<1x32xf32>
    %44 = vector.extract_strided_slice %40 {offsets = [3, 0], sizes = [1, 32], strides = [1, 1]} : vector<6x32xf32> to vector<1x32xf32>
    %45 = vector.extract_strided_slice %40 {offsets = [4, 0], sizes = [1, 32], strides = [1, 1]} : vector<6x32xf32> to vector<1x32xf32>
    %46 = vector.extract_strided_slice %40 {offsets = [5, 0], sizes = [1, 32], strides = [1, 1]} : vector<6x32xf32> to vector<1x32xf32>
    %cst_33 = arith.constant dense<0.000000e+00> : vector<16x96xf32>
    %47 = tpu.matmul %25, %28, %cst_33 {dimension_numbers = #tpu.dot_dimension_numbers<[1], [0], [0], [1], [0, 0, 1, 1], [], []>} : vector<16x32xf32>, vector<32x96xf32>, vector<16x96xf32> -> vector<16x96xf32>
    %48 = vector.broadcast %30 : vector<1x96xf32> to vector<16x96xf32>
    %49 = arith.addf %47, %48 : vector<16x96xf32>
    %50 = vector.extract_strided_slice %49 {offsets = [0, 0], sizes = [16, 32], strides = [1, 1]} : vector<16x96xf32> to vector<16x32xf32>
    %51 = vector.shape_cast %50 : vector<16x32xf32> to vector<2x8x32xf32>
    %52 = vector.extract_strided_slice %49 {offsets = [0, 32], sizes = [16, 32], strides = [1, 1]} : vector<16x96xf32> to vector<16x32xf32>
    %53 = vector.shape_cast %52 : vector<16x32xf32> to vector<2x8x32xf32>
    %54 = vector.extract_strided_slice %49 {offsets = [0, 64], sizes = [16, 32], strides = [1, 1]} : vector<16x96xf32> to vector<16x32xf32>
    %55 = vector.shape_cast %54 : vector<16x32xf32> to vector<2x8x32xf32>
    %cst_34 = arith.constant 0.000000e+00 : f32
    %56 = vector.broadcast %cst_34 : f32 to vector<16x32xf32>
    %57 = vector.extract_strided_slice %51 {offsets = [0, 0, 0], sizes = [2, 8, 16], strides = [1, 1, 1]} : vector<2x8x32xf32> to vector<2x8x16xf32>
    %58 = vector.extract_strided_slice %53 {offsets = [0, 0, 0], sizes = [2, 8, 16], strides = [1, 1, 1]} : vector<2x8x32xf32> to vector<2x8x16xf32>
    %59 = vector.extract_strided_slice %55 {offsets = [0, 0, 0], sizes = [2, 8, 16], strides = [1, 1, 1]} : vector<2x8x32xf32> to vector<2x8x16xf32>
    "tpu.trace_start"() <{level = 10 : i32, message = "bqd,bkd->bqk"}> : () -> ()
    %cst_35 = arith.constant dense<0.000000e+00> : vector<2x8x8xf32>
    %60 = tpu.matmul %57, %58, %cst_35 {dimension_numbers = #tpu.dot_dimension_numbers<[2], [2], [1], [1], [0, 0, 0, 1, 1, 1], [0], [0]>} : vector<2x8x16xf32>, vector<2x8x16xf32>, vector<2x8x8xf32> -> vector<2x8x8xf32>
    "tpu.trace_stop"() : () -> ()
    %cst_36 = arith.constant 2.500000e-01 : f32
    %61 = vector.broadcast %cst_36 : f32 to vector<2x8x8xf32>
    %62 = arith.mulf %60, %61 : vector<2x8x8xf32>
    %63 = vector.broadcast %26 : vector<2x1x8xf32> to vector<2x8x8xf32>
    %64 = arith.addf %62, %63 : vector<2x8x8xf32>
    %cst_37 = arith.constant dense<0xFF800000> : vector<2x8xf32>
    %65 = vector.multi_reduction <maximumf>, %64, %cst_37 [2] : vector<2x8x8xf32> to vector<2x8xf32>
    %66 = vector.shape_cast %65 : vector<2x8xf32> to vector<2x8x1xf32>
    %67 = vector.broadcast %66 : vector<2x8x1xf32> to vector<2x8x8xf32>
    %68 = arith.subf %64, %67 : vector<2x8x8xf32>
    %69 = math.exp %68 : vector<2x8x8xf32>
    %cst_38 = arith.constant dense<0.000000e+00> : vector<2x8xf32>
    %70 = vector.multi_reduction <add>, %69, %cst_38 [2] : vector<2x8x8xf32> to vector<2x8xf32>
    %71 = vector.shape_cast %70 : vector<2x8xf32> to vector<2x8x1xf32>
    %72 = tpu.reciprocal %71 {approx = true} : vector<2x8x1xf32> -> vector<2x8x1xf32>
    %73 = vector.broadcast %72 : vector<2x8x1xf32> to vector<2x8x8xf32>
    %74 = arith.mulf %69, %73 : vector<2x8x8xf32>
    "tpu.trace_start"() <{level = 10 : i32, message = "bqk,bkd->bqd"}> : () -> ()
    %cst_39 = arith.constant dense<0.000000e+00> : vector<2x8x16xf32>
    %75 = tpu.matmul %74, %59, %cst_39 {dimension_numbers = #tpu.dot_dimension_numbers<[2], [1], [1], [2], [0, 0, 0, 1, 1, 2], [0], [0]>} : vector<2x8x8xf32>, vector<2x8x16xf32>, vector<2x8x16xf32> -> vector<2x8x16xf32>
    "tpu.trace_stop"() : () -> ()
    %76 = vector.shape_cast %75 : vector<2x8x16xf32> to vector<16x16xf32>
    %77 = vector.extract_strided_slice %32 {offsets = [0, 0], sizes = [16, 32], strides = [1, 1]} : vector<32x32xf32> to vector<16x32xf32>
    %cst_40 = arith.constant dense<0.000000e+00> : vector<16x32xf32>
    %78 = tpu.matmul %76, %77, %cst_40 {dimension_numbers = #tpu.dot_dimension_numbers<[1], [0], [0], [1], [0, 0, 1, 1], [], []>} : vector<16x16xf32>, vector<16x32xf32>, vector<16x32xf32> -> vector<16x32xf32>
    %79 = arith.addf %56, %78 : vector<16x32xf32>
    %80 = vector.extract_strided_slice %51 {offsets = [0, 0, 16], sizes = [2, 8, 16], strides = [1, 1, 1]} : vector<2x8x32xf32> to vector<2x8x16xf32>
    %81 = vector.extract_strided_slice %53 {offsets = [0, 0, 16], sizes = [2, 8, 16], strides = [1, 1, 1]} : vector<2x8x32xf32> to vector<2x8x16xf32>
    %82 = vector.extract_strided_slice %55 {offsets = [0, 0, 16], sizes = [2, 8, 16], strides = [1, 1, 1]} : vector<2x8x32xf32> to vector<2x8x16xf32>
    "tpu.trace_start"() <{level = 10 : i32, message = "bqd,bkd->bqk"}> : () -> ()
    %cst_41 = arith.constant dense<0.000000e+00> : vector<2x8x8xf32>
    %83 = tpu.matmul %80, %81, %cst_41 {dimension_numbers = #tpu.dot_dimension_numbers<[2], [2], [1], [1], [0, 0, 0, 1, 1, 1], [0], [0]>} : vector<2x8x16xf32>, vector<2x8x16xf32>, vector<2x8x8xf32> -> vector<2x8x8xf32>
    "tpu.trace_stop"() : () -> ()
    %cst_42 = arith.constant 2.500000e-01 : f32
    %84 = vector.broadcast %cst_42 : f32 to vector<2x8x8xf32>
    %85 = arith.mulf %83, %84 : vector<2x8x8xf32>
    %86 = vector.broadcast %26 : vector<2x1x8xf32> to vector<2x8x8xf32>
    %87 = arith.addf %85, %86 : vector<2x8x8xf32>
    %cst_43 = arith.constant dense<0xFF800000> : vector<2x8xf32>
    %88 = vector.multi_reduction <maximumf>, %87, %cst_43 [2] : vector<2x8x8xf32> to vector<2x8xf32>
    %89 = vector.shape_cast %88 : vector<2x8xf32> to vector<2x8x1xf32>
    %90 = vector.broadcast %89 : vector<2x8x1xf32> to vector<2x8x8xf32>
    %91 = arith.subf %87, %90 : vector<2x8x8xf32>
    %92 = math.exp %91 : vector<2x8x8xf32>
    %cst_44 = arith.constant dense<0.000000e+00> : vector<2x8xf32>
    %93 = vector.multi_reduction <add>, %92, %cst_44 [2] : vector<2x8x8xf32> to vector<2x8xf32>
    %94 = vector.shape_cast %93 : vector<2x8xf32> to vector<2x8x1xf32>
    %95 = tpu.reciprocal %94 {approx = true} : vector<2x8x1xf32> -> vector<2x8x1xf32>
    %96 = vector.broadcast %95 : vector<2x8x1xf32> to vector<2x8x8xf32>
    %97 = arith.mulf %92, %96 : vector<2x8x8xf32>
    "tpu.trace_start"() <{level = 10 : i32, message = "bqk,bkd->bqd"}> : () -> ()
    %cst_45 = arith.constant dense<0.000000e+00> : vector<2x8x16xf32>
    %98 = tpu.matmul %97, %82, %cst_45 {dimension_numbers = #tpu.dot_dimension_numbers<[2], [1], [1], [2], [0, 0, 0, 1, 1, 2], [0], [0]>} : vector<2x8x8xf32>, vector<2x8x16xf32>, vector<2x8x16xf32> -> vector<2x8x16xf32>
    "tpu.trace_stop"() : () -> ()
    %99 = vector.shape_cast %98 : vector<2x8x16xf32> to vector<16x16xf32>
    %100 = vector.extract_strided_slice %32 {offsets = [16, 0], sizes = [16, 32], strides = [1, 1]} : vector<32x32xf32> to vector<16x32xf32>
    %cst_46 = arith.constant dense<0.000000e+00> : vector<16x32xf32>
    %101 = tpu.matmul %99, %100, %cst_46 {dimension_numbers = #tpu.dot_dimension_numbers<[1], [0], [0], [1], [0, 0, 1, 1], [], []>} : vector<16x16xf32>, vector<16x32xf32>, vector<16x32xf32> -> vector<16x32xf32>
    %102 = arith.addf %79, %101 : vector<16x32xf32>
    %103 = vector.broadcast %41 : vector<1x32xf32> to vector<16x32xf32>
    %104 = arith.addf %102, %103 : vector<16x32xf32>
    %105 = arith.addf %25, %104 : vector<16x32xf32>
    %cst_47 = arith.constant dense<0.000000e+00> : vector<16xf32>
    %106 = vector.multi_reduction <add>, %105, %cst_47 [1] : vector<16x32xf32> to vector<16xf32>
    %107 = vector.shape_cast %106 : vector<16xf32> to vector<16x1xf32>
    %cst_48 = arith.constant 3.200000e+01 : f32
    %108 = vector.broadcast %cst_48 : f32 to vector<16x1xf32>
    %109 = arith.divf %107, %108 : vector<16x1xf32>
    %110 = vector.broadcast %109 : vector<16x1xf32> to vector<16x32xf32>
    %111 = arith.subf %105, %110 : vector<16x32xf32>
    %112 = arith.mulf %111, %111 : vector<16x32xf32>
    %cst_49 = arith.constant dense<0.000000e+00> : vector<16xf32>
    %113 = vector.multi_reduction <add>, %112, %cst_49 [1] : vector<16x32xf32> to vector<16xf32>
    %114 = vector.shape_cast %113 : vector<16xf32> to vector<16x1xf32>
    %cst_50 = arith.constant 3.200000e+01 : f32
    %115 = vector.broadcast %cst_50 : f32 to vector<16x1xf32>
    %116 = arith.divf %114, %115 : vector<16x1xf32>
    %117 = vector.broadcast %109 : vector<16x1xf32> to vector<16x32xf32>
    %118 = arith.subf %105, %117 : vector<16x32xf32>
    %cst_51 = arith.constant 9.99999996E-13 : f32
    %119 = vector.broadcast %cst_51 : f32 to vector<16x1xf32>
    %120 = arith.addf %116, %119 : vector<16x1xf32>
    %121 = math.rsqrt %120 : vector<16x1xf32>
    %122 = vector.broadcast %121 : vector<16x1xf32> to vector<16x32xf32>
    %123 = arith.mulf %118, %122 : vector<16x32xf32>
    %124 = vector.broadcast %43 : vector<1x32xf32> to vector<16x32xf32>
    %125 = arith.mulf %123, %124 : vector<16x32xf32>
    %126 = vector.broadcast %44 : vector<1x32xf32> to vector<16x32xf32>
    %127 = arith.addf %125, %126 : vector<16x32xf32>
    %cst_52 = arith.constant dense<0.000000e+00> : vector<16x64xf32>
    %128 = tpu.matmul %127, %34, %cst_52 {dimension_numbers = #tpu.dot_dimension_numbers<[1], [0], [0], [1], [0, 0, 1, 1], [], []>} : vector<16x32xf32>, vector<32x64xf32>, vector<16x64xf32> -> vector<16x64xf32>
    %129 = vector.broadcast %36 : vector<1x64xf32> to vector<16x64xf32>
    %130 = arith.addf %128, %129 : vector<16x64xf32>
    %131 = arith.mulf %130, %130 : vector<16x64xf32>
    %132 = arith.mulf %130, %131 : vector<16x64xf32>
    %cst_53 = arith.constant 4.471500e-02 : f32
    %133 = vector.broadcast %cst_53 : f32 to vector<16x64xf32>
    %134 = arith.mulf %133, %132 : vector<16x64xf32>
    %135 = arith.addf %130, %134 : vector<16x64xf32>
    %cst_54 = arith.constant 0.797884583 : f32
    %136 = vector.broadcast %cst_54 : f32 to vector<16x64xf32>
    %137 = arith.mulf %136, %135 : vector<16x64xf32>
    %138 = math.tanh %137 : vector<16x64xf32>
    %cst_55 = arith.constant 1.000000e+00 : f32
    %139 = vector.broadcast %cst_55 : f32 to vector<16x64xf32>
    %140 = arith.addf %139, %138 : vector<16x64xf32>
    %cst_56 = arith.constant 5.000000e-01 : f32
    %141 = vector.broadcast %cst_56 : f32 to vector<16x64xf32>
    %142 = arith.mulf %141, %140 : vector<16x64xf32>
    %143 = arith.mulf %130, %142 : vector<16x64xf32>
    %cst_57 = arith.constant dense<0.000000e+00> : vector<16x32xf32>
    %144 = tpu.matmul %143, %38, %cst_57 {dimension_numbers = #tpu.dot_dimension_numbers<[1], [0], [0], [1], [0, 0, 1, 1], [], []>} : vector<16x64xf32>, vector<64x32xf32>, vector<16x32xf32> -> vector<16x32xf32>
    %145 = vector.broadcast %42 : vector<1x32xf32> to vector<16x32xf32>
    %146 = arith.addf %144, %145 : vector<16x32xf32>
    %147 = arith.addf %127, %146 : vector<16x32xf32>
    %cst_58 = arith.constant dense<0.000000e+00> : vector<16xf32>
    %148 = vector.multi_reduction <add>, %147, %cst_58 [1] : vector<16x32xf32> to vector<16xf32>
    %149 = vector.shape_cast %148 : vector<16xf32> to vector<16x1xf32>
    %cst_59 = arith.constant 3.200000e+01 : f32
    %150 = vector.broadcast %cst_59 : f32 to vector<16x1xf32>
    %151 = arith.divf %149, %150 : vector<16x1xf32>
    %152 = vector.broadcast %151 : vector<16x1xf32> to vector<16x32xf32>
    %153 = arith.subf %147, %152 : vector<16x32xf32>
    %154 = arith.mulf %153, %153 : vector<16x32xf32>
    %cst_60 = arith.constant dense<0.000000e+00> : vector<16xf32>
    %155 = vector.multi_reduction <add>, %154, %cst_60 [1] : vector<16x32xf32> to vector<16xf32>
    %156 = vector.shape_cast %155 : vector<16xf32> to vector<16x1xf32>
    %cst_61 = arith.constant 3.200000e+01 : f32
    %157 = vector.broadcast %cst_61 : f32 to vector<16x1xf32>
    %158 = arith.divf %156, %157 : vector<16x1xf32>
    %159 = vector.broadcast %151 : vector<16x1xf32> to vector<16x32xf32>
    %160 = arith.subf %147, %159 : vector<16x32xf32>
    %cst_62 = arith.constant 9.99999996E-13 : f32
    %161 = vector.broadcast %cst_62 : f32 to vector<16x1xf32>
    %162 = arith.addf %158, %161 : vector<16x1xf32>
    %163 = math.rsqrt %162 : vector<16x1xf32>
    %164 = vector.broadcast %163 : vector<16x1xf32> to vector<16x32xf32>
    %165 = arith.mulf %160, %164 : vector<16x32xf32>
    %166 = vector.broadcast %45 : vector<1x32xf32> to vector<16x32xf32>
    %167 = arith.mulf %165, %166 : vector<16x32xf32>
    %168 = vector.broadcast %46 : vector<1x32xf32> to vector<16x32xf32>
    %169 = arith.addf %167, %168 : vector<16x32xf32>
    %c1_63 = arith.constant 1 : index
    %c0_64 = arith.constant 0 : index
    %c0_65 = arith.constant 0 : index
    %170 = vector.load %arg4[%c1_63, %c0_64, %c0_65] : memref<2x32x96xf32, #tpu.memory_space<vmem>>, vector<1x32x96xf32>
    %171 = vector.shape_cast %170 : vector<1x32x96xf32> to vector<32x96xf32>
    %c1_66 = arith.constant 1 : index
    %c0_67 = arith.constant 0 : index
    %c0_68 = arith.constant 0 : index
    %172 = vector.load %arg5[%c1_66, %c0_67, %c0_68] : memref<2x1x96xf32, #tpu.memory_space<vmem>>, vector<1x1x96xf32>
    %173 = vector.shape_cast %172 : vector<1x1x96xf32> to vector<1x96xf32>
    %c1_69 = arith.constant 1 : index
    %c0_70 = arith.constant 0 : index
    %c0_71 = arith.constant 0 : index
    %174 = vector.load %arg6[%c1_69, %c0_70, %c0_71] : memref<2x32x32xf32, #tpu.memory_space<vmem>>, vector<1x32x32xf32>
    %175 = vector.shape_cast %174 : vector<1x32x32xf32> to vector<32x32xf32>
    %c1_72 = arith.constant 1 : index
    %c0_73 = arith.constant 0 : index
    %c0_74 = arith.constant 0 : index
    %176 = vector.load %arg7[%c1_72, %c0_73, %c0_74] : memref<2x32x64xf32, #tpu.memory_space<vmem>>, vector<1x32x64xf32>
    %177 = vector.shape_cast %176 : vector<1x32x64xf32> to vector<32x64xf32>
    %c1_75 = arith.constant 1 : index
    %c0_76 = arith.constant 0 : index
    %c0_77 = arith.constant 0 : index
    %178 = vector.load %arg8[%c1_75, %c0_76, %c0_77] : memref<2x1x64xf32, #tpu.memory_space<vmem>>, vector<1x1x64xf32>
    %179 = vector.shape_cast %178 : vector<1x1x64xf32> to vector<1x64xf32>
    %c1_78 = arith.constant 1 : index
    %c0_79 = arith.constant 0 : index
    %c0_80 = arith.constant 0 : index
    %180 = vector.load %arg9[%c1_78, %c0_79, %c0_80] : memref<2x64x32xf32, #tpu.memory_space<vmem>>, vector<1x64x32xf32>
    %181 = vector.shape_cast %180 : vector<1x64x32xf32> to vector<64x32xf32>
    %c1_81 = arith.constant 1 : index
    %c0_82 = arith.constant 0 : index
    %c0_83 = arith.constant 0 : index
    %182 = vector.load %arg10[%c1_81, %c0_82, %c0_83] : memref<2x6x32xf32, #tpu.memory_space<vmem>>, vector<1x6x32xf32>
    %183 = vector.shape_cast %182 : vector<1x6x32xf32> to vector<6x32xf32>
    %184 = vector.extract_strided_slice %183 {offsets = [0, 0], sizes = [1, 32], strides = [1, 1]} : vector<6x32xf32> to vector<1x32xf32>
    %185 = vector.extract_strided_slice %183 {offsets = [1, 0], sizes = [1, 32], strides = [1, 1]} : vector<6x32xf32> to vector<1x32xf32>
    %186 = vector.extract_strided_slice %183 {offsets = [2, 0], sizes = [1, 32], strides = [1, 1]} : vector<6x32xf32> to vector<1x32xf32>
    %187 = vector.extract_strided_slice %183 {offsets = [3, 0], sizes = [1, 32], strides = [1, 1]} : vector<6x32xf32> to vector<1x32xf32>
    %188 = vector.extract_strided_slice %183 {offsets = [4, 0], sizes = [1, 32], strides = [1, 1]} : vector<6x32xf32> to vector<1x32xf32>
    %189 = vector.extract_strided_slice %183 {offsets = [5, 0], sizes = [1, 32], strides = [1, 1]} : vector<6x32xf32> to vector<1x32xf32>
    %cst_84 = arith.constant dense<0.000000e+00> : vector<16x96xf32>
    %190 = tpu.matmul %169, %171, %cst_84 {dimension_numbers = #tpu.dot_dimension_numbers<[1], [0], [0], [1], [0, 0, 1, 1], [], []>} : vector<16x32xf32>, vector<32x96xf32>, vector<16x96xf32> -> vector<16x96xf32>
    %191 = vector.broadcast %173 : vector<1x96xf32> to vector<16x96xf32>
    %192 = arith.addf %190, %191 : vector<16x96xf32>
    %193 = vector.extract_strided_slice %192 {offsets = [0, 0], sizes = [16, 32], strides = [1, 1]} : vector<16x96xf32> to vector<16x32xf32>
    %194 = vector.shape_cast %193 : vector<16x32xf32> to vector<2x8x32xf32>
    %195 = vector.extract_strided_slice %192 {offsets = [0, 32], sizes = [16, 32], strides = [1, 1]} : vector<16x96xf32> to vector<16x32xf32>
    %196 = vector.shape_cast %195 : vector<16x32xf32> to vector<2x8x32xf32>
    %197 = vector.extract_strided_slice %192 {offsets = [0, 64], sizes = [16, 32], strides = [1, 1]} : vector<16x96xf32> to vector<16x32xf32>
    %198 = vector.shape_cast %197 : vector<16x32xf32> to vector<2x8x32xf32>
    %cst_85 = arith.constant 0.000000e+00 : f32
    %199 = vector.broadcast %cst_85 : f32 to vector<16x32xf32>
    %200 = vector.extract_strided_slice %194 {offsets = [0, 0, 0], sizes = [2, 8, 16], strides = [1, 1, 1]} : vector<2x8x32xf32> to vector<2x8x16xf32>
    %201 = vector.extract_strided_slice %196 {offsets = [0, 0, 0], sizes = [2, 8, 16], strides = [1, 1, 1]} : vector<2x8x32xf32> to vector<2x8x16xf32>
    %202 = vector.extract_strided_slice %198 {offsets = [0, 0, 0], sizes = [2, 8, 16], strides = [1, 1, 1]} : vector<2x8x32xf32> to vector<2x8x16xf32>
    "tpu.trace_start"() <{level = 10 : i32, message = "bqd,bkd->bqk"}> : () -> ()
    %cst_86 = arith.constant dense<0.000000e+00> : vector<2x8x8xf32>
    %203 = tpu.matmul %200, %201, %cst_86 {dimension_numbers = #tpu.dot_dimension_numbers<[2], [2], [1], [1], [0, 0, 0, 1, 1, 1], [0], [0]>} : vector<2x8x16xf32>, vector<2x8x16xf32>, vector<2x8x8xf32> -> vector<2x8x8xf32>
    "tpu.trace_stop"() : () -> ()
    %cst_87 = arith.constant 2.500000e-01 : f32
    %204 = vector.broadcast %cst_87 : f32 to vector<2x8x8xf32>
    %205 = arith.mulf %203, %204 : vector<2x8x8xf32>
    %206 = vector.broadcast %26 : vector<2x1x8xf32> to vector<2x8x8xf32>
    %207 = arith.addf %205, %206 : vector<2x8x8xf32>
    %cst_88 = arith.constant dense<0xFF800000> : vector<2x8xf32>
    %208 = vector.multi_reduction <maximumf>, %207, %cst_88 [2] : vector<2x8x8xf32> to vector<2x8xf32>
    %209 = vector.shape_cast %208 : vector<2x8xf32> to vector<2x8x1xf32>
    %210 = vector.broadcast %209 : vector<2x8x1xf32> to vector<2x8x8xf32>
    %211 = arith.subf %207, %210 : vector<2x8x8xf32>
    %212 = math.exp %211 : vector<2x8x8xf32>
    %cst_89 = arith.constant dense<0.000000e+00> : vector<2x8xf32>
    %213 = vector.multi_reduction <add>, %212, %cst_89 [2] : vector<2x8x8xf32> to vector<2x8xf32>
    %214 = vector.shape_cast %213 : vector<2x8xf32> to vector<2x8x1xf32>
    %215 = tpu.reciprocal %214 {approx = true} : vector<2x8x1xf32> -> vector<2x8x1xf32>
    %216 = vector.broadcast %215 : vector<2x8x1xf32> to vector<2x8x8xf32>
    %217 = arith.mulf %212, %216 : vector<2x8x8xf32>
    "tpu.trace_start"() <{level = 10 : i32, message = "bqk,bkd->bqd"}> : () -> ()
    %cst_90 = arith.constant dense<0.000000e+00> : vector<2x8x16xf32>
    %218 = tpu.matmul %217, %202, %cst_90 {dimension_numbers = #tpu.dot_dimension_numbers<[2], [1], [1], [2], [0, 0, 0, 1, 1, 2], [0], [0]>} : vector<2x8x8xf32>, vector<2x8x16xf32>, vector<2x8x16xf32> -> vector<2x8x16xf32>
    "tpu.trace_stop"() : () -> ()
    %219 = vector.shape_cast %218 : vector<2x8x16xf32> to vector<16x16xf32>
    %220 = vector.extract_strided_slice %175 {offsets = [0, 0], sizes = [16, 32], strides = [1, 1]} : vector<32x32xf32> to vector<16x32xf32>
    %cst_91 = arith.constant dense<0.000000e+00> : vector<16x32xf32>
    %221 = tpu.matmul %219, %220, %cst_91 {dimension_numbers = #tpu.dot_dimension_numbers<[1], [0], [0], [1], [0, 0, 1, 1], [], []>} : vector<16x16xf32>, vector<16x32xf32>, vector<16x32xf32> -> vector<16x32xf32>
    %222 = arith.addf %199, %221 : vector<16x32xf32>
    %223 = vector.extract_strided_slice %194 {offsets = [0, 0, 16], sizes = [2, 8, 16], strides = [1, 1, 1]} : vector<2x8x32xf32> to vector<2x8x16xf32>
    %224 = vector.extract_strided_slice %196 {offsets = [0, 0, 16], sizes = [2, 8, 16], strides = [1, 1, 1]} : vector<2x8x32xf32> to vector<2x8x16xf32>
    %225 = vector.extract_strided_slice %198 {offsets = [0, 0, 16], sizes = [2, 8, 16], strides = [1, 1, 1]} : vector<2x8x32xf32> to vector<2x8x16xf32>
    "tpu.trace_start"() <{level = 10 : i32, message = "bqd,bkd->bqk"}> : () -> ()
    %cst_92 = arith.constant dense<0.000000e+00> : vector<2x8x8xf32>
    %226 = tpu.matmul %223, %224, %cst_92 {dimension_numbers = #tpu.dot_dimension_numbers<[2], [2], [1], [1], [0, 0, 0, 1, 1, 1], [0], [0]>} : vector<2x8x16xf32>, vector<2x8x16xf32>, vector<2x8x8xf32> -> vector<2x8x8xf32>
    "tpu.trace_stop"() : () -> ()
    %cst_93 = arith.constant 2.500000e-01 : f32
    %227 = vector.broadcast %cst_93 : f32 to vector<2x8x8xf32>
    %228 = arith.mulf %226, %227 : vector<2x8x8xf32>
    %229 = vector.broadcast %26 : vector<2x1x8xf32> to vector<2x8x8xf32>
    %230 = arith.addf %228, %229 : vector<2x8x8xf32>
    %cst_94 = arith.constant dense<0xFF800000> : vector<2x8xf32>
    %231 = vector.multi_reduction <maximumf>, %230, %cst_94 [2] : vector<2x8x8xf32> to vector<2x8xf32>
    %232 = vector.shape_cast %231 : vector<2x8xf32> to vector<2x8x1xf32>
    %233 = vector.broadcast %232 : vector<2x8x1xf32> to vector<2x8x8xf32>
    %234 = arith.subf %230, %233 : vector<2x8x8xf32>
    %235 = math.exp %234 : vector<2x8x8xf32>
    %cst_95 = arith.constant dense<0.000000e+00> : vector<2x8xf32>
    %236 = vector.multi_reduction <add>, %235, %cst_95 [2] : vector<2x8x8xf32> to vector<2x8xf32>
    %237 = vector.shape_cast %236 : vector<2x8xf32> to vector<2x8x1xf32>
    %238 = tpu.reciprocal %237 {approx = true} : vector<2x8x1xf32> -> vector<2x8x1xf32>
    %239 = vector.broadcast %238 : vector<2x8x1xf32> to vector<2x8x8xf32>
    %240 = arith.mulf %235, %239 : vector<2x8x8xf32>
    "tpu.trace_start"() <{level = 10 : i32, message = "bqk,bkd->bqd"}> : () -> ()
    %cst_96 = arith.constant dense<0.000000e+00> : vector<2x8x16xf32>
    %241 = tpu.matmul %240, %225, %cst_96 {dimension_numbers = #tpu.dot_dimension_numbers<[2], [1], [1], [2], [0, 0, 0, 1, 1, 2], [0], [0]>} : vector<2x8x8xf32>, vector<2x8x16xf32>, vector<2x8x16xf32> -> vector<2x8x16xf32>
    "tpu.trace_stop"() : () -> ()
    %242 = vector.shape_cast %241 : vector<2x8x16xf32> to vector<16x16xf32>
    %243 = vector.extract_strided_slice %175 {offsets = [16, 0], sizes = [16, 32], strides = [1, 1]} : vector<32x32xf32> to vector<16x32xf32>
    %cst_97 = arith.constant dense<0.000000e+00> : vector<16x32xf32>
    %244 = tpu.matmul %242, %243, %cst_97 {dimension_numbers = #tpu.dot_dimension_numbers<[1], [0], [0], [1], [0, 0, 1, 1], [], []>} : vector<16x16xf32>, vector<16x32xf32>, vector<16x32xf32> -> vector<16x32xf32>
    %245 = arith.addf %222, %244 : vector<16x32xf32>
    %246 = vector.broadcast %184 : vector<1x32xf32> to vector<16x32xf32>
    %247 = arith.addf %245, %246 : vector<16x32xf32>
    %248 = arith.addf %169, %247 : vector<16x32xf32>
    %cst_98 = arith.constant dense<0.000000e+00> : vector<16xf32>
    %249 = vector.multi_reduction <add>, %248, %cst_98 [1] : vector<16x32xf32> to vector<16xf32>
    %250 = vector.shape_cast %249 : vector<16xf32> to vector<16x1xf32>
    %cst_99 = arith.constant 3.200000e+01 : f32
    %251 = vector.broadcast %cst_99 : f32 to vector<16x1xf32>
    %252 = arith.divf %250, %251 : vector<16x1xf32>
    %253 = vector.broadcast %252 : vector<16x1xf32> to vector<16x32xf32>
    %254 = arith.subf %248, %253 : vector<16x32xf32>
    %255 = arith.mulf %254, %254 : vector<16x32xf32>
    %cst_100 = arith.constant dense<0.000000e+00> : vector<16xf32>
    %256 = vector.multi_reduction <add>, %255, %cst_100 [1] : vector<16x32xf32> to vector<16xf32>
    %257 = vector.shape_cast %256 : vector<16xf32> to vector<16x1xf32>
    %cst_101 = arith.constant 3.200000e+01 : f32
    %258 = vector.broadcast %cst_101 : f32 to vector<16x1xf32>
    %259 = arith.divf %257, %258 : vector<16x1xf32>
    %260 = vector.broadcast %252 : vector<16x1xf32> to vector<16x32xf32>
    %261 = arith.subf %248, %260 : vector<16x32xf32>
    %cst_102 = arith.constant 9.99999996E-13 : f32
    %262 = vector.broadcast %cst_102 : f32 to vector<16x1xf32>
    %263 = arith.addf %259, %262 : vector<16x1xf32>
    %264 = math.rsqrt %263 : vector<16x1xf32>
    %265 = vector.broadcast %264 : vector<16x1xf32> to vector<16x32xf32>
    %266 = arith.mulf %261, %265 : vector<16x32xf32>
    %267 = vector.broadcast %186 : vector<1x32xf32> to vector<16x32xf32>
    %268 = arith.mulf %266, %267 : vector<16x32xf32>
    %269 = vector.broadcast %187 : vector<1x32xf32> to vector<16x32xf32>
    %270 = arith.addf %268, %269 : vector<16x32xf32>
    %cst_103 = arith.constant dense<0.000000e+00> : vector<16x64xf32>
    %271 = tpu.matmul %270, %177, %cst_103 {dimension_numbers = #tpu.dot_dimension_numbers<[1], [0], [0], [1], [0, 0, 1, 1], [], []>} : vector<16x32xf32>, vector<32x64xf32>, vector<16x64xf32> -> vector<16x64xf32>
    %272 = vector.broadcast %179 : vector<1x64xf32> to vector<16x64xf32>
    %273 = arith.addf %271, %272 : vector<16x64xf32>
    %274 = arith.mulf %273, %273 : vector<16x64xf32>
    %275 = arith.mulf %273, %274 : vector<16x64xf32>
    %cst_104 = arith.constant 4.471500e-02 : f32
    %276 = vector.broadcast %cst_104 : f32 to vector<16x64xf32>
    %277 = arith.mulf %276, %275 : vector<16x64xf32>
    %278 = arith.addf %273, %277 : vector<16x64xf32>
    %cst_105 = arith.constant 0.797884583 : f32
    %279 = vector.broadcast %cst_105 : f32 to vector<16x64xf32>
    %280 = arith.mulf %279, %278 : vector<16x64xf32>
    %281 = math.tanh %280 : vector<16x64xf32>
    %cst_106 = arith.constant 1.000000e+00 : f32
    %282 = vector.broadcast %cst_106 : f32 to vector<16x64xf32>
    %283 = arith.addf %282, %281 : vector<16x64xf32>
    %cst_107 = arith.constant 5.000000e-01 : f32
    %284 = vector.broadcast %cst_107 : f32 to vector<16x64xf32>
    %285 = arith.mulf %284, %283 : vector<16x64xf32>
    %286 = arith.mulf %273, %285 : vector<16x64xf32>
    %cst_108 = arith.constant dense<0.000000e+00> : vector<16x32xf32>
    %287 = tpu.matmul %286, %181, %cst_108 {dimension_numbers = #tpu.dot_dimension_numbers<[1], [0], [0], [1], [0, 0, 1, 1], [], []>} : vector<16x64xf32>, vector<64x32xf32>, vector<16x32xf32> -> vector<16x32xf32>
    %288 = vector.broadcast %185 : vector<1x32xf32> to vector<16x32xf32>
    %289 = arith.addf %287, %288 : vector<16x32xf32>
    %290 = arith.addf %270, %289 : vector<16x32xf32>
    %cst_109 = arith.constant dense<0.000000e+00> : vector<16xf32>
    %291 = vector.multi_reduction <add>, %290, %cst_109 [1] : vector<16x32xf32> to vector<16xf32>
    %292 = vector.shape_cast %291 : vector<16xf32> to vector<16x1xf32>
    %cst_110 = arith.constant 3.200000e+01 : f32
    %293 = vector.broadcast %cst_110 : f32 to vector<16x1xf32>
    %294 = arith.divf %292, %293 : vector<16x1xf32>
    %295 = vector.broadcast %294 : vector<16x1xf32> to vector<16x32xf32>
    %296 = arith.subf %290, %295 : vector<16x32xf32>
    %297 = arith.mulf %296, %296 : vector<16x32xf32>
    %cst_111 = arith.constant dense<0.000000e+00> : vector<16xf32>
    %298 = vector.multi_reduction <add>, %297, %cst_111 [1] : vector<16x32xf32> to vector<16xf32>
    %299 = vector.shape_cast %298 : vector<16xf32> to vector<16x1xf32>
    %cst_112 = arith.constant 3.200000e+01 : f32
    %300 = vector.broadcast %cst_112 : f32 to vector<16x1xf32>
    %301 = arith.divf %299, %300 : vector<16x1xf32>
    %302 = vector.broadcast %294 : vector<16x1xf32> to vector<16x32xf32>
    %303 = arith.subf %290, %302 : vector<16x32xf32>
    %cst_113 = arith.constant 9.99999996E-13 : f32
    %304 = vector.broadcast %cst_113 : f32 to vector<16x1xf32>
    %305 = arith.addf %301, %304 : vector<16x1xf32>
    %306 = math.rsqrt %305 : vector<16x1xf32>
    %307 = vector.broadcast %306 : vector<16x1xf32> to vector<16x32xf32>
    %308 = arith.mulf %303, %307 : vector<16x32xf32>
    %309 = vector.broadcast %188 : vector<1x32xf32> to vector<16x32xf32>
    %310 = arith.mulf %308, %309 : vector<16x32xf32>
    %311 = vector.broadcast %189 : vector<1x32xf32> to vector<16x32xf32>
    %312 = arith.addf %310, %311 : vector<16x32xf32>
    %313 = vector.shape_cast %312 : vector<16x32xf32> to vector<2x8x32xf32>
    %314 = vector.extract_strided_slice %313 {offsets = [0, 0, 0], sizes = [2, 1, 32], strides = [1, 1, 1]} : vector<2x8x32xf32> to vector<2x1x32xf32>
    %315 = vector.shape_cast %314 : vector<2x1x32xf32> to vector<2x32xf32>
    %c0_114 = arith.constant 0 : index
    %c0_115 = arith.constant 0 : index
    %316 = vector.load %arg11[%c0_114, %c0_115] : memref<2x32xf32, #tpu.memory_space<vmem>>, vector<2x32xf32>
    tpu.vector_store %arg11[%c0_114, %c0_115], %315 {strides = array<i32>} : memref<2x32xf32, #tpu.memory_space<vmem>>, vector<2x32xf32>,
    return
  }
  func.func @transform_0(%arg0: i32) -> (i32, i32, i32) {
    %c0_i32 = arith.constant 0 : i32
    %c0_i32_0 = arith.constant 0 : i32
    %c0_i32_1 = arith.constant 0 : i32
    %c0_i32_2 = arith.constant 0 : i32
    return %c0_i32, %c0_i32_0, %c0_i32_1 : i32, i32, i32
  }
  func.func @transform_1(%arg0: i32) -> (i32, i32, i32) {
    %c0_i32 = arith.constant 0 : i32
    %c0_i32_0 = arith.constant 0 : i32
    %c0_i32_1 = arith.constant 0 : i32
    %c0_i32_2 = arith.constant 0 : i32
    return %c0_i32, %c0_i32_0, %c0_i32_1 : i32, i32, i32
  }
  func.func @transform_2(%arg0: i32) -> (i32, i32) {
    %c0_i32 = arith.constant 0 : i32
    %c0_i32_0 = arith.constant 0 : i32
    %c0_i32_1 = arith.constant 0 : i32
    return %c0_i32, %c0_i32_0 : i32, i32
  }
  func.func @transform_3(%arg0: i32) -> (i32, i32, i32) {
    %c0_i32 = arith.constant 0 : i32
    %c0_i32_0 = arith.constant 0 : i32
    %c0_i32_1 = arith.constant 0 : i32
    %c0_i32_2 = arith.constant 0 : i32
    return %c0_i32, %c0_i32_0, %c0_i32_1 : i32, i32, i32
  }
  func.func @transform_4(%arg0: i32) -> (i32, i32, i32) {
    %c0_i32 = arith.constant 0 : i32
    %c0_i32_0 = arith.constant 0 : i32
    %c0_i32_1 = arith.constant 0 : i32
    %c0_i32_2 = arith.constant 0 : i32
    return %c0_i32, %c0_i32_0, %c0_i32_1 : i32, i32, i32
  }
  func.func @transform_5(%arg0: i32) -> (i32, i32, i32) {
    %c0_i32 = arith.constant 0 : i32
    %c0_i32_0 = arith.constant 0 : i32
    %c0_i32_1 = arith.constant 0 : i32
    %c0_i32_2 = arith.constant 0 : i32
    return %c0_i32, %c0_i32_0, %c0_i32_1 : i32, i32, i32
  }
  func.func @transform_6(%arg0: i32) -> (i32, i32, i32) {
    %c0_i32 = arith.constant 0 : i32
    %c0_i32_0 = arith.constant 0 : i32
    %c0_i32_1 = arith.constant 0 : i32
    %c0_i32_2 = arith.constant 0 : i32
    return %c0_i32, %c0_i32_0, %c0_i32_1 : i32, i32, i32
  }
  func.func @transform_7(%arg0: i32) -> (i32, i32, i32) {
    %c0_i32 = arith.constant 0 : i32
    %c0_i32_0 = arith.constant 0 : i32
    %c0_i32_1 = arith.constant 0 : i32
    %c0_i32_2 = arith.constant 0 : i32
    return %c0_i32, %c0_i32_0, %c0_i32_1 : i32, i32, i32
  }
  func.func @transform_8(%arg0: i32) -> (i32, i32, i32) {
    %c0_i32 = arith.constant 0 : i32
    %c0_i32_0 = arith.constant 0 : i32
    %c0_i32_1 = arith.constant 0 : i32
    %c0_i32_2 = arith.constant 0 : i32
    return %c0_i32, %c0_i32_0, %c0_i32_1 : i32, i32, i32
  }
  func.func @transform_9(%arg0: i32) -> (i32, i32, i32) {
    %c0_i32 = arith.constant 0 : i32
    %c0_i32_0 = arith.constant 0 : i32
    %c0_i32_1 = arith.constant 0 : i32
    %c0_i32_2 = arith.constant 0 : i32
    return %c0_i32, %c0_i32_0, %c0_i32_1 : i32, i32, i32
  }
  func.func @transform_10(%arg0: i32) -> (i32, i32) {
    %c0_i32 = arith.constant 0 : i32
    %c0_i32_0 = arith.constant 0 : i32
    %c0_i32_1 = arith.constant 0 : i32
    return %c0_i32, %c0_i32_0 : i32, i32
  }
}

</mosaic_0001>

<llo_original>
// kernel: dual_encoder_forward.2
$region0: #{dual_encoder_forward.2}
  #allocation0 [shape = 'u32[]', space=smem, size = 0x4, offset = 0x4, fixed_abs, tag = 'smem constant byte address 0x4 - core index']
  #allocation1 [shape = 'u32[144,128]{1,0:T(1,128)}', space=vmem, size = 0x12000, scoped, tag = 'internal scratch']
  %s0 = inlined_call_operand.vmem [shape: f32[2,8,32], index: 0, kind: input, shape index: {}]
  %s1 = inlined_call_operand.vmem [shape: f32[2,1,8], index: 1, kind: input, shape index: {}]
  %s2 = inlined_call_operand.vmem [shape: f32[2,32], index: 2, kind: input, shape index: {}]
  %s3 = inlined_call_operand.vmem [shape: f32[2,32,96], index: 3, kind: input, shape index: {}]
  %s4 = inlined_call_operand.vmem [shape: f32[2,1,96], index: 4, kind: input, shape index: {}]
  %s5 = inlined_call_operand.vmem [shape: f32[2,32,32], index: 5, kind: input, shape index: {}]
  %s6 = inlined_call_operand.vmem [shape: f32[2,32,64], index: 6, kind: input, shape index: {}]
  %s7 = inlined_call_operand.vmem [shape: f32[2,1,64], index: 7, kind: input, shape index: {}]
  %s8 = inlined_call_operand.vmem [shape: f32[2,64,32], index: 8, kind: input, shape index: {}]
  %s9 = inlined_call_operand.vmem [shape: f32[2,6,32], index: 9, kind: input, shape index: {}]
  %s10 = inlined_call_operand.hbm [shape: f32[2,32], index: 10, kind: output, shape index: {}]
  %s11 = sld [smem:[#allocation0]]
  $region50: #{dual_encoder_forward.2} parent=0
    _
  %s13 = ssub.s32 1, %s11
  %s14 = scalar_select 0, %s13, %s11
  $region1: #{dual_encoder_forward.2} parent=0
    #allocation2 [shape = 'u8[1024]{0}', space=vmem, size = 0x400, scoped, tag = 'output window, operand 0, single buffered']
    #allocation3 [shape = 's32[1]{0}', space=sflag, size = 0x4, scoped, tag = 'scoped memory for dual_encoder_forward.2']
    %15 = vsyncpa [#allocation3], 0
    // Predicated region
    $region2: #{dual_encoder_forward.2} parent=1 // pred_check
      _
    $region3: #{dual_encoder_forward.2} parent=1 // pred_check_branch
      %17 = sbr.rel (0) target = $region5
    $region4: #{dual_encoder_forward.2} parent=1 // pred_region
      _
    $region5: #{dual_encoder_forward.2} parent=1 // pred_fallthru
      _
    // Predicated region
    $region6: #{dual_encoder_forward.2} parent=1 // pred_check
      _
    $region7: #{dual_encoder_forward.2} parent=1 // pred_check_branch
      %19 = sbr.rel (0) target = $region9
    $region8: #{dual_encoder_forward.2} parent=1 // pred_region
      _
    $region9: #{dual_encoder_forward.2} parent=1 // pred_fallthru
      _
    // Predicated region
    $region10: #{dual_encoder_forward.2} parent=1 // pred_check
      _
    $region11: #{dual_encoder_forward.2} parent=1 // pred_check_branch
      %21 = sbr.rel (0) target = $region13
    $region12: #{dual_encoder_forward.2} parent=1 // pred_region
      _
    $region13: #{dual_encoder_forward.2} parent=1 // pred_fallthru
      _
    // Predicated region
    $region14: #{dual_encoder_forward.2} parent=1 // pred_check
      _
    $region15: #{dual_encoder_forward.2} parent=1 // pred_check_branch
      %23 = sbr.rel (0) target = $region17
    $region16: #{dual_encoder_forward.2} parent=1 // pred_region
      _
    $region17: #{dual_encoder_forward.2} parent=1 // pred_fallthru
      _
    // Predicated region
    $region18: #{dual_encoder_forward.2} parent=1 // pred_check
      _
    $region19: #{dual_encoder_forward.2} parent=1 // pred_check_branch
      %25 = sbr.rel (0) target = $region21
    $region20: #{dual_encoder_forward.2} parent=1 // pred_region
      _
    $region21: #{dual_encoder_forward.2} parent=1 // pred_fallthru
      _
    // Predicated region
    $region22: #{dual_encoder_forward.2} parent=1 // pred_check
      _
    $region23: #{dual_encoder_forward.2} parent=1 // pred_check_branch
      %27 = sbr.rel (0) target = $region25
    $region24: #{dual_encoder_forward.2} parent=1 // pred_region
      _
    $region25: #{dual_encoder_forward.2} parent=1 // pred_fallthru
      _
    // Predicated region
    $region26: #{dual_encoder_forward.2} parent=1 // pred_check
      _
    $region27: #{dual_encoder_forward.2} parent=1 // pred_check_branch
      %29 = sbr.rel (0) target = $region29
    $region28: #{dual_encoder_forward.2} parent=1 // pred_region
      _
    $region29: #{dual_encoder_forward.2} parent=1 // pred_fallthru
      _
    // Predicated region
    $region30: #{dual_encoder_forward.2} parent=1 // pred_check
      _
    $region31: #{dual_encoder_forward.2} parent=1 // pred_check_branch
      %31 = sbr.rel (0) target = $region33
    $region32: #{dual_encoder_forward.2} parent=1 // pred_region
      _
    $region33: #{dual_encoder_forward.2} parent=1 // pred_fallthru
      _
    // Predicated region
    $region34: #{dual_encoder_forward.2} parent=1 // pred_check
      _
    $region35: #{dual_encoder_forward.2} parent=1 // pred_check_branch
      %33 = sbr.rel (0) target = $region37
    $region36: #{dual_encoder_forward.2} parent=1 // pred_region
      _
    $region37: #{dual_encoder_forward.2} parent=1 // pred_fallthru
      _
    // Predicated region
    $region38: #{dual_encoder_forward.2} parent=1 // pred_check
      _
    $region39: #{dual_encoder_forward.2} parent=1 // pred_check_branch
      %35 = sbr.rel (0) target = $region41
    $region40: #{dual_encoder_forward.2} parent=1 // pred_region
      _
    $region41: #{dual_encoder_forward.2} parent=1 // pred_fallthru
      _
    %v36 = vld [vmem:[%s0] sm:$0xff]
    %v37 = vld [vmem:[%s0 + $0x8] sm:$0xff]
    %v38 = vld [vmem:[%s2] sm:$0x1]
    %v39 = vld [vmem:[%s2 + $0x1] sm:$0x1]
    %vm40 = vcmask 261120
    %v41 = vsel %vm40, %v36, 0.0
    %42 = vadd.xlane.f32.xlu0 %v41
    %v43 = vpop.xlane.xlu0 %42
    %v44 = vsel %vm40, %v37, 0.0
    %45 = vadd.xlane.f32.xlu0 %v44
    %v46 = vpop.xlane.xlu0 %45
    %v47 = vrcp.pop 32.0
    %v48 = vmul.f32 %v43, %v47
    %v49 = vmul.f32 %v46, %v47
    %v50 = vsub.f32 %v36, %v48
    %v51 = vsub.f32 %v37, %v49
    %v52 = vmul.f32 %v50, %v50
    %v53 = vmul.f32 %v51, %v51
    %v54 = vsel %vm40, %v52, 0.0
    %55 = vadd.xlane.f32.xlu0 %v54
    %v56 = vpop.xlane.xlu0 %55
    %v57 = vsel %vm40, %v53, 0.0
    %58 = vadd.xlane.f32.xlu0 %v57
    %v59 = vpop.xlane.xlu0 %58
    %v60 = vmul.f32 %v56, %v47
    %v61 = vmul.f32 %v59, %v47
    %v62 = vadd.f32 %v60, 1e-12
    %v63 = vadd.f32 %v61, 1e-12
    %v64 = vrsqrt.pop %v62
    %v65 = vrsqrt.pop %v63
    %v66 = vmul.f32 %v50, %v64
    %v67 = vmul.f32 %v51, %v65
    %v68 = vlaneseq
    %v69 = vshrl.u32 %v68, 7
    %v70 = vsub.s32 0, %v69
    %v71 = vrot.slane %v38, %v70
    %v72 = vmul.f32 %v66, %v71
    %v73 = vmul.f32 %v67, %v71
    %v74 = vlaneseq
    %v75 = vshrl.u32 %v74, 7
    %v76 = vsub.s32 0, %v75
    %v77 = vrot.slane %v39, %v76
    %v78 = vadd.f32 %v72, %v77
    %v79 = vadd.f32 %v73, %v77
    %v80 = vld [vmem:[%s1] sm:$0x1]
    %v81 = vld [vmem:[%s1 + $0x1] sm:$0x1]
    %v82 = vld [vmem:[%s3] sm:$0xff]
    %v83 = vld [vmem:[%s3 + $0x8] sm:$0xff]
    %v84 = vld [vmem:[%s3 + $0x10] sm:$0xff]
    %v85 = vld [vmem:[%s3 + $0x18] sm:$0xff]
    %v86 = vld [vmem:[%s4] sm:$0x1]
    %v87 = vld [vmem:[%s5] sm:$0xff]
    %v88 = vld [vmem:[%s5 + $0x8] sm:$0xff]
    %v89 = vld [vmem:[%s5 + $0x10] sm:$0xff]
    %v90 = vld [vmem:[%s5 + $0x18] sm:$0xff]
    %v91 = vld [vmem:[%s6] sm:$0xff]
    %v92 = vld [vmem:[%s6 + $0x8] sm:$0xff]
    %v93 = vld [vmem:[%s6 + $0x10] sm:$0xff]
    %v94 = vld [vmem:[%s6 + $0x18] sm:$0xff]
    %v95 = vld [vmem:[%s7] sm:$0x1]
    %v96 = vld [vmem:[%s8] sm:$0xff]
    %v97 = vld [vmem:[%s8 + $0x8] sm:$0xff]
    %v98 = vld [vmem:[%s8 + $0x10] sm:$0xff]
    %v99 = vld [vmem:[%s8 + $0x18] sm:$0xff]
    %v100 = vld [vmem:[%s8 + $0x20] sm:$0xff]
    %v101 = vld [vmem:[%s8 + $0x28] sm:$0xff]
    %v102 = vld [vmem:[%s8 + $0x30] sm:$0xff]
    %v103 = vld [vmem:[%s8 + $0x38] sm:$0xff]
    %v104 = vld [vmem:[%s9] sm:$0x3f]
    %v106 = vlaneseq
    %v107 = vshrl.u32 %v106, 7
    %v108 = vsub.s32 0, %v107
    %v109 = vrot.slane %v86, %v108
    %v112 = vsel %vm40, %v78, 0
    %v115 = vsel %vm40, %v79, 0
    %117 = vmatprep.subr.mxu0 0.0
    %118 = vmatpush1.msra.mxu0 %v82
    %119 = vmatprep.subr.mxu0 0.0
    %120 = vmatpush1.msra.mxu0 %v83
    %121 = vmatprep.subr.mxu0 0.0
    %122 = vmatpush1.msra.mxu0 %v84
    %123 = vmatprep.subr.mxu0 0.0
    %124 = vmatpush1.msra.mxu0 %v85
    %125 = vmatprep.subr.mxu0 0.0
    %126 = vmatpush1.msra.mxu0 0.0
    %127 = vmatprep.subr.mxu0 0.0
    %128 = vmatpush1.msra.mxu0 0.0
    %129 = vmatprep.subr.mxu0 0.0
    %130 = vmatpush1.msra.mxu0 0.0
    %131 = vmatprep.subr.mxu0 0.0
    %132 = vmatpush1.msra.mxu0 0.0
    %133 = vmatprep.subr.mxu0 0.0
    %134 = vmatpush1.msra.mxu0 0.0
    %135 = vmatprep.subr.mxu0 0.0
    %136 = vmatpush1.msra.mxu0 0.0
    %137 = vmatprep.subr.mxu0 0.0
    %138 = vmatpush1.msra.mxu0 0.0
    %139 = vmatprep.subr.mxu0 0.0
    %140 = vmatpush1.msra.mxu0 0.0
    %141 = vmatprep.subr.mxu0 0.0
    %142 = vmatpush1.msra.mxu0 0.0
    %143 = vmatprep.subr.mxu0 0.0
    %144 = vmatpush1.msra.mxu0 0.0
    %145 = vmatprep.subr.mxu0 0.0
    %146 = vmatpush1.msra.mxu0 0.0
    %147 = vmatprep.subr.mxu0 0.0
    %148 = vmatpush1.msra.mxu0 0.0
    %149 = vmatprep.subr.mxu0 0.0
    %150 = vmatpush1.msra.mxu0 0.0
    %151 = vmatprep.subr.mxu0 0.0
    %152 = vmatpush1.msra.mxu0 0.0
    %153 = vmatprep.subr.mxu0 0.0
    %154 = vmatpush1.msra.mxu0 0.0
    %155 = vmatprep.subr.mxu0 0.0
    %156 = vmatpush1.msra.mxu0 0.0
    %157 = vmatprep.subr.mxu0 0.0
    %158 = vmatpush1.msra.mxu0 0.0
    %159 = vmatprep.subr.mxu0 0.0
    %160 = vmatpush1.msra.mxu0 0.0
    %161 = vmatprep.subr.mxu0 0.0
    %162 = vmatpush1.msra.mxu0 0.0
    %163 = vmatprep.subr.mxu0 0.0
    %164 = vmatpush1.msra.mxu0 0.0
    %165 = vmatprep.subr.mxu0 0.0
    %166 = vmatpush1.msra.mxu0 0.0
    %167 = vmatprep.subr.mxu0 0.0
    %168 = vmatpush1.msra.mxu0 0.0
    %169 = vmatprep.subr.mxu0 0.0
    %170 = vmatpush1.msra.mxu0 0.0
    %171 = vmatprep.subr.mxu0 0.0
    %172 = vmatpush1.msra.mxu0 0.0
    %173 = vmatprep.subr.mxu0 0.0
    %174 = vmatpush1.msra.mxu0 0.0
    %175 = vmatprep.subr.mxu0 0.0
    %176 = vmatpush1.msra.mxu0 0.0
    %177 = vmatprep.subr.mxu0 0.0
    %178 = vmatpush1.msra.mxu0 0.0
    %179 = vmatprep.subr.mxu0 0.0
    %180 = vmatpush1.msra.mxu0 0.0
    %181 = vmatprep.mubr.f32.mxu0 0.0
    %182 = vmatmul.mubr.f32.gmra.mrb[0].mxu0 %v112
    %v183 = vpop.f32.mrb[0].mxu0
    %v184 = vadd.f32 %v109, %v183
    %v185 = vpop.f32.mrb[0].mxu0
    %186 = vmatprep.mubr.f32.mxu0 0.0
    %187 = vmatmul.mubr.f32.gmra.mrb[0].mxu0 %v115
    %v188 = vpop.f32.mrb[0].mxu0
    %v189 = vadd.f32 %v109, %v188
    %v190 = vpop.f32.mrb[0].mxu0
    %191 = vdwg.mxu0
    %193 = vrot.lane.b32.xlu0 %v184, 96
    %v194 = vpop.permute.xlu0 %193
    %vm195 = vcmask 130048
    %v196 = vsel %vm195, %v184, 0
    %v198 = vsel %vm195, %v194, 0
    %200 = vmatprep.subr.mxu0 0.0
    %201 = vmatpush1.xpose.msra.mxu0 %v198
    %202 = vmatprep.subr.mxu0 0.0
    %203 = vmatpush1.xpose.msra.mxu0 0.0
    %204 = vmatprep.subr.mxu0 0.0
    %205 = vmatpush1.xpose.msra.mxu0 0.0
    %206 = vmatprep.subr.mxu0 0.0
    %207 = vmatpush1.xpose.msra.mxu0 0.0
    %208 = vmatprep.subr.mxu0 0.0
    %209 = vmatpush1.xpose.msra.mxu0 0.0
    %210 = vmatprep.subr.mxu0 0.0
    %211 = vmatpush1.xpose.msra.mxu0 0.0
    %212 = vmatprep.subr.mxu0 0.0
    %213 = vmatpush1.xpose.msra.mxu0 0.0
    %214 = vmatprep.subr.mxu0 0.0
    %215 = vmatpush1.xpose.msra.mxu0 0.0
    %216 = vmatprep.subr.mxu0 0.0
    %217 = vmatpush1.xpose.msra.mxu0 0.0
    %218 = vmatprep.subr.mxu0 0.0
    %219 = vmatpush1.xpose.msra.mxu0 0.0
    %220 = vmatprep.subr.mxu0 0.0
    %221 = vmatpush1.xpose.msra.mxu0 0.0
    %222 = vmatprep.subr.mxu0 0.0
    %223 = vmatpush1.xpose.msra.mxu0 0.0
    %224 = vmatprep.subr.mxu0 0.0
    %225 = vmatpush1.xpose.msra.mxu0 0.0
    %226 = vmatprep.subr.mxu0 0.0
    %227 = vmatpush1.xpose.msra.mxu0 0.0
    %228 = vmatprep.subr.mxu0 0.0
    %229 = vmatpush1.xpose.msra.mxu0 0.0
    %230 = vmatprep.subr.mxu0 0.0
    %231 = vmatpush1.xpose.msra.mxu0 0.0
    %232 = vmatprep.subr.mxu0 0.0
    %233 = vmatpush1.xpose.msra.mxu0 0.0
    %234 = vmatprep.subr.mxu0 0.0
    %235 = vmatpush1.xpose.msra.mxu0 0.0
    %236 = vmatprep.subr.mxu0 0.0
    %237 = vmatpush1.xpose.msra.mxu0 0.0
    %238 = vmatprep.subr.mxu0 0.0
    %239 = vmatpush1.xpose.msra.mxu0 0.0
    %240 = vmatprep.subr.mxu0 0.0
    %241 = vmatpush1.xpose.msra.mxu0 0.0
    %242 = vmatprep.subr.mxu0 0.0
    %243 = vmatpush1.xpose.msra.mxu0 0.0
    %244 = vmatprep.subr.mxu0 0.0
    %245 = vmatpush1.xpose.msra.mxu0 0.0
    %246 = vmatprep.subr.mxu0 0.0
    %247 = vmatpush1.xpose.msra.mxu0 0.0
    %248 = vmatprep.subr.mxu0 0.0
    %249 = vmatpush1.xpose.msra.mxu0 0.0
    %250 = vmatprep.subr.mxu0 0.0
    %251 = vmatpush1.xpose.msra.mxu0 0.0
    %252 = vmatprep.subr.mxu0 0.0
    %253 = vmatpush1.xpose.msra.mxu0 0.0
    %254 = vmatprep.subr.mxu0 0.0
    %255 = vmatpush1.xpose.msra.mxu0 0.0
    %256 = vmatprep.subr.mxu0 0.0
    %257 = vmatpush1.xpose.msra.mxu0 0.0
    %258 = vmatprep.subr.mxu0 0.0
    %259 = vmatpush1.xpose.msra.mxu0 0.0
    %260 = vmatprep.subr.mxu0 0.0
    %261 = vmatpush1.xpose.msra.mxu0 0.0
    %262 = vmatprep.subr.mxu0 0.0
    %263 = vmatpush1.xpose.msra.mxu0 0.0
    %264 = vmatprep.mubr.f32.mxu0 0.0
    %265 = vmatmul.mubr.f32.gmra.mrb[0].mxu0 %v196
    %v266 = vpop.f32.mrb[0].mxu0
    %v267 = vadd.f32 0.0, %v266
    %v268 = vpop.f32.mrb[0].mxu0
    %269 = vdwg.mxu0
    %271 = vrot.lane.b32.xlu0 %v189, 96
    %v272 = vpop.permute.xlu0 %271
    %v273 = vsel %vm195, %v189, 0
    %v275 = vsel %vm195, %v272, 0
    %277 = vmatprep.subr.mxu0 0.0
    %278 = vmatpush1.xpose.msra.mxu0 %v275
    %279 = vmatprep.subr.mxu0 0.0
    %280 = vmatpush1.xpose.msra.mxu0 0.0
    %281 = vmatprep.subr.mxu0 0.0
    %282 = vmatpush1.xpose.msra.mxu0 0.0
    %283 = vmatprep.subr.mxu0 0.0
    %284 = vmatpush1.xpose.msra.mxu0 0.0
    %285 = vmatprep.subr.mxu0 0.0
    %286 = vmatpush1.xpose.msra.mxu0 0.0
    %287 = vmatprep.subr.mxu0 0.0
    %288 = vmatpush1.xpose.msra.mxu0 0.0
    %289 = vmatprep.subr.mxu0 0.0
    %290 = vmatpush1.xpose.msra.mxu0 0.0
    %291 = vmatprep.subr.mxu0 0.0
    %292 = vmatpush1.xpose.msra.mxu0 0.0
    %293 = vmatprep.subr.mxu0 0.0
    %294 = vmatpush1.xpose.msra.mxu0 0.0
    %295 = vmatprep.subr.mxu0 0.0
    %296 = vmatpush1.xpose.msra.mxu0 0.0
    %297 = vmatprep.subr.mxu0 0.0
    %298 = vmatpush1.xpose.msra.mxu0 0.0
    %299 = vmatprep.subr.mxu0 0.0
    %300 = vmatpush1.xpose.msra.mxu0 0.0
    %301 = vmatprep.subr.mxu0 0.0
    %302 = vmatpush1.xpose.msra.mxu0 0.0
    %303 = vmatprep.subr.mxu0 0.0
    %304 = vmatpush1.xpose.msra.mxu0 0.0
    %305 = vmatprep.subr.mxu0 0.0
    %306 = vmatpush1.xpose.msra.mxu0 0.0
    %307 = vmatprep.subr.mxu0 0.0
    %308 = vmatpush1.xpose.msra.mxu0 0.0
    %309 = vmatprep.subr.mxu0 0.0
    %310 = vmatpush1.xpose.msra.mxu0 0.0
    %311 = vmatprep.subr.mxu0 0.0
    %312 = vmatpush1.xpose.msra.mxu0 0.0
    %313 = vmatprep.subr.mxu0 0.0
    %314 = vmatpush1.xpose.msra.mxu0 0.0
    %315 = vmatprep.subr.mxu0 0.0
    %316 = vmatpush1.xpose.msra.mxu0 0.0
    %317 = vmatprep.subr.mxu0 0.0
    %318 = vmatpush1.xpose.msra.mxu0 0.0
    %319 = vmatprep.subr.mxu0 0.0
    %320 = vmatpush1.xpose.msra.mxu0 0.0
    %321 = vmatprep.subr.mxu0 0.0
    %322 = vmatpush1.xpose.msra.mxu0 0.0
    %323 = vmatprep.subr.mxu0 0.0
    %324 = vmatpush1.xpose.msra.mxu0 0.0
    %325 = vmatprep.subr.mxu0 0.0
    %326 = vmatpush1.xpose.msra.mxu0 0.0
    %327 = vmatprep.subr.mxu0 0.0
    %328 = vmatpush1.xpose.msra.mxu0 0.0
    %329 = vmatprep.subr.mxu0 0.0
    %330 = vmatpush1.xpose.msra.mxu0 0.0
    %331 = vmatprep.subr.mxu0 0.0
    %332 = vmatpush1.xpose.msra.mxu0 0.0
    %333 = vmatprep.subr.mxu0 0.0
    %334 = vmatpush1.xpose.msra.mxu0 0.0
    %335 = vmatprep.subr.mxu0 0.0
    %336 = vmatpush1.xpose.msra.mxu0 0.0
    %337 = vmatprep.subr.mxu0 0.0
    %338 = vmatpush1.xpose.msra.mxu0 0.0
    %339 = vmatprep.subr.mxu0 0.0
    %340 = vmatpush1.xpose.msra.mxu0 0.0
    %341 = vmatprep.mubr.f32.mxu0 0.0
    %342 = vmatmul.mubr.f32.gmra.mrb[0].mxu0 %v273
    %v343 = vpop.f32.mrb[0].mxu0
    %v344 = vadd.f32 0.0, %v343
    %v345 = vpop.f32.mrb[0].mxu0
    %346 = vdwg.mxu0
    %v347 = vmul.f32 %v267, 0.25
    %v348 = vmul.f32 %v344, 0.25
    %v351 = vlaneseq
    %v352 = vshrl.u32 %v351, 7
    %v353 = vsub.s32 0, %v352
    %v354 = vrot.slane %v80, %v353
    %v355 = vlaneseq
    %v356 = vshrl.u32 %v355, 7
    %v357 = vsub.s32 0, %v356
    %v358 = vrot.slane %v81, %v357
    %v361 = vadd.f32 %v347, %v354
    %v362 = vadd.f32 %v348, %v358
    %vm363 = vcmask 64512
    %v364 = vsel %vm363, %v361, -inf
    %365 = vmax.xlane.f32.xlu0 %v364
    %v366 = vpop.xlane.xlu0 %365
    %v367 = vsel %vm363, %v362, -inf
    %368 = vmax.xlane.f32.xlu0 %v367
    %v369 = vpop.xlane.xlu0 %368
    %v370 = vsub.f32 %v361, %v366
    %v371 = vsub.f32 %v362, %v369
    %v372 = vmul.f32 %v370, 1.442695
    %v373 = vpow.pop %v372
    %v374 = vmul.f32 %v371, 1.442695
    %v375 = vpow.pop %v374
    %v376 = vsel %vm363, %v373, 0.0
    %377 = vadd.xlane.f32.xlu0 %v376
    %v378 = vpop.xlane.xlu0 %377
    %v379 = vsel %vm363, %v375, 0.0
    %380 = vadd.xlane.f32.xlu0 %v379
    %v381 = vpop.xlane.xlu0 %380
    %v382 = vrcp.pop %v378
    %v383 = vrcp.pop %v381
    %v384 = vmul.f32 %v373, %v382
    %v385 = vmul.f32 %v375, %v383
    %386 = vrot.lane.b32.xlu0 %v184, 64
    %v387 = vpop.permute.xlu0 %386
    %v390 = vsel %vm363, %v384, 0
    %392 = vmatprep.subr.mxu0 0.0
    %393 = vmatpush1.msra.mxu0 %v387
    %394 = vmatprep.subr.mxu0 0.0
    %395 = vmatpush1.msra.mxu0 0.0
    %396 = vmatprep.subr.mxu0 0.0
    %397 = vmatpush1.msra.mxu0 0.0
    %398 = vmatprep.subr.mxu0 0.0
    %399 = vmatpush1.msra.mxu0 0.0
    %400 = vmatprep.subr.mxu0 0.0
    %401 = vmatpush1.msra.mxu0 0.0
    %402 = vmatprep.subr.mxu0 0.0
    %403 = vmatpush1.msra.mxu0 0.0
    %404 = vmatprep.subr.mxu0 0.0
    %405 = vmatpush1.msra.mxu0 0.0
    %406 = vmatprep.subr.mxu0 0.0
    %407 = vmatpush1.msra.mxu0 0.0
    %408 = vmatprep.subr.mxu0 0.0
    %409 = vmatpush1.msra.mxu0 0.0
    %410 = vmatprep.subr.mxu0 0.0
    %411 = vmatpush1.msra.mxu0 0.0
    %412 = vmatprep.subr.mxu0 0.0
    %413 = vmatpush1.msra.mxu0 0.0
    %414 = vmatprep.subr.mxu0 0.0
    %415 = vmatpush1.msra.mxu0 0.0
    %416 = vmatprep.subr.mxu0 0.0
    %417 = vmatpush1.msra.mxu0 0.0
    %418 = vmatprep.subr.mxu0 0.0
    %419 = vmatpush1.msra.mxu0 0.0
    %420 = vmatprep.subr.mxu0 0.0
    %421 = vmatpush1.msra.mxu0 0.0
    %422 = vmatprep.subr.mxu0 0.0
    %423 = vmatpush1.msra.mxu0 0.0
    %424 = vmatprep.subr.mxu0 0.0
    %425 = vmatpush1.msra.mxu0 0.0
    %426 = vmatprep.subr.mxu0 0.0
    %427 = vmatpush1.msra.mxu0 0.0
    %428 = vmatprep.subr.mxu0 0.0
    %429 = vmatpush1.msra.mxu0 0.0
    %430 = vmatprep.subr.mxu0 0.0
    %431 = vmatpush1.msra.mxu0 0.0
    %432 = vmatprep.subr.mxu0 0.0
    %433 = vmatpush1.msra.mxu0 0.0
    %434 = vmatprep.subr.mxu0 0.0
    %435 = vmatpush1.msra.mxu0 0.0
    %436 = vmatprep.subr.mxu0 0.0
    %437 = vmatpush1.msra.mxu0 0.0
    %438 = vmatprep.subr.mxu0 0.0
    %439 = vmatpush1.msra.mxu0 0.0
    %440 = vmatprep.subr.mxu0 0.0
    %441 = vmatpush1.msra.mxu0 0.0
    %442 = vmatprep.subr.mxu0 0.0
    %443 = vmatpush1.msra.mxu0 0.0
    %444 = vmatprep.subr.mxu0 0.0
    %445 = vmatpush1.msra.mxu0 0.0
    %446 = vmatprep.subr.mxu0 0.0
    %447 = vmatpush1.msra.mxu0 0.0
    %448 = vmatprep.subr.mxu0 0.0
    %449 = vmatpush1.msra.mxu0 0.0
    %450 = vmatprep.subr.mxu0 0.0
    %451 = vmatpush1.msra.mxu0 0.0
    %452 = vmatprep.subr.mxu0 0.0
    %453 = vmatpush1.msra.mxu0 0.0
    %454 = vmatprep.subr.mxu0 0.0
    %455 = vmatpush1.msra.mxu0 0.0
    %456 = vmatprep.mubr.f32.mxu0 0.0
    %457 = vmatmul.mubr.f32.gmra.mrb[0].mxu0 %v390
    %v458 = vpop.f32.mrb[0].mxu0
    %v459 = vadd.f32 0.0, %v458
    %v460 = vpop.f32.mrb[0].mxu0
    %461 = vdwg.mxu0
    %462 = vrot.lane.b32.xlu0 %v189, 64
    %v463 = vpop.permute.xlu0 %462
    %v466 = vsel %vm363, %v385, 0
    %468 = vmatprep.subr.mxu0 0.0
    %469 = vmatpush1.msra.mxu0 %v463
    %470 = vmatprep.subr.mxu0 0.0
    %471 = vmatpush1.msra.mxu0 0.0
    %472 = vmatprep.subr.mxu0 0.0
    %473 = vmatpush1.msra.mxu0 0.0
    %474 = vmatprep.subr.mxu0 0.0
    %475 = vmatpush1.msra.mxu0 0.0
    %476 = vmatprep.subr.mxu0 0.0
    %477 = vmatpush1.msra.mxu0 0.0
    %478 = vmatprep.subr.mxu0 0.0
    %479 = vmatpush1.msra.mxu0 0.0
    %480 = vmatprep.subr.mxu0 0.0
    %481 = vmatpush1.msra.mxu0 0.0
    %482 = vmatprep.subr.mxu0 0.0
    %483 = vmatpush1.msra.mxu0 0.0
    %484 = vmatprep.subr.mxu0 0.0
    %485 = vmatpush1.msra.mxu0 0.0
    %486 = vmatprep.subr.mxu0 0.0
    %487 = vmatpush1.msra.mxu0 0.0
    %488 = vmatprep.subr.mxu0 0.0
    %489 = vmatpush1.msra.mxu0 0.0
    %490 = vmatprep.subr.mxu0 0.0
    %491 = vmatpush1.msra.mxu0 0.0
    %492 = vmatprep.subr.mxu0 0.0
    %493 = vmatpush1.msra.mxu0 0.0
    %494 = vmatprep.subr.mxu0 0.0
    %495 = vmatpush1.msra.mxu0 0.0
    %496 = vmatprep.subr.mxu0 0.0
    %497 = vmatpush1.msra.mxu0 0.0
    %498 = vmatprep.subr.mxu0 0.0
    %499 = vmatpush1.msra.mxu0 0.0
    %500 = vmatprep.subr.mxu0 0.0
    %501 = vmatpush1.msra.mxu0 0.0
    %502 = vmatprep.subr.mxu0 0.0
    %503 = vmatpush1.msra.mxu0 0.0
    %504 = vmatprep.subr.mxu0 0.0
    %505 = vmatpush1.msra.mxu0 0.0
    %506 = vmatprep.subr.mxu0 0.0
    %507 = vmatpush1.msra.mxu0 0.0
    %508 = vmatprep.subr.mxu0 0.0
    %509 = vmatpush1.msra.mxu0 0.0
    %510 = vmatprep.subr.mxu0 0.0
    %511 = vmatpush1.msra.mxu0 0.0
    %512 = vmatprep.subr.mxu0 0.0
    %513 = vmatpush1.msra.mxu0 0.0
    %514 = vmatprep.subr.mxu0 0.0
    %515 = vmatpush1.msra.mxu0 0.0
    %516 = vmatprep.subr.mxu0 0.0
    %517 = vmatpush1.msra.mxu0 0.0
    %518 = vmatprep.subr.mxu0 0.0
    %519 = vmatpush1.msra.mxu0 0.0
    %520 = vmatprep.subr.mxu0 0.0
    %521 = vmatpush1.msra.mxu0 0.0
    %522 = vmatprep.subr.mxu0 0.0
    %523 = vmatpush1.msra.mxu0 0.0
    %524 = vmatprep.subr.mxu0 0.0
    %525 = vmatpush1.msra.mxu0 0.0
    %526 = vmatprep.subr.mxu0 0.0
    %527 = vmatpush1.msra.mxu0 0.0
    %528 = vmatprep.subr.mxu0 0.0
    %529 = vmatpush1.msra.mxu0 0.0
    %530 = vmatprep.subr.mxu0 0.0
    %531 = vmatpush1.msra.mxu0 0.0
    %532 = vmatprep.mubr.f32.mxu0 0.0
    %533 = vmatmul.mubr.f32.gmra.mrb[0].mxu0 %v466
    %v534 = vpop.f32.mrb[0].mxu0
    %v535 = vadd.f32 0.0, %v534
    %v536 = vpop.f32.mrb[0].mxu0
    %537 = vdwg.mxu0
    %538 = vrot.lane.b32.xlu0 %v184, 112
    %v539 = vpop.permute.xlu0 %538
    %540 = vrot.lane.b32.xlu0 %v184, 80
    %v541 = vpop.permute.xlu0 %540
    %v542 = vsel %vm195, %v539, 0
    %v544 = vsel %vm195, %v541, 0
    %546 = vmatprep.subr.mxu0 0.0
    %547 = vmatpush1.xpose.msra.mxu0 %v544
    %548 = vmatprep.subr.mxu0 0.0
    %549 = vmatpush1.xpose.msra.mxu0 0.0
    %550 = vmatprep.subr.mxu0 0.0
    %551 = vmatpush1.xpose.msra.mxu0 0.0
    %552 = vmatprep.subr.mxu0 0.0
    %553 = vmatpush1.xpose.msra.mxu0 0.0
    %554 = vmatprep.subr.mxu0 0.0
    %555 = vmatpush1.xpose.msra.mxu0 0.0
    %556 = vmatprep.subr.mxu0 0.0
    %557 = vmatpush1.xpose.msra.mxu0 0.0
    %558 = vmatprep.subr.mxu0 0.0
    %559 = vmatpush1.xpose.msra.mxu0 0.0
    %560 = vmatprep.subr.mxu0 0.0
    %561 = vmatpush1.xpose.msra.mxu0 0.0
    %562 = vmatprep.subr.mxu0 0.0
    %563 = vmatpush1.xpose.msra.mxu0 0.0
    %564 = vmatprep.subr.mxu0 0.0
    %565 = vmatpush1.xpose.msra.mxu0 0.0
    %566 = vmatprep.subr.mxu0 0.0
    %567 = vmatpush1.xpose.msra.mxu0 0.0
    %568 = vmatprep.subr.mxu0 0.0
    %569 = vmatpush1.xpose.msra.mxu0 0.0
    %570 = vmatprep.subr.mxu0 0.0
    %571 = vmatpush1.xpose.msra.mxu0 0.0
    %572 = vmatprep.subr.mxu0 0.0
    %573 = vmatpush1.xpose.msra.mxu0 0.0
    %574 = vmatprep.subr.mxu0 0.0
    %575 = vmatpush1.xpose.msra.mxu0 0.0
    %576 = vmatprep.subr.mxu0 0.0
    %577 = vmatpush1.xpose.msra.mxu0 0.0
    %578 = vmatprep.subr.mxu0 0.0
    %579 = vmatpush1.xpose.msra.mxu0 0.0
    %580 = vmatprep.subr.mxu0 0.0
    %581 = vmatpush1.xpose.msra.mxu0 0.0
    %582 = vmatprep.subr.mxu0 0.0
    %583 = vmatpush1.xpose.msra.mxu0 0.0
    %584 = vmatprep.subr.mxu0 0.0
    %585 = vmatpush1.xpose.msra.mxu0 0.0
    %586 = vmatprep.subr.mxu0 0.0
    %587 = vmatpush1.xpose.msra.mxu0 0.0
    %588 = vmatprep.subr.mxu0 0.0
    %589 = vmatpush1.xpose.msra.mxu0 0.0
    %590 = vmatprep.subr.mxu0 0.0
    %591 = vmatpush1.xpose.msra.mxu0 0.0
    %592 = vmatprep.subr.mxu0 0.0
    %593 = vmatpush1.xpose.msra.mxu0 0.0
    %594 = vmatprep.subr.mxu0 0.0
    %595 = vmatpush1.xpose.msra.mxu0 0.0
    %596 = vmatprep.subr.mxu0 0.0
    %597 = vmatpush1.xpose.msra.mxu0 0.0
    %598 = vmatprep.subr.mxu0 0.0
    %599 = vmatpush1.xpose.msra.mxu0 0.0
    %600 = vmatprep.subr.mxu0 0.0
    %601 = vmatpush1.xpose.msra.mxu0 0.0
    %602 = vmatprep.subr.mxu0 0.0
    %603 = vmatpush1.xpose.msra.mxu0 0.0
    %604 = vmatprep.subr.mxu0 0.0
    %605 = vmatpush1.xpose.msra.mxu0 0.0
    %606 = vmatprep.subr.mxu0 0.0
    %607 = vmatpush1.xpose.msra.mxu0 0.0
    %608 = vmatprep.subr.mxu0 0.0
    %609 = vmatpush1.xpose.msra.mxu0 0.0
    %610 = vmatprep.mubr.f32.mxu0 0.0
    %611 = vmatmul.mubr.f32.gmra.mrb[0].mxu0 %v542
    %v612 = vpop.f32.mrb[0].mxu0
    %v613 = vadd.f32 0.0, %v612
    %v614 = vpop.f32.mrb[0].mxu0
    %615 = vdwg.mxu0
    %616 = vrot.lane.b32.xlu0 %v189, 112
    %v617 = vpop.permute.xlu0 %616
    %618 = vrot.lane.b32.xlu0 %v189, 80
    %v619 = vpop.permute.xlu0 %618
    %v620 = vsel %vm195, %v617, 0
    %v622 = vsel %vm195, %v619, 0
    %624 = vmatprep.subr.mxu0 0.0
    %625 = vmatpush1.xpose.msra.mxu0 %v622
    %626 = vmatprep.subr.mxu0 0.0
    %627 = vmatpush1.xpose.msra.mxu0 0.0
    %628 = vmatprep.subr.mxu0 0.0
    %629 = vmatpush1.xpose.msra.mxu0 0.0
    %630 = vmatprep.subr.mxu0 0.0
    %631 = vmatpush1.xpose.msra.mxu0 0.0
    %632 = vmatprep.subr.mxu0 0.0
    %633 = vmatpush1.xpose.msra.mxu0 0.0
    %634 = vmatprep.subr.mxu0 0.0
    %635 = vmatpush1.xpose.msra.mxu0 0.0
    %636 = vmatprep.subr.mxu0 0.0
    %637 = vmatpush1.xpose.msra.mxu0 0.0
    %638 = vmatprep.subr.mxu0 0.0
    %639 = vmatpush1.xpose.msra.mxu0 0.0
    %640 = vmatprep.subr.mxu0 0.0
    %641 = vmatpush1.xpose.msra.mxu0 0.0
    %642 = vmatprep.subr.mxu0 0.0
    %643 = vmatpush1.xpose.msra.mxu0 0.0
    %644 = vmatprep.subr.mxu0 0.0
    %645 = vmatpush1.xpose.msra.mxu0 0.0
    %646 = vmatprep.subr.mxu0 0.0
    %647 = vmatpush1.xpose.msra.mxu0 0.0
    %648 = vmatprep.subr.mxu0 0.0
    %649 = vmatpush1.xpose.msra.mxu0 0.0
    %650 = vmatprep.subr.mxu0 0.0
    %651 = vmatpush1.xpose.msra.mxu0 0.0
    %652 = vmatprep.subr.mxu0 0.0
    %653 = vmatpush1.xpose.msra.mxu0 0.0
    %654 = vmatprep.subr.mxu0 0.0
    %655 = vmatpush1.xpose.msra.mxu0 0.0
    %656 = vmatprep.subr.mxu0 0.0
    %657 = vmatpush1.xpose.msra.mxu0 0.0
    %658 = vmatprep.subr.mxu0 0.0
    %659 = vmatpush1.xpose.msra.mxu0 0.0
    %660 = vmatprep.subr.mxu0 0.0
    %661 = vmatpush1.xpose.msra.mxu0 0.0
    %662 = vmatprep.subr.mxu0 0.0
    %663 = vmatpush1.xpose.msra.mxu0 0.0
    %664 = vmatprep.subr.mxu0 0.0
    %665 = vmatpush1.xpose.msra.mxu0 0.0
    %666 = vmatprep.subr.mxu0 0.0
    %667 = vmatpush1.xpose.msra.mxu0 0.0
    %668 = vmatprep.subr.mxu0 0.0
    %669 = vmatpush1.xpose.msra.mxu0 0.0
    %670 = vmatprep.subr.mxu0 0.0
    %671 = vmatpush1.xpose.msra.mxu0 0.0
    %672 = vmatprep.subr.mxu0 0.0
    %673 = vmatpush1.xpose.msra.mxu0 0.0
    %674 = vmatprep.subr.mxu0 0.0
    %675 = vmatpush1.xpose.msra.mxu0 0.0
    %676 = vmatprep.subr.mxu0 0.0
    %677 = vmatpush1.xpose.msra.mxu0 0.0
    %678 = vmatprep.subr.mxu0 0.0
    %679 = vmatpush1.xpose.msra.mxu0 0.0
    %680 = vmatprep.subr.mxu0 0.0
    %681 = vmatpush1.xpose.msra.mxu0 0.0
    %682 = vmatprep.subr.mxu0 0.0
    %683 = vmatpush1.xpose.msra.mxu0 0.0
    %684 = vmatprep.subr.mxu0 0.0
    %685 = vmatpush1.xpose.msra.mxu0 0.0
    %686 = vmatprep.subr.mxu0 0.0
    %687 = vmatpush1.xpose.msra.mxu0 0.0
    %688 = vmatprep.mubr.f32.mxu0 0.0
    %689 = vmatmul.mubr.f32.gmra.mrb[0].mxu0 %v620
    %v690 = vpop.f32.mrb[0].mxu0
    %v691 = vadd.f32 0.0, %v690
    %v692 = vpop.f32.mrb[0].mxu0
    %693 = vdwg.mxu0
    %v694 = vmul.f32 %v613, 0.25
    %v695 = vmul.f32 %v691, 0.25
    %v696 = vadd.f32 %v694, %v354
    %v697 = vadd.f32 %v695, %v358
    %v698 = vsel %vm363, %v696, -inf
    %699 = vmax.xlane.f32.xlu0 %v698
    %v700 = vpop.xlane.xlu0 %699
    %v701 = vsel %vm363, %v697, -inf
    %702 = vmax.xlane.f32.xlu0 %v701
    %v703 = vpop.xlane.xlu0 %702
    %v704 = vsub.f32 %v696, %v700
    %v705 = vsub.f32 %v697, %v703
    %v706 = vmul.f32 %v704, 1.442695
    %v707 = vpow.pop %v706
    %v708 = vmul.f32 %v705, 1.442695
    %v709 = vpow.pop %v708
    %v710 = vsel %vm363, %v707, 0.0
    %711 = vadd.xlane.f32.xlu0 %v710
    %v712 = vpop.xlane.xlu0 %711
    %v713 = vsel %vm363, %v709, 0.0
    %714 = vadd.xlane.f32.xlu0 %v713
    %v715 = vpop.xlane.xlu0 %714
    %v716 = vrcp.pop %v712
    %v717 = vrcp.pop %v715
    %v718 = vmul.f32 %v707, %v716
    %v719 = vmul.f32 %v709, %v717
    %720 = vrot.lane.b32.xlu0 %v184, 48
    %v721 = vpop.permute.xlu0 %720
    %v724 = vsel %vm363, %v718, 0
    %726 = vmatprep.subr.mxu0 0.0
    %727 = vmatpush1.msra.mxu0 %v721
    %728 = vmatprep.subr.mxu0 0.0
    %729 = vmatpush1.msra.mxu0 0.0
    %730 = vmatprep.subr.mxu0 0.0
    %731 = vmatpush1.msra.mxu0 0.0
    %732 = vmatprep.subr.mxu0 0.0
    %733 = vmatpush1.msra.mxu0 0.0
    %734 = vmatprep.subr.mxu0 0.0
    %735 = vmatpush1.msra.mxu0 0.0
    %736 = vmatprep.subr.mxu0 0.0
    %737 = vmatpush1.msra.mxu0 0.0
    %738 = vmatprep.subr.mxu0 0.0
    %739 = vmatpush1.msra.mxu0 0.0
    %740 = vmatprep.subr.mxu0 0.0
    %741 = vmatpush1.msra.mxu0 0.0
    %742 = vmatprep.subr.mxu0 0.0
    %743 = vmatpush1.msra.mxu0 0.0
    %744 = vmatprep.subr.mxu0 0.0
    %745 = vmatpush1.msra.mxu0 0.0
    %746 = vmatprep.subr.mxu0 0.0
    %747 = vmatpush1.msra.mxu0 0.0
    %748 = vmatprep.subr.mxu0 0.0
    %749 = vmatpush1.msra.mxu0 0.0
    %750 = vmatprep.subr.mxu0 0.0
    %751 = vmatpush1.msra.mxu0 0.0
    %752 = vmatprep.subr.mxu0 0.0
    %753 = vmatpush1.msra.mxu0 0.0
    %754 = vmatprep.subr.mxu0 0.0
    %755 = vmatpush1.msra.mxu0 0.0
    %756 = vmatprep.subr.mxu0 0.0
    %757 = vmatpush1.msra.mxu0 0.0
    %758 = vmatprep.subr.mxu0 0.0
    %759 = vmatpush1.msra.mxu0 0.0
    %760 = vmatprep.subr.mxu0 0.0
    %761 = vmatpush1.msra.mxu0 0.0
    %762 = vmatprep.subr.mxu0 0.0
    %763 = vmatpush1.msra.mxu0 0.0
    %764 = vmatprep.subr.mxu0 0.0
    %765 = vmatpush1.msra.mxu0 0.0
    %766 = vmatprep.subr.mxu0 0.0
    %767 = vmatpush1.msra.mxu0 0.0
    %768 = vmatprep.subr.mxu0 0.0
    %769 = vmatpush1.msra.mxu0 0.0
    %770 = vmatprep.subr.mxu0 0.0
    %771 = vmatpush1.msra.mxu0 0.0
    %772 = vmatprep.subr.mxu0 0.0
    %773 = vmatpush1.msra.mxu0 0.0
    %774 = vmatprep.subr.mxu0 0.0
    %775 = vmatpush1.msra.mxu0 0.0
    %776 = vmatprep.subr.mxu0 0.0
    %777 = vmatpush1.msra.mxu0 0.0
    %778 = vmatprep.subr.mxu0 0.0
    %779 = vmatpush1.msra.mxu0 0.0
    %780 = vmatprep.subr.mxu0 0.0
    %781 = vmatpush1.msra.mxu0 0.0
    %782 = vmatprep.subr.mxu0 0.0
    %783 = vmatpush1.msra.mxu0 0.0
    %784 = vmatprep.subr.mxu0 0.0
    %785 = vmatpush1.msra.mxu0 0.0
    %786 = vmatprep.subr.mxu0 0.0
    %787 = vmatpush1.msra.mxu0 0.0
    %788 = vmatprep.subr.mxu0 0.0
    %789 = vmatpush1.msra.mxu0 0.0
    %790 = vmatprep.mubr.f32.mxu0 0.0
    %791 = vmatmul.mubr.f32.gmra.mrb[0].mxu0 %v724
    %v792 = vpop.f32.mrb[0].mxu0
    %v793 = vadd.f32 0.0, %v792
    %v794 = vpop.f32.mrb[0].mxu0
    %795 = vdwg.mxu0
    %796 = vrot.lane.b32.xlu0 %v189, 48
    %v797 = vpop.permute.xlu0 %796
    %v800 = vsel %vm363, %v719, 0
    %802 = vmatprep.subr.mxu0 0.0
    %803 = vmatpush1.msra.mxu0 %v797
    %804 = vmatprep.subr.mxu0 0.0
    %805 = vmatpush1.msra.mxu0 0.0
    %806 = vmatprep.subr.mxu0 0.0
    %807 = vmatpush1.msra.mxu0 0.0
    %808 = vmatprep.subr.mxu0 0.0
    %809 = vmatpush1.msra.mxu0 0.0
    %810 = vmatprep.subr.mxu0 0.0
    %811 = vmatpush1.msra.mxu0 0.0
    %812 = vmatprep.subr.mxu0 0.0
    %813 = vmatpush1.msra.mxu0 0.0
    %814 = vmatprep.subr.mxu0 0.0
    %815 = vmatpush1.msra.mxu0 0.0
    %816 = vmatprep.subr.mxu0 0.0
    %817 = vmatpush1.msra.mxu0 0.0
    %818 = vmatprep.subr.mxu0 0.0
    %819 = vmatpush1.msra.mxu0 0.0
    %820 = vmatprep.subr.mxu0 0.0
    %821 = vmatpush1.msra.mxu0 0.0
    %822 = vmatprep.subr.mxu0 0.0
    %823 = vmatpush1.msra.mxu0 0.0
    %824 = vmatprep.subr.mxu0 0.0
    %825 = vmatpush1.msra.mxu0 0.0
    %826 = vmatprep.subr.mxu0 0.0
    %827 = vmatpush1.msra.mxu0 0.0
    %828 = vmatprep.subr.mxu0 0.0
    %829 = vmatpush1.msra.mxu0 0.0
    %830 = vmatprep.subr.mxu0 0.0
    %831 = vmatpush1.msra.mxu0 0.0
    %832 = vmatprep.subr.mxu0 0.0
    %833 = vmatpush1.msra.mxu0 0.0
    %834 = vmatprep.subr.mxu0 0.0
    %835 = vmatpush1.msra.mxu0 0.0
    %836 = vmatprep.subr.mxu0 0.0
    %837 = vmatpush1.msra.mxu0 0.0
    %838 = vmatprep.subr.mxu0 0.0
    %839 = vmatpush1.msra.mxu0 0.0
    %840 = vmatprep.subr.mxu0 0.0
    %841 = vmatpush1.msra.mxu0 0.0
    %842 = vmatprep.subr.mxu0 0.0
    %843 = vmatpush1.msra.mxu0 0.0
    %844 = vmatprep.subr.mxu0 0.0
    %845 = vmatpush1.msra.mxu0 0.0
    %846 = vmatprep.subr.mxu0 0.0
    %847 = vmatpush1.msra.mxu0 0.0
    %848 = vmatprep.subr.mxu0 0.0
    %849 = vmatpush1.msra.mxu0 0.0
    %850 = vmatprep.subr.mxu0 0.0
    %851 = vmatpush1.msra.mxu0 0.0
    %852 = vmatprep.subr.mxu0 0.0
    %853 = vmatpush1.msra.mxu0 0.0
    %854 = vmatprep.subr.mxu0 0.0
    %855 = vmatpush1.msra.mxu0 0.0
    %856 = vmatprep.subr.mxu0 0.0
    %857 = vmatpush1.msra.mxu0 0.0
    %858 = vmatprep.subr.mxu0 0.0
    %859 = vmatpush1.msra.mxu0 0.0
    %860 = vmatprep.subr.mxu0 0.0
    %861 = vmatpush1.msra.mxu0 0.0
    %862 = vmatprep.subr.mxu0 0.0
    %863 = vmatpush1.msra.mxu0 0.0
    %864 = vmatprep.subr.mxu0 0.0
    %865 = vmatpush1.msra.mxu0 0.0
    %866 = vmatprep.mubr.f32.mxu0 0.0
    %867 = vmatmul.mubr.f32.gmra.mrb[0].mxu0 %v800
    %v868 = vpop.f32.mrb[0].mxu0
    %v869 = vadd.f32 0.0, %v868
    %v870 = vpop.f32.mrb[0].mxu0
    %871 = vdwg.mxu0
    %v873 = vsel %vm195, %v793, 0
    %v876 = vsel %vm195, %v869, 0
    %878 = vmatprep.subr.mxu0 0.0
    %879 = vmatpush1.msra.mxu0 %v89
    %880 = vmatprep.subr.mxu0 0.0
    %881 = vmatpush1.msra.mxu0 %v90
    %882 = vmatprep.subr.mxu0 0.0
    %883 = vmatpush1.msra.mxu0 0.0
    %884 = vmatprep.subr.mxu0 0.0
    %885 = vmatpush1.msra.mxu0 0.0
    %886 = vmatprep.subr.mxu0 0.0
    %887 = vmatpush1.msra.mxu0 0.0
    %888 = vmatprep.subr.mxu0 0.0
    %889 = vmatpush1.msra.mxu0 0.0
    %890 = vmatprep.subr.mxu0 0.0
    %891 = vmatpush1.msra.mxu0 0.0
    %892 = vmatprep.subr.mxu0 0.0
    %893 = vmatpush1.msra.mxu0 0.0
    %894 = vmatprep.subr.mxu0 0.0
    %895 = vmatpush1.msra.mxu0 0.0
    %896 = vmatprep.subr.mxu0 0.0
    %897 = vmatpush1.msra.mxu0 0.0
    %898 = vmatprep.subr.mxu0 0.0
    %899 = vmatpush1.msra.mxu0 0.0
    %900 = vmatprep.subr.mxu0 0.0
    %901 = vmatpush1.msra.mxu0 0.0
    %902 = vmatprep.subr.mxu0 0.0
    %903 = vmatpush1.msra.mxu0 0.0
    %904 = vmatprep.subr.mxu0 0.0
    %905 = vmatpush1.msra.mxu0 0.0
    %906 = vmatprep.subr.mxu0 0.0
    %907 = vmatpush1.msra.mxu0 0.0
    %908 = vmatprep.subr.mxu0 0.0
    %909 = vmatpush1.msra.mxu0 0.0
    %910 = vmatprep.subr.mxu0 0.0
    %911 = vmatpush1.msra.mxu0 0.0
    %912 = vmatprep.subr.mxu0 0.0
    %913 = vmatpush1.msra.mxu0 0.0
    %914 = vmatprep.subr.mxu0 0.0
    %915 = vmatpush1.msra.mxu0 0.0
    %916 = vmatprep.subr.mxu0 0.0
    %917 = vmatpush1.msra.mxu0 0.0
    %918 = vmatprep.subr.mxu0 0.0
    %919 = vmatpush1.msra.mxu0 0.0
    %920 = vmatprep.subr.mxu0 0.0
    %921 = vmatpush1.msra.mxu0 0.0
    %922 = vmatprep.subr.mxu0 0.0
    %923 = vmatpush1.msra.mxu0 0.0
    %924 = vmatprep.subr.mxu0 0.0
    %925 = vmatpush1.msra.mxu0 0.0
    %926 = vmatprep.subr.mxu0 0.0
    %927 = vmatpush1.msra.mxu0 0.0
    %928 = vmatprep.subr.mxu0 0.0
    %929 = vmatpush1.msra.mxu0 0.0
    %930 = vmatprep.subr.mxu0 0.0
    %931 = vmatpush1.msra.mxu0 0.0
    %932 = vmatprep.subr.mxu0 0.0
    %933 = vmatpush1.msra.mxu0 0.0
    %934 = vmatprep.subr.mxu0 0.0
    %935 = vmatpush1.msra.mxu0 0.0
    %936 = vmatprep.subr.mxu0 0.0
    %937 = vmatpush1.msra.mxu0 0.0
    %938 = vmatprep.subr.mxu0 0.0
    %939 = vmatpush1.msra.mxu0 0.0
    %940 = vmatprep.subr.mxu0 0.0
    %941 = vmatpush1.msra.mxu0 0.0
    %942 = vmatprep.mubr.f32.mxu0 0.0
    %943 = vmatmul.mubr.f32.gmra.mrb[0].mxu0 %v873
    %v944 = vpop.f32.mrb[0].mxu0
    %v945 = vadd.f32 0.0, %v944
    %v946 = vpop.f32.mrb[0].mxu0
    %947 = vmatprep.mubr.f32.mxu0 0.0
    %948 = vmatmul.mubr.f32.gmra.mrb[0].mxu0 %v876
    %v949 = vpop.f32.mrb[0].mxu0
    %v950 = vadd.f32 0.0, %v949
    %v951 = vpop.f32.mrb[0].mxu0
    %952 = vdwg.mxu0
    %v954 = vsel %vm195, %v459, 0
    %v957 = vsel %vm195, %v535, 0
    %959 = vmatprep.subr.mxu0 0.0
    %960 = vmatpush1.msra.mxu0 %v87
    %961 = vmatprep.subr.mxu0 0.0
    %962 = vmatpush1.msra.mxu0 %v88
    %963 = vmatprep.subr.mxu0 0.0
    %964 = vmatpush1.msra.mxu0 0.0
    %965 = vmatprep.subr.mxu0 0.0
    %966 = vmatpush1.msra.mxu0 0.0
    %967 = vmatprep.subr.mxu0 0.0
    %968 = vmatpush1.msra.mxu0 0.0
    %969 = vmatprep.subr.mxu0 0.0
    %970 = vmatpush1.msra.mxu0 0.0
    %971 = vmatprep.subr.mxu0 0.0
    %972 = vmatpush1.msra.mxu0 0.0
    %973 = vmatprep.subr.mxu0 0.0
    %974 = vmatpush1.msra.mxu0 0.0
    %975 = vmatprep.subr.mxu0 0.0
    %976 = vmatpush1.msra.mxu0 0.0
    %977 = vmatprep.subr.mxu0 0.0
    %978 = vmatpush1.msra.mxu0 0.0
    %979 = vmatprep.subr.mxu0 0.0
    %980 = vmatpush1.msra.mxu0 0.0
    %981 = vmatprep.subr.mxu0 0.0
    %982 = vmatpush1.msra.mxu0 0.0
    %983 = vmatprep.subr.mxu0 0.0
    %984 = vmatpush1.msra.mxu0 0.0
    %985 = vmatprep.subr.mxu0 0.0
    %986 = vmatpush1.msra.mxu0 0.0
    %987 = vmatprep.subr.mxu0 0.0
    %988 = vmatpush1.msra.mxu0 0.0
    %989 = vmatprep.subr.mxu0 0.0
    %990 = vmatpush1.msra.mxu0 0.0
    %991 = vmatprep.subr.mxu0 0.0
    %992 = vmatpush1.msra.mxu0 0.0
    %993 = vmatprep.subr.mxu0 0.0
    %994 = vmatpush1.msra.mxu0 0.0
    %995 = vmatprep.subr.mxu0 0.0
    %996 = vmatpush1.msra.mxu0 0.0
    %997 = vmatprep.subr.mxu0 0.0
    %998 = vmatpush1.msra.mxu0 0.0
    %999 = vmatprep.subr.mxu0 0.0
    %1000 = vmatpush1.msra.mxu0 0.0
    %1001 = vmatprep.subr.mxu0 0.0
    %1002 = vmatpush1.msra.mxu0 0.0
    %1003 = vmatprep.subr.mxu0 0.0
    %1004 = vmatpush1.msra.mxu0 0.0
    %1005 = vmatprep.subr.mxu0 0.0
    %1006 = vmatpush1.msra.mxu0 0.0
    %1007 = vmatprep.subr.mxu0 0.0
    %1008 = vmatpush1.msra.mxu0 0.0
    %1009 = vmatprep.subr.mxu0 0.0
    %1010 = vmatpush1.msra.mxu0 0.0
    %1011 = vmatprep.subr.mxu0 0.0
    %1012 = vmatpush1.msra.mxu0 0.0
    %1013 = vmatprep.subr.mxu0 0.0
    %1014 = vmatpush1.msra.mxu0 0.0
    %1015 = vmatprep.subr.mxu0 0.0
    %1016 = vmatpush1.msra.mxu0 0.0
    %1017 = vmatprep.subr.mxu0 0.0
    %1018 = vmatpush1.msra.mxu0 0.0
    %1019 = vmatprep.subr.mxu0 0.0
    %1020 = vmatpush1.msra.mxu0 0.0
    %1021 = vmatprep.subr.mxu0 0.0
    %1022 = vmatpush1.msra.mxu0 0.0
    %1023 = vmatprep.mubr.f32.mxu0 0.0
    %1024 = vmatmul.mubr.f32.gmra.mrb[0].mxu0 %v954
    %v1025 = vpop.f32.mrb[0].mxu0
    %v1026 = vadd.f32 %v945, %v1025
    %v1027 = vpop.f32.mrb[0].mxu0
    %1028 = vmatprep.mubr.f32.mxu0 0.0
    %1029 = vmatmul.mubr.f32.gmra.mrb[0].mxu0 %v957
    %v1030 = vpop.f32.mrb[0].mxu0
    %v1031 = vadd.f32 %v950, %v1030
    %v1032 = vpop.f32.mrb[0].mxu0
    %1033 = vdwg.mxu0
    %v1034 = vlaneseq
    %v1035 = vshrl.u32 %v1034, 7
    %v1036 = vsub.s32 0, %v1035
    %v1037 = vrot.slane %v104, %v1036
    %v1038 = vadd.f32 %v1026, %v1037
    %v1039 = vadd.f32 %v1031, %v1037
    %v1040 = vadd.f32 %v78, %v1038
    %v1041 = vadd.f32 %v79, %v1039
    %v1042 = vsel %vm40, %v1040, 0.0
    %1043 = vadd.xlane.f32.xlu0 %v1042
    %v1044 = vpop.xlane.xlu0 %1043
    %v1045 = vsel %vm40, %v1041, 0.0
    %1046 = vadd.xlane.f32.xlu0 %v1045
    %v1047 = vpop.xlane.xlu0 %1046
    %v1048 = vmul.f32 %v1044, %v47
    %v1049 = vmul.f32 %v1047, %v47
    %v1050 = vsub.f32 %v1040, %v1048
    %v1051 = vsub.f32 %v1041, %v1049
    %v1052 = vmul.f32 %v1050, %v1050
    %v1053 = vmul.f32 %v1051, %v1051
    %v1054 = vsel %vm40, %v1052, 0.0
    %1055 = vadd.xlane.f32.xlu0 %v1054
    %v1056 = vpop.xlane.xlu0 %1055
    %v1057 = vsel %vm40, %v1053, 0.0
    %1058 = vadd.xlane.f32.xlu0 %v1057
    %v1059 = vpop.xlane.xlu0 %1058
    %v1060 = vmul.f32 %v1056, %v47
    %v1061 = vmul.f32 %v1059, %v47
    %v1062 = vadd.f32 %v1060, 1e-12
    %v1063 = vadd.f32 %v1061, 1e-12
    %v1064 = vrsqrt.pop %v1062
    %v1065 = vrsqrt.pop %v1063
    %v1066 = vmul.f32 %v1050, %v1064
    %v1067 = vmul.f32 %v1051, %v1065
    %v1068 = vlaneseq
    %v1069 = vshrl.u32 %v1068, 7
    %v1070 = vsub.s32 2, %v1069
    %v1071 = vrot.slane %v104, %v1070
    %v1072 = vmul.f32 %v1066, %v1071
    %v1073 = vmul.f32 %v1067, %v1071
    %v1074 = vlaneseq
    %v1075 = vshrl.u32 %v1074, 7
    %v1076 = vsub.s32 3, %v1075
    %v1077 = vrot.slane %v104, %v1076
    %v1078 = vadd.f32 %v1072, %v1077
    %v1079 = vadd.f32 %v1073, %v1077
    %v1081 = vlaneseq
    %v1082 = vshrl.u32 %v1081, 7
    %v1083 = vsub.s32 0, %v1082
    %v1084 = vrot.slane %v95, %v1083
    %v1087 = vsel %vm40, %v1078, 0
    %v1090 = vsel %vm40, %v1079, 0
    %1092 = vmatprep.subr.mxu0 0.0
    %1093 = vmatpush1.msra.mxu0 %v91
    %1094 = vmatprep.subr.mxu0 0.0
    %1095 = vmatpush1.msra.mxu0 %v92
    %1096 = vmatprep.subr.mxu0 0.0
    %1097 = vmatpush1.msra.mxu0 %v93
    %1098 = vmatprep.subr.mxu0 0.0
    %1099 = vmatpush1.msra.mxu0 %v94
    %1100 = vmatprep.subr.mxu0 0.0
    %1101 = vmatpush1.msra.mxu0 0.0
    %1102 = vmatprep.subr.mxu0 0.0
    %1103 = vmatpush1.msra.mxu0 0.0
    %1104 = vmatprep.subr.mxu0 0.0
    %1105 = vmatpush1.msra.mxu0 0.0
    %1106 = vmatprep.subr.mxu0 0.0
    %1107 = vmatpush1.msra.mxu0 0.0
    %1108 = vmatprep.subr.mxu0 0.0
    %1109 = vmatpush1.msra.mxu0 0.0
    %1110 = vmatprep.subr.mxu0 0.0
    %1111 = vmatpush1.msra.mxu0 0.0
    %1112 = vmatprep.subr.mxu0 0.0
    %1113 = vmatpush1.msra.mxu0 0.0
    %1114 = vmatprep.subr.mxu0 0.0
    %1115 = vmatpush1.msra.mxu0 0.0
    %1116 = vmatprep.subr.mxu0 0.0
    %1117 = vmatpush1.msra.mxu0 0.0
    %1118 = vmatprep.subr.mxu0 0.0
    %1119 = vmatpush1.msra.mxu0 0.0
    %1120 = vmatprep.subr.mxu0 0.0
    %1121 = vmatpush1.msra.mxu0 0.0
    %1122 = vmatprep.subr.mxu0 0.0
    %1123 = vmatpush1.msra.mxu0 0.0
    %1124 = vmatprep.subr.mxu0 0.0
    %1125 = vmatpush1.msra.mxu0 0.0
    %1126 = vmatprep.subr.mxu0 0.0
    %1127 = vmatpush1.msra.mxu0 0.0
    %1128 = vmatprep.subr.mxu0 0.0
    %1129 = vmatpush1.msra.mxu0 0.0
    %1130 = vmatprep.subr.mxu0 0.0
    %1131 = vmatpush1.msra.mxu0 0.0
    %1132 = vmatprep.subr.mxu0 0.0
    %1133 = vmatpush1.msra.mxu0 0.0
    %1134 = vmatprep.subr.mxu0 0.0
    %1135 = vmatpush1.msra.mxu0 0.0
    %1136 = vmatprep.subr.mxu0 0.0
    %1137 = vmatpush1.msra.mxu0 0.0
    %1138 = vmatprep.subr.mxu0 0.0
    %1139 = vmatpush1.msra.mxu0 0.0
    %1140 = vmatprep.subr.mxu0 0.0
    %1141 = vmatpush1.msra.mxu0 0.0
    %1142 = vmatprep.subr.mxu0 0.0
    %1143 = vmatpush1.msra.mxu0 0.0
    %1144 = vmatprep.subr.mxu0 0.0
    %1145 = vmatpush1.msra.mxu0 0.0
    %1146 = vmatprep.subr.mxu0 0.0
    %1147 = vmatpush1.msra.mxu0 0.0
    %1148 = vmatprep.subr.mxu0 0.0
    %1149 = vmatpush1.msra.mxu0 0.0
    %1150 = vmatprep.subr.mxu0 0.0
    %1151 = vmatpush1.msra.mxu0 0.0
    %1152 = vmatprep.subr.mxu0 0.0
    %1153 = vmatpush1.msra.mxu0 0.0
    %1154 = vmatprep.subr.mxu0 0.0
    %1155 = vmatpush1.msra.mxu0 0.0
    %1156 = vmatprep.mubr.f32.mxu0 0.0
    %1157 = vmatmul.mubr.f32.gmra.mrb[0].mxu0 %v1087
    %v1158 = vpop.f32.mrb[0].mxu0
    %v1159 = vadd.f32 %v1084, %v1158
    %v1160 = vpop.f32.mrb[0].mxu0
    %1161 = vmatprep.mubr.f32.mxu0 0.0
    %1162 = vmatmul.mubr.f32.gmra.mrb[0].mxu0 %v1090
    %v1163 = vpop.f32.mrb[0].mxu0
    %v1164 = vadd.f32 %v1084, %v1163
    %v1165 = vpop.f32.mrb[0].mxu0
    %1166 = vdwg.mxu0
    %v1167 = vmul.f32 %v1159, %v1159
    %v1168 = vmul.f32 %v1164, %v1164
    %v1169 = vmul.f32 %v1159, %v1167
    %v1170 = vmul.f32 %v1164, %v1168
    %v1171 = vmul.f32 %v1169, 0.044715
    %v1172 = vmul.f32 %v1170, 0.044715
    %v1173 = vadd.f32 %v1159, %v1171
    %v1174 = vadd.f32 %v1164, %v1172
    %v1175 = vmul.f32 %v1173, 0.7978846
    %v1176 = vmul.f32 %v1174, 0.7978846
    %v1177 = vtanh.pop %v1175
    %v1178 = vtanh.pop %v1176
    %v1179 = vadd.f32 %v1177, 1.0
    %v1180 = vadd.f32 %v1178, 1.0
    %v1181 = vmul.f32 %v1179, 0.5
    %v1182 = vmul.f32 %v1180, 0.5
    %v1183 = vmul.f32 %v1159, %v1181
    %v1184 = vmul.f32 %v1164, %v1182
    %v1185 = vlaneseq
    %v1186 = vshrl.u32 %v1185, 7
    %v1187 = vsub.s32 1, %v1186
    %v1188 = vrot.slane %v104, %v1187
    %vm1189 = vcmask 523264
    %v1191 = vsel %vm1189, %v1183, 0
    %v1194 = vsel %vm1189, %v1184, 0
    %1196 = vmatprep.subr.mxu0 0.0
    %1197 = vmatpush1.msra.mxu0 %v96
    %1198 = vmatprep.subr.mxu0 0.0
    %1199 = vmatpush1.msra.mxu0 %v97
    %1200 = vmatprep.subr.mxu0 0.0
    %1201 = vmatpush1.msra.mxu0 %v98
    %1202 = vmatprep.subr.mxu0 0.0
    %1203 = vmatpush1.msra.mxu0 %v99
    %1204 = vmatprep.subr.mxu0 0.0
    %1205 = vmatpush1.msra.mxu0 %v100
    %1206 = vmatprep.subr.mxu0 0.0
    %1207 = vmatpush1.msra.mxu0 %v101
    %1208 = vmatprep.subr.mxu0 0.0
    %1209 = vmatpush1.msra.mxu0 %v102
    %1210 = vmatprep.subr.mxu0 0.0
    %1211 = vmatpush1.msra.mxu0 %v103
    %1212 = vmatprep.subr.mxu0 0.0
    %1213 = vmatpush1.msra.mxu0 0.0
    %1214 = vmatprep.subr.mxu0 0.0
    %1215 = vmatpush1.msra.mxu0 0.0
    %1216 = vmatprep.subr.mxu0 0.0
    %1217 = vmatpush1.msra.mxu0 0.0
    %1218 = vmatprep.subr.mxu0 0.0
    %1219 = vmatpush1.msra.mxu0 0.0
    %1220 = vmatprep.subr.mxu0 0.0
    %1221 = vmatpush1.msra.mxu0 0.0
    %1222 = vmatprep.subr.mxu0 0.0
    %1223 = vmatpush1.msra.mxu0 0.0
    %1224 = vmatprep.subr.mxu0 0.0
    %1225 = vmatpush1.msra.mxu0 0.0
    %1226 = vmatprep.subr.mxu0 0.0
    %1227 = vmatpush1.msra.mxu0 0.0
    %1228 = vmatprep.subr.mxu0 0.0
    %1229 = vmatpush1.msra.mxu0 0.0
    %1230 = vmatprep.subr.mxu0 0.0
    %1231 = vmatpush1.msra.mxu0 0.0
    %1232 = vmatprep.subr.mxu0 0.0
    %1233 = vmatpush1.msra.mxu0 0.0
    %1234 = vmatprep.subr.mxu0 0.0
    %1235 = vmatpush1.msra.mxu0 0.0
    %1236 = vmatprep.subr.mxu0 0.0
    %1237 = vmatpush1.msra.mxu0 0.0
    %1238 = vmatprep.subr.mxu0 0.0
    %1239 = vmatpush1.msra.mxu0 0.0
    %1240 = vmatprep.subr.mxu0 0.0
    %1241 = vmatpush1.msra.mxu0 0.0
    %1242 = vmatprep.subr.mxu0 0.0
    %1243 = vmatpush1.msra.mxu0 0.0
    %1244 = vmatprep.subr.mxu0 0.0
    %1245 = vmatpush1.msra.mxu0 0.0
    %1246 = vmatprep.subr.mxu0 0.0
    %1247 = vmatpush1.msra.mxu0 0.0
    %1248 = vmatprep.subr.mxu0 0.0
    %1249 = vmatpush1.msra.mxu0 0.0
    %1250 = vmatprep.subr.mxu0 0.0
    %1251 = vmatpush1.msra.mxu0 0.0
    %1252 = vmatprep.subr.mxu0 0.0
    %1253 = vmatpush1.msra.mxu0 0.0
    %1254 = vmatprep.subr.mxu0 0.0
    %1255 = vmatpush1.msra.mxu0 0.0
    %1256 = vmatprep.subr.mxu0 0.0
    %1257 = vmatpush1.msra.mxu0 0.0
    %1258 = vmatprep.subr.mxu0 0.0
    %1259 = vmatpush1.msra.mxu0 0.0
    %1260 = vmatprep.mubr.f32.mxu0 0.0
    %1261 = vmatmul.mubr.f32.gmra.mrb[0].mxu0 %v1191
    %v1262 = vpop.f32.mrb[0].mxu0
    %v1263 = vadd.f32 %v1188, %v1262
    %v1264 = vpop.f32.mrb[0].mxu0
    %1265 = vmatprep.mubr.f32.mxu0 0.0
    %1266 = vmatmul.mubr.f32.gmra.mrb[0].mxu0 %v1194
    %v1267 = vpop.f32.mrb[0].mxu0
    %v1268 = vadd.f32 %v1188, %v1267
    %v1269 = vpop.f32.mrb[0].mxu0
    %1270 = vdwg.mxu0
    %v1271 = vadd.f32 %v1078, %v1263
    %v1272 = vadd.f32 %v1079, %v1268
    %v1273 = vsel %vm40, %v1271, 0.0
    %1274 = vadd.xlane.f32.xlu0 %v1273
    %v1275 = vpop.xlane.xlu0 %1274
    %v1276 = vsel %vm40, %v1272, 0.0
    %1277 = vadd.xlane.f32.xlu0 %v1276
    %v1278 = vpop.xlane.xlu0 %1277
    %v1279 = vmul.f32 %v1275, %v47
    %v1280 = vmul.f32 %v1278, %v47
    %v1281 = vsub.f32 %v1271, %v1279
    %v1282 = vsub.f32 %v1272, %v1280
    %v1283 = vmul.f32 %v1281, %v1281
    %v1284 = vmul.f32 %v1282, %v1282
    %v1285 = vsel %vm40, %v1283, 0.0
    %1286 = vadd.xlane.f32.xlu0 %v1285
    %v1287 = vpop.xlane.xlu0 %1286
    %v1288 = vsel %vm40, %v1284, 0.0
    %1289 = vadd.xlane.f32.xlu0 %v1288
    %v1290 = vpop.xlane.xlu0 %1289
    %v1291 = vmul.f32 %v1287, %v47
    %v1292 = vmul.f32 %v1290, %v47
    %v1293 = vadd.f32 %v1291, 1e-12
    %v1294 = vadd.f32 %v1292, 1e-12
    %v1295 = vrsqrt.pop %v1293
    %v1296 = vrsqrt.pop %v1294
    %v1297 = vmul.f32 %v1281, %v1295
    %v1298 = vmul.f32 %v1282, %v1296
    %v1299 = vlaneseq
    %v1300 = vshrl.u32 %v1299, 7
    %v1301 = vsub.s32 4, %v1300
    %v1302 = vrot.slane %v104, %v1301
    %v1303 = vmul.f32 %v1297, %v1302
    %v1304 = vmul.f32 %v1298, %v1302
    %v1305 = vlaneseq
    %v1306 = vshrl.u32 %v1305, 7
    %v1307 = vsub.s32 5, %v1306
    %v1308 = vrot.slane %v104, %v1307
    %v1309 = vadd.f32 %v1303, %v1308
    %v1310 = vadd.f32 %v1304, %v1308
    %s1311 = scalar_lea.vmem %s3, 32
    %v1312 = vld [vmem:[%s1311] sm:$0xff]
    %v1313 = vld [vmem:[%s1311 + $0x8] sm:$0xff]
    %v1314 = vld [vmem:[%s1311 + $0x10] sm:$0xff]
    %v1315 = vld [vmem:[%s1311 + $0x18] sm:$0xff]
    %s1316 = scalar_lea.vmem %s4, 1
    %v1317 = vld [vmem:[%s1316] sm:$0x1]
    %s1318 = scalar_lea.vmem %s5, 32
    %v1319 = vld [vmem:[%s1318] sm:$0xff]
    %v1320 = vld [vmem:[%s1318 + $0x8] sm:$0xff]
    %v1321 = vld [vmem:[%s1318 + $0x10] sm:$0xff]
    %v1322 = vld [vmem:[%s1318 + $0x18] sm:$0xff]
    %s1323 = scalar_lea.vmem %s6, 32
    %v1324 = vld [vmem:[%s1323] sm:$0xff]
    %v1325 = vld [vmem:[%s1323 + $0x8] sm:$0xff]
    %v1326 = vld [vmem:[%s1323 + $0x10] sm:$0xff]
    %v1327 = vld [vmem:[%s1323 + $0x18] sm:$0xff]
    %s1328 = scalar_lea.vmem %s7, 1
    %v1329 = vld [vmem:[%s1328] sm:$0x1]
    %s1330 = scalar_lea.vmem %s8, 64
    %v1331 = vld [vmem:[%s1330] sm:$0xff]
    %v1332 = vld [vmem:[%s1330 + $0x8] sm:$0xff]
    %v1333 = vld [vmem:[%s1330 + $0x10] sm:$0xff]
    %v1334 = vld [vmem:[%s1330 + $0x18] sm:$0xff]
    %v1335 = vld [vmem:[%s1330 + $0x20] sm:$0xff]
    %v1336 = vld [vmem:[%s1330 + $0x28] sm:$0xff]
    %v1337 = vld [vmem:[%s1330 + $0x30] sm:$0xff]
    %v1338 = vld [vmem:[%s1330 + $0x38] sm:$0xff]
    %s1339 = scalar_lea.vmem %s9, 8
    %v1340 = vld [vmem:[%s1339] sm:$0x3f]
    %v1342 = vlaneseq
    %v1343 = vshrl.u32 %v1342, 7
    %v1344 = vsub.s32 0, %v1343
    %v1345 = vrot.slane %v1317, %v1344
    %v1348 = vsel %vm40, %v1309, 0
    %v1351 = vsel %vm40, %v1310, 0
    %1353 = vmatprep.subr.mxu0 0.0
    %1354 = vmatpush1.msra.mxu0 %v1312
    %1355 = vmatprep.subr.mxu0 0.0
    %1356 = vmatpush1.msra.mxu0 %v1313
    %1357 = vmatprep.subr.mxu0 0.0
    %1358 = vmatpush1.msra.mxu0 %v1314
    %1359 = vmatprep.subr.mxu0 0.0
    %1360 = vmatpush1.msra.mxu0 %v1315
    %1361 = vmatprep.subr.mxu0 0.0
    %1362 = vmatpush1.msra.mxu0 0.0
    %1363 = vmatprep.subr.mxu0 0.0
    %1364 = vmatpush1.msra.mxu0 0.0
    %1365 = vmatprep.subr.mxu0 0.0
    %1366 = vmatpush1.msra.mxu0 0.0
    %1367 = vmatprep.subr.mxu0 0.0
    %1368 = vmatpush1.msra.mxu0 0.0
    %1369 = vmatprep.subr.mxu0 0.0
    %1370 = vmatpush1.msra.mxu0 0.0
    %1371 = vmatprep.subr.mxu0 0.0
    %1372 = vmatpush1.msra.mxu0 0.0
    %1373 = vmatprep.subr.mxu0 0.0
    %1374 = vmatpush1.msra.mxu0 0.0
    %1375 = vmatprep.subr.mxu0 0.0
    %1376 = vmatpush1.msra.mxu0 0.0
    %1377 = vmatprep.subr.mxu0 0.0
    %1378 = vmatpush1.msra.mxu0 0.0
    %1379 = vmatprep.subr.mxu0 0.0
    %1380 = vmatpush1.msra.mxu0 0.0
    %1381 = vmatprep.subr.mxu0 0.0
    %1382 = vmatpush1.msra.mxu0 0.0
    %1383 = vmatprep.subr.mxu0 0.0
    %1384 = vmatpush1.msra.mxu0 0.0
    %1385 = vmatprep.subr.mxu0 0.0
    %1386 = vmatpush1.msra.mxu0 0.0
    %1387 = vmatprep.subr.mxu0 0.0
    %1388 = vmatpush1.msra.mxu0 0.0
    %1389 = vmatprep.subr.mxu0 0.0
    %1390 = vmatpush1.msra.mxu0 0.0
    %1391 = vmatprep.subr.mxu0 0.0
    %1392 = vmatpush1.msra.mxu0 0.0
    %1393 = vmatprep.subr.mxu0 0.0
    %1394 = vmatpush1.msra.mxu0 0.0
    %1395 = vmatprep.subr.mxu0 0.0
    %1396 = vmatpush1.msra.mxu0 0.0
    %1397 = vmatprep.subr.mxu0 0.0
    %1398 = vmatpush1.msra.mxu0 0.0
    %1399 = vmatprep.subr.mxu0 0.0
    %1400 = vmatpush1.msra.mxu0 0.0
    %1401 = vmatprep.subr.mxu0 0.0
    %1402 = vmatpush1.msra.mxu0 0.0
    %1403 = vmatprep.subr.mxu0 0.0
    %1404 = vmatpush1.msra.mxu0 0.0
    %1405 = vmatprep.subr.mxu0 0.0
    %1406 = vmatpush1.msra.mxu0 0.0
    %1407 = vmatprep.subr.mxu0 0.0
    %1408 = vmatpush1.msra.mxu0 0.0
    %1409 = vmatprep.subr.mxu0 0.0
    %1410 = vmatpush1.msra.mxu0 0.0
    %1411 = vmatprep.subr.mxu0 0.0
    %1412 = vmatpush1.msra.mxu0 0.0
    %1413 = vmatprep.subr.mxu0 0.0
    %1414 = vmatpush1.msra.mxu0 0.0
    %1415 = vmatprep.subr.mxu0 0.0
    %1416 = vmatpush1.msra.mxu0 0.0
    %1417 = vmatprep.mubr.f32.mxu0 0.0
    %1418 = vmatmul.mubr.f32.gmra.mrb[0].mxu0 %v1348
    %v1419 = vpop.f32.mrb[0].mxu0
    %v1420 = vadd.f32 %v1345, %v1419
    %v1421 = vpop.f32.mrb[0].mxu0
    %1422 = vmatprep.mubr.f32.mxu0 0.0
    %1423 = vmatmul.mubr.f32.gmra.mrb[0].mxu0 %v1351
    %v1424 = vpop.f32.mrb[0].mxu0
    %v1425 = vadd.f32 %v1345, %v1424
    %v1426 = vpop.f32.mrb[0].mxu0
    %1427 = vdwg.mxu0
    %1429 = vrot.lane.b32.xlu0 %v1420, 96
    %v1430 = vpop.permute.xlu0 %1429
    %v1431 = vsel %vm195, %v1420, 0
    %v1433 = vsel %vm195, %v1430, 0
    %1435 = vmatprep.subr.mxu0 0.0
    %1436 = vmatpush1.xpose.msra.mxu0 %v1433
    %1437 = vmatprep.subr.mxu0 0.0
    %1438 = vmatpush1.xpose.msra.mxu0 0.0
    %1439 = vmatprep.subr.mxu0 0.0
    %1440 = vmatpush1.xpose.msra.mxu0 0.0
    %1441 = vmatprep.subr.mxu0 0.0
    %1442 = vmatpush1.xpose.msra.mxu0 0.0
    %1443 = vmatprep.subr.mxu0 0.0
    %1444 = vmatpush1.xpose.msra.mxu0 0.0
    %1445 = vmatprep.subr.mxu0 0.0
    %1446 = vmatpush1.xpose.msra.mxu0 0.0
    %1447 = vmatprep.subr.mxu0 0.0
    %1448 = vmatpush1.xpose.msra.mxu0 0.0
    %1449 = vmatprep.subr.mxu0 0.0
    %1450 = vmatpush1.xpose.msra.mxu0 0.0
    %1451 = vmatprep.subr.mxu0 0.0
    %1452 = vmatpush1.xpose.msra.mxu0 0.0
    %1453 = vmatprep.subr.mxu0 0.0
    %1454 = vmatpush1.xpose.msra.mxu0 0.0
    %1455 = vmatprep.subr.mxu0 0.0
    %1456 = vmatpush1.xpose.msra.mxu0 0.0
    %1457 = vmatprep.subr.mxu0 0.0
    %1458 = vmatpush1.xpose.msra.mxu0 0.0
    %1459 = vmatprep.subr.mxu0 0.0
    %1460 = vmatpush1.xpose.msra.mxu0 0.0
    %1461 = vmatprep.subr.mxu0 0.0
    %1462 = vmatpush1.xpose.msra.mxu0 0.0
    %1463 = vmatprep.subr.mxu0 0.0
    %1464 = vmatpush1.xpose.msra.mxu0 0.0
    %1465 = vmatprep.subr.mxu0 0.0
    %1466 = vmatpush1.xpose.msra.mxu0 0.0
    %1467 = vmatprep.subr.mxu0 0.0
    %1468 = vmatpush1.xpose.msra.mxu0 0.0
    %1469 = vmatprep.subr.mxu0 0.0
    %1470 = vmatpush1.xpose.msra.mxu0 0.0
    %1471 = vmatprep.subr.mxu0 0.0
    %1472 = vmatpush1.xpose.msra.mxu0 0.0
    %1473 = vmatprep.subr.mxu0 0.0
    %1474 = vmatpush1.xpose.msra.mxu0 0.0
    %1475 = vmatprep.subr.mxu0 0.0
    %1476 = vmatpush1.xpose.msra.mxu0 0.0
    %1477 = vmatprep.subr.mxu0 0.0
    %1478 = vmatpush1.xpose.msra.mxu0 0.0
    %1479 = vmatprep.subr.mxu0 0.0
    %1480 = vmatpush1.xpose.msra.mxu0 0.0
    %1481 = vmatprep.subr.mxu0 0.0
    %1482 = vmatpush1.xpose.msra.mxu0 0.0
    %1483 = vmatprep.subr.mxu0 0.0
    %1484 = vmatpush1.xpose.msra.mxu0 0.0
    %1485 = vmatprep.subr.mxu0 0.0
    %1486 = vmatpush1.xpose.msra.mxu0 0.0
    %1487 = vmatprep.subr.mxu0 0.0
    %1488 = vmatpush1.xpose.msra.mxu0 0.0
    %1489 = vmatprep.subr.mxu0 0.0
    %1490 = vmatpush1.xpose.msra.mxu0 0.0
    %1491 = vmatprep.subr.mxu0 0.0
    %1492 = vmatpush1.xpose.msra.mxu0 0.0
    %1493 = vmatprep.subr.mxu0 0.0
    %1494 = vmatpush1.xpose.msra.mxu0 0.0
    %1495 = vmatprep.subr.mxu0 0.0
    %1496 = vmatpush1.xpose.msra.mxu0 0.0
    %1497 = vmatprep.subr.mxu0 0.0
    %1498 = vmatpush1.xpose.msra.mxu0 0.0
    %1499 = vmatprep.mubr.f32.mxu0 0.0
    %1500 = vmatmul.mubr.f32.gmra.mrb[0].mxu0 %v1431
    %v1501 = vpop.f32.mrb[0].mxu0
    %v1502 = vadd.f32 0.0, %v1501
    %v1503 = vpop.f32.mrb[0].mxu0
    %1504 = vdwg.mxu0
    %1506 = vrot.lane.b32.xlu0 %v1425, 96
    %v1507 = vpop.permute.xlu0 %1506
    %v1508 = vsel %vm195, %v1425, 0
    %v1510 = vsel %vm195, %v1507, 0
    %1512 = vmatprep.subr.mxu0 0.0
    %1513 = vmatpush1.xpose.msra.mxu0 %v1510
    %1514 = vmatprep.subr.mxu0 0.0
    %1515 = vmatpush1.xpose.msra.mxu0 0.0
    %1516 = vmatprep.subr.mxu0 0.0
    %1517 = vmatpush1.xpose.msra.mxu0 0.0
    %1518 = vmatprep.subr.mxu0 0.0
    %1519 = vmatpush1.xpose.msra.mxu0 0.0
    %1520 = vmatprep.subr.mxu0 0.0
    %1521 = vmatpush1.xpose.msra.mxu0 0.0
    %1522 = vmatprep.subr.mxu0 0.0
    %1523 = vmatpush1.xpose.msra.mxu0 0.0
    %1524 = vmatprep.subr.mxu0 0.0
    %1525 = vmatpush1.xpose.msra.mxu0 0.0
    %1526 = vmatprep.subr.mxu0 0.0
    %1527 = vmatpush1.xpose.msra.mxu0 0.0
    %1528 = vmatprep.subr.mxu0 0.0
    %1529 = vmatpush1.xpose.msra.mxu0 0.0
    %1530 = vmatprep.subr.mxu0 0.0
    %1531 = vmatpush1.xpose.msra.mxu0 0.0
    %1532 = vmatprep.subr.mxu0 0.0
    %1533 = vmatpush1.xpose.msra.mxu0 0.0
    %1534 = vmatprep.subr.mxu0 0.0
    %1535 = vmatpush1.xpose.msra.mxu0 0.0
    %1536 = vmatprep.subr.mxu0 0.0
    %1537 = vmatpush1.xpose.msra.mxu0 0.0
    %1538 = vmatprep.subr.mxu0 0.0
    %1539 = vmatpush1.xpose.msra.mxu0 0.0
    %1540 = vmatprep.subr.mxu0 0.0
    %1541 = vmatpush1.xpose.msra.mxu0 0.0
    %1542 = vmatprep.subr.mxu0 0.0
    %1543 = vmatpush1.xpose.msra.mxu0 0.0
    %1544 = vmatprep.subr.mxu0 0.0
    %1545 = vmatpush1.xpose.msra.mxu0 0.0
    %1546 = vmatprep.subr.mxu0 0.0
    %1547 = vmatpush1.xpose.msra.mxu0 0.0
    %1548 = vmatprep.subr.mxu0 0.0
    %1549 = vmatpush1.xpose.msra.mxu0 0.0
    %1550 = vmatprep.subr.mxu0 0.0
    %1551 = vmatpush1.xpose.msra.mxu0 0.0
    %1552 = vmatprep.subr.mxu0 0.0
    %1553 = vmatpush1.xpose.msra.mxu0 0.0
    %1554 = vmatprep.subr.mxu0 0.0
    %1555 = vmatpush1.xpose.msra.mxu0 0.0
    %1556 = vmatprep.subr.mxu0 0.0
    %1557 = vmatpush1.xpose.msra.mxu0 0.0
    %1558 = vmatprep.subr.mxu0 0.0
    %1559 = vmatpush1.xpose.msra.mxu0 0.0
    %1560 = vmatprep.subr.mxu0 0.0
    %1561 = vmatpush1.xpose.msra.mxu0 0.0
    %1562 = vmatprep.subr.mxu0 0.0
    %1563 = vmatpush1.xpose.msra.mxu0 0.0
    %1564 = vmatprep.subr.mxu0 0.0
    %1565 = vmatpush1.xpose.msra.mxu0 0.0
    %1566 = vmatprep.subr.mxu0 0.0
    %1567 = vmatpush1.xpose.msra.mxu0 0.0
    %1568 = vmatprep.subr.mxu0 0.0
    %1569 = vmatpush1.xpose.msra.mxu0 0.0
    %1570 = vmatprep.subr.mxu0 0.0
    %1571 = vmatpush1.xpose.msra.mxu0 0.0
    %1572 = vmatprep.subr.mxu0 0.0
    %1573 = vmatpush1.xpose.msra.mxu0 0.0
    %1574 = vmatprep.subr.mxu0 0.0
    %1575 = vmatpush1.xpose.msra.mxu0 0.0
    %1576 = vmatprep.mubr.f32.mxu0 0.0
    %1577 = vmatmul.mubr.f32.gmra.mrb[0].mxu0 %v1508
    %v1578 = vpop.f32.mrb[0].mxu0
    %v1579 = vadd.f32 0.0, %v1578
    %v1580 = vpop.f32.mrb[0].mxu0
    %1581 = vdwg.mxu0
    %v1582 = vmul.f32 %v1502, 0.25
    %v1583 = vmul.f32 %v1579, 0.25
    %v1584 = vadd.f32 %v1582, %v354
    %v1585 = vadd.f32 %v1583, %v358
    %v1586 = vsel %vm363, %v1584, -inf
    %1587 = vmax.xlane.f32.xlu0 %v1586
    %v1588 = vpop.xlane.xlu0 %1587
    %v1589 = vsel %vm363, %v1585, -inf
    %1590 = vmax.xlane.f32.xlu0 %v1589
    %v1591 = vpop.xlane.xlu0 %1590
    %v1592 = vsub.f32 %v1584, %v1588
    %v1593 = vsub.f32 %v1585, %v1591
    %v1594 = vmul.f32 %v1592, 1.442695
    %v1595 = vpow.pop %v1594
    %v1596 = vmul.f32 %v1593, 1.442695
    %v1597 = vpow.pop %v1596
    %v1598 = vsel %vm363, %v1595, 0.0
    %1599 = vadd.xlane.f32.xlu0 %v1598
    %v1600 = vpop.xlane.xlu0 %1599
    %v1601 = vsel %vm363, %v1597, 0.0
    %1602 = vadd.xlane.f32.xlu0 %v1601
    %v1603 = vpop.xlane.xlu0 %1602
    %v1604 = vrcp.pop %v1600
    %v1605 = vrcp.pop %v1603
    %v1606 = vmul.f32 %v1595, %v1604
    %v1607 = vmul.f32 %v1597, %v1605
    %1608 = vrot.lane.b32.xlu0 %v1420, 64
    %v1609 = vpop.permute.xlu0 %1608
    %v1612 = vsel %vm363, %v1606, 0
    %1614 = vmatprep.subr.mxu0 0.0
    %1615 = vmatpush1.msra.mxu0 %v1609
    %1616 = vmatprep.subr.mxu0 0.0
    %1617 = vmatpush1.msra.mxu0 0.0
    %1618 = vmatprep.subr.mxu0 0.0
    %1619 = vmatpush1.msra.mxu0 0.0
    %1620 = vmatprep.subr.mxu0 0.0
    %1621 = vmatpush1.msra.mxu0 0.0
    %1622 = vmatprep.subr.mxu0 0.0
    %1623 = vmatpush1.msra.mxu0 0.0
    %1624 = vmatprep.subr.mxu0 0.0
    %1625 = vmatpush1.msra.mxu0 0.0
    %1626 = vmatprep.subr.mxu0 0.0
    %1627 = vmatpush1.msra.mxu0 0.0
    %1628 = vmatprep.subr.mxu0 0.0
    %1629 = vmatpush1.msra.mxu0 0.0
    %1630 = vmatprep.subr.mxu0 0.0
    %1631 = vmatpush1.msra.mxu0 0.0
    %1632 = vmatprep.subr.mxu0 0.0
    %1633 = vmatpush1.msra.mxu0 0.0
    %1634 = vmatprep.subr.mxu0 0.0
    %1635 = vmatpush1.msra.mxu0 0.0
    %1636 = vmatprep.subr.mxu0 0.0
    %1637 = vmatpush1.msra.mxu0 0.0
    %1638 = vmatprep.subr.mxu0 0.0
    %1639 = vmatpush1.msra.mxu0 0.0
    %1640 = vmatprep.subr.mxu0 0.0
    %1641 = vmatpush1.msra.mxu0 0.0
    %1642 = vmatprep.subr.mxu0 0.0
    %1643 = vmatpush1.msra.mxu0 0.0
    %1644 = vmatprep.subr.mxu0 0.0
    %1645 = vmatpush1.msra.mxu0 0.0
    %1646 = vmatprep.subr.mxu0 0.0
    %1647 = vmatpush1.msra.mxu0 0.0
    %1648 = vmatprep.subr.mxu0 0.0
    %1649 = vmatpush1.msra.mxu0 0.0
    %1650 = vmatprep.subr.mxu0 0.0
    %1651 = vmatpush1.msra.mxu0 0.0
    %1652 = vmatprep.subr.mxu0 0.0
    %1653 = vmatpush1.msra.mxu0 0.0
    %1654 = vmatprep.subr.mxu0 0.0
    %1655 = vmatpush1.msra.mxu0 0.0
    %1656 = vmatprep.subr.mxu0 0.0
    %1657 = vmatpush1.msra.mxu0 0.0
    %1658 = vmatprep.subr.mxu0 0.0
    %1659 = vmatpush1.msra.mxu0 0.0
    %1660 = vmatprep.subr.mxu0 0.0
    %1661 = vmatpush1.msra.mxu0 0.0
    %1662 = vmatprep.subr.mxu0 0.0
    %1663 = vmatpush1.msra.mxu0 0.0
    %1664 = vmatprep.subr.mxu0 0.0
    %1665 = vmatpush1.msra.mxu0 0.0
    %1666 = vmatprep.subr.mxu0 0.0
    %1667 = vmatpush1.msra.mxu0 0.0
    %1668 = vmatprep.subr.mxu0 0.0
    %1669 = vmatpush1.msra.mxu0 0.0
    %1670 = vmatprep.subr.mxu0 0.0
    %1671 = vmatpush1.msra.mxu0 0.0
    %1672 = vmatprep.subr.mxu0 0.0
    %1673 = vmatpush1.msra.mxu0 0.0
    %1674 = vmatprep.subr.mxu0 0.0
    %1675 = vmatpush1.msra.mxu0 0.0
    %1676 = vmatprep.subr.mxu0 0.0
    %1677 = vmatpush1.msra.mxu0 0.0
    %1678 = vmatprep.mubr.f32.mxu0 0.0
    %1679 = vmatmul.mubr.f32.gmra.mrb[0].mxu0 %v1612
    %v1680 = vpop.f32.mrb[0].mxu0
    %v1681 = vadd.f32 0.0, %v1680
    %v1682 = vpop.f32.mrb[0].mxu0
    %1683 = vdwg.mxu0
    %1684 = vrot.lane.b32.xlu0 %v1425, 64
    %v1685 = vpop.permute.xlu0 %1684
    %v1688 = vsel %vm363, %v1607, 0
    %1690 = vmatprep.subr.mxu0 0.0
    %1691 = vmatpush1.msra.mxu0 %v1685
    %1692 = vmatprep.subr.mxu0 0.0
    %1693 = vmatpush1.msra.mxu0 0.0
    %1694 = vmatprep.subr.mxu0 0.0
    %1695 = vmatpush1.msra.mxu0 0.0
    %1696 = vmatprep.subr.mxu0 0.0
    %1697 = vmatpush1.msra.mxu0 0.0
    %1698 = vmatprep.subr.mxu0 0.0
    %1699 = vmatpush1.msra.mxu0 0.0
    %1700 = vmatprep.subr.mxu0 0.0
    %1701 = vmatpush1.msra.mxu0 0.0
    %1702 = vmatprep.subr.mxu0 0.0
    %1703 = vmatpush1.msra.mxu0 0.0
    %1704 = vmatprep.subr.mxu0 0.0
    %1705 = vmatpush1.msra.mxu0 0.0
    %1706 = vmatprep.subr.mxu0 0.0
    %1707 = vmatpush1.msra.mxu0 0.0
    %1708 = vmatprep.subr.mxu0 0.0
    %1709 = vmatpush1.msra.mxu0 0.0
    %1710 = vmatprep.subr.mxu0 0.0
    %1711 = vmatpush1.msra.mxu0 0.0
    %1712 = vmatprep.subr.mxu0 0.0
    %1713 = vmatpush1.msra.mxu0 0.0
    %1714 = vmatprep.subr.mxu0 0.0
    %1715 = vmatpush1.msra.mxu0 0.0
    %1716 = vmatprep.subr.mxu0 0.0
    %1717 = vmatpush1.msra.mxu0 0.0
    %1718 = vmatprep.subr.mxu0 0.0
    %1719 = vmatpush1.msra.mxu0 0.0
    %1720 = vmatprep.subr.mxu0 0.0
    %1721 = vmatpush1.msra.mxu0 0.0
    %1722 = vmatprep.subr.mxu0 0.0
    %1723 = vmatpush1.msra.mxu0 0.0
    %1724 = vmatprep.subr.mxu0 0.0
    %1725 = vmatpush1.msra.mxu0 0.0
    %1726 = vmatprep.subr.mxu0 0.0
    %1727 = vmatpush1.msra.mxu0 0.0
    %1728 = vmatprep.subr.mxu0 0.0
    %1729 = vmatpush1.msra.mxu0 0.0
    %1730 = vmatprep.subr.mxu0 0.0
    %1731 = vmatpush1.msra.mxu0 0.0
    %1732 = vmatprep.subr.mxu0 0.0
    %1733 = vmatpush1.msra.mxu0 0.0
    %1734 = vmatprep.subr.mxu0 0.0
    %1735 = vmatpush1.msra.mxu0 0.0
    %1736 = vmatprep.subr.mxu0 0.0
    %1737 = vmatpush1.msra.mxu0 0.0
    %1738 = vmatprep.subr.mxu0 0.0
    %1739 = vmatpush1.msra.mxu0 0.0
    %1740 = vmatprep.subr.mxu0 0.0
    %1741 = vmatpush1.msra.mxu0 0.0
    %1742 = vmatprep.subr.mxu0 0.0
    %1743 = vmatpush1.msra.mxu0 0.0
    %1744 = vmatprep.subr.mxu0 0.0
    %1745 = vmatpush1.msra.mxu0 0.0
    %1746 = vmatprep.subr.mxu0 0.0
    %1747 = vmatpush1.msra.mxu0 0.0
    %1748 = vmatprep.subr.mxu0 0.0
    %1749 = vmatpush1.msra.mxu0 0.0
    %1750 = vmatprep.subr.mxu0 0.0
    %1751 = vmatpush1.msra.mxu0 0.0
    %1752 = vmatprep.subr.mxu0 0.0
    %1753 = vmatpush1.msra.mxu0 0.0
    %1754 = vmatprep.mubr.f32.mxu0 0.0
    %1755 = vmatmul.mubr.f32.gmra.mrb[0].mxu0 %v1688
    %v1756 = vpop.f32.mrb[0].mxu0
    %v1757 = vadd.f32 0.0, %v1756
    %v1758 = vpop.f32.mrb[0].mxu0
    %1759 = vdwg.mxu0
    %1760 = vrot.lane.b32.xlu0 %v1420, 112
    %v1761 = vpop.permute.xlu0 %1760
    %1762 = vrot.lane.b32.xlu0 %v1420, 80
    %v1763 = vpop.permute.xlu0 %1762
    %v1764 = vsel %vm195, %v1761, 0
    %v1766 = vsel %vm195, %v1763, 0
    %1768 = vmatprep.subr.mxu0 0.0
    %1769 = vmatpush1.xpose.msra.mxu0 %v1766
    %1770 = vmatprep.subr.mxu0 0.0
    %1771 = vmatpush1.xpose.msra.mxu0 0.0
    %1772 = vmatprep.subr.mxu0 0.0
    %1773 = vmatpush1.xpose.msra.mxu0 0.0
    %1774 = vmatprep.subr.mxu0 0.0
    %1775 = vmatpush1.xpose.msra.mxu0 0.0
    %1776 = vmatprep.subr.mxu0 0.0
    %1777 = vmatpush1.xpose.msra.mxu0 0.0
    %1778 = vmatprep.subr.mxu0 0.0
    %1779 = vmatpush1.xpose.msra.mxu0 0.0
    %1780 = vmatprep.subr.mxu0 0.0
    %1781 = vmatpush1.xpose.msra.mxu0 0.0
    %1782 = vmatprep.subr.mxu0 0.0
    %1783 = vmatpush1.xpose.msra.mxu0 0.0
    %1784 = vmatprep.subr.mxu0 0.0
    %1785 = vmatpush1.xpose.msra.mxu0 0.0
    %1786 = vmatprep.subr.mxu0 0.0
    %1787 = vmatpush1.xpose.msra.mxu0 0.0
    %1788 = vmatprep.subr.mxu0 0.0
    %1789 = vmatpush1.xpose.msra.mxu0 0.0
    %1790 = vmatprep.subr.mxu0 0.0
    %1791 = vmatpush1.xpose.msra.mxu0 0.0
    %1792 = vmatprep.subr.mxu0 0.0
    %1793 = vmatpush1.xpose.msra.mxu0 0.0
    %1794 = vmatprep.subr.mxu0 0.0
    %1795 = vmatpush1.xpose.msra.mxu0 0.0
    %1796 = vmatprep.subr.mxu0 0.0
    %1797 = vmatpush1.xpose.msra.mxu0 0.0
    %1798 = vmatprep.subr.mxu0 0.0
    %1799 = vmatpush1.xpose.msra.mxu0 0.0
    %1800 = vmatprep.subr.mxu0 0.0
    %1801 = vmatpush1.xpose.msra.mxu0 0.0
    %1802 = vmatprep.subr.mxu0 0.0
    %1803 = vmatpush1.xpose.msra.mxu0 0.0
    %1804 = vmatprep.subr.mxu0 0.0
    %1805 = vmatpush1.xpose.msra.mxu0 0.0
    %1806 = vmatprep.subr.mxu0 0.0
    %1807 = vmatpush1.xpose.msra.mxu0 0.0
    %1808 = vmatprep.subr.mxu0 0.0
    %1809 = vmatpush1.xpose.msra.mxu0 0.0
    %1810 = vmatprep.subr.mxu0 0.0
    %1811 = vmatpush1.xpose.msra.mxu0 0.0
    %1812 = vmatprep.subr.mxu0 0.0
    %1813 = vmatpush1.xpose.msra.mxu0 0.0
    %1814 = vmatprep.subr.mxu0 0.0
    %1815 = vmatpush1.xpose.msra.mxu0 0.0
    %1816 = vmatprep.subr.mxu0 0.0
    %1817 = vmatpush1.xpose.msra.mxu0 0.0
    %1818 = vmatprep.subr.mxu0 0.0
    %1819 = vmatpush1.xpose.msra.mxu0 0.0
    %1820 = vmatprep.subr.mxu0 0.0
    %1821 = vmatpush1.xpose.msra.mxu0 0.0
    %1822 = vmatprep.subr.mxu0 0.0
    %1823 = vmatpush1.xpose.msra.mxu0 0.0
    %1824 = vmatprep.subr.mxu0 0.0
    %1825 = vmatpush1.xpose.msra.mxu0 0.0
    %1826 = vmatprep.subr.mxu0 0.0
    %1827 = vmatpush1.xpose.msra.mxu0 0.0
    %1828 = vmatprep.subr.mxu0 0.0
    %1829 = vmatpush1.xpose.msra.mxu0 0.0
    %1830 = vmatprep.subr.mxu0 0.0
    %1831 = vmatpush1.xpose.msra.mxu0 0.0
    %1832 = vmatprep.mubr.f32.mxu0 0.0
    %1833 = vmatmul.mubr.f32.gmra.mrb[0].mxu0 %v1764
    %v1834 = vpop.f32.mrb[0].mxu0
    %v1835 = vadd.f32 0.0, %v1834
    %v1836 = vpop.f32.mrb[0].mxu0
    %1837 = vdwg.mxu0
    %1838 = vrot.lane.b32.xlu0 %v1425, 112
    %v1839 = vpop.permute.xlu0 %1838
    %1840 = vrot.lane.b32.xlu0 %v1425, 80
    %v1841 = vpop.permute.xlu0 %1840
    %v1842 = vsel %vm195, %v1839, 0
    %v1844 = vsel %vm195, %v1841, 0
    %1846 = vmatprep.subr.mxu0 0.0
    %1847 = vmatpush1.xpose.msra.mxu0 %v1844
    %1848 = vmatprep.subr.mxu0 0.0
    %1849 = vmatpush1.xpose.msra.mxu0 0.0
    %1850 = vmatprep.subr.mxu0 0.0
    %1851 = vmatpush1.xpose.msra.mxu0 0.0
    %1852 = vmatprep.subr.mxu0 0.0
    %1853 = vmatpush1.xpose.msra.mxu0 0.0
    %1854 = vmatprep.subr.mxu0 0.0
    %1855 = vmatpush1.xpose.msra.mxu0 0.0
    %1856 = vmatprep.subr.mxu0 0.0
    %1857 = vmatpush1.xpose.msra.mxu0 0.0
    %1858 = vmatprep.subr.mxu0 0.0
    %1859 = vmatpush1.xpose.msra.mxu0 0.0
    %1860 = vmatprep.subr.mxu0 0.0
    %1861 = vmatpush1.xpose.msra.mxu0 0.0
    %1862 = vmatprep.subr.mxu0 0.0
    %1863 = vmatpush1.xpose.msra.mxu0 0.0
    %1864 = vmatprep.subr.mxu0 0.0
    %1865 = vmatpush1.xpose.msra.mxu0 0.0
    %1866 = vmatprep.subr.mxu0 0.0
    %1867 = vmatpush1.xpose.msra.mxu0 0.0
    %1868 = vmatprep.subr.mxu0 0.0
    %1869 = vmatpush1.xpose.msra.mxu0 0.0
    %1870 = vmatprep.subr.mxu0 0.0
    %1871 = vmatpush1.xpose.msra.mxu0 0.0
    %1872 = vmatprep.subr.mxu0 0.0
    %1873 = vmatpush1.xpose.msra.mxu0 0.0
    %1874 = vmatprep.subr.mxu0 0.0
    %1875 = vmatpush1.xpose.msra.mxu0 0.0
    %1876 = vmatprep.subr.mxu0 0.0
    %1877 = vmatpush1.xpose.msra.mxu0 0.0
    %1878 = vmatprep.subr.mxu0 0.0
    %1879 = vmatpush1.xpose.msra.mxu0 0.0
    %1880 = vmatprep.subr.mxu0 0.0
    %1881 = vmatpush1.xpose.msra.mxu0 0.0
    %1882 = vmatprep.subr.mxu0 0.0
    %1883 = vmatpush1.xpose.msra.mxu0 0.0
    %1884 = vmatprep.subr.mxu0 0.0
    %1885 = vmatpush1.xpose.msra.mxu0 0.0
    %1886 = vmatprep.subr.mxu0 0.0
    %1887 = vmatpush1.xpose.msra.mxu0 0.0
    %1888 = vmatprep.subr.mxu0 0.0
    %1889 = vmatpush1.xpose.msra.mxu0 0.0
    %1890 = vmatprep.subr.mxu0 0.0
    %1891 = vmatpush1.xpose.msra.mxu0 0.0
    %1892 = vmatprep.subr.mxu0 0.0
    %1893 = vmatpush1.xpose.msra.mxu0 0.0
    %1894 = vmatprep.subr.mxu0 0.0
    %1895 = vmatpush1.xpose.msra.mxu0 0.0
    %1896 = vmatprep.subr.mxu0 0.0
    %1897 = vmatpush1.xpose.msra.mxu0 0.0
    %1898 = vmatprep.subr.mxu0 0.0
    %1899 = vmatpush1.xpose.msra.mxu0 0.0
    %1900 = vmatprep.subr.mxu0 0.0
    %1901 = vmatpush1.xpose.msra.mxu0 0.0
    %1902 = vmatprep.subr.mxu0 0.0
    %1903 = vmatpush1.xpose.msra.mxu0 0.0
    %1904 = vmatprep.subr.mxu0 0.0
    %1905 = vmatpush1.xpose.msra.mxu0 0.0
    %1906 = vmatprep.subr.mxu0 0.0
    %1907 = vmatpush1.xpose.msra.mxu0 0.0
    %1908 = vmatprep.subr.mxu0 0.0
    %1909 = vmatpush1.xpose.msra.mxu0 0.0
    %1910 = vmatprep.mubr.f32.mxu0 0.0
    %1911 = vmatmul.mubr.f32.gmra.mrb[0].mxu0 %v1842
    %v1912 = vpop.f32.mrb[0].mxu0
    %v1913 = vadd.f32 0.0, %v1912
    %v1914 = vpop.f32.mrb[0].mxu0
    %1915 = vdwg.mxu0
    %v1916 = vmul.f32 %v1835, 0.25
    %v1917 = vmul.f32 %v1913, 0.25
    %v1918 = vadd.f32 %v1916, %v354
    %v1919 = vadd.f32 %v1917, %v358
    %v1920 = vsel %vm363, %v1918, -inf
    %1921 = vmax.xlane.f32.xlu0 %v1920
    %v1922 = vpop.xlane.xlu0 %1921
    %v1923 = vsel %vm363, %v1919, -inf
    %1924 = vmax.xlane.f32.xlu0 %v1923
    %v1925 = vpop.xlane.xlu0 %1924
    %v1926 = vsub.f32 %v1918, %v1922
    %v1927 = vsub.f32 %v1919, %v1925
    %v1928 = vmul.f32 %v1926, 1.442695
    %v1929 = vpow.pop %v1928
    %v1930 = vmul.f32 %v1927, 1.442695
    %v1931 = vpow.pop %v1930
    %v1932 = vsel %vm363, %v1929, 0.0
    %1933 = vadd.xlane.f32.xlu0 %v1932
    %v1934 = vpop.xlane.xlu0 %1933
    %v1935 = vsel %vm363, %v1931, 0.0
    %1936 = vadd.xlane.f32.xlu0 %v1935
    %v1937 = vpop.xlane.xlu0 %1936
    %v1938 = vrcp.pop %v1934
    %v1939 = vrcp.pop %v1937
    %v1940 = vmul.f32 %v1929, %v1938
    %v1941 = vmul.f32 %v1931, %v1939
    %1942 = vrot.lane.b32.xlu0 %v1420, 48
    %v1943 = vpop.permute.xlu0 %1942
    %v1946 = vsel %vm363, %v1940, 0
    %1948 = vmatprep.subr.mxu0 0.0
    %1949 = vmatpush1.msra.mxu0 %v1943
    %1950 = vmatprep.subr.mxu0 0.0
    %1951 = vmatpush1.msra.mxu0 0.0
    %1952 = vmatprep.subr.mxu0 0.0
    %1953 = vmatpush1.msra.mxu0 0.0
    %1954 = vmatprep.subr.mxu0 0.0
    %1955 = vmatpush1.msra.mxu0 0.0
    %1956 = vmatprep.subr.mxu0 0.0
    %1957 = vmatpush1.msra.mxu0 0.0
    %1958 = vmatprep.subr.mxu0 0.0
    %1959 = vmatpush1.msra.mxu0 0.0
    %1960 = vmatprep.subr.mxu0 0.0
    %1961 = vmatpush1.msra.mxu0 0.0
    %1962 = vmatprep.subr.mxu0 0.0
    %1963 = vmatpush1.msra.mxu0 0.0
    %1964 = vmatprep.subr.mxu0 0.0
    %1965 = vmatpush1.msra.mxu0 0.0
    %1966 = vmatprep.subr.mxu0 0.0
    %1967 = vmatpush1.msra.mxu0 0.0
    %1968 = vmatprep.subr.mxu0 0.0
    %1969 = vmatpush1.msra.mxu0 0.0
    %1970 = vmatprep.subr.mxu0 0.0
    %1971 = vmatpush1.msra.mxu0 0.0
    %1972 = vmatprep.subr.mxu0 0.0
    %1973 = vmatpush1.msra.mxu0 0.0
    %1974 = vmatprep.subr.mxu0 0.0
    %1975 = vmatpush1.msra.mxu0 0.0
    %1976 = vmatprep.subr.mxu0 0.0
    %1977 = vmatpush1.msra.mxu0 0.0
    %1978 = vmatprep.subr.mxu0 0.0
    %1979 = vmatpush1.msra.mxu0 0.0
    %1980 = vmatprep.subr.mxu0 0.0
    %1981 = vmatpush1.msra.mxu0 0.0
    %1982 = vmatprep.subr.mxu0 0.0
    %1983 = vmatpush1.msra.mxu0 0.0
    %1984 = vmatprep.subr.mxu0 0.0
    %1985 = vmatpush1.msra.mxu0 0.0
    %1986 = vmatprep.subr.mxu0 0.0
    %1987 = vmatpush1.msra.mxu0 0.0
    %1988 = vmatprep.subr.mxu0 0.0
    %1989 = vmatpush1.msra.mxu0 0.0
    %1990 = vmatprep.subr.mxu0 0.0
    %1991 = vmatpush1.msra.mxu0 0.0
    %1992 = vmatprep.subr.mxu0 0.0
    %1993 = vmatpush1.msra.mxu0 0.0
    %1994 = vmatprep.subr.mxu0 0.0
    %1995 = vmatpush1.msra.mxu0 0.0
    %1996 = vmatprep.subr.mxu0 0.0
    %1997 = vmatpush1.msra.mxu0 0.0
    %1998 = vmatprep.subr.mxu0 0.0
    %1999 = vmatpush1.msra.mxu0 0.0
    %2000 = vmatprep.subr.mxu0 0.0
    %2001 = vmatpush1.msra.mxu0 0.0
    %2002 = vmatprep.subr.mxu0 0.0
    %2003 = vmatpush1.msra.mxu0 0.0
    %2004 = vmatprep.subr.mxu0 0.0
    %2005 = vmatpush1.msra.mxu0 0.0
    %2006 = vmatprep.subr.mxu0 0.0
    %2007 = vmatpush1.msra.mxu0 0.0
    %2008 = vmatprep.subr.mxu0 0.0
    %2009 = vmatpush1.msra.mxu0 0.0
    %2010 = vmatprep.subr.mxu0 0.0
    %2011 = vmatpush1.msra.mxu0 0.0
    %2012 = vmatprep.mubr.f32.mxu0 0.0
    %2013 = vmatmul.mubr.f32.gmra.mrb[0].mxu0 %v1946
    %v2014 = vpop.f32.mrb[0].mxu0
    %v2015 = vadd.f32 0.0, %v2014
    %v2016 = vpop.f32.mrb[0].mxu0
    %2017 = vdwg.mxu0
    %2018 = vrot.lane.b32.xlu0 %v1425, 48
    %v2019 = vpop.permute.xlu0 %2018
    %v2022 = vsel %vm363, %v1941, 0
    %2024 = vmatprep.subr.mxu0 0.0
    %2025 = vmatpush1.msra.mxu0 %v2019
    %2026 = vmatprep.subr.mxu0 0.0
    %2027 = vmatpush1.msra.mxu0 0.0
    %2028 = vmatprep.subr.mxu0 0.0
    %2029 = vmatpush1.msra.mxu0 0.0
    %2030 = vmatprep.subr.mxu0 0.0
    %2031 = vmatpush1.msra.mxu0 0.0
    %2032 = vmatprep.subr.mxu0 0.0
    %2033 = vmatpush1.msra.mxu0 0.0
    %2034 = vmatprep.subr.mxu0 0.0
    %2035 = vmatpush1.msra.mxu0 0.0
    %2036 = vmatprep.subr.mxu0 0.0
    %2037 = vmatpush1.msra.mxu0 0.0
    %2038 = vmatprep.subr.mxu0 0.0
    %2039 = vmatpush1.msra.mxu0 0.0
    %2040 = vmatprep.subr.mxu0 0.0
    %2041 = vmatpush1.msra.mxu0 0.0
    %2042 = vmatprep.subr.mxu0 0.0
    %2043 = vmatpush1.msra.mxu0 0.0
    %2044 = vmatprep.subr.mxu0 0.0
    %2045 = vmatpush1.msra.mxu0 0.0
    %2046 = vmatprep.subr.mxu0 0.0
    %2047 = vmatpush1.msra.mxu0 0.0
    %2048 = vmatprep.subr.mxu0 0.0
    %2049 = vmatpush1.msra.mxu0 0.0
    %2050 = vmatprep.subr.mxu0 0.0
    %2051 = vmatpush1.msra.mxu0 0.0
    %2052 = vmatprep.subr.mxu0 0.0
    %2053 = vmatpush1.msra.mxu0 0.0
    %2054 = vmatprep.subr.mxu0 0.0
    %2055 = vmatpush1.msra.mxu0 0.0
    %2056 = vmatprep.subr.mxu0 0.0
    %2057 = vmatpush1.msra.mxu0 0.0
    %2058 = vmatprep.subr.mxu0 0.0
    %2059 = vmatpush1.msra.mxu0 0.0
    %2060 = vmatprep.subr.mxu0 0.0
    %2061 = vmatpush1.msra.mxu0 0.0
    %2062 = vmatprep.subr.mxu0 0.0
    %2063 = vmatpush1.msra.mxu0 0.0
    %2064 = vmatprep.subr.mxu0 0.0
    %2065 = vmatpush1.msra.mxu0 0.0
    %2066 = vmatprep.subr.mxu0 0.0
    %2067 = vmatpush1.msra.mxu0 0.0
    %2068 = vmatprep.subr.mxu0 0.0
    %2069 = vmatpush1.msra.mxu0 0.0
    %2070 = vmatprep.subr.mxu0 0.0
    %2071 = vmatpush1.msra.mxu0 0.0
    %2072 = vmatprep.subr.mxu0 0.0
    %2073 = vmatpush1.msra.mxu0 0.0
    %2074 = vmatprep.subr.mxu0 0.0
    %2075 = vmatpush1.msra.mxu0 0.0
    %2076 = vmatprep.subr.mxu0 0.0
    %2077 = vmatpush1.msra.mxu0 0.0
    %2078 = vmatprep.subr.mxu0 0.0
    %2079 = vmatpush1.msra.mxu0 0.0
    %2080 = vmatprep.subr.mxu0 0.0
    %2081 = vmatpush1.msra.mxu0 0.0
    %2082 = vmatprep.subr.mxu0 0.0
    %2083 = vmatpush1.msra.mxu0 0.0
    %2084 = vmatprep.subr.mxu0 0.0
    %2085 = vmatpush1.msra.mxu0 0.0
    %2086 = vmatprep.subr.mxu0 0.0
    %2087 = vmatpush1.msra.mxu0 0.0
    %2088 = vmatprep.mubr.f32.mxu0 0.0
    %2089 = vmatmul.mubr.f32.gmra.mrb[0].mxu0 %v2022
    %v2090 = vpop.f32.mrb[0].mxu0
    %v2091 = vadd.f32 0.0, %v2090
    %v2092 = vpop.f32.mrb[0].mxu0
    %2093 = vdwg.mxu0
    %v2095 = vsel %vm195, %v2015, 0
    %v2098 = vsel %vm195, %v2091, 0
    %2100 = vmatprep.subr.mxu0 0.0
    %2101 = vmatpush1.msra.mxu0 %v1321
    %2102 = vmatprep.subr.mxu0 0.0
    %2103 = vmatpush1.msra.mxu0 %v1322
    %2104 = vmatprep.subr.mxu0 0.0
    %2105 = vmatpush1.msra.mxu0 0.0
    %2106 = vmatprep.subr.mxu0 0.0
    %2107 = vmatpush1.msra.mxu0 0.0
    %2108 = vmatprep.subr.mxu0 0.0
    %2109 = vmatpush1.msra.mxu0 0.0
    %2110 = vmatprep.subr.mxu0 0.0
    %2111 = vmatpush1.msra.mxu0 0.0
    %2112 = vmatprep.subr.mxu0 0.0
    %2113 = vmatpush1.msra.mxu0 0.0
    %2114 = vmatprep.subr.mxu0 0.0
    %2115 = vmatpush1.msra.mxu0 0.0
    %2116 = vmatprep.subr.mxu0 0.0
    %2117 = vmatpush1.msra.mxu0 0.0
    %2118 = vmatprep.subr.mxu0 0.0
    %2119 = vmatpush1.msra.mxu0 0.0
    %2120 = vmatprep.subr.mxu0 0.0
    %2121 = vmatpush1.msra.mxu0 0.0
    %2122 = vmatprep.subr.mxu0 0.0
    %2123 = vmatpush1.msra.mxu0 0.0
    %2124 = vmatprep.subr.mxu0 0.0
    %2125 = vmatpush1.msra.mxu0 0.0
    %2126 = vmatprep.subr.mxu0 0.0
    %2127 = vmatpush1.msra.mxu0 0.0
    %2128 = vmatprep.subr.mxu0 0.0
    %2129 = vmatpush1.msra.mxu0 0.0
    %2130 = vmatprep.subr.mxu0 0.0
    %2131 = vmatpush1.msra.mxu0 0.0
    %2132 = vmatprep.subr.mxu0 0.0
    %2133 = vmatpush1.msra.mxu0 0.0
    %2134 = vmatprep.subr.mxu0 0.0
    %2135 = vmatpush1.msra.mxu0 0.0
    %2136 = vmatprep.subr.mxu0 0.0
    %2137 = vmatpush1.msra.mxu0 0.0
    %2138 = vmatprep.subr.mxu0 0.0
    %2139 = vmatpush1.msra.mxu0 0.0
    %2140 = vmatprep.subr.mxu0 0.0
    %2141 = vmatpush1.msra.mxu0 0.0
    %2142 = vmatprep.subr.mxu0 0.0
    %2143 = vmatpush1.msra.mxu0 0.0
    %2144 = vmatprep.subr.mxu0 0.0
    %2145 = vmatpush1.msra.mxu0 0.0
    %2146 = vmatprep.subr.mxu0 0.0
    %2147 = vmatpush1.msra.mxu0 0.0
    %2148 = vmatprep.subr.mxu0 0.0
    %2149 = vmatpush1.msra.mxu0 0.0
    %2150 = vmatprep.subr.mxu0 0.0
    %2151 = vmatpush1.msra.mxu0 0.0
    %2152 = vmatprep.subr.mxu0 0.0
    %2153 = vmatpush1.msra.mxu0 0.0
    %2154 = vmatprep.subr.mxu0 0.0
    %2155 = vmatpush1.msra.mxu0 0.0
    %2156 = vmatprep.subr.mxu0 0.0
    %2157 = vmatpush1.msra.mxu0 0.0
    %2158 = vmatprep.subr.mxu0 0.0
    %2159 = vmatpush1.msra.mxu0 0.0
    %2160 = vmatprep.subr.mxu0 0.0
    %2161 = vmatpush1.msra.mxu0 0.0
    %2162 = vmatprep.subr.mxu0 0.0
    %2163 = vmatpush1.msra.mxu0 0.0
    %2164 = vmatprep.mubr.f32.mxu0 0.0
    %2165 = vmatmul.mubr.f32.gmra.mrb[0].mxu0 %v2095
    %v2166 = vpop.f32.mrb[0].mxu0
    %v2167 = vadd.f32 0.0, %v2166
    %v2168 = vpop.f32.mrb[0].mxu0
    %2169 = vmatprep.mubr.f32.mxu0 0.0
    %2170 = vmatmul.mubr.f32.gmra.mrb[0].mxu0 %v2098
    %v2171 = vpop.f32.mrb[0].mxu0
    %v2172 = vadd.f32 0.0, %v2171
    %v2173 = vpop.f32.mrb[0].mxu0
    %2174 = vdwg.mxu0
    %v2176 = vsel %vm195, %v1681, 0
    %v2179 = vsel %vm195, %v1757, 0
    %2181 = vmatprep.subr.mxu0 0.0
    %2182 = vmatpush1.msra.mxu0 %v1319
    %2183 = vmatprep.subr.mxu0 0.0
    %2184 = vmatpush1.msra.mxu0 %v1320
    %2185 = vmatprep.subr.mxu0 0.0
    %2186 = vmatpush1.msra.mxu0 0.0
    %2187 = vmatprep.subr.mxu0 0.0
    %2188 = vmatpush1.msra.mxu0 0.0
    %2189 = vmatprep.subr.mxu0 0.0
    %2190 = vmatpush1.msra.mxu0 0.0
    %2191 = vmatprep.subr.mxu0 0.0
    %2192 = vmatpush1.msra.mxu0 0.0
    %2193 = vmatprep.subr.mxu0 0.0
    %2194 = vmatpush1.msra.mxu0 0.0
    %2195 = vmatprep.subr.mxu0 0.0
    %2196 = vmatpush1.msra.mxu0 0.0
    %2197 = vmatprep.subr.mxu0 0.0
    %2198 = vmatpush1.msra.mxu0 0.0
    %2199 = vmatprep.subr.mxu0 0.0
    %2200 = vmatpush1.msra.mxu0 0.0
    %2201 = vmatprep.subr.mxu0 0.0
    %2202 = vmatpush1.msra.mxu0 0.0
    %2203 = vmatprep.subr.mxu0 0.0
    %2204 = vmatpush1.msra.mxu0 0.0
    %2205 = vmatprep.subr.mxu0 0.0
    %2206 = vmatpush1.msra.mxu0 0.0
    %2207 = vmatprep.subr.mxu0 0.0
    %2208 = vmatpush1.msra.mxu0 0.0
    %2209 = vmatprep.subr.mxu0 0.0
    %2210 = vmatpush1.msra.mxu0 0.0
    %2211 = vmatprep.subr.mxu0 0.0
    %2212 = vmatpush1.msra.mxu0 0.0
    %2213 = vmatprep.subr.mxu0 0.0
    %2214 = vmatpush1.msra.mxu0 0.0
    %2215 = vmatprep.subr.mxu0 0.0
    %2216 = vmatpush1.msra.mxu0 0.0
    %2217 = vmatprep.subr.mxu0 0.0
    %2218 = vmatpush1.msra.mxu0 0.0
    %2219 = vmatprep.subr.mxu0 0.0
    %2220 = vmatpush1.msra.mxu0 0.0
    %2221 = vmatprep.subr.mxu0 0.0
    %2222 = vmatpush1.msra.mxu0 0.0
    %2223 = vmatprep.subr.mxu0 0.0
    %2224 = vmatpush1.msra.mxu0 0.0
    %2225 = vmatprep.subr.mxu0 0.0
    %2226 = vmatpush1.msra.mxu0 0.0
    %2227 = vmatprep.subr.mxu0 0.0
    %2228 = vmatpush1.msra.mxu0 0.0
    %2229 = vmatprep.subr.mxu0 0.0
    %2230 = vmatpush1.msra.mxu0 0.0
    %2231 = vmatprep.subr.mxu0 0.0
    %2232 = vmatpush1.msra.mxu0 0.0
    %2233 = vmatprep.subr.mxu0 0.0
    %2234 = vmatpush1.msra.mxu0 0.0
    %2235 = vmatprep.subr.mxu0 0.0
    %2236 = vmatpush1.msra.mxu0 0.0
    %2237 = vmatprep.subr.mxu0 0.0
    %2238 = vmatpush1.msra.mxu0 0.0
    %2239 = vmatprep.subr.mxu0 0.0
    %2240 = vmatpush1.msra.mxu0 0.0
    %2241 = vmatprep.subr.mxu0 0.0
    %2242 = vmatpush1.msra.mxu0 0.0
    %2243 = vmatprep.subr.mxu0 0.0
    %2244 = vmatpush1.msra.mxu0 0.0
    %2245 = vmatprep.mubr.f32.mxu0 0.0
    %2246 = vmatmul.mubr.f32.gmra.mrb[0].mxu0 %v2176
    %v2247 = vpop.f32.mrb[0].mxu0
    %v2248 = vadd.f32 %v2167, %v2247
    %v2249 = vpop.f32.mrb[0].mxu0
    %2250 = vmatprep.mubr.f32.mxu0 0.0
    %2251 = vmatmul.mubr.f32.gmra.mrb[0].mxu0 %v2179
    %v2252 = vpop.f32.mrb[0].mxu0
    %v2253 = vadd.f32 %v2172, %v2252
    %v2254 = vpop.f32.mrb[0].mxu0
    %2255 = vdwg.mxu0
    %v2256 = vlaneseq
    %v2257 = vshrl.u32 %v2256, 7
    %v2258 = vsub.s32 0, %v2257
    %v2259 = vrot.slane %v1340, %v2258
    %v2260 = vadd.f32 %v2248, %v2259
    %v2261 = vadd.f32 %v2253, %v2259
    %v2262 = vadd.f32 %v1309, %v2260
    %v2263 = vadd.f32 %v1310, %v2261
    %v2264 = vsel %vm40, %v2262, 0.0
    %2265 = vadd.xlane.f32.xlu0 %v2264
    %v2266 = vpop.xlane.xlu0 %2265
    %v2267 = vsel %vm40, %v2263, 0.0
    %2268 = vadd.xlane.f32.xlu0 %v2267
    %v2269 = vpop.xlane.xlu0 %2268
    %v2270 = vmul.f32 %v2266, %v47
    %v2271 = vmul.f32 %v2269, %v47
    %v2272 = vsub.f32 %v2262, %v2270
    %v2273 = vsub.f32 %v2263, %v2271
    %v2274 = vmul.f32 %v2272, %v2272
    %v2275 = vmul.f32 %v2273, %v2273
    %v2276 = vsel %vm40, %v2274, 0.0
    %2277 = vadd.xlane.f32.xlu0 %v2276
    %v2278 = vpop.xlane.xlu0 %2277
    %v2279 = vsel %vm40, %v2275, 0.0
    %2280 = vadd.xlane.f32.xlu0 %v2279
    %v2281 = vpop.xlane.xlu0 %2280
    %v2282 = vmul.f32 %v2278, %v47
    %v2283 = vmul.f32 %v2281, %v47
    %v2284 = vadd.f32 %v2282, 1e-12
    %v2285 = vadd.f32 %v2283, 1e-12
    %v2286 = vrsqrt.pop %v2284
    %v2287 = vrsqrt.pop %v2285
    %v2288 = vmul.f32 %v2272, %v2286
    %v2289 = vmul.f32 %v2273, %v2287
    %v2290 = vlaneseq
    %v2291 = vshrl.u32 %v2290, 7
    %v2292 = vsub.s32 2, %v2291
    %v2293 = vrot.slane %v1340, %v2292
    %v2294 = vmul.f32 %v2288, %v2293
    %v2295 = vmul.f32 %v2289, %v2293
    %v2296 = vlaneseq
    %v2297 = vshrl.u32 %v2296, 7
    %v2298 = vsub.s32 3, %v2297
    %v2299 = vrot.slane %v1340, %v2298
    %v2300 = vadd.f32 %v2294, %v2299
    %v2301 = vadd.f32 %v2295, %v2299
    %v2303 = vlaneseq
    %v2304 = vshrl.u32 %v2303, 7
    %v2305 = vsub.s32 0, %v2304
    %v2306 = vrot.slane %v1329, %v2305
    %v2309 = vsel %vm40, %v2300, 0
    %v2312 = vsel %vm40, %v2301, 0
    %2314 = vmatprep.subr.mxu0 0.0
    %2315 = vmatpush1.msra.mxu0 %v1324
    %2316 = vmatprep.subr.mxu0 0.0
    %2317 = vmatpush1.msra.mxu0 %v1325
    %2318 = vmatprep.subr.mxu0 0.0
    %2319 = vmatpush1.msra.mxu0 %v1326
    %2320 = vmatprep.subr.mxu0 0.0
    %2321 = vmatpush1.msra.mxu0 %v1327
    %2322 = vmatprep.subr.mxu0 0.0
    %2323 = vmatpush1.msra.mxu0 0.0
    %2324 = vmatprep.subr.mxu0 0.0
    %2325 = vmatpush1.msra.mxu0 0.0
    %2326 = vmatprep.subr.mxu0 0.0
    %2327 = vmatpush1.msra.mxu0 0.0
    %2328 = vmatprep.subr.mxu0 0.0
    %2329 = vmatpush1.msra.mxu0 0.0
    %2330 = vmatprep.subr.mxu0 0.0
    %2331 = vmatpush1.msra.mxu0 0.0
    %2332 = vmatprep.subr.mxu0 0.0
    %2333 = vmatpush1.msra.mxu0 0.0
    %2334 = vmatprep.subr.mxu0 0.0
    %2335 = vmatpush1.msra.mxu0 0.0
    %2336 = vmatprep.subr.mxu0 0.0
    %2337 = vmatpush1.msra.mxu0 0.0
    %2338 = vmatprep.subr.mxu0 0.0
    %2339 = vmatpush1.msra.mxu0 0.0
    %2340 = vmatprep.subr.mxu0 0.0
    %2341 = vmatpush1.msra.mxu0 0.0
    %2342 = vmatprep.subr.mxu0 0.0
    %2343 = vmatpush1.msra.mxu0 0.0
    %2344 = vmatprep.subr.mxu0 0.0
    %2345 = vmatpush1.msra.mxu0 0.0
    %2346 = vmatprep.subr.mxu0 0.0
    %2347 = vmatpush1.msra.mxu0 0.0
    %2348 = vmatprep.subr.mxu0 0.0
    %2349 = vmatpush1.msra.mxu0 0.0
    %2350 = vmatprep.subr.mxu0 0.0
    %2351 = vmatpush1.msra.mxu0 0.0
    %2352 = vmatprep.subr.mxu0 0.0
    %2353 = vmatpush1.msra.mxu0 0.0
    %2354 = vmatprep.subr.mxu0 0.0
    %2355 = vmatpush1.msra.mxu0 0.0
    %2356 = vmatprep.subr.mxu0 0.0
    %2357 = vmatpush1.msra.mxu0 0.0
    %2358 = vmatprep.subr.mxu0 0.0
    %2359 = vmatpush1.msra.mxu0 0.0
    %2360 = vmatprep.subr.mxu0 0.0
    %2361 = vmatpush1.msra.mxu0 0.0
    %2362 = vmatprep.subr.mxu0 0.0
    %2363 = vmatpush1.msra.mxu0 0.0
    %2364 = vmatprep.subr.mxu0 0.0
    %2365 = vmatpush1.msra.mxu0 0.0
    %2366 = vmatprep.subr.mxu0 0.0
    %2367 = vmatpush1.msra.mxu0 0.0
    %2368 = vmatprep.subr.mxu0 0.0
    %2369 = vmatpush1.msra.mxu0 0.0
    %2370 = vmatprep.subr.mxu0 0.0
    %2371 = vmatpush1.msra.mxu0 0.0
    %2372 = vmatprep.subr.mxu0 0.0
    %2373 = vmatpush1.msra.mxu0 0.0
    %2374 = vmatprep.subr.mxu0 0.0
    %2375 = vmatpush1.msra.mxu0 0.0
    %2376 = vmatprep.subr.mxu0 0.0
    %2377 = vmatpush1.msra.mxu0 0.0
    %2378 = vmatprep.mubr.f32.mxu0 0.0
    %2379 = vmatmul.mubr.f32.gmra.mrb[0].mxu0 %v2309
    %v2380 = vpop.f32.mrb[0].mxu0
    %v2381 = vadd.f32 %v2306, %v2380
    %v2382 = vpop.f32.mrb[0].mxu0
    %2383 = vmatprep.mubr.f32.mxu0 0.0
    %2384 = vmatmul.mubr.f32.gmra.mrb[0].mxu0 %v2312
    %v2385 = vpop.f32.mrb[0].mxu0
    %v2386 = vadd.f32 %v2306, %v2385
    %v2387 = vpop.f32.mrb[0].mxu0
    %2388 = vdwg.mxu0
    %v2389 = vmul.f32 %v2381, %v2381
    %v2390 = vmul.f32 %v2386, %v2386
    %v2391 = vmul.f32 %v2381, %v2389
    %v2392 = vmul.f32 %v2386, %v2390
    %v2393 = vmul.f32 %v2391, 0.044715
    %v2394 = vmul.f32 %v2392, 0.044715
    %v2395 = vadd.f32 %v2381, %v2393
    %v2396 = vadd.f32 %v2386, %v2394
    %v2397 = vmul.f32 %v2395, 0.7978846
    %v2398 = vmul.f32 %v2396, 0.7978846
    %v2399 = vtanh.pop %v2397
    %v2400 = vtanh.pop %v2398
    %v2401 = vadd.f32 %v2399, 1.0
    %v2402 = vadd.f32 %v2400, 1.0
    %v2403 = vmul.f32 %v2401, 0.5
    %v2404 = vmul.f32 %v2402, 0.5
    %v2405 = vmul.f32 %v2381, %v2403
    %v2406 = vmul.f32 %v2386, %v2404
    %v2407 = vlaneseq
    %v2408 = vshrl.u32 %v2407, 7
    %v2409 = vsub.s32 1, %v2408
    %v2410 = vrot.slane %v1340, %v2409
    %v2412 = vsel %vm1189, %v2405, 0
    %v2415 = vsel %vm1189, %v2406, 0
    %2417 = vmatprep.subr.mxu0 0.0
    %2418 = vmatpush1.msra.mxu0 %v1331
    %2419 = vmatprep.subr.mxu0 0.0
    %2420 = vmatpush1.msra.mxu0 %v1332
    %2421 = vmatprep.subr.mxu0 0.0
    %2422 = vmatpush1.msra.mxu0 %v1333
    %2423 = vmatprep.subr.mxu0 0.0
    %2424 = vmatpush1.msra.mxu0 %v1334
    %2425 = vmatprep.subr.mxu0 0.0
    %2426 = vmatpush1.msra.mxu0 %v1335
    %2427 = vmatprep.subr.mxu0 0.0
    %2428 = vmatpush1.msra.mxu0 %v1336
    %2429 = vmatprep.subr.mxu0 0.0
    %2430 = vmatpush1.msra.mxu0 %v1337
    %2431 = vmatprep.subr.mxu0 0.0
    %2432 = vmatpush1.msra.mxu0 %v1338
    %2433 = vmatprep.subr.mxu0 0.0
    %2434 = vmatpush1.msra.mxu0 0.0
    %2435 = vmatprep.subr.mxu0 0.0
    %2436 = vmatpush1.msra.mxu0 0.0
    %2437 = vmatprep.subr.mxu0 0.0
    %2438 = vmatpush1.msra.mxu0 0.0
    %2439 = vmatprep.subr.mxu0 0.0
    %2440 = vmatpush1.msra.mxu0 0.0
    %2441 = vmatprep.subr.mxu0 0.0
    %2442 = vmatpush1.msra.mxu0 0.0
    %2443 = vmatprep.subr.mxu0 0.0
    %2444 = vmatpush1.msra.mxu0 0.0
    %2445 = vmatprep.subr.mxu0 0.0
    %2446 = vmatpush1.msra.mxu0 0.0
    %2447 = vmatprep.subr.mxu0 0.0
    %2448 = vmatpush1.msra.mxu0 0.0
    %2449 = vmatprep.subr.mxu0 0.0
    %2450 = vmatpush1.msra.mxu0 0.0
    %2451 = vmatprep.subr.mxu0 0.0
    %2452 = vmatpush1.msra.mxu0 0.0
    %2453 = vmatprep.subr.mxu0 0.0
    %2454 = vmatpush1.msra.mxu0 0.0
    %2455 = vmatprep.subr.mxu0 0.0
    %2456 = vmatpush1.msra.mxu0 0.0
    %2457 = vmatprep.subr.mxu0 0.0
    %2458 = vmatpush1.msra.mxu0 0.0
    %2459 = vmatprep.subr.mxu0 0.0
    %2460 = vmatpush1.msra.mxu0 0.0
    %2461 = vmatprep.subr.mxu0 0.0
    %2462 = vmatpush1.msra.mxu0 0.0
    %2463 = vmatprep.subr.mxu0 0.0
    %2464 = vmatpush1.msra.mxu0 0.0
    %2465 = vmatprep.subr.mxu0 0.0
    %2466 = vmatpush1.msra.mxu0 0.0
    %2467 = vmatprep.subr.mxu0 0.0
    %2468 = vmatpush1.msra.mxu0 0.0
    %2469 = vmatprep.subr.mxu0 0.0
    %2470 = vmatpush1.msra.mxu0 0.0
    %2471 = vmatprep.subr.mxu0 0.0
    %2472 = vmatpush1.msra.mxu0 0.0
    %2473 = vmatprep.subr.mxu0 0.0
    %2474 = vmatpush1.msra.mxu0 0.0
    %2475 = vmatprep.subr.mxu0 0.0
    %2476 = vmatpush1.msra.mxu0 0.0
    %2477 = vmatprep.subr.mxu0 0.0
    %2478 = vmatpush1.msra.mxu0 0.0
    %2479 = vmatprep.subr.mxu0 0.0
    %2480 = vmatpush1.msra.mxu0 0.0
    %2481 = vmatprep.mubr.f32.mxu0 0.0
    %2482 = vmatmul.mubr.f32.gmra.mrb[0].mxu0 %v2412
    %v2483 = vpop.f32.mrb[0].mxu0
    %v2484 = vadd.f32 %v2410, %v2483
    %v2485 = vpop.f32.mrb[0].mxu0
    %2486 = vmatprep.mubr.f32.mxu0 0.0
    %2487 = vmatmul.mubr.f32.gmra.mrb[0].mxu0 %v2415
    %v2488 = vpop.f32.mrb[0].mxu0
    %v2489 = vadd.f32 %v2410, %v2488
    %v2490 = vpop.f32.mrb[0].mxu0
    %2491 = vdwg.mxu0
    %v2492 = vadd.f32 %v2300, %v2484
    %v2493 = vadd.f32 %v2301, %v2489
    %v2494 = vsel %vm40, %v2492, 0.0
    %2495 = vadd.xlane.f32.xlu0 %v2494
    %v2496 = vpop.xlane.xlu0 %2495
    %v2497 = vsel %vm40, %v2493, 0.0
    %2498 = vadd.xlane.f32.xlu0 %v2497
    %v2499 = vpop.xlane.xlu0 %2498
    %v2500 = vmul.f32 %v2496, %v47
    %v2501 = vmul.f32 %v2499, %v47
    %v2502 = vsub.f32 %v2492, %v2500
    %v2503 = vsub.f32 %v2493, %v2501
    %v2504 = vmul.f32 %v2502, %v2502
    %v2505 = vmul.f32 %v2503, %v2503
    %v2506 = vsel %vm40, %v2504, 0.0
    %2507 = vadd.xlane.f32.xlu0 %v2506
    %v2508 = vpop.xlane.xlu0 %2507
    %v2509 = vsel %vm40, %v2505, 0.0
    %2510 = vadd.xlane.f32.xlu0 %v2509
    %v2511 = vpop.xlane.xlu0 %2510
    %v2512 = vmul.f32 %v2508, %v47
    %v2513 = vmul.f32 %v2511, %v47
    %v2514 = vadd.f32 %v2512, 1e-12
    %v2515 = vadd.f32 %v2513, 1e-12
    %v2516 = vrsqrt.pop %v2514
    %v2517 = vrsqrt.pop %v2515
    %v2518 = vmul.f32 %v2502, %v2516
    %v2519 = vmul.f32 %v2503, %v2517
    %v2520 = vlaneseq
    %v2521 = vshrl.u32 %v2520, 7
    %v2522 = vsub.s32 4, %v2521
    %v2523 = vrot.slane %v1340, %v2522
    %v2524 = vmul.f32 %v2518, %v2523
    %v2525 = vmul.f32 %v2519, %v2523
    %v2526 = vlaneseq
    %v2527 = vshrl.u32 %v2526, 7
    %v2528 = vsub.s32 5, %v2527
    %v2529 = vrot.slane %v1340, %v2528
    %v2530 = vadd.f32 %v2524, %v2529
    %v2531 = vadd.f32 %v2525, %v2529
    %v2534 = vrot.slane %v2531, 7
    %vm2535 = vcmask 1041409
    %v2536 = vsel %vm2535, %v2534, %v2530
    %vm2538 = vcmask 254976
    %2539 = vst.msk [vmem:[#allocation2] sm:$0x3] %vm2538, %v2536
    // Predicated region
    $region42: #{dual_encoder_forward.2} parent=1 // pred_check
      _
    $region43: #{dual_encoder_forward.2} parent=1 // pred_check_branch
      %2541 = sbr.rel (0) target = $region45
    $region44: #{dual_encoder_forward.2} parent=1 // pred_region
      %s2543 = ssub.s32 32, 32
      %2544 = vsyncadd [#allocation3], %s2543
      %s2546 = sshll.u32 [#allocation2], 4
      %s2547 = int_to_ptr.vmem [resolvable:$true] %s2546
      %2549 = dma.vmem_to_hbm [thread:$0]  %s2547, 32, %s10, [#allocation3]
    $region45: #{dual_encoder_forward.2} parent=1 // pred_fallthru
      _
    // Predicated region
    $region46: #{dual_encoder_forward.2} parent=1 // pred_check
      _
    $region47: #{dual_encoder_forward.2} parent=1 // pred_check_branch
      %2551 = sbr.rel (0) target = $region49
    $region48: #{dual_encoder_forward.2} parent=1 // pred_region
      %2552 = dma.done [#allocation3], 32
    $region49: #{dual_encoder_forward.2} parent=1 // pred_fallthru
      _
    %2553 = vsyncpa [#allocation3], 1

// kernel: dual_encoder_forward.3
$region0: #{dual_encoder_forward.3}
  #allocation0 [shape = 'u32[]', space=smem, size = 0x4, offset = 0x4, fixed_abs, tag = 'smem constant byte address 0x4 - core index']
  #allocation1 [shape = 'u32[144,128]{1,0:T(1,128)}', space=vmem, size = 0x12000, scoped, tag = 'internal scratch']
  %s0 = inlined_call_operand.vmem [shape: f32[4,8,32], index: 0, kind: input, shape index: {}]
  %s1 = inlined_call_operand.vmem [shape: f32[4,1,8], index: 1, kind: input, shape index: {}]
  %s2 = inlined_call_operand.vmem [shape: f32[2,32], index: 2, kind: input, shape index: {}]
  %s3 = inlined_call_operand.vmem [shape: f32[2,32,96], index: 3, kind: input, shape index: {}]
  %s4 = inlined_call_operand.vmem [shape: f32[2,1,96], index: 4, kind: input, shape index: {}]
  %s5 = inlined_call_operand.vmem [shape: f32[2,32,32], index: 5, kind: input, shape index: {}]
  %s6 = inlined_call_operand.vmem [shape: f32[2,32,64], index: 6, kind: input, shape index: {}]
  %s7 = inlined_call_operand.vmem [shape: f32[2,1,64], index: 7, kind: input, shape index: {}]
  %s8 = inlined_call_operand.vmem [shape: f32[2,64,32], index: 8, kind: input, shape index: {}]
  %s9 = inlined_call_operand.vmem [shape: f32[2,6,32], index: 9, kind: input, shape index: {}]
  %s10 = inlined_call_operand.hbm [shape: f32[4,32], index: 10, kind: output, shape index: {}]
  %s11 = sld [smem:[#allocation0]]
  $region50: #{dual_encoder_forward.3} parent=0
    _
  %s13 = ssub.s32 1, %s11
  %s14 = scalar_select 0, %s13, %s11
  $region1: #{dual_encoder_forward.3} parent=0
    #allocation2 [shape = 'u8[2048]{0}', space=vmem, size = 0x800, scoped, tag = 'output window, operand 0, single buffered']
    #allocation3 [shape = 's32[1]{0}', space=sflag, size = 0x4, scoped, tag = 'scoped memory for dual_encoder_forward.3']
    %15 = vsyncpa [#allocation3], 0
    // Predicated region
    $region2: #{dual_encoder_forward.3} parent=1 // pred_check
      _
    $region3: #{dual_encoder_forward.3} parent=1 // pred_check_branch
      %17 = sbr.rel (0) target = $region5
    $region4: #{dual_encoder_forward.3} parent=1 // pred_region
      _
    $region5: #{dual_encoder_forward.3} parent=1 // pred_fallthru
      _
    // Predicated region
    $region6: #{dual_encoder_forward.3} parent=1 // pred_check
      _
    $region7: #{dual_encoder_forward.3} parent=1 // pred_check_branch
      %19 = sbr.rel (0) target = $region9
    $region8: #{dual_encoder_forward.3} parent=1 // pred_region
      _
    $region9: #{dual_encoder_forward.3} parent=1 // pred_fallthru
      _
    // Predicated region
    $region10: #{dual_encoder_forward.3} parent=1 // pred_check
      _
    $region11: #{dual_encoder_forward.3} parent=1 // pred_check_branch
      %21 = sbr.rel (0) target = $region13
    $region12: #{dual_encoder_forward.3} parent=1 // pred_region
      _
    $region13: #{dual_encoder_forward.3} parent=1 // pred_fallthru
      _
    // Predicated region
    $region14: #{dual_encoder_forward.3} parent=1 // pred_check
      _
    $region15: #{dual_encoder_forward.3} parent=1 // pred_check_branch
      %23 = sbr.rel (0) target = $region17
    $region16: #{dual_encoder_forward.3} parent=1 // pred_region
      _
    $region17: #{dual_encoder_forward.3} parent=1 // pred_fallthru
      _
    // Predicated region
    $region18: #{dual_encoder_forward.3} parent=1 // pred_check
      _
    $region19: #{dual_encoder_forward.3} parent=1 // pred_check_branch
      %25 = sbr.rel (0) target = $region21
    $region20: #{dual_encoder_forward.3} parent=1 // pred_region
      _
    $region21: #{dual_encoder_forward.3} parent=1 // pred_fallthru
      _
    // Predicated region
    $region22: #{dual_encoder_forward.3} parent=1 // pred_check
      _
    $region23: #{dual_encoder_forward.3} parent=1 // pred_check_branch
      %27 = sbr.rel (0) target = $region25
    $region24: #{dual_encoder_forward.3} parent=1 // pred_region
      _
    $region25: #{dual_encoder_forward.3} parent=1 // pred_fallthru
      _
    // Predicated region
    $region26: #{dual_encoder_forward.3} parent=1 // pred_check
      _
    $region27: #{dual_encoder_forward.3} parent=1 // pred_check_branch
      %29 = sbr.rel (0) target = $region29
    $region28: #{dual_encoder_forward.3} parent=1 // pred_region
      _
    $region29: #{dual_encoder_forward.3} parent=1 // pred_fallthru
      _
    // Predicated region
    $region30: #{dual_encoder_forward.3} parent=1 // pred_check
      _
    $region31: #{dual_encoder_forward.3} parent=1 // pred_check_branch
      %31 = sbr.rel (0) target = $region33
    $region32: #{dual_encoder_forward.3} parent=1 // pred_region
      _
    $region33: #{dual_encoder_forward.3} parent=1 // pred_fallthru
      _
    // Predicated region
    $region34: #{dual_encoder_forward.3} parent=1 // pred_check
      _
    $region35: #{dual_encoder_forward.3} parent=1 // pred_check_branch
      %33 = sbr.rel (0) target = $region37
    $region36: #{dual_encoder_forward.3} parent=1 // pred_region
      _
    $region37: #{dual_encoder_forward.3} parent=1 // pred_fallthru
      _
    // Predicated region
    $region38: #{dual_encoder_forward.3} parent=1 // pred_check
      _
    $region39: #{dual_encoder_forward.3} parent=1 // pred_check_branch
      %35 = sbr.rel (0) target = $region41
    $region40: #{dual_encoder_forward.3} parent=1 // pred_region
      _
    $region41: #{dual_encoder_forward.3} parent=1 // pred_fallthru
      _
    %v36 = vld [vmem:[%s0] sm:$0xff]
    %v37 = vld [vmem:[%s0 + $0x8] sm:$0xff]
    %v38 = vld [vmem:[%s0 + $0x10] sm:$0xff]
    %v39 = vld [vmem:[%s0 + $0x18] sm:$0xff]
    %v40 = vld [vmem:[%s2] sm:$0x1]
    %v41 = vld [vmem:[%s2 + $0x1] sm:$0x1]
    %vm42 = vcmask 261120
    %v43 = vsel %vm42, %v36, 0.0
    %44 = vadd.xlane.f32.xlu0 %v43
    %v45 = vpop.xlane.xlu0 %44
    %v46 = vsel %vm42, %v37, 0.0
    %47 = vadd.xlane.f32.xlu0 %v46
    %v48 = vpop.xlane.xlu0 %47
    %v49 = vsel %vm42, %v38, 0.0
    %50 = vadd.xlane.f32.xlu0 %v49
    %v51 = vpop.xlane.xlu0 %50
    %v52 = vsel %vm42, %v39, 0.0
    %53 = vadd.xlane.f32.xlu0 %v52
    %v54 = vpop.xlane.xlu0 %53
    %v55 = vrcp.pop 32.0
    %v56 = vmul.f32 %v45, %v55
    %v57 = vmul.f32 %v48, %v55
    %v58 = vmul.f32 %v51, %v55
    %v59 = vmul.f32 %v54, %v55
    %v60 = vsub.f32 %v36, %v56
    %v61 = vsub.f32 %v37, %v57
    %v62 = vsub.f32 %v38, %v58
    %v63 = vsub.f32 %v39, %v59
    %v64 = vmul.f32 %v60, %v60
    %v65 = vmul.f32 %v61, %v61
    %v66 = vmul.f32 %v62, %v62
    %v67 = vmul.f32 %v63, %v63
    %v68 = vsel %vm42, %v64, 0.0
    %69 = vadd.xlane.f32.xlu0 %v68
    %v70 = vpop.xlane.xlu0 %69
    %v71 = vsel %vm42, %v65, 0.0
    %72 = vadd.xlane.f32.xlu0 %v71
    %v73 = vpop.xlane.xlu0 %72
    %v74 = vsel %vm42, %v66, 0.0
    %75 = vadd.xlane.f32.xlu0 %v74
    %v76 = vpop.xlane.xlu0 %75
    %v77 = vsel %vm42, %v67, 0.0
    %78 = vadd.xlane.f32.xlu0 %v77
    %v79 = vpop.xlane.xlu0 %78
    %v80 = vmul.f32 %v70, %v55
    %v81 = vmul.f32 %v73, %v55
    %v82 = vmul.f32 %v76, %v55
    %v83 = vmul.f32 %v79, %v55
    %v84 = vadd.f32 %v80, 1e-12
    %v85 = vadd.f32 %v81, 1e-12
    %v86 = vadd.f32 %v82, 1e-12
    %v87 = vadd.f32 %v83, 1e-12
    %v88 = vrsqrt.pop %v84
    %v89 = vrsqrt.pop %v85
    %v90 = vrsqrt.pop %v86
    %v91 = vrsqrt.pop %v87
    %v92 = vmul.f32 %v60, %v88
    %v93 = vmul.f32 %v61, %v89
    %v94 = vmul.f32 %v62, %v90
    %v95 = vmul.f32 %v63, %v91
    %v96 = vlaneseq
    %v97 = vshrl.u32 %v96, 7
    %v98 = vsub.s32 0, %v97
    %v99 = vrot.slane %v40, %v98
    %v100 = vmul.f32 %v92, %v99
    %v101 = vmul.f32 %v93, %v99
    %v102 = vmul.f32 %v94, %v99
    %v103 = vmul.f32 %v95, %v99
    %v104 = vlaneseq
    %v105 = vshrl.u32 %v104, 7
    %v106 = vsub.s32 0, %v105
    %v107 = vrot.slane %v41, %v106
    %v108 = vadd.f32 %v100, %v107
    %v109 = vadd.f32 %v101, %v107
    %v110 = vadd.f32 %v102, %v107
    %v111 = vadd.f32 %v103, %v107
    %v112 = vld [vmem:[%s1] sm:$0x1]
    %v113 = vld [vmem:[%s1 + $0x1] sm:$0x1]
    %v114 = vld [vmem:[%s1 + $0x2] sm:$0x1]
    %v115 = vld [vmem:[%s1 + $0x3] sm:$0x1]
    %v116 = vld [vmem:[%s3] sm:$0xff]
    %v117 = vld [vmem:[%s3 + $0x8] sm:$0xff]
    %v118 = vld [vmem:[%s3 + $0x10] sm:$0xff]
    %v119 = vld [vmem:[%s3 + $0x18] sm:$0xff]
    %v120 = vld [vmem:[%s4] sm:$0x1]
    %v121 = vld [vmem:[%s5] sm:$0xff]
    %v122 = vld [vmem:[%s5 + $0x8] sm:$0xff]
    %v123 = vld [vmem:[%s5 + $0x10] sm:$0xff]
    %v124 = vld [vmem:[%s5 + $0x18] sm:$0xff]
    %v125 = vld [vmem:[%s6] sm:$0xff]
    %v126 = vld [vmem:[%s6 + $0x8] sm:$0xff]
    %v127 = vld [vmem:[%s6 + $0x10] sm:$0xff]
    %v128 = vld [vmem:[%s6 + $0x18] sm:$0xff]
    %v129 = vld [vmem:[%s7] sm:$0x1]
    %v130 = vld [vmem:[%s8] sm:$0xff]
    %v131 = vld [vmem:[%s8 + $0x8] sm:$0xff]
    %v132 = vld [vmem:[%s8 + $0x10] sm:$0xff]
    %v133 = vld [vmem:[%s8 + $0x18] sm:$0xff]
    %v134 = vld [vmem:[%s8 + $0x20] sm:$0xff]
    %v135 = vld [vmem:[%s8 + $0x28] sm:$0xff]
    %v136 = vld [vmem:[%s8 + $0x30] sm:$0xff]
    %v137 = vld [vmem:[%s8 + $0x38] sm:$0xff]
    %v138 = vld [vmem:[%s9] sm:$0x3f]
    %v140 = vlaneseq
    %v141 = vshrl.u32 %v140, 7
    %v142 = vsub.s32 0, %v141
    %v143 = vrot.slane %v120, %v142
    %v146 = vsel %vm42, %v108, 0
    %v149 = vsel %vm42, %v109, 0
    %v152 = vsel %vm42, %v110, 0
    %v155 = vsel %vm42, %v111, 0
    %157 = vmatprep.subr.mxu0 0.0
    %158 = vmatpush1.msra.mxu0 %v116
    %159 = vmatprep.subr.mxu0 0.0
    %160 = vmatpush1.msra.mxu0 %v117
    %161 = vmatprep.subr.mxu0 0.0
    %162 = vmatpush1.msra.mxu0 %v118
    %163 = vmatprep.subr.mxu0 0.0
    %164 = vmatpush1.msra.mxu0 %v119
    %165 = vmatprep.subr.mxu0 0.0
    %166 = vmatpush1.msra.mxu0 0.0
    %167 = vmatprep.subr.mxu0 0.0
    %168 = vmatpush1.msra.mxu0 0.0
    %169 = vmatprep.subr.mxu0 0.0
    %170 = vmatpush1.msra.mxu0 0.0
    %171 = vmatprep.subr.mxu0 0.0
    %172 = vmatpush1.msra.mxu0 0.0
    %173 = vmatprep.subr.mxu0 0.0
    %174 = vmatpush1.msra.mxu0 0.0
    %175 = vmatprep.subr.mxu0 0.0
    %176 = vmatpush1.msra.mxu0 0.0
    %177 = vmatprep.subr.mxu0 0.0
    %178 = vmatpush1.msra.mxu0 0.0
    %179 = vmatprep.subr.mxu0 0.0
    %180 = vmatpush1.msra.mxu0 0.0
    %181 = vmatprep.subr.mxu0 0.0
    %182 = vmatpush1.msra.mxu0 0.0
    %183 = vmatprep.subr.mxu0 0.0
    %184 = vmatpush1.msra.mxu0 0.0
    %185 = vmatprep.subr.mxu0 0.0
    %186 = vmatpush1.msra.mxu0 0.0
    %187 = vmatprep.subr.mxu0 0.0
    %188 = vmatpush1.msra.mxu0 0.0
    %189 = vmatprep.subr.mxu0 0.0
    %190 = vmatpush1.msra.mxu0 0.0
    %191 = vmatprep.subr.mxu0 0.0
    %192 = vmatpush1.msra.mxu0 0.0
    %193 = vmatprep.subr.mxu0 0.0
    %194 = vmatpush1.msra.mxu0 0.0
    %195 = vmatprep.subr.mxu0 0.0
    %196 = vmatpush1.msra.mxu0 0.0
    %197 = vmatprep.subr.mxu0 0.0
    %198 = vmatpush1.msra.mxu0 0.0
    %199 = vmatprep.subr.mxu0 0.0
    %200 = vmatpush1.msra.mxu0 0.0
    %201 = vmatprep.subr.mxu0 0.0
    %202 = vmatpush1.msra.mxu0 0.0
    %203 = vmatprep.subr.mxu0 0.0
    %204 = vmatpush1.msra.mxu0 0.0
    %205 = vmatprep.subr.mxu0 0.0
    %206 = vmatpush1.msra.mxu0 0.0
    %207 = vmatprep.subr.mxu0 0.0
    %208 = vmatpush1.msra.mxu0 0.0
    %209 = vmatprep.subr.mxu0 0.0
    %210 = vmatpush1.msra.mxu0 0.0
    %211 = vmatprep.subr.mxu0 0.0
    %212 = vmatpush1.msra.mxu0 0.0
    %213 = vmatprep.subr.mxu0 0.0
    %214 = vmatpush1.msra.mxu0 0.0
    %215 = vmatprep.subr.mxu0 0.0
    %216 = vmatpush1.msra.mxu0 0.0
    %217 = vmatprep.subr.mxu0 0.0
    %218 = vmatpush1.msra.mxu0 0.0
    %219 = vmatprep.subr.mxu0 0.0
    %220 = vmatpush1.msra.mxu0 0.0
    %221 = vmatprep.mubr.f32.mxu0 0.0
    %222 = vmatmul.mubr.f32.gmra.mrb[0].mxu0 %v146
    %v223 = vpop.f32.mrb[0].mxu0
    %v224 = vadd.f32 %v143, %v223
    %v225 = vpop.f32.mrb[0].mxu0
    %226 = vmatprep.mubr.f32.mxu0 0.0
    %227 = vmatmul.mubr.f32.gmra.mrb[0].mxu0 %v149
    %v228 = vpop.f32.mrb[0].mxu0
    %v229 = vadd.f32 %v143, %v228
    %v230 = vpop.f32.mrb[0].mxu0
    %231 = vmatprep.mubr.f32.mxu0 0.0
    %232 = vmatmul.mubr.f32.gmra.mrb[0].mxu0 %v152
    %v233 = vpop.f32.mrb[0].mxu0
    %v234 = vadd.f32 %v143, %v233
    %v235 = vpop.f32.mrb[0].mxu0
    %236 = vmatprep.mubr.f32.mxu0 0.0
    %237 = vmatmul.mubr.f32.gmra.mrb[0].mxu0 %v155
    %v238 = vpop.f32.mrb[0].mxu0
    %v239 = vadd.f32 %v143, %v238
    %v240 = vpop.f32.mrb[0].mxu0
    %241 = vdwg.mxu0
    %243 = vrot.lane.b32.xlu0 %v224, 96
    %v244 = vpop.permute.xlu0 %243
    %vm245 = vcmask 130048
    %v246 = vsel %vm245, %v224, 0
    %v248 = vsel %vm245, %v244, 0
    %250 = vmatprep.subr.mxu0 0.0
    %251 = vmatpush1.xpose.msra.mxu0 %v248
    %252 = vmatprep.subr.mxu0 0.0
    %253 = vmatpush1.xpose.msra.mxu0 0.0
    %254 = vmatprep.subr.mxu0 0.0
    %255 = vmatpush1.xpose.msra.mxu0 0.0
    %256 = vmatprep.subr.mxu0 0.0
    %257 = vmatpush1.xpose.msra.mxu0 0.0
    %258 = vmatprep.subr.mxu0 0.0
    %259 = vmatpush1.xpose.msra.mxu0 0.0
    %260 = vmatprep.subr.mxu0 0.0
    %261 = vmatpush1.xpose.msra.mxu0 0.0
    %262 = vmatprep.subr.mxu0 0.0
    %263 = vmatpush1.xpose.msra.mxu0 0.0
    %264 = vmatprep.subr.mxu0 0.0
    %265 = vmatpush1.xpose.msra.mxu0 0.0
    %266 = vmatprep.subr.mxu0 0.0
    %267 = vmatpush1.xpose.msra.mxu0 0.0
    %268 = vmatprep.subr.mxu0 0.0
    %269 = vmatpush1.xpose.msra.mxu0 0.0
    %270 = vmatprep.subr.mxu0 0.0
    %271 = vmatpush1.xpose.msra.mxu0 0.0
    %272 = vmatprep.subr.mxu0 0.0
    %273 = vmatpush1.xpose.msra.mxu0 0.0
    %274 = vmatprep.subr.mxu0 0.0
    %275 = vmatpush1.xpose.msra.mxu0 0.0
    %276 = vmatprep.subr.mxu0 0.0
    %277 = vmatpush1.xpose.msra.mxu0 0.0
    %278 = vmatprep.subr.mxu0 0.0
    %279 = vmatpush1.xpose.msra.mxu0 0.0
    %280 = vmatprep.subr.mxu0 0.0
    %281 = vmatpush1.xpose.msra.mxu0 0.0
    %282 = vmatprep.subr.mxu0 0.0
    %283 = vmatpush1.xpose.msra.mxu0 0.0
    %284 = vmatprep.subr.mxu0 0.0
    %285 = vmatpush1.xpose.msra.mxu0 0.0
    %286 = vmatprep.subr.mxu0 0.0
    %287 = vmatpush1.xpose.msra.mxu0 0.0
    %288 = vmatprep.subr.mxu0 0.0
    %289 = vmatpush1.xpose.msra.mxu0 0.0
    %290 = vmatprep.subr.mxu0 0.0
    %291 = vmatpush1.xpose.msra.mxu0 0.0
    %292 = vmatprep.subr.mxu0 0.0
    %293 = vmatpush1.xpose.msra.mxu0 0.0
    %294 = vmatprep.subr.mxu0 0.0
    %295 = vmatpush1.xpose.msra.mxu0 0.0
    %296 = vmatprep.subr.mxu0 0.0
    %297 = vmatpush1.xpose.msra.mxu0 0.0
    %298 = vmatprep.subr.mxu0 0.0
    %299 = vmatpush1.xpose.msra.mxu0 0.0
    %300 = vmatprep.subr.mxu0 0.0
    %301 = vmatpush1.xpose.msra.mxu0 0.0
    %302 = vmatprep.subr.mxu0 0.0
    %303 = vmatpush1.xpose.msra.mxu0 0.0
    %304 = vmatprep.subr.mxu0 0.0
    %305 = vmatpush1.xpose.msra.mxu0 0.0
    %306 = vmatprep.subr.mxu0 0.0
    %307 = vmatpush1.xpose.msra.mxu0 0.0
    %308 = vmatprep.subr.mxu0 0.0
    %309 = vmatpush1.xpose.msra.mxu0 0.0
    %310 = vmatprep.subr.mxu0 0.0
    %311 = vmatpush1.xpose.msra.mxu0 0.0
    %312 = vmatprep.subr.mxu0 0.0
    %313 = vmatpush1.xpose.msra.mxu0 0.0
    %314 = vmatprep.mubr.f32.mxu0 0.0
    %315 = vmatmul.mubr.f32.gmra.mrb[0].mxu0 %v246
    %v316 = vpop.f32.mrb[0].mxu0
    %v317 = vadd.f32 0.0, %v316
    %v318 = vpop.f32.mrb[0].mxu0
    %319 = vdwg.mxu0
    %321 = vrot.lane.b32.xlu0 %v229, 96
    %v322 = vpop.permute.xlu0 %321
    %v323 = vsel %vm245, %v229, 0
    %v325 = vsel %vm245, %v322, 0
    %327 = vmatprep.subr.mxu0 0.0
    %328 = vmatpush1.xpose.msra.mxu0 %v325
    %329 = vmatprep.subr.mxu0 0.0
    %330 = vmatpush1.xpose.msra.mxu0 0.0
    %331 = vmatprep.subr.mxu0 0.0
    %332 = vmatpush1.xpose.msra.mxu0 0.0
    %333 = vmatprep.subr.mxu0 0.0
    %334 = vmatpush1.xpose.msra.mxu0 0.0
    %335 = vmatprep.subr.mxu0 0.0
    %336 = vmatpush1.xpose.msra.mxu0 0.0
    %337 = vmatprep.subr.mxu0 0.0
    %338 = vmatpush1.xpose.msra.mxu0 0.0
    %339 = vmatprep.subr.mxu0 0.0
    %340 = vmatpush1.xpose.msra.mxu0 0.0
    %341 = vmatprep.subr.mxu0 0.0
    %342 = vmatpush1.xpose.msra.mxu0 0.0
    %343 = vmatprep.subr.mxu0 0.0
    %344 = vmatpush1.xpose.msra.mxu0 0.0
    %345 = vmatprep.subr.mxu0 0.0
    %346 = vmatpush1.xpose.msra.mxu0 0.0
    %347 = vmatprep.subr.mxu0 0.0
    %348 = vmatpush1.xpose.msra.mxu0 0.0
    %349 = vmatprep.subr.mxu0 0.0
    %350 = vmatpush1.xpose.msra.mxu0 0.0
    %351 = vmatprep.subr.mxu0 0.0
    %352 = vmatpush1.xpose.msra.mxu0 0.0
    %353 = vmatprep.subr.mxu0 0.0
    %354 = vmatpush1.xpose.msra.mxu0 0.0
    %355 = vmatprep.subr.mxu0 0.0
    %356 = vmatpush1.xpose.msra.mxu0 0.0
    %357 = vmatprep.subr.mxu0 0.0
    %358 = vmatpush1.xpose.msra.mxu0 0.0
    %359 = vmatprep.subr.mxu0 0.0
    %360 = vmatpush1.xpose.msra.mxu0 0.0
    %361 = vmatprep.subr.mxu0 0.0
    %362 = vmatpush1.xpose.msra.mxu0 0.0
    %363 = vmatprep.subr.mxu0 0.0
    %364 = vmatpush1.xpose.msra.mxu0 0.0
    %365 = vmatprep.subr.mxu0 0.0
    %366 = vmatpush1.xpose.msra.mxu0 0.0
    %367 = vmatprep.subr.mxu0 0.0
    %368 = vmatpush1.xpose.msra.mxu0 0.0
    %369 = vmatprep.subr.mxu0 0.0
    %370 = vmatpush1.xpose.msra.mxu0 0.0
    %371 = vmatprep.subr.mxu0 0.0
    %372 = vmatpush1.xpose.msra.mxu0 0.0
    %373 = vmatprep.subr.mxu0 0.0
    %374 = vmatpush1.xpose.msra.mxu0 0.0
    %375 = vmatprep.subr.mxu0 0.0
    %376 = vmatpush1.xpose.msra.mxu0 0.0
    %377 = vmatprep.subr.mxu0 0.0
    %378 = vmatpush1.xpose.msra.mxu0 0.0
    %379 = vmatprep.subr.mxu0 0.0
    %380 = vmatpush1.xpose.msra.mxu0 0.0
    %381 = vmatprep.subr.mxu0 0.0
    %382 = vmatpush1.xpose.msra.mxu0 0.0
    %383 = vmatprep.subr.mxu0 0.0
    %384 = vmatpush1.xpose.msra.mxu0 0.0
    %385 = vmatprep.subr.mxu0 0.0
    %386 = vmatpush1.xpose.msra.mxu0 0.0
    %387 = vmatprep.subr.mxu0 0.0
    %388 = vmatpush1.xpose.msra.mxu0 0.0
    %389 = vmatprep.subr.mxu0 0.0
    %390 = vmatpush1.xpose.msra.mxu0 0.0
    %391 = vmatprep.mubr.f32.mxu0 0.0
    %392 = vmatmul.mubr.f32.gmra.mrb[0].mxu0 %v323
    %v393 = vpop.f32.mrb[0].mxu0
    %v394 = vadd.f32 0.0, %v393
    %v395 = vpop.f32.mrb[0].mxu0
    %396 = vdwg.mxu0
    %398 = vrot.lane.b32.xlu0 %v234, 96
    %v399 = vpop.permute.xlu0 %398
    %v400 = vsel %vm245, %v234, 0
    %v402 = vsel %vm245, %v399, 0
    %404 = vmatprep.subr.mxu0 0.0
    %405 = vmatpush1.xpose.msra.mxu0 %v402
    %406 = vmatprep.subr.mxu0 0.0
    %407 = vmatpush1.xpose.msra.mxu0 0.0
    %408 = vmatprep.subr.mxu0 0.0
    %409 = vmatpush1.xpose.msra.mxu0 0.0
    %410 = vmatprep.subr.mxu0 0.0
    %411 = vmatpush1.xpose.msra.mxu0 0.0
    %412 = vmatprep.subr.mxu0 0.0
    %413 = vmatpush1.xpose.msra.mxu0 0.0
    %414 = vmatprep.subr.mxu0 0.0
    %415 = vmatpush1.xpose.msra.mxu0 0.0
    %416 = vmatprep.subr.mxu0 0.0
    %417 = vmatpush1.xpose.msra.mxu0 0.0
    %418 = vmatprep.subr.mxu0 0.0
    %419 = vmatpush1.xpose.msra.mxu0 0.0
    %420 = vmatprep.subr.mxu0 0.0
    %421 = vmatpush1.xpose.msra.mxu0 0.0
    %422 = vmatprep.subr.mxu0 0.0
    %423 = vmatpush1.xpose.msra.mxu0 0.0
    %424 = vmatprep.subr.mxu0 0.0
    %425 = vmatpush1.xpose.msra.mxu0 0.0
    %426 = vmatprep.subr.mxu0 0.0
    %427 = vmatpush1.xpose.msra.mxu0 0.0
    %428 = vmatprep.subr.mxu0 0.0
    %429 = vmatpush1.xpose.msra.mxu0 0.0
    %430 = vmatprep.subr.mxu0 0.0
    %431 = vmatpush1.xpose.msra.mxu0 0.0
    %432 = vmatprep.subr.mxu0 0.0
    %433 = vmatpush1.xpose.msra.mxu0 0.0
    %434 = vmatprep.subr.mxu0 0.0
    %435 = vmatpush1.xpose.msra.mxu0 0.0
    %436 = vmatprep.subr.mxu0 0.0
    %437 = vmatpush1.xpose.msra.mxu0 0.0
    %438 = vmatprep.subr.mxu0 0.0
    %439 = vmatpush1.xpose.msra.mxu0 0.0
    %440 = vmatprep.subr.mxu0 0.0
    %441 = vmatpush1.xpose.msra.mxu0 0.0
    %442 = vmatprep.subr.mxu0 0.0
    %443 = vmatpush1.xpose.msra.mxu0 0.0
    %444 = vmatprep.subr.mxu0 0.0
    %445 = vmatpush1.xpose.msra.mxu0 0.0
    %446 = vmatprep.subr.mxu0 0.0
    %447 = vmatpush1.xpose.msra.mxu0 0.0
    %448 = vmatprep.subr.mxu0 0.0
    %449 = vmatpush1.xpose.msra.mxu0 0.0
    %450 = vmatprep.subr.mxu0 0.0
    %451 = vmatpush1.xpose.msra.mxu0 0.0
    %452 = vmatprep.subr.mxu0 0.0
    %453 = vmatpush1.xpose.msra.mxu0 0.0
    %454 = vmatprep.subr.mxu0 0.0
    %455 = vmatpush1.xpose.msra.mxu0 0.0
    %456 = vmatprep.subr.mxu0 0.0
    %457 = vmatpush1.xpose.msra.mxu0 0.0
    %458 = vmatprep.subr.mxu0 0.0
    %459 = vmatpush1.xpose.msra.mxu0 0.0
    %460 = vmatprep.subr.mxu0 0.0
    %461 = vmatpush1.xpose.msra.mxu0 0.0
    %462 = vmatprep.subr.mxu0 0.0
    %463 = vmatpush1.xpose.msra.mxu0 0.0
    %464 = vmatprep.subr.mxu0 0.0
    %465 = vmatpush1.xpose.msra.mxu0 0.0
    %466 = vmatprep.subr.mxu0 0.0
    %467 = vmatpush1.xpose.msra.mxu0 0.0
    %468 = vmatprep.mubr.f32.mxu0 0.0
    %469 = vmatmul.mubr.f32.gmra.mrb[0].mxu0 %v400
    %v470 = vpop.f32.mrb[0].mxu0
    %v471 = vadd.f32 0.0, %v470
    %v472 = vpop.f32.mrb[0].mxu0
    %473 = vdwg.mxu0
    %475 = vrot.lane.b32.xlu0 %v239, 96
    %v476 = vpop.permute.xlu0 %475
    %v477 = vsel %vm245, %v239, 0
    %v479 = vsel %vm245, %v476, 0
    %481 = vmatprep.subr.mxu0 0.0
    %482 = vmatpush1.xpose.msra.mxu0 %v479
    %483 = vmatprep.subr.mxu0 0.0
    %484 = vmatpush1.xpose.msra.mxu0 0.0
    %485 = vmatprep.subr.mxu0 0.0
    %486 = vmatpush1.xpose.msra.mxu0 0.0
    %487 = vmatprep.subr.mxu0 0.0
    %488 = vmatpush1.xpose.msra.mxu0 0.0
    %489 = vmatprep.subr.mxu0 0.0
    %490 = vmatpush1.xpose.msra.mxu0 0.0
    %491 = vmatprep.subr.mxu0 0.0
    %492 = vmatpush1.xpose.msra.mxu0 0.0
    %493 = vmatprep.subr.mxu0 0.0
    %494 = vmatpush1.xpose.msra.mxu0 0.0
    %495 = vmatprep.subr.mxu0 0.0
    %496 = vmatpush1.xpose.msra.mxu0 0.0
    %497 = vmatprep.subr.mxu0 0.0
    %498 = vmatpush1.xpose.msra.mxu0 0.0
    %499 = vmatprep.subr.mxu0 0.0
    %500 = vmatpush1.xpose.msra.mxu0 0.0
    %501 = vmatprep.subr.mxu0 0.0
    %502 = vmatpush1.xpose.msra.mxu0 0.0
    %503 = vmatprep.subr.mxu0 0.0
    %504 = vmatpush1.xpose.msra.mxu0 0.0
    %505 = vmatprep.subr.mxu0 0.0
    %506 = vmatpush1.xpose.msra.mxu0 0.0
    %507 = vmatprep.subr.mxu0 0.0
    %508 = vmatpush1.xpose.msra.mxu0 0.0
    %509 = vmatprep.subr.mxu0 0.0
    %510 = vmatpush1.xpose.msra.mxu0 0.0
    %511 = vmatprep.subr.mxu0 0.0
    %512 = vmatpush1.xpose.msra.mxu0 0.0
    %513 = vmatprep.subr.mxu0 0.0
    %514 = vmatpush1.xpose.msra.mxu0 0.0
    %515 = vmatprep.subr.mxu0 0.0
    %516 = vmatpush1.xpose.msra.mxu0 0.0
    %517 = vmatprep.subr.mxu0 0.0
    %518 = vmatpush1.xpose.msra.mxu0 0.0
    %519 = vmatprep.subr.mxu0 0.0
    %520 = vmatpush1.xpose.msra.mxu0 0.0
    %521 = vmatprep.subr.mxu0 0.0
    %522 = vmatpush1.xpose.msra.mxu0 0.0
    %523 = vmatprep.subr.mxu0 0.0
    %524 = vmatpush1.xpose.msra.mxu0 0.0
    %525 = vmatprep.subr.mxu0 0.0
    %526 = vmatpush1.xpose.msra.mxu0 0.0
    %527 = vmatprep.subr.mxu0 0.0
    %528 = vmatpush1.xpose.msra.mxu0 0.0
    %529 = vmatprep.subr.mxu0 0.0
    %530 = vmatpush1.xpose.msra.mxu0 0.0
    %531 = vmatprep.subr.mxu0 0.0
    %532 = vmatpush1.xpose.msra.mxu0 0.0
    %533 = vmatprep.subr.mxu0 0.0
    %534 = vmatpush1.xpose.msra.mxu0 0.0
    %535 = vmatprep.subr.mxu0 0.0
    %536 = vmatpush1.xpose.msra.mxu0 0.0
    %537 = vmatprep.subr.mxu0 0.0
    %538 = vmatpush1.xpose.msra.mxu0 0.0
    %539 = vmatprep.subr.mxu0 0.0
    %540 = vmatpush1.xpose.msra.mxu0 0.0
    %541 = vmatprep.subr.mxu0 0.0
    %542 = vmatpush1.xpose.msra.mxu0 0.0
    %543 = vmatprep.subr.mxu0 0.0
    %544 = vmatpush1.xpose.msra.mxu0 0.0
    %545 = vmatprep.mubr.f32.mxu0 0.0
    %546 = vmatmul.mubr.f32.gmra.mrb[0].mxu0 %v477
    %v547 = vpop.f32.mrb[0].mxu0
    %v548 = vadd.f32 0.0, %v547
    %v549 = vpop.f32.mrb[0].mxu0
    %550 = vdwg.mxu0
    %v551 = vmul.f32 %v317, 0.25
    %v552 = vmul.f32 %v394, 0.25
    %v553 = vmul.f32 %v471, 0.25
    %v554 = vmul.f32 %v548, 0.25
    %v559 = vlaneseq
    %v560 = vshrl.u32 %v559, 7
    %v561 = vsub.s32 0, %v560
    %v562 = vrot.slane %v112, %v561
    %v563 = vlaneseq
    %v564 = vshrl.u32 %v563, 7
    %v565 = vsub.s32 0, %v564
    %v566 = vrot.slane %v113, %v565
    %v567 = vlaneseq
    %v568 = vshrl.u32 %v567, 7
    %v569 = vsub.s32 0, %v568
    %v570 = vrot.slane %v114, %v569
    %v571 = vlaneseq
    %v572 = vshrl.u32 %v571, 7
    %v573 = vsub.s32 0, %v572
    %v574 = vrot.slane %v115, %v573
    %v579 = vadd.f32 %v551, %v562
    %v580 = vadd.f32 %v552, %v566
    %v581 = vadd.f32 %v553, %v570
    %v582 = vadd.f32 %v554, %v574
    %vm583 = vcmask 64512
    %v584 = vsel %vm583, %v579, -inf
    %585 = vmax.xlane.f32.xlu0 %v584
    %v586 = vpop.xlane.xlu0 %585
    %v587 = vsel %vm583, %v580, -inf
    %588 = vmax.xlane.f32.xlu0 %v587
    %v589 = vpop.xlane.xlu0 %588
    %v590 = vsel %vm583, %v581, -inf
    %591 = vmax.xlane.f32.xlu0 %v590
    %v592 = vpop.xlane.xlu0 %591
    %v593 = vsel %vm583, %v582, -inf
    %594 = vmax.xlane.f32.xlu0 %v593
    %v595 = vpop.xlane.xlu0 %594
    %v596 = vsub.f32 %v579, %v586
    %v597 = vsub.f32 %v580, %v589
    %v598 = vsub.f32 %v581, %v592
    %v599 = vsub.f32 %v582, %v595
    %v600 = vmul.f32 %v596, 1.442695
    %v601 = vpow.pop %v600
    %v602 = vmul.f32 %v597, 1.442695
    %v603 = vpow.pop %v602
    %v604 = vmul.f32 %v598, 1.442695
    %v605 = vpow.pop %v604
    %v606 = vmul.f32 %v599, 1.442695
    %v607 = vpow.pop %v606
    %v608 = vsel %vm583, %v601, 0.0
    %609 = vadd.xlane.f32.xlu0 %v608
    %v610 = vpop.xlane.xlu0 %609
    %v611 = vsel %vm583, %v603, 0.0
    %612 = vadd.xlane.f32.xlu0 %v611
    %v613 = vpop.xlane.xlu0 %612
    %v614 = vsel %vm583, %v605, 0.0
    %615 = vadd.xlane.f32.xlu0 %v614
    %v616 = vpop.xlane.xlu0 %615
    %v617 = vsel %vm583, %v607, 0.0
    %618 = vadd.xlane.f32.xlu0 %v617
    %v619 = vpop.xlane.xlu0 %618
    %v620 = vrcp.pop %v610
    %v621 = vrcp.pop %v613
    %v622 = vrcp.pop %v616
    %v623 = vrcp.pop %v619
    %v624 = vmul.f32 %v601, %v620
    %v625 = vmul.f32 %v603, %v621
    %v626 = vmul.f32 %v605, %v622
    %v627 = vmul.f32 %v607, %v623
    %628 = vrot.lane.b32.xlu0 %v224, 64
    %v629 = vpop.permute.xlu0 %628
    %v632 = vsel %vm583, %v624, 0
    %634 = vmatprep.subr.mxu0 0.0
    %635 = vmatpush1.msra.mxu0 %v629
    %636 = vmatprep.subr.mxu0 0.0
    %637 = vmatpush1.msra.mxu0 0.0
    %638 = vmatprep.subr.mxu0 0.0
    %639 = vmatpush1.msra.mxu0 0.0
    %640 = vmatprep.subr.mxu0 0.0
    %641 = vmatpush1.msra.mxu0 0.0
    %642 = vmatprep.subr.mxu0 0.0
    %643 = vmatpush1.msra.mxu0 0.0
    %644 = vmatprep.subr.mxu0 0.0
    %645 = vmatpush1.msra.mxu0 0.0
    %646 = vmatprep.subr.mxu0 0.0
    %647 = vmatpush1.msra.mxu0 0.0
    %648 = vmatprep.subr.mxu0 0.0
    %649 = vmatpush1.msra.mxu0 0.0
    %650 = vmatprep.subr.mxu0 0.0
    %651 = vmatpush1.msra.mxu0 0.0
    %652 = vmatprep.subr.mxu0 0.0
    %653 = vmatpush1.msra.mxu0 0.0
    %654 = vmatprep.subr.mxu0 0.0
    %655 = vmatpush1.msra.mxu0 0.0
    %656 = vmatprep.subr.mxu0 0.0
    %657 = vmatpush1.msra.mxu0 0.0
    %658 = vmatprep.subr.mxu0 0.0
    %659 = vmatpush1.msra.mxu0 0.0
    %660 = vmatprep.subr.mxu0 0.0
    %661 = vmatpush1.msra.mxu0 0.0
    %662 = vmatprep.subr.mxu0 0.0
    %663 = vmatpush1.msra.mxu0 0.0
    %664 = vmatprep.subr.mxu0 0.0
    %665 = vmatpush1.msra.mxu0 0.0
    %666 = vmatprep.subr.mxu0 0.0
    %667 = vmatpush1.msra.mxu0 0.0
    %668 = vmatprep.subr.mxu0 0.0
    %669 = vmatpush1.msra.mxu0 0.0
    %670 = vmatprep.subr.mxu0 0.0
    %671 = vmatpush1.msra.mxu0 0.0
    %672 = vmatprep.subr.mxu0 0.0
    %673 = vmatpush1.msra.mxu0 0.0
    %674 = vmatprep.subr.mxu0 0.0
    %675 = vmatpush1.msra.mxu0 0.0
    %676 = vmatprep.subr.mxu0 0.0
    %677 = vmatpush1.msra.mxu0 0.0
    %678 = vmatprep.subr.mxu0 0.0
    %679 = vmatpush1.msra.mxu0 0.0
    %680 = vmatprep.subr.mxu0 0.0
    %681 = vmatpush1.msra.mxu0 0.0
    %682 = vmatprep.subr.mxu0 0.0
    %683 = vmatpush1.msra.mxu0 0.0
    %684 = vmatprep.subr.mxu0 0.0
    %685 = vmatpush1.msra.mxu0 0.0
    %686 = vmatprep.subr.mxu0 0.0
    %687 = vmatpush1.msra.mxu0 0.0
    %688 = vmatprep.subr.mxu0 0.0
    %689 = vmatpush1.msra.mxu0 0.0
    %690 = vmatprep.subr.mxu0 0.0
    %691 = vmatpush1.msra.mxu0 0.0
    %692 = vmatprep.subr.mxu0 0.0
    %693 = vmatpush1.msra.mxu0 0.0
    %694 = vmatprep.subr.mxu0 0.0
    %695 = vmatpush1.msra.mxu0 0.0
    %696 = vmatprep.subr.mxu0 0.0
    %697 = vmatpush1.msra.mxu0 0.0
    %698 = vmatprep.mubr.f32.mxu0 0.0
    %699 = vmatmul.mubr.f32.gmra.mrb[0].mxu0 %v632
    %v700 = vpop.f32.mrb[0].mxu0
    %v701 = vadd.f32 0.0, %v700
    %v702 = vpop.f32.mrb[0].mxu0
    %703 = vdwg.mxu0
    %704 = vrot.lane.b32.xlu0 %v229, 64
    %v705 = vpop.permute.xlu0 %704
    %v708 = vsel %vm583, %v625, 0
    %710 = vmatprep.subr.mxu0 0.0
    %711 = vmatpush1.msra.mxu0 %v705
    %712 = vmatprep.subr.mxu0 0.0
    %713 = vmatpush1.msra.mxu0 0.0
    %714 = vmatprep.subr.mxu0 0.0
    %715 = vmatpush1.msra.mxu0 0.0
    %716 = vmatprep.subr.mxu0 0.0
    %717 = vmatpush1.msra.mxu0 0.0
    %718 = vmatprep.subr.mxu0 0.0
    %719 = vmatpush1.msra.mxu0 0.0
    %720 = vmatprep.subr.mxu0 0.0
    %721 = vmatpush1.msra.mxu0 0.0
    %722 = vmatprep.subr.mxu0 0.0
    %723 = vmatpush1.msra.mxu0 0.0
    %724 = vmatprep.subr.mxu0 0.0
    %725 = vmatpush1.msra.mxu0 0.0
    %726 = vmatprep.subr.mxu0 0.0
    %727 = vmatpush1.msra.mxu0 0.0
    %728 = vmatprep.subr.mxu0 0.0
    %729 = vmatpush1.msra.mxu0 0.0
    %730 = vmatprep.subr.mxu0 0.0
    %731 = vmatpush1.msra.mxu0 0.0
    %732 = vmatprep.subr.mxu0 0.0
    %733 = vmatpush1.msra.mxu0 0.0
    %734 = vmatprep.subr.mxu0 0.0
    %735 = vmatpush1.msra.mxu0 0.0
    %736 = vmatprep.subr.mxu0 0.0
    %737 = vmatpush1.msra.mxu0 0.0
    %738 = vmatprep.subr.mxu0 0.0
    %739 = vmatpush1.msra.mxu0 0.0
    %740 = vmatprep.subr.mxu0 0.0
    %741 = vmatpush1.msra.mxu0 0.0
    %742 = vmatprep.subr.mxu0 0.0
    %743 = vmatpush1.msra.mxu0 0.0
    %744 = vmatprep.subr.mxu0 0.0
    %745 = vmatpush1.msra.mxu0 0.0
    %746 = vmatprep.subr.mxu0 0.0
    %747 = vmatpush1.msra.mxu0 0.0
    %748 = vmatprep.subr.mxu0 0.0
    %749 = vmatpush1.msra.mxu0 0.0
    %750 = vmatprep.subr.mxu0 0.0
    %751 = vmatpush1.msra.mxu0 0.0
    %752 = vmatprep.subr.mxu0 0.0
    %753 = vmatpush1.msra.mxu0 0.0
    %754 = vmatprep.subr.mxu0 0.0
    %755 = vmatpush1.msra.mxu0 0.0
    %756 = vmatprep.subr.mxu0 0.0
    %757 = vmatpush1.msra.mxu0 0.0
    %758 = vmatprep.subr.mxu0 0.0
    %759 = vmatpush1.msra.mxu0 0.0
    %760 = vmatprep.subr.mxu0 0.0
    %761 = vmatpush1.msra.mxu0 0.0
    %762 = vmatprep.subr.mxu0 0.0
    %763 = vmatpush1.msra.mxu0 0.0
    %764 = vmatprep.subr.mxu0 0.0
    %765 = vmatpush1.msra.mxu0 0.0
    %766 = vmatprep.subr.mxu0 0.0
    %767 = vmatpush1.msra.mxu0 0.0
    %768 = vmatprep.subr.mxu0 0.0
    %769 = vmatpush1.msra.mxu0 0.0
    %770 = vmatprep.subr.mxu0 0.0
    %771 = vmatpush1.msra.mxu0 0.0
    %772 = vmatprep.subr.mxu0 0.0
    %773 = vmatpush1.msra.mxu0 0.0
    %774 = vmatprep.mubr.f32.mxu0 0.0
    %775 = vmatmul.mubr.f32.gmra.mrb[0].mxu0 %v708
    %v776 = vpop.f32.mrb[0].mxu0
    %v777 = vadd.f32 0.0, %v776
    %v778 = vpop.f32.mrb[0].mxu0
    %779 = vdwg.mxu0
    %780 = vrot.lane.b32.xlu0 %v234, 64
    %v781 = vpop.permute.xlu0 %780
    %v784 = vsel %vm583, %v626, 0
    %786 = vmatprep.subr.mxu0 0.0
    %787 = vmatpush1.msra.mxu0 %v781
    %788 = vmatprep.subr.mxu0 0.0
    %789 = vmatpush1.msra.mxu0 0.0
    %790 = vmatprep.subr.mxu0 0.0
    %791 = vmatpush1.msra.mxu0 0.0
    %792 = vmatprep.subr.mxu0 0.0
    %793 = vmatpush1.msra.mxu0 0.0
    %794 = vmatprep.subr.mxu0 0.0
    %795 = vmatpush1.msra.mxu0 0.0
    %796 = vmatprep.subr.mxu0 0.0
    %797 = vmatpush1.msra.mxu0 0.0
    %798 = vmatprep.subr.mxu0 0.0
    %799 = vmatpush1.msra.mxu0 0.0
    %800 = vmatprep.subr.mxu0 0.0
    %801 = vmatpush1.msra.mxu0 0.0
    %802 = vmatprep.subr.mxu0 0.0
    %803 = vmatpush1.msra.mxu0 0.0
    %804 = vmatprep.subr.mxu0 0.0
    %805 = vmatpush1.msra.mxu0 0.0
    %806 = vmatprep.subr.mxu0 0.0
    %807 = vmatpush1.msra.mxu0 0.0
    %808 = vmatprep.subr.mxu0 0.0
    %809 = vmatpush1.msra.mxu0 0.0
    %810 = vmatprep.subr.mxu0 0.0
    %811 = vmatpush1.msra.mxu0 0.0
    %812 = vmatprep.subr.mxu0 0.0
    %813 = vmatpush1.msra.mxu0 0.0
    %814 = vmatprep.subr.mxu0 0.0
    %815 = vmatpush1.msra.mxu0 0.0
    %816 = vmatprep.subr.mxu0 0.0
    %817 = vmatpush1.msra.mxu0 0.0
    %818 = vmatprep.subr.mxu0 0.0
    %819 = vmatpush1.msra.mxu0 0.0
    %820 = vmatprep.subr.mxu0 0.0
    %821 = vmatpush1.msra.mxu0 0.0
    %822 = vmatprep.subr.mxu0 0.0
    %823 = vmatpush1.msra.mxu0 0.0
    %824 = vmatprep.subr.mxu0 0.0
    %825 = vmatpush1.msra.mxu0 0.0
    %826 = vmatprep.subr.mxu0 0.0
    %827 = vmatpush1.msra.mxu0 0.0
    %828 = vmatprep.subr.mxu0 0.0
    %829 = vmatpush1.msra.mxu0 0.0
    %830 = vmatprep.subr.mxu0 0.0
    %831 = vmatpush1.msra.mxu0 0.0
    %832 = vmatprep.subr.mxu0 0.0
    %833 = vmatpush1.msra.mxu0 0.0
    %834 = vmatprep.subr.mxu0 0.0
    %835 = vmatpush1.msra.mxu0 0.0
    %836 = vmatprep.subr.mxu0 0.0
    %837 = vmatpush1.msra.mxu0 0.0
    %838 = vmatprep.subr.mxu0 0.0
    %839 = vmatpush1.msra.mxu0 0.0
    %840 = vmatprep.subr.mxu0 0.0
    %841 = vmatpush1.msra.mxu0 0.0
    %842 = vmatprep.subr.mxu0 0.0
    %843 = vmatpush1.msra.mxu0 0.0
    %844 = vmatprep.subr.mxu0 0.0
    %845 = vmatpush1.msra.mxu0 0.0
    %846 = vmatprep.subr.mxu0 0.0
    %847 = vmatpush1.msra.mxu0 0.0
    %848 = vmatprep.subr.mxu0 0.0
    %849 = vmatpush1.msra.mxu0 0.0
    %850 = vmatprep.mubr.f32.mxu0 0.0
    %851 = vmatmul.mubr.f32.gmra.mrb[0].mxu0 %v784
    %v852 = vpop.f32.mrb[0].mxu0
    %v853 = vadd.f32 0.0, %v852
    %v854 = vpop.f32.mrb[0].mxu0
    %855 = vdwg.mxu0
    %856 = vrot.lane.b32.xlu0 %v239, 64
    %v857 = vpop.permute.xlu0 %856
    %v860 = vsel %vm583, %v627, 0
    %862 = vmatprep.subr.mxu0 0.0
    %863 = vmatpush1.msra.mxu0 %v857
    %864 = vmatprep.subr.mxu0 0.0
    %865 = vmatpush1.msra.mxu0 0.0
    %866 = vmatprep.subr.mxu0 0.0
    %867 = vmatpush1.msra.mxu0 0.0
    %868 = vmatprep.subr.mxu0 0.0
    %869 = vmatpush1.msra.mxu0 0.0
    %870 = vmatprep.subr.mxu0 0.0
    %871 = vmatpush1.msra.mxu0 0.0
    %872 = vmatprep.subr.mxu0 0.0
    %873 = vmatpush1.msra.mxu0 0.0
    %874 = vmatprep.subr.mxu0 0.0
    %875 = vmatpush1.msra.mxu0 0.0
    %876 = vmatprep.subr.mxu0 0.0
    %877 = vmatpush1.msra.mxu0 0.0
    %878 = vmatprep.subr.mxu0 0.0
    %879 = vmatpush1.msra.mxu0 0.0
    %880 = vmatprep.subr.mxu0 0.0
    %881 = vmatpush1.msra.mxu0 0.0
    %882 = vmatprep.subr.mxu0 0.0
    %883 = vmatpush1.msra.mxu0 0.0
    %884 = vmatprep.subr.mxu0 0.0
    %885 = vmatpush1.msra.mxu0 0.0
    %886 = vmatprep.subr.mxu0 0.0
    %887 = vmatpush1.msra.mxu0 0.0
    %888 = vmatprep.subr.mxu0 0.0
    %889 = vmatpush1.msra.mxu0 0.0
    %890 = vmatprep.subr.mxu0 0.0
    %891 = vmatpush1.msra.mxu0 0.0
    %892 = vmatprep.subr.mxu0 0.0
    %893 = vmatpush1.msra.mxu0 0.0
    %894 = vmatprep.subr.mxu0 0.0
    %895 = vmatpush1.msra.mxu0 0.0
    %896 = vmatprep.subr.mxu0 0.0
    %897 = vmatpush1.msra.mxu0 0.0
    %898 = vmatprep.subr.mxu0 0.0
    %899 = vmatpush1.msra.mxu0 0.0
    %900 = vmatprep.subr.mxu0 0.0
    %901 = vmatpush1.msra.mxu0 0.0
    %902 = vmatprep.subr.mxu0 0.0
    %903 = vmatpush1.msra.mxu0 0.0
    %904 = vmatprep.subr.mxu0 0.0
    %905 = vmatpush1.msra.mxu0 0.0
    %906 = vmatprep.subr.mxu0 0.0
    %907 = vmatpush1.msra.mxu0 0.0
    %908 = vmatprep.subr.mxu0 0.0
    %909 = vmatpush1.msra.mxu0 0.0
    %910 = vmatprep.subr.mxu0 0.0
    %911 = vmatpush1.msra.mxu0 0.0
    %912 = vmatprep.subr.mxu0 0.0
    %913 = vmatpush1.msra.mxu0 0.0
    %914 = vmatprep.subr.mxu0 0.0
    %915 = vmatpush1.msra.mxu0 0.0
    %916 = vmatprep.subr.mxu0 0.0
    %917 = vmatpush1.msra.mxu0 0.0
    %918 = vmatprep.subr.mxu0 0.0
    %919 = vmatpush1.msra.mxu0 0.0
    %920 = vmatprep.subr.mxu0 0.0
    %921 = vmatpush1.msra.mxu0 0.0
    %922 = vmatprep.subr.mxu0 0.0
    %923 = vmatpush1.msra.mxu0 0.0
    %924 = vmatprep.subr.mxu0 0.0
    %925 = vmatpush1.msra.mxu0 0.0
    %926 = vmatprep.mubr.f32.mxu0 0.0
    %927 = vmatmul.mubr.f32.gmra.mrb[0].mxu0 %v860
    %v928 = vpop.f32.mrb[0].mxu0
    %v929 = vadd.f32 0.0, %v928
    %v930 = vpop.f32.mrb[0].mxu0
    %931 = vdwg.mxu0
    %932 = vrot.lane.b32.xlu0 %v224, 112
    %v933 = vpop.permute.xlu0 %932
    %934 = vrot.lane.b32.xlu0 %v224, 80
    %v935 = vpop.permute.xlu0 %934
    %v936 = vsel %vm245, %v933, 0
    %v938 = vsel %vm245, %v935, 0
    %940 = vmatprep.subr.mxu0 0.0
    %941 = vmatpush1.xpose.msra.mxu0 %v938
    %942 = vmatprep.subr.mxu0 0.0
    %943 = vmatpush1.xpose.msra.mxu0 0.0
    %944 = vmatprep.subr.mxu0 0.0
    %945 = vmatpush1.xpose.msra.mxu0 0.0
    %946 = vmatprep.subr.mxu0 0.0
    %947 = vmatpush1.xpose.msra.mxu0 0.0
    %948 = vmatprep.subr.mxu0 0.0
    %949 = vmatpush1.xpose.msra.mxu0 0.0
    %950 = vmatprep.subr.mxu0 0.0
    %951 = vmatpush1.xpose.msra.mxu0 0.0
    %952 = vmatprep.subr.mxu0 0.0
    %953 = vmatpush1.xpose.msra.mxu0 0.0
    %954 = vmatprep.subr.mxu0 0.0
    %955 = vmatpush1.xpose.msra.mxu0 0.0
    %956 = vmatprep.subr.mxu0 0.0
    %957 = vmatpush1.xpose.msra.mxu0 0.0
    %958 = vmatprep.subr.mxu0 0.0
    %959 = vmatpush1.xpose.msra.mxu0 0.0
    %960 = vmatprep.subr.mxu0 0.0
    %961 = vmatpush1.xpose.msra.mxu0 0.0
    %962 = vmatprep.subr.mxu0 0.0
    %963 = vmatpush1.xpose.msra.mxu0 0.0
    %964 = vmatprep.subr.mxu0 0.0
    %965 = vmatpush1.xpose.msra.mxu0 0.0
    %966 = vmatprep.subr.mxu0 0.0
    %967 = vmatpush1.xpose.msra.mxu0 0.0
    %968 = vmatprep.subr.mxu0 0.0
    %969 = vmatpush1.xpose.msra.mxu0 0.0
    %970 = vmatprep.subr.mxu0 0.0
    %971 = vmatpush1.xpose.msra.mxu0 0.0
    %972 = vmatprep.subr.mxu0 0.0
    %973 = vmatpush1.xpose.msra.mxu0 0.0
    %974 = vmatprep.subr.mxu0 0.0
    %975 = vmatpush1.xpose.msra.mxu0 0.0
    %976 = vmatprep.subr.mxu0 0.0
    %977 = vmatpush1.xpose.msra.mxu0 0.0
    %978 = vmatprep.subr.mxu0 0.0
    %979 = vmatpush1.xpose.msra.mxu0 0.0
    %980 = vmatprep.subr.mxu0 0.0
    %981 = vmatpush1.xpose.msra.mxu0 0.0
    %982 = vmatprep.subr.mxu0 0.0
    %983 = vmatpush1.xpose.msra.mxu0 0.0
    %984 = vmatprep.subr.mxu0 0.0
    %985 = vmatpush1.xpose.msra.mxu0 0.0
    %986 = vmatprep.subr.mxu0 0.0
    %987 = vmatpush1.xpose.msra.mxu0 0.0
    %988 = vmatprep.subr.mxu0 0.0
    %989 = vmatpush1.xpose.msra.mxu0 0.0
    %990 = vmatprep.subr.mxu0 0.0
    %991 = vmatpush1.xpose.msra.mxu0 0.0
    %992 = vmatprep.subr.mxu0 0.0
    %993 = vmatpush1.xpose.msra.mxu0 0.0
    %994 = vmatprep.subr.mxu0 0.0
    %995 = vmatpush1.xpose.msra.mxu0 0.0
    %996 = vmatprep.subr.mxu0 0.0
    %997 = vmatpush1.xpose.msra.mxu0 0.0
    %998 = vmatprep.subr.mxu0 0.0
    %999 = vmatpush1.xpose.msra.mxu0 0.0
    %1000 = vmatprep.subr.mxu0 0.0
    %1001 = vmatpush1.xpose.msra.mxu0 0.0
    %1002 = vmatprep.subr.mxu0 0.0
    %1003 = vmatpush1.xpose.msra.mxu0 0.0
    %1004 = vmatprep.mubr.f32.mxu0 0.0
    %1005 = vmatmul.mubr.f32.gmra.mrb[0].mxu0 %v936
    %v1006 = vpop.f32.mrb[0].mxu0
    %v1007 = vadd.f32 0.0, %v1006
    %v1008 = vpop.f32.mrb[0].mxu0
    %1009 = vdwg.mxu0
    %1010 = vrot.lane.b32.xlu0 %v229, 112
    %v1011 = vpop.permute.xlu0 %1010
    %1012 = vrot.lane.b32.xlu0 %v229, 80
    %v1013 = vpop.permute.xlu0 %1012
    %v1014 = vsel %vm245, %v1011, 0
    %v1016 = vsel %vm245, %v1013, 0
    %1018 = vmatprep.subr.mxu0 0.0
    %1019 = vmatpush1.xpose.msra.mxu0 %v1016
    %1020 = vmatprep.subr.mxu0 0.0
    %1021 = vmatpush1.xpose.msra.mxu0 0.0
    %1022 = vmatprep.subr.mxu0 0.0
    %1023 = vmatpush1.xpose.msra.mxu0 0.0
    %1024 = vmatprep.subr.mxu0 0.0
    %1025 = vmatpush1.xpose.msra.mxu0 0.0
    %1026 = vmatprep.subr.mxu0 0.0
    %1027 = vmatpush1.xpose.msra.mxu0 0.0
    %1028 = vmatprep.subr.mxu0 0.0
    %1029 = vmatpush1.xpose.msra.mxu0 0.0
    %1030 = vmatprep.subr.mxu0 0.0
    %1031 = vmatpush1.xpose.msra.mxu0 0.0
    %1032 = vmatprep.subr.mxu0 0.0
    %1033 = vmatpush1.xpose.msra.mxu0 0.0
    %1034 = vmatprep.subr.mxu0 0.0
    %1035 = vmatpush1.xpose.msra.mxu0 0.0
    %1036 = vmatprep.subr.mxu0 0.0
    %1037 = vmatpush1.xpose.msra.mxu0 0.0
    %1038 = vmatprep.subr.mxu0 0.0
    %1039 = vmatpush1.xpose.msra.mxu0 0.0
    %1040 = vmatprep.subr.mxu0 0.0
    %1041 = vmatpush1.xpose.msra.mxu0 0.0
    %1042 = vmatprep.subr.mxu0 0.0
    %1043 = vmatpush1.xpose.msra.mxu0 0.0
    %1044 = vmatprep.subr.mxu0 0.0
    %1045 = vmatpush1.xpose.msra.mxu0 0.0
    %1046 = vmatprep.subr.mxu0 0.0
    %1047 = vmatpush1.xpose.msra.mxu0 0.0
    %1048 = vmatprep.subr.mxu0 0.0
    %1049 = vmatpush1.xpose.msra.mxu0 0.0
    %1050 = vmatprep.subr.mxu0 0.0
    %1051 = vmatpush1.xpose.msra.mxu0 0.0
    %1052 = vmatprep.subr.mxu0 0.0
    %1053 = vmatpush1.xpose.msra.mxu0 0.0
    %1054 = vmatprep.subr.mxu0 0.0
    %1055 = vmatpush1.xpose.msra.mxu0 0.0
    %1056 = vmatprep.subr.mxu0 0.0
    %1057 = vmatpush1.xpose.msra.mxu0 0.0
    %1058 = vmatprep.subr.mxu0 0.0
    %1059 = vmatpush1.xpose.msra.mxu0 0.0
    %1060 = vmatprep.subr.mxu0 0.0
    %1061 = vmatpush1.xpose.msra.mxu0 0.0
    %1062 = vmatprep.subr.mxu0 0.0
    %1063 = vmatpush1.xpose.msra.mxu0 0.0
    %1064 = vmatprep.subr.mxu0 0.0
    %1065 = vmatpush1.xpose.msra.mxu0 0.0
    %1066 = vmatprep.subr.mxu0 0.0
    %1067 = vmatpush1.xpose.msra.mxu0 0.0
    %1068 = vmatprep.subr.mxu0 0.0
    %1069 = vmatpush1.xpose.msra.mxu0 0.0
    %1070 = vmatprep.subr.mxu0 0.0
    %1071 = vmatpush1.xpose.msra.mxu0 0.0
    %1072 = vmatprep.subr.mxu0 0.0
    %1073 = vmatpush1.xpose.msra.mxu0 0.0
    %1074 = vmatprep.subr.mxu0 0.0
    %1075 = vmatpush1.xpose.msra.mxu0 0.0
    %1076 = vmatprep.subr.mxu0 0.0
    %1077 = vmatpush1.xpose.msra.mxu0 0.0
    %1078 = vmatprep.subr.mxu0 0.0
    %1079 = vmatpush1.xpose.msra.mxu0 0.0
    %1080 = vmatprep.subr.mxu0 0.0
    %1081 = vmatpush1.xpose.msra.mxu0 0.0
    %1082 = vmatprep.mubr.f32.mxu0 0.0
    %1083 = vmatmul.mubr.f32.gmra.mrb[0].mxu0 %v1014
    %v1084 = vpop.f32.mrb[0].mxu0
    %v1085 = vadd.f32 0.0, %v1084
    %v1086 = vpop.f32.mrb[0].mxu0
    %1087 = vdwg.mxu0
    %1088 = vrot.lane.b32.xlu0 %v234, 112
    %v1089 = vpop.permute.xlu0 %1088
    %1090 = vrot.lane.b32.xlu0 %v234, 80
    %v1091 = vpop.permute.xlu0 %1090
    %v1092 = vsel %vm245, %v1089, 0
    %v1094 = vsel %vm245, %v1091, 0
    %1096 = vmatprep.subr.mxu0 0.0
    %1097 = vmatpush1.xpose.msra.mxu0 %v1094
    %1098 = vmatprep.subr.mxu0 0.0
    %1099 = vmatpush1.xpose.msra.mxu0 0.0
    %1100 = vmatprep.subr.mxu0 0.0
    %1101 = vmatpush1.xpose.msra.mxu0 0.0
    %1102 = vmatprep.subr.mxu0 0.0
    %1103 = vmatpush1.xpose.msra.mxu0 0.0
    %1104 = vmatprep.subr.mxu0 0.0
    %1105 = vmatpush1.xpose.msra.mxu0 0.0
    %1106 = vmatprep.subr.mxu0 0.0
    %1107 = vmatpush1.xpose.msra.mxu0 0.0
    %1108 = vmatprep.subr.mxu0 0.0
    %1109 = vmatpush1.xpose.msra.mxu0 0.0
    %1110 = vmatprep.subr.mxu0 0.0
    %1111 = vmatpush1.xpose.msra.mxu0 0.0
    %1112 = vmatprep.subr.mxu0 0.0
    %1113 = vmatpush1.xpose.msra.mxu0 0.0
    %1114 = vmatprep.subr.mxu0 0.0
    %1115 = vmatpush1.xpose.msra.mxu0 0.0
    %1116 = vmatprep.subr.mxu0 0.0
    %1117 = vmatpush1.xpose.msra.mxu0 0.0
    %1118 = vmatprep.subr.mxu0 0.0
    %1119 = vmatpush1.xpose.msra.mxu0 0.0
    %1120 = vmatprep.subr.mxu0 0.0
    %1121 = vmatpush1.xpose.msra.mxu0 0.0
    %1122 = vmatprep.subr.mxu0 0.0
    %1123 = vmatpush1.xpose.msra.mxu0 0.0
    %1124 = vmatprep.subr.mxu0 0.0
    %1125 = vmatpush1.xpose.msra.mxu0 0.0
    %1126 = vmatprep.subr.mxu0 0.0
    %1127 = vmatpush1.xpose.msra.mxu0 0.0
    %1128 = vmatprep.subr.mxu0 0.0
    %1129 = vmatpush1.xpose.msra.mxu0 0.0
    %1130 = vmatprep.subr.mxu0 0.0
    %1131 = vmatpush1.xpose.msra.mxu0 0.0
    %1132 = vmatprep.subr.mxu0 0.0
    %1133 = vmatpush1.xpose.msra.mxu0 0.0
    %1134 = vmatprep.subr.mxu0 0.0
    %1135 = vmatpush1.xpose.msra.mxu0 0.0
    %1136 = vmatprep.subr.mxu0 0.0
    %1137 = vmatpush1.xpose.msra.mxu0 0.0
    %1138 = vmatprep.subr.mxu0 0.0
    %1139 = vmatpush1.xpose.msra.mxu0 0.0
    %1140 = vmatprep.subr.mxu0 0.0
    %1141 = vmatpush1.xpose.msra.mxu0 0.0
    %1142 = vmatprep.subr.mxu0 0.0
    %1143 = vmatpush1.xpose.msra.mxu0 0.0
    %1144 = vmatprep.subr.mxu0 0.0
    %1145 = vmatpush1.xpose.msra.mxu0 0.0
    %1146 = vmatprep.subr.mxu0 0.0
    %1147 = vmatpush1.xpose.msra.mxu0 0.0
    %1148 = vmatprep.subr.mxu0 0.0
    %1149 = vmatpush1.xpose.msra.mxu0 0.0
    %1150 = vmatprep.subr.mxu0 0.0
    %1151 = vmatpush1.xpose.msra.mxu0 0.0
    %1152 = vmatprep.subr.mxu0 0.0
    %1153 = vmatpush1.xpose.msra.mxu0 0.0
    %1154 = vmatprep.subr.mxu0 0.0
    %1155 = vmatpush1.xpose.msra.mxu0 0.0
    %1156 = vmatprep.subr.mxu0 0.0
    %1157 = vmatpush1.xpose.msra.mxu0 0.0
    %1158 = vmatprep.subr.mxu0 0.0
    %1159 = vmatpush1.xpose.msra.mxu0 0.0
    %1160 = vmatprep.mubr.f32.mxu0 0.0
    %1161 = vmatmul.mubr.f32.gmra.mrb[0].mxu0 %v1092
    %v1162 = vpop.f32.mrb[0].mxu0
    %v1163 = vadd.f32 0.0, %v1162
    %v1164 = vpop.f32.mrb[0].mxu0
    %1165 = vdwg.mxu0
    %1166 = vrot.lane.b32.xlu0 %v239, 112
    %v1167 = vpop.permute.xlu0 %1166
    %1168 = vrot.lane.b32.xlu0 %v239, 80
    %v1169 = vpop.permute.xlu0 %1168
    %v1170 = vsel %vm245, %v1167, 0
    %v1172 = vsel %vm245, %v1169, 0
    %1174 = vmatprep.subr.mxu0 0.0
    %1175 = vmatpush1.xpose.msra.mxu0 %v1172
    %1176 = vmatprep.subr.mxu0 0.0
    %1177 = vmatpush1.xpose.msra.mxu0 0.0
    %1178 = vmatprep.subr.mxu0 0.0
    %1179 = vmatpush1.xpose.msra.mxu0 0.0
    %1180 = vmatprep.subr.mxu0 0.0
    %1181 = vmatpush1.xpose.msra.mxu0 0.0
    %1182 = vmatprep.subr.mxu0 0.0
    %1183 = vmatpush1.xpose.msra.mxu0 0.0
    %1184 = vmatprep.subr.mxu0 0.0
    %1185 = vmatpush1.xpose.msra.mxu0 0.0
    %1186 = vmatprep.subr.mxu0 0.0
    %1187 = vmatpush1.xpose.msra.mxu0 0.0
    %1188 = vmatprep.subr.mxu0 0.0
    %1189 = vmatpush1.xpose.msra.mxu0 0.0
    %1190 = vmatprep.subr.mxu0 0.0
    %1191 = vmatpush1.xpose.msra.mxu0 0.0
    %1192 = vmatprep.subr.mxu0 0.0
    %1193 = vmatpush1.xpose.msra.mxu0 0.0
    %1194 = vmatprep.subr.mxu0 0.0
    %1195 = vmatpush1.xpose.msra.mxu0 0.0
    %1196 = vmatprep.subr.mxu0 0.0
    %1197 = vmatpush1.xpose.msra.mxu0 0.0
    %1198 = vmatprep.subr.mxu0 0.0
    %1199 = vmatpush1.xpose.msra.mxu0 0.0
    %1200 = vmatprep.subr.mxu0 0.0
    %1201 = vmatpush1.xpose.msra.mxu0 0.0
    %1202 = vmatprep.subr.mxu0 0.0
    %1203 = vmatpush1.xpose.msra.mxu0 0.0
    %1204 = vmatprep.subr.mxu0 0.0
    %1205 = vmatpush1.xpose.msra.mxu0 0.0
    %1206 = vmatprep.subr.mxu0 0.0
    %1207 = vmatpush1.xpose.msra.mxu0 0.0
    %1208 = vmatprep.subr.mxu0 0.0
    %1209 = vmatpush1.xpose.msra.mxu0 0.0
    %1210 = vmatprep.subr.mxu0 0.0
    %1211 = vmatpush1.xpose.msra.mxu0 0.0
    %1212 = vmatprep.subr.mxu0 0.0
    %1213 = vmatpush1.xpose.msra.mxu0 0.0
    %1214 = vmatprep.subr.mxu0 0.0
    %1215 = vmatpush1.xpose.msra.mxu0 0.0
    %1216 = vmatprep.subr.mxu0 0.0
    %1217 = vmatpush1.xpose.msra.mxu0 0.0
    %1218 = vmatprep.subr.mxu0 0.0
    %1219 = vmatpush1.xpose.msra.mxu0 0.0
    %1220 = vmatprep.subr.mxu0 0.0
    %1221 = vmatpush1.xpose.msra.mxu0 0.0
    %1222 = vmatprep.subr.mxu0 0.0
    %1223 = vmatpush1.xpose.msra.mxu0 0.0
    %1224 = vmatprep.subr.mxu0 0.0
    %1225 = vmatpush1.xpose.msra.mxu0 0.0
    %1226 = vmatprep.subr.mxu0 0.0
    %1227 = vmatpush1.xpose.msra.mxu0 0.0
    %1228 = vmatprep.subr.mxu0 0.0
    %1229 = vmatpush1.xpose.msra.mxu0 0.0
    %1230 = vmatprep.subr.mxu0 0.0
    %1231 = vmatpush1.xpose.msra.mxu0 0.0
    %1232 = vmatprep.subr.mxu0 0.0
    %1233 = vmatpush1.xpose.msra.mxu0 0.0
    %1234 = vmatprep.subr.mxu0 0.0
    %1235 = vmatpush1.xpose.msra.mxu0 0.0
    %1236 = vmatprep.subr.mxu0 0.0
    %1237 = vmatpush1.xpose.msra.mxu0 0.0
    %1238 = vmatprep.mubr.f32.mxu0 0.0
    %1239 = vmatmul.mubr.f32.gmra.mrb[0].mxu0 %v1170
    %v1240 = vpop.f32.mrb[0].mxu0
    %v1241 = vadd.f32 0.0, %v1240
    %v1242 = vpop.f32.mrb[0].mxu0
    %1243 = vdwg.mxu0
    %v1244 = vmul.f32 %v1007, 0.25
    %v1245 = vmul.f32 %v1085, 0.25
    %v1246 = vmul.f32 %v1163, 0.25
    %v1247 = vmul.f32 %v1241, 0.25
    %v1248 = vadd.f32 %v1244, %v562
    %v1249 = vadd.f32 %v1245, %v566
    %v1250 = vadd.f32 %v1246, %v570
    %v1251 = vadd.f32 %v1247, %v574
    %v1252 = vsel %vm583, %v1248, -inf
    %1253 = vmax.xlane.f32.xlu0 %v1252
    %v1254 = vpop.xlane.xlu0 %1253
    %v1255 = vsel %vm583, %v1249, -inf
    %1256 = vmax.xlane.f32.xlu0 %v1255
    %v1257 = vpop.xlane.xlu0 %1256
    %v1258 = vsel %vm583, %v1250, -inf
    %1259 = vmax.xlane.f32.xlu0 %v1258
    %v1260 = vpop.xlane.xlu0 %1259
    %v1261 = vsel %vm583, %v1251, -inf
    %1262 = vmax.xlane.f32.xlu0 %v1261
    %v1263 = vpop.xlane.xlu0 %1262
    %v1264 = vsub.f32 %v1248, %v1254
    %v1265 = vsub.f32 %v1249, %v1257
    %v1266 = vsub.f32 %v1250, %v1260
    %v1267 = vsub.f32 %v1251, %v1263
    %v1268 = vmul.f32 %v1264, 1.442695
    %v1269 = vpow.pop %v1268
    %v1270 = vmul.f32 %v1265, 1.442695
    %v1271 = vpow.pop %v1270
    %v1272 = vmul.f32 %v1266, 1.442695
    %v1273 = vpow.pop %v1272
    %v1274 = vmul.f32 %v1267, 1.442695
    %v1275 = vpow.pop %v1274
    %v1276 = vsel %vm583, %v1269, 0.0
    %1277 = vadd.xlane.f32.xlu0 %v1276
    %v1278 = vpop.xlane.xlu0 %1277
    %v1279 = vsel %vm583, %v1271, 0.0
    %1280 = vadd.xlane.f32.xlu0 %v1279
    %v1281 = vpop.xlane.xlu0 %1280
    %v1282 = vsel %vm583, %v1273, 0.0
    %1283 = vadd.xlane.f32.xlu0 %v1282
    %v1284 = vpop.xlane.xlu0 %1283
    %v1285 = vsel %vm583, %v1275, 0.0
    %1286 = vadd.xlane.f32.xlu0 %v1285
    %v1287 = vpop.xlane.xlu0 %1286
    %v1288 = vrcp.pop %v1278
    %v1289 = vrcp.pop %v1281
    %v1290 = vrcp.pop %v1284
    %v1291 = vrcp.pop %v1287
    %v1292 = vmul.f32 %v1269, %v1288
    %v1293 = vmul.f32 %v1271, %v1289
    %v1294 = vmul.f32 %v1273, %v1290
    %v1295 = vmul.f32 %v1275, %v1291
    %1296 = vrot.lane.b32.xlu0 %v224, 48
    %v1297 = vpop.permute.xlu0 %1296
    %v1300 = vsel %vm583, %v1292, 0
    %1302 = vmatprep.subr.mxu0 0.0
    %1303 = vmatpush1.msra.mxu0 %v1297
    %1304 = vmatprep.subr.mxu0 0.0
    %1305 = vmatpush1.msra.mxu0 0.0
    %1306 = vmatprep.subr.mxu0 0.0
    %1307 = vmatpush1.msra.mxu0 0.0
    %1308 = vmatprep.subr.mxu0 0.0
    %1309 = vmatpush1.msra.mxu0 0.0
    %1310 = vmatprep.subr.mxu0 0.0
    %1311 = vmatpush1.msra.mxu0 0.0
    %1312 = vmatprep.subr.mxu0 0.0
    %1313 = vmatpush1.msra.mxu0 0.0
    %1314 = vmatprep.subr.mxu0 0.0
    %1315 = vmatpush1.msra.mxu0 0.0
    %1316 = vmatprep.subr.mxu0 0.0
    %1317 = vmatpush1.msra.mxu0 0.0
    %1318 = vmatprep.subr.mxu0 0.0
    %1319 = vmatpush1.msra.mxu0 0.0
    %1320 = vmatprep.subr.mxu0 0.0
    %1321 = vmatpush1.msra.mxu0 0.0
    %1322 = vmatprep.subr.mxu0 0.0
    %1323 = vmatpush1.msra.mxu0 0.0
    %1324 = vmatprep.subr.mxu0 0.0
    %1325 = vmatpush1.msra.mxu0 0.0
    %1326 = vmatprep.subr.mxu0 0.0
    %1327 = vmatpush1.msra.mxu0 0.0
    %1328 = vmatprep.subr.mxu0 0.0
    %1329 = vmatpush1.msra.mxu0 0.0
    %1330 = vmatprep.subr.mxu0 0.0
    %1331 = vmatpush1.msra.mxu0 0.0
    %1332 = vmatprep.subr.mxu0 0.0
    %1333 = vmatpush1.msra.mxu0 0.0
    %1334 = vmatprep.subr.mxu0 0.0
    %1335 = vmatpush1.msra.mxu0 0.0
    %1336 = vmatprep.subr.mxu0 0.0
    %1337 = vmatpush1.msra.mxu0 0.0
    %1338 = vmatprep.subr.mxu0 0.0
    %1339 = vmatpush1.msra.mxu0 0.0
    %1340 = vmatprep.subr.mxu0 0.0
    %1341 = vmatpush1.msra.mxu0 0.0
    %1342 = vmatprep.subr.mxu0 0.0
    %1343 = vmatpush1.msra.mxu0 0.0
    %1344 = vmatprep.subr.mxu0 0.0
    %1345 = vmatpush1.msra.mxu0 0.0
    %1346 = vmatprep.subr.mxu0 0.0
    %1347 = vmatpush1.msra.mxu0 0.0
    %1348 = vmatprep.subr.mxu0 0.0
    %1349 = vmatpush1.msra.mxu0 0.0
    %1350 = vmatprep.subr.mxu0 0.0
    %1351 = vmatpush1.msra.mxu0 0.0
    %1352 = vmatprep.subr.mxu0 0.0
    %1353 = vmatpush1.msra.mxu0 0.0
    %1354 = vmatprep.subr.mxu0 0.0
    %1355 = vmatpush1.msra.mxu0 0.0
    %1356 = vmatprep.subr.mxu0 0.0
    %1357 = vmatpush1.msra.mxu0 0.0
    %1358 = vmatprep.subr.mxu0 0.0
    %1359 = vmatpush1.msra.mxu0 0.0
    %1360 = vmatprep.subr.mxu0 0.0
    %1361 = vmatpush1.msra.mxu0 0.0
    %1362 = vmatprep.subr.mxu0 0.0
    %1363 = vmatpush1.msra.mxu0 0.0
    %1364 = vmatprep.subr.mxu0 0.0
    %1365 = vmatpush1.msra.mxu0 0.0
    %1366 = vmatprep.mubr.f32.mxu0 0.0
    %1367 = vmatmul.mubr.f32.gmra.mrb[0].mxu0 %v1300
    %v1368 = vpop.f32.mrb[0].mxu0
    %v1369 = vadd.f32 0.0, %v1368
    %v1370 = vpop.f32.mrb[0].mxu0
    %1371 = vdwg.mxu0
    %1372 = vrot.lane.b32.xlu0 %v229, 48
    %v1373 = vpop.permute.xlu0 %1372
    %v1376 = vsel %vm583, %v1293, 0
    %1378 = vmatprep.subr.mxu0 0.0
    %1379 = vmatpush1.msra.mxu0 %v1373
    %1380 = vmatprep.subr.mxu0 0.0
    %1381 = vmatpush1.msra.mxu0 0.0
    %1382 = vmatprep.subr.mxu0 0.0
    %1383 = vmatpush1.msra.mxu0 0.0
    %1384 = vmatprep.subr.mxu0 0.0
    %1385 = vmatpush1.msra.mxu0 0.0
    %1386 = vmatprep.subr.mxu0 0.0
    %1387 = vmatpush1.msra.mxu0 0.0
    %1388 = vmatprep.subr.mxu0 0.0
    %1389 = vmatpush1.msra.mxu0 0.0
    %1390 = vmatprep.subr.mxu0 0.0
    %1391 = vmatpush1.msra.mxu0 0.0
    %1392 = vmatprep.subr.mxu0 0.0
    %1393 = vmatpush1.msra.mxu0 0.0
    %1394 = vmatprep.subr.mxu0 0.0
    %1395 = vmatpush1.msra.mxu0 0.0
    %1396 = vmatprep.subr.mxu0 0.0
    %1397 = vmatpush1.msra.mxu0 0.0
    %1398 = vmatprep.subr.mxu0 0.0
    %1399 = vmatpush1.msra.mxu0 0.0
    %1400 = vmatprep.subr.mxu0 0.0
    %1401 = vmatpush1.msra.mxu0 0.0
    %1402 = vmatprep.subr.mxu0 0.0
    %1403 = vmatpush1.msra.mxu0 0.0
    %1404 = vmatprep.subr.mxu0 0.0
    %1405 = vmatpush1.msra.mxu0 0.0
    %1406 = vmatprep.subr.mxu0 0.0
    %1407 = vmatpush1.msra.mxu0 0.0
    %1408 = vmatprep.subr.mxu0 0.0
    %1409 = vmatpush1.msra.mxu0 0.0
    %1410 = vmatprep.subr.mxu0 0.0
    %1411 = vmatpush1.msra.mxu0 0.0
    %1412 = vmatprep.subr.mxu0 0.0
    %1413 = vmatpush1.msra.mxu0 0.0
    %1414 = vmatprep.subr.mxu0 0.0
    %1415 = vmatpush1.msra.mxu0 0.0
    %1416 = vmatprep.subr.mxu0 0.0
    %1417 = vmatpush1.msra.mxu0 0.0
    %1418 = vmatprep.subr.mxu0 0.0
    %1419 = vmatpush1.msra.mxu0 0.0
    %1420 = vmatprep.subr.mxu0 0.0
    %1421 = vmatpush1.msra.mxu0 0.0
    %1422 = vmatprep.subr.mxu0 0.0
    %1423 = vmatpush1.msra.mxu0 0.0
    %1424 = vmatprep.subr.mxu0 0.0
    %1425 = vmatpush1.msra.mxu0 0.0
    %1426 = vmatprep.subr.mxu0 0.0
    %1427 = vmatpush1.msra.mxu0 0.0
    %1428 = vmatprep.subr.mxu0 0.0
    %1429 = vmatpush1.msra.mxu0 0.0
    %1430 = vmatprep.subr.mxu0 0.0
    %1431 = vmatpush1.msra.mxu0 0.0
    %1432 = vmatprep.subr.mxu0 0.0
    %1433 = vmatpush1.msra.mxu0 0.0
    %1434 = vmatprep.subr.mxu0 0.0
    %1435 = vmatpush1.msra.mxu0 0.0
    %1436 = vmatprep.subr.mxu0 0.0
    %1437 = vmatpush1.msra.mxu0 0.0
    %1438 = vmatprep.subr.mxu0 0.0
    %1439 = vmatpush1.msra.mxu0 0.0
    %1440 = vmatprep.subr.mxu0 0.0
    %1441 = vmatpush1.msra.mxu0 0.0
    %1442 = vmatprep.mubr.f32.mxu0 0.0
    %1443 = vmatmul.mubr.f32.gmra.mrb[0].mxu0 %v1376
    %v1444 = vpop.f32.mrb[0].mxu0
    %v1445 = vadd.f32 0.0, %v1444
    %v1446 = vpop.f32.mrb[0].mxu0
    %1447 = vdwg.mxu0
    %1448 = vrot.lane.b32.xlu0 %v234, 48
    %v1449 = vpop.permute.xlu0 %1448
    %v1452 = vsel %vm583, %v1294, 0
    %1454 = vmatprep.subr.mxu0 0.0
    %1455 = vmatpush1.msra.mxu0 %v1449
    %1456 = vmatprep.subr.mxu0 0.0
    %1457 = vmatpush1.msra.mxu0 0.0
    %1458 = vmatprep.subr.mxu0 0.0
    %1459 = vmatpush1.msra.mxu0 0.0
    %1460 = vmatprep.subr.mxu0 0.0
    %1461 = vmatpush1.msra.mxu0 0.0
    %1462 = vmatprep.subr.mxu0 0.0
    %1463 = vmatpush1.msra.mxu0 0.0
    %1464 = vmatprep.subr.mxu0 0.0
    %1465 = vmatpush1.msra.mxu0 0.0
    %1466 = vmatprep.subr.mxu0 0.0
    %1467 = vmatpush1.msra.mxu0 0.0
    %1468 = vmatprep.subr.mxu0 0.0
    %1469 = vmatpush1.msra.mxu0 0.0
    %1470 = vmatprep.subr.mxu0 0.0
    %1471 = vmatpush1.msra.mxu0 0.0
    %1472 = vmatprep.subr.mxu0 0.0
    %1473 = vmatpush1.msra.mxu0 0.0
    %1474 = vmatprep.subr.mxu0 0.0
    %1475 = vmatpush1.msra.mxu0 0.0
    %1476 = vmatprep.subr.mxu0 0.0
    %1477 = vmatpush1.msra.mxu0 0.0
    %1478 = vmatprep.subr.mxu0 0.0
    %1479 = vmatpush1.msra.mxu0 0.0
    %1480 = vmatprep.subr.mxu0 0.0
    %1481 = vmatpush1.msra.mxu0 0.0
    %1482 = vmatprep.subr.mxu0 0.0
    %1483 = vmatpush1.msra.mxu0 0.0
    %1484 = vmatprep.subr.mxu0 0.0
    %1485 = vmatpush1.msra.mxu0 0.0
    %1486 = vmatprep.subr.mxu0 0.0
    %1487 = vmatpush1.msra.mxu0 0.0
    %1488 = vmatprep.subr.mxu0 0.0
    %1489 = vmatpush1.msra.mxu0 0.0
    %1490 = vmatprep.subr.mxu0 0.0
    %1491 = vmatpush1.msra.mxu0 0.0
    %1492 = vmatprep.subr.mxu0 0.0
    %1493 = vmatpush1.msra.mxu0 0.0
    %1494 = vmatprep.subr.mxu0 0.0
    %1495 = vmatpush1.msra.mxu0 0.0
    %1496 = vmatprep.subr.mxu0 0.0
    %1497 = vmatpush1.msra.mxu0 0.0
    %1498 = vmatprep.subr.mxu0 0.0
    %1499 = vmatpush1.msra.mxu0 0.0
    %1500 = vmatprep.subr.mxu0 0.0
    %1501 = vmatpush1.msra.mxu0 0.0
    %1502 = vmatprep.subr.mxu0 0.0
    %1503 = vmatpush1.msra.mxu0 0.0
    %1504 = vmatprep.subr.mxu0 0.0
    %1505 = vmatpush1.msra.mxu0 0.0
    %1506 = vmatprep.subr.mxu0 0.0
    %1507 = vmatpush1.msra.mxu0 0.0
    %1508 = vmatprep.subr.mxu0 0.0
    %1509 = vmatpush1.msra.mxu0 0.0
    %1510 = vmatprep.subr.mxu0 0.0
    %1511 = vmatpush1.msra.mxu0 0.0
    %1512 = vmatprep.subr.mxu0 0.0
    %1513 = vmatpush1.msra.mxu0 0.0
    %1514 = vmatprep.subr.mxu0 0.0
    %1515 = vmatpush1.msra.mxu0 0.0
    %1516 = vmatprep.subr.mxu0 0.0
    %1517 = vmatpush1.msra.mxu0 0.0
    %1518 = vmatprep.mubr.f32.mxu0 0.0
    %1519 = vmatmul.mubr.f32.gmra.mrb[0].mxu0 %v1452
    %v1520 = vpop.f32.mrb[0].mxu0
    %v1521 = vadd.f32 0.0, %v1520
    %v1522 = vpop.f32.mrb[0].mxu0
    %1523 = vdwg.mxu0
    %1524 = vrot.lane.b32.xlu0 %v239, 48
    %v1525 = vpop.permute.xlu0 %1524
    %v1528 = vsel %vm583, %v1295, 0
    %1530 = vmatprep.subr.mxu0 0.0
    %1531 = vmatpush1.msra.mxu0 %v1525
    %1532 = vmatprep.subr.mxu0 0.0
    %1533 = vmatpush1.msra.mxu0 0.0
    %1534 = vmatprep.subr.mxu0 0.0
    %1535 = vmatpush1.msra.mxu0 0.0
    %1536 = vmatprep.subr.mxu0 0.0
    %1537 = vmatpush1.msra.mxu0 0.0
    %1538 = vmatprep.subr.mxu0 0.0
    %1539 = vmatpush1.msra.mxu0 0.0
    %1540 = vmatprep.subr.mxu0 0.0
    %1541 = vmatpush1.msra.mxu0 0.0
    %1542 = vmatprep.subr.mxu0 0.0
    %1543 = vmatpush1.msra.mxu0 0.0
    %1544 = vmatprep.subr.mxu0 0.0
    %1545 = vmatpush1.msra.mxu0 0.0
    %1546 = vmatprep.subr.mxu0 0.0
    %1547 = vmatpush1.msra.mxu0 0.0
    %1548 = vmatprep.subr.mxu0 0.0
    %1549 = vmatpush1.msra.mxu0 0.0
    %1550 = vmatprep.subr.mxu0 0.0
    %1551 = vmatpush1.msra.mxu0 0.0
    %1552 = vmatprep.subr.mxu0 0.0
    %1553 = vmatpush1.msra.mxu0 0.0
    %1554 = vmatprep.subr.mxu0 0.0
    %1555 = vmatpush1.msra.mxu0 0.0
    %1556 = vmatprep.subr.mxu0 0.0
    %1557 = vmatpush1.msra.mxu0 0.0
    %1558 = vmatprep.subr.mxu0 0.0
    %1559 = vmatpush1.msra.mxu0 0.0
    %1560 = vmatprep.subr.mxu0 0.0
    %1561 = vmatpush1.msra.mxu0 0.0
    %1562 = vmatprep.subr.mxu0 0.0
    %1563 = vmatpush1.msra.mxu0 0.0
    %1564 = vmatprep.subr.mxu0 0.0
    %1565 = vmatpush1.msra.mxu0 0.0
    %1566 = vmatprep.subr.mxu0 0.0
    %1567 = vmatpush1.msra.mxu0 0.0
    %1568 = vmatprep.subr.mxu0 0.0
    %1569 = vmatpush1.msra.mxu0 0.0
    %1570 = vmatprep.subr.mxu0 0.0
    %1571 = vmatpush1.msra.mxu0 0.0
    %1572 = vmatprep.subr.mxu0 0.0
    %1573 = vmatpush1.msra.mxu0 0.0
    %1574 = vmatprep.subr.mxu0 0.0
    %1575 = vmatpush1.msra.mxu0 0.0
    %1576 = vmatprep.subr.mxu0 0.0
    %1577 = vmatpush1.msra.mxu0 0.0
    %1578 = vmatprep.subr.mxu0 0.0
    %1579 = vmatpush1.msra.mxu0 0.0
    %1580 = vmatprep.subr.mxu0 0.0
    %1581 = vmatpush1.msra.mxu0 0.0
    %1582 = vmatprep.subr.mxu0 0.0
    %1583 = vmatpush1.msra.mxu0 0.0
    %1584 = vmatprep.subr.mxu0 0.0
    %1585 = vmatpush1.msra.mxu0 0.0
    %1586 = vmatprep.subr.mxu0 0.0
    %1587 = vmatpush1.msra.mxu0 0.0
    %1588 = vmatprep.subr.mxu0 0.0
    %1589 = vmatpush1.msra.mxu0 0.0
    %1590 = vmatprep.subr.mxu0 0.0
    %1591 = vmatpush1.msra.mxu0 0.0
    %1592 = vmatprep.subr.mxu0 0.0
    %1593 = vmatpush1.msra.mxu0 0.0
    %1594 = vmatprep.mubr.f32.mxu0 0.0
    %1595 = vmatmul.mubr.f32.gmra.mrb[0].mxu0 %v1528
    %v1596 = vpop.f32.mrb[0].mxu0
    %v1597 = vadd.f32 0.0, %v1596
    %v1598 = vpop.f32.mrb[0].mxu0
    %1599 = vdwg.mxu0
    %v1601 = vsel %vm245, %v1369, 0
    %v1604 = vsel %vm245, %v1445, 0
    %v1607 = vsel %vm245, %v1521, 0
    %v1610 = vsel %vm245, %v1597, 0
    %1612 = vmatprep.subr.mxu0 0.0
    %1613 = vmatpush1.msra.mxu0 %v123
    %1614 = vmatprep.subr.mxu0 0.0
    %1615 = vmatpush1.msra.mxu0 %v124
    %1616 = vmatprep.subr.mxu0 0.0
    %1617 = vmatpush1.msra.mxu0 0.0
    %1618 = vmatprep.subr.mxu0 0.0
    %1619 = vmatpush1.msra.mxu0 0.0
    %1620 = vmatprep.subr.mxu0 0.0
    %1621 = vmatpush1.msra.mxu0 0.0
    %1622 = vmatprep.subr.mxu0 0.0
    %1623 = vmatpush1.msra.mxu0 0.0
    %1624 = vmatprep.subr.mxu0 0.0
    %1625 = vmatpush1.msra.mxu0 0.0
    %1626 = vmatprep.subr.mxu0 0.0
    %1627 = vmatpush1.msra.mxu0 0.0
    %1628 = vmatprep.subr.mxu0 0.0
    %1629 = vmatpush1.msra.mxu0 0.0
    %1630 = vmatprep.subr.mxu0 0.0
    %1631 = vmatpush1.msra.mxu0 0.0
    %1632 = vmatprep.subr.mxu0 0.0
    %1633 = vmatpush1.msra.mxu0 0.0
    %1634 = vmatprep.subr.mxu0 0.0
    %1635 = vmatpush1.msra.mxu0 0.0
    %1636 = vmatprep.subr.mxu0 0.0
    %1637 = vmatpush1.msra.mxu0 0.0
    %1638 = vmatprep.subr.mxu0 0.0
    %1639 = vmatpush1.msra.mxu0 0.0
    %1640 = vmatprep.subr.mxu0 0.0
    %1641 = vmatpush1.msra.mxu0 0.0
    %1642 = vmatprep.subr.mxu0 0.0
    %1643 = vmatpush1.msra.mxu0 0.0
    %1644 = vmatprep.subr.mxu0 0.0
    %1645 = vmatpush1.msra.mxu0 0.0
    %1646 = vmatprep.subr.mxu0 0.0
    %1647 = vmatpush1.msra.mxu0 0.0
    %1648 = vmatprep.subr.mxu0 0.0
    %1649 = vmatpush1.msra.mxu0 0.0
    %1650 = vmatprep.subr.mxu0 0.0
    %1651 = vmatpush1.msra.mxu0 0.0
    %1652 = vmatprep.subr.mxu0 0.0
    %1653 = vmatpush1.msra.mxu0 0.0
    %1654 = vmatprep.subr.mxu0 0.0
    %1655 = vmatpush1.msra.mxu0 0.0
    %1656 = vmatprep.subr.mxu0 0.0
    %1657 = vmatpush1.msra.mxu0 0.0
    %1658 = vmatprep.subr.mxu0 0.0
    %1659 = vmatpush1.msra.mxu0 0.0
    %1660 = vmatprep.subr.mxu0 0.0
    %1661 = vmatpush1.msra.mxu0 0.0
    %1662 = vmatprep.subr.mxu0 0.0
    %1663 = vmatpush1.msra.mxu0 0.0
    %1664 = vmatprep.subr.mxu0 0.0
    %1665 = vmatpush1.msra.mxu0 0.0
    %1666 = vmatprep.subr.mxu0 0.0
    %1667 = vmatpush1.msra.mxu0 0.0
    %1668 = vmatprep.subr.mxu0 0.0
    %1669 = vmatpush1.msra.mxu0 0.0
    %1670 = vmatprep.subr.mxu0 0.0
    %1671 = vmatpush1.msra.mxu0 0.0
    %1672 = vmatprep.subr.mxu0 0.0
    %1673 = vmatpush1.msra.mxu0 0.0
    %1674 = vmatprep.subr.mxu0 0.0
    %1675 = vmatpush1.msra.mxu0 0.0
    %1676 = vmatprep.mubr.f32.mxu0 0.0
    %1677 = vmatmul.mubr.f32.gmra.mrb[0].mxu0 %v1601
    %v1678 = vpop.f32.mrb[0].mxu0
    %v1679 = vadd.f32 0.0, %v1678
    %v1680 = vpop.f32.mrb[0].mxu0
    %1681 = vmatprep.mubr.f32.mxu0 0.0
    %1682 = vmatmul.mubr.f32.gmra.mrb[0].mxu0 %v1604
    %v1683 = vpop.f32.mrb[0].mxu0
    %v1684 = vadd.f32 0.0, %v1683
    %v1685 = vpop.f32.mrb[0].mxu0
    %1686 = vmatprep.mubr.f32.mxu0 0.0
    %1687 = vmatmul.mubr.f32.gmra.mrb[0].mxu0 %v1607
    %v1688 = vpop.f32.mrb[0].mxu0
    %v1689 = vadd.f32 0.0, %v1688
    %v1690 = vpop.f32.mrb[0].mxu0
    %1691 = vmatprep.mubr.f32.mxu0 0.0
    %1692 = vmatmul.mubr.f32.gmra.mrb[0].mxu0 %v1610
    %v1693 = vpop.f32.mrb[0].mxu0
    %v1694 = vadd.f32 0.0, %v1693
    %v1695 = vpop.f32.mrb[0].mxu0
    %1696 = vdwg.mxu0
    %v1698 = vsel %vm245, %v701, 0
    %v1701 = vsel %vm245, %v777, 0
    %v1704 = vsel %vm245, %v853, 0
    %v1707 = vsel %vm245, %v929, 0
    %1709 = vmatprep.subr.mxu0 0.0
    %1710 = vmatpush1.msra.mxu0 %v121
    %1711 = vmatprep.subr.mxu0 0.0
    %1712 = vmatpush1.msra.mxu0 %v122
    %1713 = vmatprep.subr.mxu0 0.0
    %1714 = vmatpush1.msra.mxu0 0.0
    %1715 = vmatprep.subr.mxu0 0.0
    %1716 = vmatpush1.msra.mxu0 0.0
    %1717 = vmatprep.subr.mxu0 0.0
    %1718 = vmatpush1.msra.mxu0 0.0
    %1719 = vmatprep.subr.mxu0 0.0
    %1720 = vmatpush1.msra.mxu0 0.0
    %1721 = vmatprep.subr.mxu0 0.0
    %1722 = vmatpush1.msra.mxu0 0.0
    %1723 = vmatprep.subr.mxu0 0.0
    %1724 = vmatpush1.msra.mxu0 0.0
    %1725 = vmatprep.subr.mxu0 0.0
    %1726 = vmatpush1.msra.mxu0 0.0
    %1727 = vmatprep.subr.mxu0 0.0
    %1728 = vmatpush1.msra.mxu0 0.0
    %1729 = vmatprep.subr.mxu0 0.0
    %1730 = vmatpush1.msra.mxu0 0.0
    %1731 = vmatprep.subr.mxu0 0.0
    %1732 = vmatpush1.msra.mxu0 0.0
    %1733 = vmatprep.subr.mxu0 0.0
    %1734 = vmatpush1.msra.mxu0 0.0
    %1735 = vmatprep.subr.mxu0 0.0
    %1736 = vmatpush1.msra.mxu0 0.0
    %1737 = vmatprep.subr.mxu0 0.0
    %1738 = vmatpush1.msra.mxu0 0.0
    %1739 = vmatprep.subr.mxu0 0.0
    %1740 = vmatpush1.msra.mxu0 0.0
    %1741 = vmatprep.subr.mxu0 0.0
    %1742 = vmatpush1.msra.mxu0 0.0
    %1743 = vmatprep.subr.mxu0 0.0
    %1744 = vmatpush1.msra.mxu0 0.0
    %1745 = vmatprep.subr.mxu0 0.0
    %1746 = vmatpush1.msra.mxu0 0.0
    %1747 = vmatprep.subr.mxu0 0.0
    %1748 = vmatpush1.msra.mxu0 0.0
    %1749 = vmatprep.subr.mxu0 0.0
    %1750 = vmatpush1.msra.mxu0 0.0
    %1751 = vmatprep.subr.mxu0 0.0
    %1752 = vmatpush1.msra.mxu0 0.0
    %1753 = vmatprep.subr.mxu0 0.0
    %1754 = vmatpush1.msra.mxu0 0.0
    %1755 = vmatprep.subr.mxu0 0.0
    %1756 = vmatpush1.msra.mxu0 0.0
    %1757 = vmatprep.subr.mxu0 0.0
    %1758 = vmatpush1.msra.mxu0 0.0
    %1759 = vmatprep.subr.mxu0 0.0
    %1760 = vmatpush1.msra.mxu0 0.0
    %1761 = vmatprep.subr.mxu0 0.0
    %1762 = vmatpush1.msra.mxu0 0.0
    %1763 = vmatprep.subr.mxu0 0.0
    %1764 = vmatpush1.msra.mxu0 0.0
    %1765 = vmatprep.subr.mxu0 0.0
    %1766 = vmatpush1.msra.mxu0 0.0
    %1767 = vmatprep.subr.mxu0 0.0
    %1768 = vmatpush1.msra.mxu0 0.0
    %1769 = vmatprep.subr.mxu0 0.0
    %1770 = vmatpush1.msra.mxu0 0.0
    %1771 = vmatprep.subr.mxu0 0.0
    %1772 = vmatpush1.msra.mxu0 0.0
    %1773 = vmatprep.mubr.f32.mxu0 0.0
    %1774 = vmatmul.mubr.f32.gmra.mrb[0].mxu0 %v1698
    %v1775 = vpop.f32.mrb[0].mxu0
    %v1776 = vadd.f32 %v1679, %v1775
    %v1777 = vpop.f32.mrb[0].mxu0
    %1778 = vmatprep.mubr.f32.mxu0 0.0
    %1779 = vmatmul.mubr.f32.gmra.mrb[0].mxu0 %v1701
    %v1780 = vpop.f32.mrb[0].mxu0
    %v1781 = vadd.f32 %v1684, %v1780
    %v1782 = vpop.f32.mrb[0].mxu0
    %1783 = vmatprep.mubr.f32.mxu0 0.0
    %1784 = vmatmul.mubr.f32.gmra.mrb[0].mxu0 %v1704
    %v1785 = vpop.f32.mrb[0].mxu0
    %v1786 = vadd.f32 %v1689, %v1785
    %v1787 = vpop.f32.mrb[0].mxu0
    %1788 = vmatprep.mubr.f32.mxu0 0.0
    %1789 = vmatmul.mubr.f32.gmra.mrb[0].mxu0 %v1707
    %v1790 = vpop.f32.mrb[0].mxu0
    %v1791 = vadd.f32 %v1694, %v1790
    %v1792 = vpop.f32.mrb[0].mxu0
    %1793 = vdwg.mxu0
    %v1794 = vlaneseq
    %v1795 = vshrl.u32 %v1794, 7
    %v1796 = vsub.s32 0, %v1795
    %v1797 = vrot.slane %v138, %v1796
    %v1798 = vadd.f32 %v1776, %v1797
    %v1799 = vadd.f32 %v1781, %v1797
    %v1800 = vadd.f32 %v1786, %v1797
    %v1801 = vadd.f32 %v1791, %v1797
    %v1802 = vadd.f32 %v108, %v1798
    %v1803 = vadd.f32 %v109, %v1799
    %v1804 = vadd.f32 %v110, %v1800
    %v1805 = vadd.f32 %v111, %v1801
    %v1806 = vsel %vm42, %v1802, 0.0
    %1807 = vadd.xlane.f32.xlu0 %v1806
    %v1808 = vpop.xlane.xlu0 %1807
    %v1809 = vsel %vm42, %v1803, 0.0
    %1810 = vadd.xlane.f32.xlu0 %v1809
    %v1811 = vpop.xlane.xlu0 %1810
    %v1812 = vsel %vm42, %v1804, 0.0
    %1813 = vadd.xlane.f32.xlu0 %v1812
    %v1814 = vpop.xlane.xlu0 %1813
    %v1815 = vsel %vm42, %v1805, 0.0
    %1816 = vadd.xlane.f32.xlu0 %v1815
    %v1817 = vpop.xlane.xlu0 %1816
    %v1818 = vmul.f32 %v1808, %v55
    %v1819 = vmul.f32 %v1811, %v55
    %v1820 = vmul.f32 %v1814, %v55
    %v1821 = vmul.f32 %v1817, %v55
    %v1822 = vsub.f32 %v1802, %v1818
    %v1823 = vsub.f32 %v1803, %v1819
    %v1824 = vsub.f32 %v1804, %v1820
    %v1825 = vsub.f32 %v1805, %v1821
    %v1826 = vmul.f32 %v1822, %v1822
    %v1827 = vmul.f32 %v1823, %v1823
    %v1828 = vmul.f32 %v1824, %v1824
    %v1829 = vmul.f32 %v1825, %v1825
    %v1830 = vsel %vm42, %v1826, 0.0
    %1831 = vadd.xlane.f32.xlu0 %v1830
    %v1832 = vpop.xlane.xlu0 %1831
    %v1833 = vsel %vm42, %v1827, 0.0
    %1834 = vadd.xlane.f32.xlu0 %v1833
    %v1835 = vpop.xlane.xlu0 %1834
    %v1836 = vsel %vm42, %v1828, 0.0
    %1837 = vadd.xlane.f32.xlu0 %v1836
    %v1838 = vpop.xlane.xlu0 %1837
    %v1839 = vsel %vm42, %v1829, 0.0
    %1840 = vadd.xlane.f32.xlu0 %v1839
    %v1841 = vpop.xlane.xlu0 %1840
    %v1842 = vmul.f32 %v1832, %v55
    %v1843 = vmul.f32 %v1835, %v55
    %v1844 = vmul.f32 %v1838, %v55
    %v1845 = vmul.f32 %v1841, %v55
    %v1846 = vadd.f32 %v1842, 1e-12
    %v1847 = vadd.f32 %v1843, 1e-12
    %v1848 = vadd.f32 %v1844, 1e-12
    %v1849 = vadd.f32 %v1845, 1e-12
    %v1850 = vrsqrt.pop %v1846
    %v1851 = vrsqrt.pop %v1847
    %v1852 = vrsqrt.pop %v1848
    %v1853 = vrsqrt.pop %v1849
    %v1854 = vmul.f32 %v1822, %v1850
    %v1855 = vmul.f32 %v1823, %v1851
    %v1856 = vmul.f32 %v1824, %v1852
    %v1857 = vmul.f32 %v1825, %v1853
    %v1858 = vlaneseq
    %v1859 = vshrl.u32 %v1858, 7
    %v1860 = vsub.s32 2, %v1859
    %v1861 = vrot.slane %v138, %v1860
    %v1862 = vmul.f32 %v1854, %v1861
    %v1863 = vmul.f32 %v1855, %v1861
    %v1864 = vmul.f32 %v1856, %v1861
    %v1865 = vmul.f32 %v1857, %v1861
    %v1866 = vlaneseq
    %v1867 = vshrl.u32 %v1866, 7
    %v1868 = vsub.s32 3, %v1867
    %v1869 = vrot.slane %v138, %v1868
    %v1870 = vadd.f32 %v1862, %v1869
    %v1871 = vadd.f32 %v1863, %v1869
    %v1872 = vadd.f32 %v1864, %v1869
    %v1873 = vadd.f32 %v1865, %v1869
    %v1875 = vlaneseq
    %v1876 = vshrl.u32 %v1875, 7
    %v1877 = vsub.s32 0, %v1876
    %v1878 = vrot.slane %v129, %v1877
    %v1881 = vsel %vm42, %v1870, 0
    %v1884 = vsel %vm42, %v1871, 0
    %v1887 = vsel %vm42, %v1872, 0
    %v1890 = vsel %vm42, %v1873, 0
    %1892 = vmatprep.subr.mxu0 0.0
    %1893 = vmatpush1.msra.mxu0 %v125
    %1894 = vmatprep.subr.mxu0 0.0
    %1895 = vmatpush1.msra.mxu0 %v126
    %1896 = vmatprep.subr.mxu0 0.0
    %1897 = vmatpush1.msra.mxu0 %v127
    %1898 = vmatprep.subr.mxu0 0.0
    %1899 = vmatpush1.msra.mxu0 %v128
    %1900 = vmatprep.subr.mxu0 0.0
    %1901 = vmatpush1.msra.mxu0 0.0
    %1902 = vmatprep.subr.mxu0 0.0
    %1903 = vmatpush1.msra.mxu0 0.0
    %1904 = vmatprep.subr.mxu0 0.0
    %1905 = vmatpush1.msra.mxu0 0.0
    %1906 = vmatprep.subr.mxu0 0.0
    %1907 = vmatpush1.msra.mxu0 0.0
    %1908 = vmatprep.subr.mxu0 0.0
    %1909 = vmatpush1.msra.mxu0 0.0
    %1910 = vmatprep.subr.mxu0 0.0
    %1911 = vmatpush1.msra.mxu0 0.0
    %1912 = vmatprep.subr.mxu0 0.0
    %1913 = vmatpush1.msra.mxu0 0.0
    %1914 = vmatprep.subr.mxu0 0.0
    %1915 = vmatpush1.msra.mxu0 0.0
    %1916 = vmatprep.subr.mxu0 0.0
    %1917 = vmatpush1.msra.mxu0 0.0
    %1918 = vmatprep.subr.mxu0 0.0
    %1919 = vmatpush1.msra.mxu0 0.0
    %1920 = vmatprep.subr.mxu0 0.0
    %1921 = vmatpush1.msra.mxu0 0.0
    %1922 = vmatprep.subr.mxu0 0.0
    %1923 = vmatpush1.msra.mxu0 0.0
    %1924 = vmatprep.subr.mxu0 0.0
    %1925 = vmatpush1.msra.mxu0 0.0
    %1926 = vmatprep.subr.mxu0 0.0
    %1927 = vmatpush1.msra.mxu0 0.0
    %1928 = vmatprep.subr.mxu0 0.0
    %1929 = vmatpush1.msra.mxu0 0.0
    %1930 = vmatprep.subr.mxu0 0.0
    %1931 = vmatpush1.msra.mxu0 0.0
    %1932 = vmatprep.subr.mxu0 0.0
    %1933 = vmatpush1.msra.mxu0 0.0
    %1934 = vmatprep.subr.mxu0 0.0
    %1935 = vmatpush1.msra.mxu0 0.0
    %1936 = vmatprep.subr.mxu0 0.0
    %1937 = vmatpush1.msra.mxu0 0.0
    %1938 = vmatprep.subr.mxu0 0.0
    %1939 = vmatpush1.msra.mxu0 0.0
    %1940 = vmatprep.subr.mxu0 0.0
    %1941 = vmatpush1.msra.mxu0 0.0
    %1942 = vmatprep.subr.mxu0 0.0
    %1943 = vmatpush1.msra.mxu0 0.0
    %1944 = vmatprep.subr.mxu0 0.0
    %1945 = vmatpush1.msra.mxu0 0.0
    %1946 = vmatprep.subr.mxu0 0.0
    %1947 = vmatpush1.msra.mxu0 0.0
    %1948 = vmatprep.subr.mxu0 0.0
    %1949 = vmatpush1.msra.mxu0 0.0
    %1950 = vmatprep.subr.mxu0 0.0
    %1951 = vmatpush1.msra.mxu0 0.0
    %1952 = vmatprep.subr.mxu0 0.0
    %1953 = vmatpush1.msra.mxu0 0.0
    %1954 = vmatprep.subr.mxu0 0.0
    %1955 = vmatpush1.msra.mxu0 0.0
    %1956 = vmatprep.mubr.f32.mxu0 0.0
    %1957 = vmatmul.mubr.f32.gmra.mrb[0].mxu0 %v1881
    %v1958 = vpop.f32.mrb[0].mxu0
    %v1959 = vadd.f32 %v1878, %v1958
    %v1960 = vpop.f32.mrb[0].mxu0
    %1961 = vmatprep.mubr.f32.mxu0 0.0
    %1962 = vmatmul.mubr.f32.gmra.mrb[0].mxu0 %v1884
    %v1963 = vpop.f32.mrb[0].mxu0
    %v1964 = vadd.f32 %v1878, %v1963
    %v1965 = vpop.f32.mrb[0].mxu0
    %1966 = vmatprep.mubr.f32.mxu0 0.0
    %1967 = vmatmul.mubr.f32.gmra.mrb[0].mxu0 %v1887
    %v1968 = vpop.f32.mrb[0].mxu0
    %v1969 = vadd.f32 %v1878, %v1968
    %v1970 = vpop.f32.mrb[0].mxu0
    %1971 = vmatprep.mubr.f32.mxu0 0.0
    %1972 = vmatmul.mubr.f32.gmra.mrb[0].mxu0 %v1890
    %v1973 = vpop.f32.mrb[0].mxu0
    %v1974 = vadd.f32 %v1878, %v1973
    %v1975 = vpop.f32.mrb[0].mxu0
    %1976 = vdwg.mxu0
    %v1977 = vmul.f32 %v1959, %v1959
    %v1978 = vmul.f32 %v1964, %v1964
    %v1979 = vmul.f32 %v1969, %v1969
    %v1980 = vmul.f32 %v1974, %v1974
    %v1981 = vmul.f32 %v1959, %v1977
    %v1982 = vmul.f32 %v1964, %v1978
    %v1983 = vmul.f32 %v1969, %v1979
    %v1984 = vmul.f32 %v1974, %v1980
    %v1985 = vmul.f32 %v1981, 0.044715
    %v1986 = vmul.f32 %v1982, 0.044715
    %v1987 = vmul.f32 %v1983, 0.044715
    %v1988 = vmul.f32 %v1984, 0.044715
    %v1989 = vadd.f32 %v1959, %v1985
    %v1990 = vadd.f32 %v1964, %v1986
    %v1991 = vadd.f32 %v1969, %v1987
    %v1992 = vadd.f32 %v1974, %v1988
    %v1993 = vmul.f32 %v1989, 0.7978846
    %v1994 = vmul.f32 %v1990, 0.7978846
    %v1995 = vmul.f32 %v1991, 0.7978846
    %v1996 = vmul.f32 %v1992, 0.7978846
    %v1997 = vtanh.pop %v1993
    %v1998 = vtanh.pop %v1994
    %v1999 = vtanh.pop %v1995
    %v2000 = vtanh.pop %v1996
    %v2001 = vadd.f32 %v1997, 1.0
    %v2002 = vadd.f32 %v1998, 1.0
    %v2003 = vadd.f32 %v1999, 1.0
    %v2004 = vadd.f32 %v2000, 1.0
    %v2005 = vmul.f32 %v2001, 0.5
    %v2006 = vmul.f32 %v2002, 0.5
    %v2007 = vmul.f32 %v2003, 0.5
    %v2008 = vmul.f32 %v2004, 0.5
    %v2009 = vmul.f32 %v1959, %v2005
    %v2010 = vmul.f32 %v1964, %v2006
    %v2011 = vmul.f32 %v1969, %v2007
    %v2012 = vmul.f32 %v1974, %v2008
    %v2013 = vlaneseq
    %v2014 = vshrl.u32 %v2013, 7
    %v2015 = vsub.s32 1, %v2014
    %v2016 = vrot.slane %v138, %v2015
    %vm2017 = vcmask 523264
    %v2019 = vsel %vm2017, %v2009, 0
    %v2022 = vsel %vm2017, %v2010, 0
    %v2025 = vsel %vm2017, %v2011, 0
    %v2028 = vsel %vm2017, %v2012, 0
    %2030 = vmatprep.subr.mxu0 0.0
    %2031 = vmatpush1.msra.mxu0 %v130
    %2032 = vmatprep.subr.mxu0 0.0
    %2033 = vmatpush1.msra.mxu0 %v131
    %2034 = vmatprep.subr.mxu0 0.0
    %2035 = vmatpush1.msra.mxu0 %v132
    %2036 = vmatprep.subr.mxu0 0.0
    %2037 = vmatpush1.msra.mxu0 %v133
    %2038 = vmatprep.subr.mxu0 0.0
    %2039 = vmatpush1.msra.mxu0 %v134
    %2040 = vmatprep.subr.mxu0 0.0
    %2041 = vmatpush1.msra.mxu0 %v135
    %2042 = vmatprep.subr.mxu0 0.0
    %2043 = vmatpush1.msra.mxu0 %v136
    %2044 = vmatprep.subr.mxu0 0.0
    %2045 = vmatpush1.msra.mxu0 %v137
    %2046 = vmatprep.subr.mxu0 0.0
    %2047 = vmatpush1.msra.mxu0 0.0
    %2048 = vmatprep.subr.mxu0 0.0
    %2049 = vmatpush1.msra.mxu0 0.0
    %2050 = vmatprep.subr.mxu0 0.0
    %2051 = vmatpush1.msra.mxu0 0.0
    %2052 = vmatprep.subr.mxu0 0.0
    %2053 = vmatpush1.msra.mxu0 0.0
    %2054 = vmatprep.subr.mxu0 0.0
    %2055 = vmatpush1.msra.mxu0 0.0
    %2056 = vmatprep.subr.mxu0 0.0
    %2057 = vmatpush1.msra.mxu0 0.0
    %2058 = vmatprep.subr.mxu0 0.0
    %2059 = vmatpush1.msra.mxu0 0.0
    %2060 = vmatprep.subr.mxu0 0.0
    %2061 = vmatpush1.msra.mxu0 0.0
    %2062 = vmatprep.subr.mxu0 0.0
    %2063 = vmatpush1.msra.mxu0 0.0
    %2064 = vmatprep.subr.mxu0 0.0
    %2065 = vmatpush1.msra.mxu0 0.0
    %2066 = vmatprep.subr.mxu0 0.0
    %2067 = vmatpush1.msra.mxu0 0.0
    %2068 = vmatprep.subr.mxu0 0.0
    %2069 = vmatpush1.msra.mxu0 0.0
    %2070 = vmatprep.subr.mxu0 0.0
    %2071 = vmatpush1.msra.mxu0 0.0
    %2072 = vmatprep.subr.mxu0 0.0
    %2073 = vmatpush1.msra.mxu0 0.0
    %2074 = vmatprep.subr.mxu0 0.0
    %2075 = vmatpush1.msra.mxu0 0.0
    %2076 = vmatprep.subr.mxu0 0.0
    %2077 = vmatpush1.msra.mxu0 0.0
    %2078 = vmatprep.subr.mxu0 0.0
    %2079 = vmatpush1.msra.mxu0 0.0
    %2080 = vmatprep.subr.mxu0 0.0
    %2081 = vmatpush1.msra.mxu0 0.0
    %2082 = vmatprep.subr.mxu0 0.0
    %2083 = vmatpush1.msra.mxu0 0.0
    %2084 = vmatprep.subr.mxu0 0.0
    %2085 = vmatpush1.msra.mxu0 0.0
    %2086 = vmatprep.subr.mxu0 0.0
    %2087 = vmatpush1.msra.mxu0 0.0
    %2088 = vmatprep.subr.mxu0 0.0
    %2089 = vmatpush1.msra.mxu0 0.0
    %2090 = vmatprep.subr.mxu0 0.0
    %2091 = vmatpush1.msra.mxu0 0.0
    %2092 = vmatprep.subr.mxu0 0.0
    %2093 = vmatpush1.msra.mxu0 0.0
    %2094 = vmatprep.mubr.f32.mxu0 0.0
    %2095 = vmatmul.mubr.f32.gmra.mrb[0].mxu0 %v2019
    %v2096 = vpop.f32.mrb[0].mxu0
    %v2097 = vadd.f32 %v2016, %v2096
    %v2098 = vpop.f32.mrb[0].mxu0
    %2099 = vmatprep.mubr.f32.mxu0 0.0
    %2100 = vmatmul.mubr.f32.gmra.mrb[0].mxu0 %v2022
    %v2101 = vpop.f32.mrb[0].mxu0
    %v2102 = vadd.f32 %v2016, %v2101
    %v2103 = vpop.f32.mrb[0].mxu0
    %2104 = vmatprep.mubr.f32.mxu0 0.0
    %2105 = vmatmul.mubr.f32.gmra.mrb[0].mxu0 %v2025
    %v2106 = vpop.f32.mrb[0].mxu0
    %v2107 = vadd.f32 %v2016, %v2106
    %v2108 = vpop.f32.mrb[0].mxu0
    %2109 = vmatprep.mubr.f32.mxu0 0.0
    %2110 = vmatmul.mubr.f32.gmra.mrb[0].mxu0 %v2028
    %v2111 = vpop.f32.mrb[0].mxu0
    %v2112 = vadd.f32 %v2016, %v2111
    %v2113 = vpop.f32.mrb[0].mxu0
    %2114 = vdwg.mxu0
    %v2115 = vadd.f32 %v1870, %v2097
    %v2116 = vadd.f32 %v1871, %v2102
    %v2117 = vadd.f32 %v1872, %v2107
    %v2118 = vadd.f32 %v1873, %v2112
    %v2119 = vsel %vm42, %v2115, 0.0
    %2120 = vadd.xlane.f32.xlu0 %v2119
    %v2121 = vpop.xlane.xlu0 %2120
    %v2122 = vsel %vm42, %v2116, 0.0
    %2123 = vadd.xlane.f32.xlu0 %v2122
    %v2124 = vpop.xlane.xlu0 %2123
    %v2125 = vsel %vm42, %v2117, 0.0
    %2126 = vadd.xlane.f32.xlu0 %v2125
    %v2127 = vpop.xlane.xlu0 %2126
    %v2128 = vsel %vm42, %v2118, 0.0
    %2129 = vadd.xlane.f32.xlu0 %v2128
    %v2130 = vpop.xlane.xlu0 %2129
    %v2131 = vmul.f32 %v2121, %v55
    %v2132 = vmul.f32 %v2124, %v55
    %v2133 = vmul.f32 %v2127, %v55
    %v2134 = vmul.f32 %v2130, %v55
    %v2135 = vsub.f32 %v2115, %v2131
    %v2136 = vsub.f32 %v2116, %v2132
    %v2137 = vsub.f32 %v2117, %v2133
    %v2138 = vsub.f32 %v2118, %v2134
    %v2139 = vmul.f32 %v2135, %v2135
    %v2140 = vmul.f32 %v2136, %v2136
    %v2141 = vmul.f32 %v2137, %v2137
    %v2142 = vmul.f32 %v2138, %v2138
    %v2143 = vsel %vm42, %v2139, 0.0
    %2144 = vadd.xlane.f32.xlu0 %v2143
    %v2145 = vpop.xlane.xlu0 %2144
    %v2146 = vsel %vm42, %v2140, 0.0
    %2147 = vadd.xlane.f32.xlu0 %v2146
    %v2148 = vpop.xlane.xlu0 %2147
    %v2149 = vsel %vm42, %v2141, 0.0
    %2150 = vadd.xlane.f32.xlu0 %v2149
    %v2151 = vpop.xlane.xlu0 %2150
    %v2152 = vsel %vm42, %v2142, 0.0
    %2153 = vadd.xlane.f32.xlu0 %v2152
    %v2154 = vpop.xlane.xlu0 %2153
    %v2155 = vmul.f32 %v2145, %v55
    %v2156 = vmul.f32 %v2148, %v55
    %v2157 = vmul.f32 %v2151, %v55
    %v2158 = vmul.f32 %v2154, %v55
    %v2159 = vadd.f32 %v2155, 1e-12
    %v2160 = vadd.f32 %v2156, 1e-12
    %v2161 = vadd.f32 %v2157, 1e-12
    %v2162 = vadd.f32 %v2158, 1e-12
    %v2163 = vrsqrt.pop %v2159
    %v2164 = vrsqrt.pop %v2160
    %v2165 = vrsqrt.pop %v2161
    %v2166 = vrsqrt.pop %v2162
    %v2167 = vmul.f32 %v2135, %v2163
    %v2168 = vmul.f32 %v2136, %v2164
    %v2169 = vmul.f32 %v2137, %v2165
    %v2170 = vmul.f32 %v2138, %v2166
    %v2171 = vlaneseq
    %v2172 = vshrl.u32 %v2171, 7
    %v2173 = vsub.s32 4, %v2172
    %v2174 = vrot.slane %v138, %v2173
    %v2175 = vmul.f32 %v2167, %v2174
    %v2176 = vmul.f32 %v2168, %v2174
    %v2177 = vmul.f32 %v2169, %v2174
    %v2178 = vmul.f32 %v2170, %v2174
    %v2179 = vlaneseq
    %v2180 = vshrl.u32 %v2179, 7
    %v2181 = vsub.s32 5, %v2180
    %v2182 = vrot.slane %v138, %v2181
    %v2183 = vadd.f32 %v2175, %v2182
    %v2184 = vadd.f32 %v2176, %v2182
    %v2185 = vadd.f32 %v2177, %v2182
    %v2186 = vadd.f32 %v2178, %v2182
    %s2187 = scalar_lea.vmem %s3, 32
    %v2188 = vld [vmem:[%s2187] sm:$0xff]
    %v2189 = vld [vmem:[%s2187 + $0x8] sm:$0xff]
    %v2190 = vld [vmem:[%s2187 + $0x10] sm:$0xff]
    %v2191 = vld [vmem:[%s2187 + $0x18] sm:$0xff]
    %s2192 = scalar_lea.vmem %s4, 1
    %v2193 = vld [vmem:[%s2192] sm:$0x1]
    %s2194 = scalar_lea.vmem %s5, 32
    %v2195 = vld [vmem:[%s2194] sm:$0xff]
    %v2196 = vld [vmem:[%s2194 + $0x8] sm:$0xff]
    %v2197 = vld [vmem:[%s2194 + $0x10] sm:$0xff]
    %v2198 = vld [vmem:[%s2194 + $0x18] sm:$0xff]
    %s2199 = scalar_lea.vmem %s6, 32
    %v2200 = vld [vmem:[%s2199] sm:$0xff]
    %v2201 = vld [vmem:[%s2199 + $0x8] sm:$0xff]
    %v2202 = vld [vmem:[%s2199 + $0x10] sm:$0xff]
    %v2203 = vld [vmem:[%s2199 + $0x18] sm:$0xff]
    %s2204 = scalar_lea.vmem %s7, 1
    %v2205 = vld [vmem:[%s2204] sm:$0x1]
    %s2206 = scalar_lea.vmem %s8, 64
    %v2207 = vld [vmem:[%s2206] sm:$0xff]
    %v2208 = vld [vmem:[%s2206 + $0x8] sm:$0xff]
    %v2209 = vld [vmem:[%s2206 + $0x10] sm:$0xff]
    %v2210 = vld [vmem:[%s2206 + $0x18] sm:$0xff]
    %v2211 = vld [vmem:[%s2206 + $0x20] sm:$0xff]
    %v2212 = vld [vmem:[%s2206 + $0x28] sm:$0xff]
    %v2213 = vld [vmem:[%s2206 + $0x30] sm:$0xff]
    %v2214 = vld [vmem:[%s2206 + $0x38] sm:$0xff]
    %s2215 = scalar_lea.vmem %s9, 8
    %v2216 = vld [vmem:[%s2215] sm:$0x3f]
    %v2218 = vlaneseq
    %v2219 = vshrl.u32 %v2218, 7
    %v2220 = vsub.s32 0, %v2219
    %v2221 = vrot.slane %v2193, %v2220
    %v2224 = vsel %vm42, %v2183, 0
    %v2227 = vsel %vm42, %v2184, 0
    %v2230 = vsel %vm42, %v2185, 0
    %v2233 = vsel %vm42, %v2186, 0
    %2235 = vmatprep.subr.mxu0 0.0
    %2236 = vmatpush1.msra.mxu0 %v2188
    %2237 = vmatprep.subr.mxu0 0.0
    %2238 = vmatpush1.msra.mxu0 %v2189
    %2239 = vmatprep.subr.mxu0 0.0
    %2240 = vmatpush1.msra.mxu0 %v2190
    %2241 = vmatprep.subr.mxu0 0.0
    %2242 = vmatpush1.msra.mxu0 %v2191
    %2243 = vmatprep.subr.mxu0 0.0
    %2244 = vmatpush1.msra.mxu0 0.0
    %2245 = vmatprep.subr.mxu0 0.0
    %2246 = vmatpush1.msra.mxu0 0.0
    %2247 = vmatprep.subr.mxu0 0.0
    %2248 = vmatpush1.msra.mxu0 0.0
    %2249 = vmatprep.subr.mxu0 0.0
    %2250 = vmatpush1.msra.mxu0 0.0
    %2251 = vmatprep.subr.mxu0 0.0
    %2252 = vmatpush1.msra.mxu0 0.0
    %2253 = vmatprep.subr.mxu0 0.0
    %2254 = vmatpush1.msra.mxu0 0.0
    %2255 = vmatprep.subr.mxu0 0.0
    %2256 = vmatpush1.msra.mxu0 0.0
    %2257 = vmatprep.subr.mxu0 0.0
    %2258 = vmatpush1.msra.mxu0 0.0
    %2259 = vmatprep.subr.mxu0 0.0
    %2260 = vmatpush1.msra.mxu0 0.0
    %2261 = vmatprep.subr.mxu0 0.0
    %2262 = vmatpush1.msra.mxu0 0.0
    %2263 = vmatprep.subr.mxu0 0.0
    %2264 = vmatpush1.msra.mxu0 0.0
    %2265 = vmatprep.subr.mxu0 0.0
    %2266 = vmatpush1.msra.mxu0 0.0
    %2267 = vmatprep.subr.mxu0 0.0
    %2268 = vmatpush1.msra.mxu0 0.0
    %2269 = vmatprep.subr.mxu0 0.0
    %2270 = vmatpush1.msra.mxu0 0.0
    %2271 = vmatprep.subr.mxu0 0.0
    %2272 = vmatpush1.msra.mxu0 0.0
    %2273 = vmatprep.subr.mxu0 0.0
    %2274 = vmatpush1.msra.mxu0 0.0
    %2275 = vmatprep.subr.mxu0 0.0
    %2276 = vmatpush1.msra.mxu0 0.0
    %2277 = vmatprep.subr.mxu0 0.0
    %2278 = vmatpush1.msra.mxu0 0.0
    %2279 = vmatprep.subr.mxu0 0.0
    %2280 = vmatpush1.msra.mxu0 0.0
    %2281 = vmatprep.subr.mxu0 0.0
    %2282 = vmatpush1.msra.mxu0 0.0
    %2283 = vmatprep.subr.mxu0 0.0
    %2284 = vmatpush1.msra.mxu0 0.0
    %2285 = vmatprep.subr.mxu0 0.0
    %2286 = vmatpush1.msra.mxu0 0.0
    %2287 = vmatprep.subr.mxu0 0.0
    %2288 = vmatpush1.msra.mxu0 0.0
    %2289 = vmatprep.subr.mxu0 0.0
    %2290 = vmatpush1.msra.mxu0 0.0
    %2291 = vmatprep.subr.mxu0 0.0
    %2292 = vmatpush1.msra.mxu0 0.0
    %2293 = vmatprep.subr.mxu0 0.0
    %2294 = vmatpush1.msra.mxu0 0.0
    %2295 = vmatprep.subr.mxu0 0.0
    %2296 = vmatpush1.msra.mxu0 0.0
    %2297 = vmatprep.subr.mxu0 0.0
    %2298 = vmatpush1.msra.mxu0 0.0
    %2299 = vmatprep.mubr.f32.mxu0 0.0
    %2300 = vmatmul.mubr.f32.gmra.mrb[0].mxu0 %v2224
    %v2301 = vpop.f32.mrb[0].mxu0
    %v2302 = vadd.f32 %v2221, %v2301
    %v2303 = vpop.f32.mrb[0].mxu0
    %2304 = vmatprep.mubr.f32.mxu0 0.0
    %2305 = vmatmul.mubr.f32.gmra.mrb[0].mxu0 %v2227
    %v2306 = vpop.f32.mrb[0].mxu0
    %v2307 = vadd.f32 %v2221, %v2306
    %v2308 = vpop.f32.mrb[0].mxu0
    %2309 = vmatprep.mubr.f32.mxu0 0.0
    %2310 = vmatmul.mubr.f32.gmra.mrb[0].mxu0 %v2230
    %v2311 = vpop.f32.mrb[0].mxu0
    %v2312 = vadd.f32 %v2221, %v2311
    %v2313 = vpop.f32.mrb[0].mxu0
    %2314 = vmatprep.mubr.f32.mxu0 0.0
    %2315 = vmatmul.mubr.f32.gmra.mrb[0].mxu0 %v2233
    %v2316 = vpop.f32.mrb[0].mxu0
    %v2317 = vadd.f32 %v2221, %v2316
    %v2318 = vpop.f32.mrb[0].mxu0
    %2319 = vdwg.mxu0
    %2321 = vrot.lane.b32.xlu0 %v2302, 96
    %v2322 = vpop.permute.xlu0 %2321
    %v2323 = vsel %vm245, %v2302, 0
    %v2325 = vsel %vm245, %v2322, 0
    %2327 = vmatprep.subr.mxu0 0.0
    %2328 = vmatpush1.xpose.msra.mxu0 %v2325
    %2329 = vmatprep.subr.mxu0 0.0
    %2330 = vmatpush1.xpose.msra.mxu0 0.0
    %2331 = vmatprep.subr.mxu0 0.0
    %2332 = vmatpush1.xpose.msra.mxu0 0.0
    %2333 = vmatprep.subr.mxu0 0.0
    %2334 = vmatpush1.xpose.msra.mxu0 0.0
    %2335 = vmatprep.subr.mxu0 0.0
    %2336 = vmatpush1.xpose.msra.mxu0 0.0
    %2337 = vmatprep.subr.mxu0 0.0
    %2338 = vmatpush1.xpose.msra.mxu0 0.0
    %2339 = vmatprep.subr.mxu0 0.0
    %2340 = vmatpush1.xpose.msra.mxu0 0.0
    %2341 = vmatprep.subr.mxu0 0.0
    %2342 = vmatpush1.xpose.msra.mxu0 0.0
    %2343 = vmatprep.subr.mxu0 0.0
    %2344 = vmatpush1.xpose.msra.mxu0 0.0
    %2345 = vmatprep.subr.mxu0 0.0
    %2346 = vmatpush1.xpose.msra.mxu0 0.0
    %2347 = vmatprep.subr.mxu0 0.0
    %2348 = vmatpush1.xpose.msra.mxu0 0.0
    %2349 = vmatprep.subr.mxu0 0.0
    %2350 = vmatpush1.xpose.msra.mxu0 0.0
    %2351 = vmatprep.subr.mxu0 0.0
    %2352 = vmatpush1.xpose.msra.mxu0 0.0
    %2353 = vmatprep.subr.mxu0 0.0
    %2354 = vmatpush1.xpose.msra.mxu0 0.0
    %2355 = vmatprep.subr.mxu0 0.0
    %2356 = vmatpush1.xpose.msra.mxu0 0.0
    %2357 = vmatprep.subr.mxu0 0.0
    %2358 = vmatpush1.xpose.msra.mxu0 0.0
    %2359 = vmatprep.subr.mxu0 0.0
    %2360 = vmatpush1.xpose.msra.mxu0 0.0
    %2361 = vmatprep.subr.mxu0 0.0
    %2362 = vmatpush1.xpose.msra.mxu0 0.0
    %2363 = vmatprep.subr.mxu0 0.0
    %2364 = vmatpush1.xpose.msra.mxu0 0.0
    %2365 = vmatprep.subr.mxu0 0.0
    %2366 = vmatpush1.xpose.msra.mxu0 0.0
    %2367 = vmatprep.subr.mxu0 0.0
    %2368 = vmatpush1.xpose.msra.mxu0 0.0
    %2369 = vmatprep.subr.mxu0 0.0
    %2370 = vmatpush1.xpose.msra.mxu0 0.0
    %2371 = vmatprep.subr.mxu0 0.0
    %2372 = vmatpush1.xpose.msra.mxu0 0.0
    %2373 = vmatprep.subr.mxu0 0.0
    %2374 = vmatpush1.xpose.msra.mxu0 0.0
    %2375 = vmatprep.subr.mxu0 0.0
    %2376 = vmatpush1.xpose.msra.mxu0 0.0
    %2377 = vmatprep.subr.mxu0 0.0
    %2378 = vmatpush1.xpose.msra.mxu0 0.0
    %2379 = vmatprep.subr.mxu0 0.0
    %2380 = vmatpush1.xpose.msra.mxu0 0.0
    %2381 = vmatprep.subr.mxu0 0.0
    %2382 = vmatpush1.xpose.msra.mxu0 0.0
    %2383 = vmatprep.subr.mxu0 0.0
    %2384 = vmatpush1.xpose.msra.mxu0 0.0
    %2385 = vmatprep.subr.mxu0 0.0
    %2386 = vmatpush1.xpose.msra.mxu0 0.0
    %2387 = vmatprep.subr.mxu0 0.0
    %2388 = vmatpush1.xpose.msra.mxu0 0.0
    %2389 = vmatprep.subr.mxu0 0.0
    %2390 = vmatpush1.xpose.msra.mxu0 0.0
    %2391 = vmatprep.mubr.f32.mxu0 0.0
    %2392 = vmatmul.mubr.f32.gmra.mrb[0].mxu0 %v2323
    %v2393 = vpop.f32.mrb[0].mxu0
    %v2394 = vadd.f32 0.0, %v2393
    %v2395 = vpop.f32.mrb[0].mxu0
    %2396 = vdwg.mxu0
    %2398 = vrot.lane.b32.xlu0 %v2307, 96
    %v2399 = vpop.permute.xlu0 %2398
    %v2400 = vsel %vm245, %v2307, 0
    %v2402 = vsel %vm245, %v2399, 0
    %2404 = vmatprep.subr.mxu0 0.0
    %2405 = vmatpush1.xpose.msra.mxu0 %v2402
    %2406 = vmatprep.subr.mxu0 0.0
    %2407 = vmatpush1.xpose.msra.mxu0 0.0
    %2408 = vmatprep.subr.mxu0 0.0
    %2409 = vmatpush1.xpose.msra.mxu0 0.0
    %2410 = vmatprep.subr.mxu0 0.0
    %2411 = vmatpush1.xpose.msra.mxu0 0.0
    %2412 = vmatprep.subr.mxu0 0.0
    %2413 = vmatpush1.xpose.msra.mxu0 0.0
    %2414 = vmatprep.subr.mxu0 0.0
    %2415 = vmatpush1.xpose.msra.mxu0 0.0
    %2416 = vmatprep.subr.mxu0 0.0
    %2417 = vmatpush1.xpose.msra.mxu0 0.0
    %2418 = vmatprep.subr.mxu0 0.0
    %2419 = vmatpush1.xpose.msra.mxu0 0.0
    %2420 = vmatprep.subr.mxu0 0.0
    %2421 = vmatpush1.xpose.msra.mxu0 0.0
    %2422 = vmatprep.subr.mxu0 0.0
    %2423 = vmatpush1.xpose.msra.mxu0 0.0
    %2424 = vmatprep.subr.mxu0 0.0
    %2425 = vmatpush1.xpose.msra.mxu0 0.0
    %2426 = vmatprep.subr.mxu0 0.0
    %2427 = vmatpush1.xpose.msra.mxu0 0.0
    %2428 = vmatprep.subr.mxu0 0.0
    %2429 = vmatpush1.xpose.msra.mxu0 0.0
    %2430 = vmatprep.subr.mxu0 0.0
    %2431 = vmatpush1.xpose.msra.mxu0 0.0
    %2432 = vmatprep.subr.mxu0 0.0
    %2433 = vmatpush1.xpose.msra.mxu0 0.0
    %2434 = vmatprep.subr.mxu0 0.0
    %2435 = vmatpush1.xpose.msra.mxu0 0.0
    %2436 = vmatprep.subr.mxu0 0.0
    %2437 = vmatpush1.xpose.msra.mxu0 0.0
    %2438 = vmatprep.subr.mxu0 0.0
    %2439 = vmatpush1.xpose.msra.mxu0 0.0
    %2440 = vmatprep.subr.mxu0 0.0
    %2441 = vmatpush1.xpose.msra.mxu0 0.0
    %2442 = vmatprep.subr.mxu0 0.0
    %2443 = vmatpush1.xpose.msra.mxu0 0.0
    %2444 = vmatprep.subr.mxu0 0.0
    %2445 = vmatpush1.xpose.msra.mxu0 0.0
    %2446 = vmatprep.subr.mxu0 0.0
    %2447 = vmatpush1.xpose.msra.mxu0 0.0
    %2448 = vmatprep.subr.mxu0 0.0
    %2449 = vmatpush1.xpose.msra.mxu0 0.0
    %2450 = vmatprep.subr.mxu0 0.0
    %2451 = vmatpush1.xpose.msra.mxu0 0.0
    %2452 = vmatprep.subr.mxu0 0.0
    %2453 = vmatpush1.xpose.msra.mxu0 0.0
    %2454 = vmatprep.subr.mxu0 0.0
    %2455 = vmatpush1.xpose.msra.mxu0 0.0
    %2456 = vmatprep.subr.mxu0 0.0
    %2457 = vmatpush1.xpose.msra.mxu0 0.0
    %2458 = vmatprep.subr.mxu0 0.0
    %2459 = vmatpush1.xpose.msra.mxu0 0.0
    %2460 = vmatprep.subr.mxu0 0.0
    %2461 = vmatpush1.xpose.msra.mxu0 0.0
    %2462 = vmatprep.subr.mxu0 0.0
    %2463 = vmatpush1.xpose.msra.mxu0 0.0
    %2464 = vmatprep.subr.mxu0 0.0
    %2465 = vmatpush1.xpose.msra.mxu0 0.0
    %2466 = vmatprep.subr.mxu0 0.0
    %2467 = vmatpush1.xpose.msra.mxu0 0.0
    %2468 = vmatprep.mubr.f32.mxu0 0.0
    %2469 = vmatmul.mubr.f32.gmra.mrb[0].mxu0 %v2400
    %v2470 = vpop.f32.mrb[0].mxu0
    %v2471 = vadd.f32 0.0, %v2470
    %v2472 = vpop.f32.mrb[0].mxu0
    %2473 = vdwg.mxu0
    %2475 = vrot.lane.b32.xlu0 %v2312, 96
    %v2476 = vpop.permute.xlu0 %2475
    %v2477 = vsel %vm245, %v2312, 0
    %v2479 = vsel %vm245, %v2476, 0
    %2481 = vmatprep.subr.mxu0 0.0
    %2482 = vmatpush1.xpose.msra.mxu0 %v2479
    %2483 = vmatprep.subr.mxu0 0.0
    %2484 = vmatpush1.xpose.msra.mxu0 0.0
    %2485 = vmatprep.subr.mxu0 0.0
    %2486 = vmatpush1.xpose.msra.mxu0 0.0
    %2487 = vmatprep.subr.mxu0 0.0
    %2488 = vmatpush1.xpose.msra.mxu0 0.0
    %2489 = vmatprep.subr.mxu0 0.0
    %2490 = vmatpush1.xpose.msra.mxu0 0.0
    %2491 = vmatprep.subr.mxu0 0.0
    %2492 = vmatpush1.xpose.msra.mxu0 0.0
    %2493 = vmatprep.subr.mxu0 0.0
    %2494 = vmatpush1.xpose.msra.mxu0 0.0
    %2495 = vmatprep.subr.mxu0 0.0
    %2496 = vmatpush1.xpose.msra.mxu0 0.0
    %2497 = vmatprep.subr.mxu0 0.0
    %2498 = vmatpush1.xpose.msra.mxu0 0.0
    %2499 = vmatprep.subr.mxu0 0.0
    %2500 = vmatpush1.xpose.msra.mxu0 0.0
    %2501 = vmatprep.subr.mxu0 0.0
    %2502 = vmatpush1.xpose.msra.mxu0 0.0
    %2503 = vmatprep.subr.mxu0 0.0
    %2504 = vmatpush1.xpose.msra.mxu0 0.0
    %2505 = vmatprep.subr.mxu0 0.0
    %2506 = vmatpush1.xpose.msra.mxu0 0.0
    %2507 = vmatprep.subr.mxu0 0.0
    %2508 = vmatpush1.xpose.msra.mxu0 0.0
    %2509 = vmatprep.subr.mxu0 0.0
    %2510 = vmatpush1.xpose.msra.mxu0 0.0
    %2511 = vmatprep.subr.mxu0 0.0
    %2512 = vmatpush1.xpose.msra.mxu0 0.0
    %2513 = vmatprep.subr.mxu0 0.0
    %2514 = vmatpush1.xpose.msra.mxu0 0.0
    %2515 = vmatprep.subr.mxu0 0.0
    %2516 = vmatpush1.xpose.msra.mxu0 0.0
    %2517 = vmatprep.subr.mxu0 0.0
    %2518 = vmatpush1.xpose.msra.mxu0 0.0
    %2519 = vmatprep.subr.mxu0 0.0
    %2520 = vmatpush1.xpose.msra.mxu0 0.0
    %2521 = vmatprep.subr.mxu0 0.0
    %2522 = vmatpush1.xpose.msra.mxu0 0.0
    %2523 = vmatprep.subr.mxu0 0.0
    %2524 = vmatpush1.xpose.msra.mxu0 0.0
    %2525 = vmatprep.subr.mxu0 0.0
    %2526 = vmatpush1.xpose.msra.mxu0 0.0
    %2527 = vmatprep.subr.mxu0 0.0
    %2528 = vmatpush1.xpose.msra.mxu0 0.0
    %2529 = vmatprep.subr.mxu0 0.0
    %2530 = vmatpush1.xpose.msra.mxu0 0.0
    %2531 = vmatprep.subr.mxu0 0.0
    %2532 = vmatpush1.xpose.msra.mxu0 0.0
    %2533 = vmatprep.subr.mxu0 0.0
    %2534 = vmatpush1.xpose.msra.mxu0 0.0
    %2535 = vmatprep.subr.mxu0 0.0
    %2536 = vmatpush1.xpose.msra.mxu0 0.0
    %2537 = vmatprep.subr.mxu0 0.0
    %2538 = vmatpush1.xpose.msra.mxu0 0.0
    %2539 = vmatprep.subr.mxu0 0.0
    %2540 = vmatpush1.xpose.msra.mxu0 0.0
    %2541 = vmatprep.subr.mxu0 0.0
    %2542 = vmatpush1.xpose.msra.mxu0 0.0
    %2543 = vmatprep.subr.mxu0 0.0
    %2544 = vmatpush1.xpose.msra.mxu0 0.0
    %2545 = vmatprep.mubr.f32.mxu0 0.0
    %2546 = vmatmul.mubr.f32.gmra.mrb[0].mxu0 %v2477
    %v2547 = vpop.f32.mrb[0].mxu0
    %v2548 = vadd.f32 0.0, %v2547
    %v2549 = vpop.f32.mrb[0].mxu0
    %2550 = vdwg.mxu0
    %2552 = vrot.lane.b32.xlu0 %v2317, 96
    %v2553 = vpop.permute.xlu0 %2552
    %v2554 = vsel %vm245, %v2317, 0
    %v2556 = vsel %vm245, %v2553, 0
    %2558 = vmatprep.subr.mxu0 0.0
    %2559 = vmatpush1.xpose.msra.mxu0 %v2556
    %2560 = vmatprep.subr.mxu0 0.0
    %2561 = vmatpush1.xpose.msra.mxu0 0.0
    %2562 = vmatprep.subr.mxu0 0.0
    %2563 = vmatpush1.xpose.msra.mxu0 0.0
    %2564 = vmatprep.subr.mxu0 0.0
    %2565 = vmatpush1.xpose.msra.mxu0 0.0
    %2566 = vmatprep.subr.mxu0 0.0
    %2567 = vmatpush1.xpose.msra.mxu0 0.0
    %2568 = vmatprep.subr.mxu0 0.0
    %2569 = vmatpush1.xpose.msra.mxu0 0.0
    %2570 = vmatprep.subr.mxu0 0.0
    %2571 = vmatpush1.xpose.msra.mxu0 0.0
    %2572 = vmatprep.subr.mxu0 0.0
    %2573 = vmatpush1.xpose.msra.mxu0 0.0
    %2574 = vmatprep.subr.mxu0 0.0
    %2575 = vmatpush1.xpose.msra.mxu0 0.0
    %2576 = vmatprep.subr.mxu0 0.0
    %2577 = vmatpush1.xpose.msra.mxu0 0.0
    %2578 = vmatprep.subr.mxu0 0.0
    %2579 = vmatpush1.xpose.msra.mxu0 0.0
    %2580 = vmatprep.subr.mxu0 0.0
    %2581 = vmatpush1.xpose.msra.mxu0 0.0
    %2582 = vmatprep.subr.mxu0 0.0
    %2583 = vmatpush1.xpose.msra.mxu0 0.0
    %2584 = vmatprep.subr.mxu0 0.0
    %2585 = vmatpush1.xpose.msra.mxu0 0.0
    %2586 = vmatprep.subr.mxu0 0.0
    %2587 = vmatpush1.xpose.msra.mxu0 0.0
    %2588 = vmatprep.subr.mxu0 0.0
    %2589 = vmatpush1.xpose.msra.mxu0 0.0
    %2590 = vmatprep.subr.mxu0 0.0
    %2591 = vmatpush1.xpose.msra.mxu0 0.0
    %2592 = vmatprep.subr.mxu0 0.0
    %2593 = vmatpush1.xpose.msra.mxu0 0.0
    %2594 = vmatprep.subr.mxu0 0.0
    %2595 = vmatpush1.xpose.msra.mxu0 0.0
    %2596 = vmatprep.subr.mxu0 0.0
    %2597 = vmatpush1.xpose.msra.mxu0 0.0
    %2598 = vmatprep.subr.mxu0 0.0
    %2599 = vmatpush1.xpose.msra.mxu0 0.0
    %2600 = vmatprep.subr.mxu0 0.0
    %2601 = vmatpush1.xpose.msra.mxu0 0.0
    %2602 = vmatprep.subr.mxu0 0.0
    %2603 = vmatpush1.xpose.msra.mxu0 0.0
    %2604 = vmatprep.subr.mxu0 0.0
    %2605 = vmatpush1.xpose.msra.mxu0 0.0
    %2606 = vmatprep.subr.mxu0 0.0
    %2607 = vmatpush1.xpose.msra.mxu0 0.0
    %2608 = vmatprep.subr.mxu0 0.0
    %2609 = vmatpush1.xpose.msra.mxu0 0.0
    %2610 = vmatprep.subr.mxu0 0.0
    %2611 = vmatpush1.xpose.msra.mxu0 0.0
    %2612 = vmatprep.subr.mxu0 0.0
    %2613 = vmatpush1.xpose.msra.mxu0 0.0
    %2614 = vmatprep.subr.mxu0 0.0
    %2615 = vmatpush1.xpose.msra.mxu0 0.0
    %2616 = vmatprep.subr.mxu0 0.0
    %2617 = vmatpush1.xpose.msra.mxu0 0.0
    %2618 = vmatprep.subr.mxu0 0.0
    %2619 = vmatpush1.xpose.msra.mxu0 0.0
    %2620 = vmatprep.subr.mxu0 0.0
    %2621 = vmatpush1.xpose.msra.mxu0 0.0
    %2622 = vmatprep.mubr.f32.mxu0 0.0
    %2623 = vmatmul.mubr.f32.gmra.mrb[0].mxu0 %v2554
    %v2624 = vpop.f32.mrb[0].mxu0
    %v2625 = vadd.f32 0.0, %v2624
    %v2626 = vpop.f32.mrb[0].mxu0
    %2627 = vdwg.mxu0
    %v2628 = vmul.f32 %v2394, 0.25
    %v2629 = vmul.f32 %v2471, 0.25
    %v2630 = vmul.f32 %v2548, 0.25
    %v2631 = vmul.f32 %v2625, 0.25
    %v2632 = vadd.f32 %v2628, %v562
    %v2633 = vadd.f32 %v2629, %v566
    %v2634 = vadd.f32 %v2630, %v570
    %v2635 = vadd.f32 %v2631, %v574
    %v2636 = vsel %vm583, %v2632, -inf
    %2637 = vmax.xlane.f32.xlu0 %v2636
    %v2638 = vpop.xlane.xlu0 %2637
    %v2639 = vsel %vm583, %v2633, -inf
    %2640 = vmax.xlane.f32.xlu0 %v2639
    %v2641 = vpop.xlane.xlu0 %2640
    %v2642 = vsel %vm583, %v2634, -inf
    %2643 = vmax.xlane.f32.xlu0 %v2642
    %v2644 = vpop.xlane.xlu0 %2643
    %v2645 = vsel %vm583, %v2635, -inf
    %2646 = vmax.xlane.f32.xlu0 %v2645
    %v2647 = vpop.xlane.xlu0 %2646
    %v2648 = vsub.f32 %v2632, %v2638
    %v2649 = vsub.f32 %v2633, %v2641
    %v2650 = vsub.f32 %v2634, %v2644
    %v2651 = vsub.f32 %v2635, %v2647
    %v2652 = vmul.f32 %v2648, 1.442695
    %v2653 = vpow.pop %v2652
    %v2654 = vmul.f32 %v2649, 1.442695
    %v2655 = vpow.pop %v2654
    %v2656 = vmul.f32 %v2650, 1.442695
    %v2657 = vpow.pop %v2656
    %v2658 = vmul.f32 %v2651, 1.442695
    %v2659 = vpow.pop %v2658
    %v2660 = vsel %vm583, %v2653, 0.0
    %2661 = vadd.xlane.f32.xlu0 %v2660
    %v2662 = vpop.xlane.xlu0 %2661
    %v2663 = vsel %vm583, %v2655, 0.0
    %2664 = vadd.xlane.f32.xlu0 %v2663
    %v2665 = vpop.xlane.xlu0 %2664
    %v2666 = vsel %vm583, %v2657, 0.0
    %2667 = vadd.xlane.f32.xlu0 %v2666
    %v2668 = vpop.xlane.xlu0 %2667
    %v2669 = vsel %vm583, %v2659, 0.0
    %2670 = vadd.xlane.f32.xlu0 %v2669
    %v2671 = vpop.xlane.xlu0 %2670
    %v2672 = vrcp.pop %v2662
    %v2673 = vrcp.pop %v2665
    %v2674 = vrcp.pop %v2668
    %v2675 = vrcp.pop %v2671
    %v2676 = vmul.f32 %v2653, %v2672
    %v2677 = vmul.f32 %v2655, %v2673
    %v2678 = vmul.f32 %v2657, %v2674
    %v2679 = vmul.f32 %v2659, %v2675
    %2680 = vrot.lane.b32.xlu0 %v2302, 64
    %v2681 = vpop.permute.xlu0 %2680
    %v2684 = vsel %vm583, %v2676, 0
    %2686 = vmatprep.subr.mxu0 0.0
    %2687 = vmatpush1.msra.mxu0 %v2681
    %2688 = vmatprep.subr.mxu0 0.0
    %2689 = vmatpush1.msra.mxu0 0.0
    %2690 = vmatprep.subr.mxu0 0.0
    %2691 = vmatpush1.msra.mxu0 0.0
    %2692 = vmatprep.subr.mxu0 0.0
    %2693 = vmatpush1.msra.mxu0 0.0
    %2694 = vmatprep.subr.mxu0 0.0
    %2695 = vmatpush1.msra.mxu0 0.0
    %2696 = vmatprep.subr.mxu0 0.0
    %2697 = vmatpush1.msra.mxu0 0.0
    %2698 = vmatprep.subr.mxu0 0.0
    %2699 = vmatpush1.msra.mxu0 0.0
    %2700 = vmatprep.subr.mxu0 0.0
    %2701 = vmatpush1.msra.mxu0 0.0
    %2702 = vmatprep.subr.mxu0 0.0
    %2703 = vmatpush1.msra.mxu0 0.0
    %2704 = vmatprep.subr.mxu0 0.0
    %2705 = vmatpush1.msra.mxu0 0.0
    %2706 = vmatprep.subr.mxu0 0.0
    %2707 = vmatpush1.msra.mxu0 0.0
    %2708 = vmatprep.subr.mxu0 0.0
    %2709 = vmatpush1.msra.mxu0 0.0
    %2710 = vmatprep.subr.mxu0 0.0
    %2711 = vmatpush1.msra.mxu0 0.0
    %2712 = vmatprep.subr.mxu0 0.0
    %2713 = vmatpush1.msra.mxu0 0.0
    %2714 = vmatprep.subr.mxu0 0.0
    %2715 = vmatpush1.msra.mxu0 0.0
    %2716 = vmatprep.subr.mxu0 0.0
    %2717 = vmatpush1.msra.mxu0 0.0
    %2718 = vmatprep.subr.mxu0 0.0
    %2719 = vmatpush1.msra.mxu0 0.0
    %2720 = vmatprep.subr.mxu0 0.0
    %2721 = vmatpush1.msra.mxu0 0.0
    %2722 = vmatprep.subr.mxu0 0.0
    %2723 = vmatpush1.msra.mxu0 0.0
    %2724 = vmatprep.subr.mxu0 0.0
    %2725 = vmatpush1.msra.mxu0 0.0
    %2726 = vmatprep.subr.mxu0 0.0
    %2727 = vmatpush1.msra.mxu0 0.0
    %2728 = vmatprep.subr.mxu0 0.0
    %2729 = vmatpush1.msra.mxu0 0.0
    %2730 = vmatprep.subr.mxu0 0.0
    %2731 = vmatpush1.msra.mxu0 0.0
    %2732 = vmatprep.subr.mxu0 0.0
    %2733 = vmatpush1.msra.mxu0 0.0
    %2734 = vmatprep.subr.mxu0 0.0
    %2735 = vmatpush1.msra.mxu0 0.0
    %2736 = vmatprep.subr.mxu0 0.0
    %2737 = vmatpush1.msra.mxu0 0.0
    %2738 = vmatprep.subr.mxu0 0.0
    %2739 = vmatpush1.msra.mxu0 0.0
    %2740 = vmatprep.subr.mxu0 0.0
    %2741 = vmatpush1.msra.mxu0 0.0
    %2742 = vmatprep.subr.mxu0 0.0
    %2743 = vmatpush1.msra.mxu0 0.0
    %2744 = vmatprep.subr.mxu0 0.0
    %2745 = vmatpush1.msra.mxu0 0.0
    %2746 = vmatprep.subr.mxu0 0.0
    %2747 = vmatpush1.msra.mxu0 0.0
    %2748 = vmatprep.subr.mxu0 0.0
    %2749 = vmatpush1.msra.mxu0 0.0
    %2750 = vmatprep.mubr.f32.mxu0 0.0
    %2751 = vmatmul.mubr.f32.gmra.mrb[0].mxu0 %v2684
    %v2752 = vpop.f32.mrb[0].mxu0
    %v2753 = vadd.f32 0.0, %v2752
    %v2754 = vpop.f32.mrb[0].mxu0
    %2755 = vdwg.mxu0
    %2756 = vrot.lane.b32.xlu0 %v2307, 64
    %v2757 = vpop.permute.xlu0 %2756
    %v2760 = vsel %vm583, %v2677, 0
    %2762 = vmatprep.subr.mxu0 0.0
    %2763 = vmatpush1.msra.mxu0 %v2757
    %2764 = vmatprep.subr.mxu0 0.0
    %2765 = vmatpush1.msra.mxu0 0.0
    %2766 = vmatprep.subr.mxu0 0.0
    %2767 = vmatpush1.msra.mxu0 0.0
    %2768 = vmatprep.subr.mxu0 0.0
    %2769 = vmatpush1.msra.mxu0 0.0
    %2770 = vmatprep.subr.mxu0 0.0
    %2771 = vmatpush1.msra.mxu0 0.0
    %2772 = vmatprep.subr.mxu0 0.0
    %2773 = vmatpush1.msra.mxu0 0.0
    %2774 = vmatprep.subr.mxu0 0.0
    %2775 = vmatpush1.msra.mxu0 0.0
    %2776 = vmatprep.subr.mxu0 0.0
    %2777 = vmatpush1.msra.mxu0 0.0
    %2778 = vmatprep.subr.mxu0 0.0
    %2779 = vmatpush1.msra.mxu0 0.0
    %2780 = vmatprep.subr.mxu0 0.0
    %2781 = vmatpush1.msra.mxu0 0.0
    %2782 = vmatprep.subr.mxu0 0.0
    %2783 = vmatpush1.msra.mxu0 0.0
    %2784 = vmatprep.subr.mxu0 0.0
    %2785 = vmatpush1.msra.mxu0 0.0
    %2786 = vmatprep.subr.mxu0 0.0
    %2787 = vmatpush1.msra.mxu0 0.0
    %2788 = vmatprep.subr.mxu0 0.0
    %2789 = vmatpush1.msra.mxu0 0.0
    %2790 = vmatprep.subr.mxu0 0.0
    %2791 = vmatpush1.msra.mxu0 0.0
    %2792 = vmatprep.subr.mxu0 0.0
    %2793 = vmatpush1.msra.mxu0 0.0
    %2794 = vmatprep.subr.mxu0 0.0
    %2795 = vmatpush1.msra.mxu0 0.0
    %2796 = vmatprep.subr.mxu0 0.0
    %2797 = vmatpush1.msra.mxu0 0.0
    %2798 = vmatprep.subr.mxu0 0.0
    %2799 = vmatpush1.msra.mxu0 0.0
    %2800 = vmatprep.subr.mxu0 0.0
    %2801 = vmatpush1.msra.mxu0 0.0
    %2802 = vmatprep.subr.mxu0 0.0
    %2803 = vmatpush1.msra.mxu0 0.0
    %2804 = vmatprep.subr.mxu0 0.0
    %2805 = vmatpush1.msra.mxu0 0.0
    %2806 = vmatprep.subr.mxu0 0.0
    %2807 = vmatpush1.msra.mxu0 0.0
    %2808 = vmatprep.subr.mxu0 0.0
    %2809 = vmatpush1.msra.mxu0 0.0
    %2810 = vmatprep.subr.mxu0 0.0
    %2811 = vmatpush1.msra.mxu0 0.0
    %2812 = vmatprep.subr.mxu0 0.0
    %2813 = vmatpush1.msra.mxu0 0.0
    %2814 = vmatprep.subr.mxu0 0.0
    %2815 = vmatpush1.msra.mxu0 0.0
    %2816 = vmatprep.subr.mxu0 0.0
    %2817 = vmatpush1.msra.mxu0 0.0
    %2818 = vmatprep.subr.mxu0 0.0
    %2819 = vmatpush1.msra.mxu0 0.0
    %2820 = vmatprep.subr.mxu0 0.0
    %2821 = vmatpush1.msra.mxu0 0.0
    %2822 = vmatprep.subr.mxu0 0.0
    %2823 = vmatpush1.msra.mxu0 0.0
    %2824 = vmatprep.subr.mxu0 0.0
    %2825 = vmatpush1.msra.mxu0 0.0
    %2826 = vmatprep.mubr.f32.mxu0 0.0
    %2827 = vmatmul.mubr.f32.gmra.mrb[0].mxu0 %v2760
    %v2828 = vpop.f32.mrb[0].mxu0
    %v2829 = vadd.f32 0.0, %v2828
    %v2830 = vpop.f32.mrb[0].mxu0
    %2831 = vdwg.mxu0
    %2832 = vrot.lane.b32.xlu0 %v2312, 64
    %v2833 = vpop.permute.xlu0 %2832
    %v2836 = vsel %vm583, %v2678, 0
    %2838 = vmatprep.subr.mxu0 0.0
    %2839 = vmatpush1.msra.mxu0 %v2833
    %2840 = vmatprep.subr.mxu0 0.0
    %2841 = vmatpush1.msra.mxu0 0.0
    %2842 = vmatprep.subr.mxu0 0.0
    %2843 = vmatpush1.msra.mxu0 0.0
    %2844 = vmatprep.subr.mxu0 0.0
    %2845 = vmatpush1.msra.mxu0 0.0
    %2846 = vmatprep.subr.mxu0 0.0
    %2847 = vmatpush1.msra.mxu0 0.0
    %2848 = vmatprep.subr.mxu0 0.0
    %2849 = vmatpush1.msra.mxu0 0.0
    %2850 = vmatprep.subr.mxu0 0.0
    %2851 = vmatpush1.msra.mxu0 0.0
    %2852 = vmatprep.subr.mxu0 0.0
    %2853 = vmatpush1.msra.mxu0 0.0
    %2854 = vmatprep.subr.mxu0 0.0
    %2855 = vmatpush1.msra.mxu0 0.0
    %2856 = vmatprep.subr.mxu0 0.0
    %2857 = vmatpush1.msra.mxu0 0.0
    %2858 = vmatprep.subr.mxu0 0.0
    %2859 = vmatpush1.msra.mxu0 0.0
    %2860 = vmatprep.subr.mxu0 0.0
    %2861 = vmatpush1.msra.mxu0 0.0
    %2862 = vmatprep.subr.mxu0 0.0
    %2863 = vmatpush1.msra.mxu0 0.0
    %2864 = vmatprep.subr.mxu0 0.0
    %2865 = vmatpush1.msra.mxu0 0.0
    %2866 = vmatprep.subr.mxu0 0.0
    %2867 = vmatpush1.msra.mxu0 0.0
    %2868 = vmatprep.subr.mxu0 0.0
    %2869 = vmatpush1.msra.mxu0 0.0
    %2870 = vmatprep.subr.mxu0 0.0
    %2871 = vmatpush1.msra.mxu0 0.0
    %2872 = vmatprep.subr.mxu0 0.0
    %2873 = vmatpush1.msra.mxu0 0.0
    %2874 = vmatprep.subr.mxu0 0.0
    %2875 = vmatpush1.msra.mxu0 0.0
    %2876 = vmatprep.subr.mxu0 0.0
    %2877 = vmatpush1.msra.mxu0 0.0
    %2878 = vmatprep.subr.mxu0 0.0
    %2879 = vmatpush1.msra.mxu0 0.0
    %2880 = vmatprep.subr.mxu0 0.0
    %2881 = vmatpush1.msra.mxu0 0.0
    %2882 = vmatprep.subr.mxu0 0.0
    %2883 = vmatpush1.msra.mxu0 0.0
    %2884 = vmatprep.subr.mxu0 0.0
    %2885 = vmatpush1.msra.mxu0 0.0
    %2886 = vmatprep.subr.mxu0 0.0
    %2887 = vmatpush1.msra.mxu0 0.0
    %2888 = vmatprep.subr.mxu0 0.0
    %2889 = vmatpush1.msra.mxu0 0.0
    %2890 = vmatprep.subr.mxu0 0.0
    %2891 = vmatpush1.msra.mxu0 0.0
    %2892 = vmatprep.subr.mxu0 0.0
    %2893 = vmatpush1.msra.mxu0 0.0
    %2894 = vmatprep.subr.mxu0 0.0
    %2895 = vmatpush1.msra.mxu0 0.0
    %2896 = vmatprep.subr.mxu0 0.0
    %2897 = vmatpush1.msra.mxu0 0.0
    %2898 = vmatprep.subr.mxu0 0.0
    %2899 = vmatpush1.msra.mxu0 0.0
    %2900 = vmatprep.subr.mxu0 0.0
    %2901 = vmatpush1.msra.mxu0 0.0
    %2902 = vmatprep.mubr.f32.mxu0 0.0
    %2903 = vmatmul.mubr.f32.gmra.mrb[0].mxu0 %v2836
    %v2904 = vpop.f32.mrb[0].mxu0
    %v2905 = vadd.f32 0.0, %v2904
    %v2906 = vpop.f32.mrb[0].mxu0
    %2907 = vdwg.mxu0
    %2908 = vrot.lane.b32.xlu0 %v2317, 64
    %v2909 = vpop.permute.xlu0 %2908
    %v2912 = vsel %vm583, %v2679, 0
    %2914 = vmatprep.subr.mxu0 0.0
    %2915 = vmatpush1.msra.mxu0 %v2909
    %2916 = vmatprep.subr.mxu0 0.0
    %2917 = vmatpush1.msra.mxu0 0.0
    %2918 = vmatprep.subr.mxu0 0.0
    %2919 = vmatpush1.msra.mxu0 0.0
    %2920 = vmatprep.subr.mxu0 0.0
    %2921 = vmatpush1.msra.mxu0 0.0
    %2922 = vmatprep.subr.mxu0 0.0
    %2923 = vmatpush1.msra.mxu0 0.0
    %2924 = vmatprep.subr.mxu0 0.0
    %2925 = vmatpush1.msra.mxu0 0.0
    %2926 = vmatprep.subr.mxu0 0.0
    %2927 = vmatpush1.msra.mxu0 0.0
    %2928 = vmatprep.subr.mxu0 0.0
    %2929 = vmatpush1.msra.mxu0 0.0
    %2930 = vmatprep.subr.mxu0 0.0
    %2931 = vmatpush1.msra.mxu0 0.0
    %2932 = vmatprep.subr.mxu0 0.0
    %2933 = vmatpush1.msra.mxu0 0.0
    %2934 = vmatprep.subr.mxu0 0.0
    %2935 = vmatpush1.msra.mxu0 0.0
    %2936 = vmatprep.subr.mxu0 0.0
    %2937 = vmatpush1.msra.mxu0 0.0
    %2938 = vmatprep.subr.mxu0 0.0
    %2939 = vmatpush1.msra.mxu0 0.0
    %2940 = vmatprep.subr.mxu0 0.0
    %2941 = vmatpush1.msra.mxu0 0.0
    %2942 = vmatprep.subr.mxu0 0.0
    %2943 = vmatpush1.msra.mxu0 0.0
    %2944 = vmatprep.subr.mxu0 0.0
    %2945 = vmatpush1.msra.mxu0 0.0
    %2946 = vmatprep.subr.mxu0 0.0
    %2947 = vmatpush1.msra.mxu0 0.0
    %2948 = vmatprep.subr.mxu0 0.0
    %2949 = vmatpush1.msra.mxu0 0.0
    %2950 = vmatprep.subr.mxu0 0.0
    %2951 = vmatpush1.msra.mxu0 0.0
    %2952 = vmatprep.subr.mxu0 0.0
    %2953 = vmatpush1.msra.mxu0 0.0
    %2954 = vmatprep.subr.mxu0 0.0
    %2955 = vmatpush1.msra.mxu0 0.0
    %2956 = vmatprep.subr.mxu0 0.0
    %2957 = vmatpush1.msra.mxu0 0.0
    %2958 = vmatprep.subr.mxu0 0.0
    %2959 = vmatpush1.msra.mxu0 0.0
    %2960 = vmatprep.subr.mxu0 0.0
    %2961 = vmatpush1.msra.mxu0 0.0
    %2962 = vmatprep.subr.mxu0 0.0
    %2963 = vmatpush1.msra.mxu0 0.0
    %2964 = vmatprep.subr.mxu0 0.0
    %2965 = vmatpush1.msra.mxu0 0.0
    %2966 = vmatprep.subr.mxu0 0.0
    %2967 = vmatpush1.msra.mxu0 0.0
    %2968 = vmatprep.subr.mxu0 0.0
    %2969 = vmatpush1.msra.mxu0 0.0
    %2970 = vmatprep.subr.mxu0 0.0
    %2971 = vmatpush1.msra.mxu0 0.0
    %2972 = vmatprep.subr.mxu0 0.0
    %2973 = vmatpush1.msra.mxu0 0.0
    %2974 = vmatprep.subr.mxu0 0.0
    %2975 = vmatpush1.msra.mxu0 0.0
    %2976 = vmatprep.subr.mxu0 0.0
    %2977 = vmatpush1.msra.mxu0 0.0
    %2978 = vmatprep.mubr.f32.mxu0 0.0
    %2979 = vmatmul.mubr.f32.gmra.mrb[0].mxu0 %v2912
    %v2980 = vpop.f32.mrb[0].mxu0
    %v2981 = vadd.f32 0.0, %v2980
    %v2982 = vpop.f32.mrb[0].mxu0
    %2983 = vdwg.mxu0
    %2984 = vrot.lane.b32.xlu0 %v2302, 112
    %v2985 = vpop.permute.xlu0 %2984
    %2986 = vrot.lane.b32.xlu0 %v2302, 80
    %v2987 = vpop.permute.xlu0 %2986
    %v2988 = vsel %vm245, %v2985, 0
    %v2990 = vsel %vm245, %v2987, 0
    %2992 = vmatprep.subr.mxu0 0.0
    %2993 = vmatpush1.xpose.msra.mxu0 %v2990
    %2994 = vmatprep.subr.mxu0 0.0
    %2995 = vmatpush1.xpose.msra.mxu0 0.0
    %2996 = vmatprep.subr.mxu0 0.0
    %2997 = vmatpush1.xpose.msra.mxu0 0.0
    %2998 = vmatprep.subr.mxu0 0.0
    %2999 = vmatpush1.xpose.msra.mxu0 0.0
    %3000 = vmatprep.subr.mxu0 0.0
    %3001 = vmatpush1.xpose.msra.mxu0 0.0
    %3002 = vmatprep.subr.mxu0 0.0
    %3003 = vmatpush1.xpose.msra.mxu0 0.0
    %3004 = vmatprep.subr.mxu0 0.0
    %3005 = vmatpush1.xpose.msra.mxu0 0.0
    %3006 = vmatprep.subr.mxu0 0.0
    %3007 = vmatpush1.xpose.msra.mxu0 0.0
    %3008 = vmatprep.subr.mxu0 0.0
    %3009 = vmatpush1.xpose.msra.mxu0 0.0
    %3010 = vmatprep.subr.mxu0 0.0
    %3011 = vmatpush1.xpose.msra.mxu0 0.0
    %3012 = vmatprep.subr.mxu0 0.0
    %3013 = vmatpush1.xpose.msra.mxu0 0.0
    %3014 = vmatprep.subr.mxu0 0.0
    %3015 = vmatpush1.xpose.msra.mxu0 0.0
    %3016 = vmatprep.subr.mxu0 0.0
    %3017 = vmatpush1.xpose.msra.mxu0 0.0
    %3018 = vmatprep.subr.mxu0 0.0
    %3019 = vmatpush1.xpose.msra.mxu0 0.0
    %3020 = vmatprep.subr.mxu0 0.0
    %3021 = vmatpush1.xpose.msra.mxu0 0.0
    %3022 = vmatprep.subr.mxu0 0.0
    %3023 = vmatpush1.xpose.msra.mxu0 0.0
    %3024 = vmatprep.subr.mxu0 0.0
    %3025 = vmatpush1.xpose.msra.mxu0 0.0
    %3026 = vmatprep.subr.mxu0 0.0
    %3027 = vmatpush1.xpose.msra.mxu0 0.0
    %3028 = vmatprep.subr.mxu0 0.0
    %3029 = vmatpush1.xpose.msra.mxu0 0.0
    %3030 = vmatprep.subr.mxu0 0.0
    %3031 = vmatpush1.xpose.msra.mxu0 0.0
    %3032 = vmatprep.subr.mxu0 0.0
    %3033 = vmatpush1.xpose.msra.mxu0 0.0
    %3034 = vmatprep.subr.mxu0 0.0
    %3035 = vmatpush1.xpose.msra.mxu0 0.0
    %3036 = vmatprep.subr.mxu0 0.0
    %3037 = vmatpush1.xpose.msra.mxu0 0.0
    %3038 = vmatprep.subr.mxu0 0.0
    %3039 = vmatpush1.xpose.msra.mxu0 0.0
    %3040 = vmatprep.subr.mxu0 0.0
    %3041 = vmatpush1.xpose.msra.mxu0 0.0
    %3042 = vmatprep.subr.mxu0 0.0
    %3043 = vmatpush1.xpose.msra.mxu0 0.0
    %3044 = vmatprep.subr.mxu0 0.0
    %3045 = vmatpush1.xpose.msra.mxu0 0.0
    %3046 = vmatprep.subr.mxu0 0.0
    %3047 = vmatpush1.xpose.msra.mxu0 0.0
    %3048 = vmatprep.subr.mxu0 0.0
    %3049 = vmatpush1.xpose.msra.mxu0 0.0
    %3050 = vmatprep.subr.mxu0 0.0
    %3051 = vmatpush1.xpose.msra.mxu0 0.0
    %3052 = vmatprep.subr.mxu0 0.0
    %3053 = vmatpush1.xpose.msra.mxu0 0.0
    %3054 = vmatprep.subr.mxu0 0.0
    %3055 = vmatpush1.xpose.msra.mxu0 0.0
    %3056 = vmatprep.mubr.f32.mxu0 0.0
    %3057 = vmatmul.mubr.f32.gmra.mrb[0].mxu0 %v2988
    %v3058 = vpop.f32.mrb[0].mxu0
    %v3059 = vadd.f32 0.0, %v3058
    %v3060 = vpop.f32.mrb[0].mxu0
    %3061 = vdwg.mxu0
    %3062 = vrot.lane.b32.xlu0 %v2307, 112
    %v3063 = vpop.permute.xlu0 %3062
    %3064 = vrot.lane.b32.xlu0 %v2307, 80
    %v3065 = vpop.permute.xlu0 %3064
    %v3066 = vsel %vm245, %v3063, 0
    %v3068 = vsel %vm245, %v3065, 0
    %3070 = vmatprep.subr.mxu0 0.0
    %3071 = vmatpush1.xpose.msra.mxu0 %v3068
    %3072 = vmatprep.subr.mxu0 0.0
    %3073 = vmatpush1.xpose.msra.mxu0 0.0
    %3074 = vmatprep.subr.mxu0 0.0
    %3075 = vmatpush1.xpose.msra.mxu0 0.0
    %3076 = vmatprep.subr.mxu0 0.0
    %3077 = vmatpush1.xpose.msra.mxu0 0.0
    %3078 = vmatprep.subr.mxu0 0.0
    %3079 = vmatpush1.xpose.msra.mxu0 0.0
    %3080 = vmatprep.subr.mxu0 0.0
    %3081 = vmatpush1.xpose.msra.mxu0 0.0
    %3082 = vmatprep.subr.mxu0 0.0
    %3083 = vmatpush1.xpose.msra.mxu0 0.0
    %3084 = vmatprep.subr.mxu0 0.0
    %3085 = vmatpush1.xpose.msra.mxu0 0.0
    %3086 = vmatprep.subr.mxu0 0.0
    %3087 = vmatpush1.xpose.msra.mxu0 0.0
    %3088 = vmatprep.subr.mxu0 0.0
    %3089 = vmatpush1.xpose.msra.mxu0 0.0
    %3090 = vmatprep.subr.mxu0 0.0
    %3091 = vmatpush1.xpose.msra.mxu0 0.0
    %3092 = vmatprep.subr.mxu0 0.0
    %3093 = vmatpush1.xpose.msra.mxu0 0.0
    %3094 = vmatprep.subr.mxu0 0.0
    %3095 = vmatpush1.xpose.msra.mxu0 0.0
    %3096 = vmatprep.subr.mxu0 0.0
    %3097 = vmatpush1.xpose.msra.mxu0 0.0
    %3098 = vmatprep.subr.mxu0 0.0
    %3099 = vmatpush1.xpose.msra.mxu0 0.0
    %3100 = vmatprep.subr.mxu0 0.0
    %3101 = vmatpush1.xpose.msra.mxu0 0.0
    %3102 = vmatprep.subr.mxu0 0.0
    %3103 = vmatpush1.xpose.msra.mxu0 0.0
    %3104 = vmatprep.subr.mxu0 0.0
    %3105 = vmatpush1.xpose.msra.mxu0 0.0
    %3106 = vmatprep.subr.mxu0 0.0
    %3107 = vmatpush1.xpose.msra.mxu0 0.0
    %3108 = vmatprep.subr.mxu0 0.0
    %3109 = vmatpush1.xpose.msra.mxu0 0.0
    %3110 = vmatprep.subr.mxu0 0.0
    %3111 = vmatpush1.xpose.msra.mxu0 0.0
    %3112 = vmatprep.subr.mxu0 0.0
    %3113 = vmatpush1.xpose.msra.mxu0 0.0
    %3114 = vmatprep.subr.mxu0 0.0
    %3115 = vmatpush1.xpose.msra.mxu0 0.0
    %3116 = vmatprep.subr.mxu0 0.0
    %3117 = vmatpush1.xpose.msra.mxu0 0.0
    %3118 = vmatprep.subr.mxu0 0.0
    %3119 = vmatpush1.xpose.msra.mxu0 0.0
    %3120 = vmatprep.subr.mxu0 0.0
    %3121 = vmatpush1.xpose.msra.mxu0 0.0
    %3122 = vmatprep.subr.mxu0 0.0
    %3123 = vmatpush1.xpose.msra.mxu0 0.0
    %3124 = vmatprep.subr.mxu0 0.0
    %3125 = vmatpush1.xpose.msra.mxu0 0.0
    %3126 = vmatprep.subr.mxu0 0.0
    %3127 = vmatpush1.xpose.msra.mxu0 0.0
    %3128 = vmatprep.subr.mxu0 0.0
    %3129 = vmatpush1.xpose.msra.mxu0 0.0
    %3130 = vmatprep.subr.mxu0 0.0
    %3131 = vmatpush1.xpose.msra.mxu0 0.0
    %3132 = vmatprep.subr.mxu0 0.0
    %3133 = vmatpush1.xpose.msra.mxu0 0.0
    %3134 = vmatprep.mubr.f32.mxu0 0.0
    %3135 = vmatmul.mubr.f32.gmra.mrb[0].mxu0 %v3066
    %v3136 = vpop.f32.mrb[0].mxu0
    %v3137 = vadd.f32 0.0, %v3136
    %v3138 = vpop.f32.mrb[0].mxu0
    %3139 = vdwg.mxu0
    %3140 = vrot.lane.b32.xlu0 %v2312, 112
    %v3141 = vpop.permute.xlu0 %3140
    %3142 = vrot.lane.b32.xlu0 %v2312, 80
    %v3143 = vpop.permute.xlu0 %3142
    %v3144 = vsel %vm245, %v3141, 0
    %v3146 = vsel %vm245, %v3143, 0
    %3148 = vmatprep.subr.mxu0 0.0
    %3149 = vmatpush1.xpose.msra.mxu0 %v3146
    %3150 = vmatprep.subr.mxu0 0.0
    %3151 = vmatpush1.xpose.msra.mxu0 0.0
    %3152 = vmatprep.subr.mxu0 0.0
    %3153 = vmatpush1.xpose.msra.mxu0 0.0
    %3154 = vmatprep.subr.mxu0 0.0
    %3155 = vmatpush1.xpose.msra.mxu0 0.0
    %3156 = vmatprep.subr.mxu0 0.0
    %3157 = vmatpush1.xpose.msra.mxu0 0.0
    %3158 = vmatprep.subr.mxu0 0.0
    %3159 = vmatpush1.xpose.msra.mxu0 0.0
    %3160 = vmatprep.subr.mxu0 0.0
    %3161 = vmatpush1.xpose.msra.mxu0 0.0
    %3162 = vmatprep.subr.mxu0 0.0
    %3163 = vmatpush1.xpose.msra.mxu0 0.0
    %3164 = vmatprep.subr.mxu0 0.0
    %3165 = vmatpush1.xpose.msra.mxu0 0.0
    %3166 = vmatprep.subr.mxu0 0.0
    %3167 = vmatpush1.xpose.msra.mxu0 0.0
    %3168 = vmatprep.subr.mxu0 0.0
    %3169 = vmatpush1.xpose.msra.mxu0 0.0
    %3170 = vmatprep.subr.mxu0 0.0
    %3171 = vmatpush1.xpose.msra.mxu0 0.0
    %3172 = vmatprep.subr.mxu0 0.0
    %3173 = vmatpush1.xpose.msra.mxu0 0.0
    %3174 = vmatprep.subr.mxu0 0.0
    %3175 = vmatpush1.xpose.msra.mxu0 0.0
    %3176 = vmatprep.subr.mxu0 0.0
    %3177 = vmatpush1.xpose.msra.mxu0 0.0
    %3178 = vmatprep.subr.mxu0 0.0
    %3179 = vmatpush1.xpose.msra.mxu0 0.0
    %3180 = vmatprep.subr.mxu0 0.0
    %3181 = vmatpush1.xpose.msra.mxu0 0.0
    %3182 = vmatprep.subr.mxu0 0.0
    %3183 = vmatpush1.xpose.msra.mxu0 0.0
    %3184 = vmatprep.subr.mxu0 0.0
    %3185 = vmatpush1.xpose.msra.mxu0 0.0
    %3186 = vmatprep.subr.mxu0 0.0
    %3187 = vmatpush1.xpose.msra.mxu0 0.0
    %3188 = vmatprep.subr.mxu0 0.0
    %3189 = vmatpush1.xpose.msra.mxu0 0.0
    %3190 = vmatprep.subr.mxu0 0.0
    %3191 = vmatpush1.xpose.msra.mxu0 0.0
    %3192 = vmatprep.subr.mxu0 0.0
    %3193 = vmatpush1.xpose.msra.mxu0 0.0
    %3194 = vmatprep.subr.mxu0 0.0
    %3195 = vmatpush1.xpose.msra.mxu0 0.0
    %3196 = vmatprep.subr.mxu0 0.0
    %3197 = vmatpush1.xpose.msra.mxu0 0.0
    %3198 = vmatprep.subr.mxu0 0.0
    %3199 = vmatpush1.xpose.msra.mxu0 0.0
    %3200 = vmatprep.subr.mxu0 0.0
    %3201 = vmatpush1.xpose.msra.mxu0 0.0
    %3202 = vmatprep.subr.mxu0 0.0
    %3203 = vmatpush1.xpose.msra.mxu0 0.0
    %3204 = vmatprep.subr.mxu0 0.0
    %3205 = vmatpush1.xpose.msra.mxu0 0.0
    %3206 = vmatprep.subr.mxu0 0.0
    %3207 = vmatpush1.xpose.msra.mxu0 0.0
    %3208 = vmatprep.subr.mxu0 0.0
    %3209 = vmatpush1.xpose.msra.mxu0 0.0
    %3210 = vmatprep.subr.mxu0 0.0
    %3211 = vmatpush1.xpose.msra.mxu0 0.0
    %3212 = vmatprep.mubr.f32.mxu0 0.0
    %3213 = vmatmul.mubr.f32.gmra.mrb[0].mxu0 %v3144
    %v3214 = vpop.f32.mrb[0].mxu0
    %v3215 = vadd.f32 0.0, %v3214
    %v3216 = vpop.f32.mrb[0].mxu0
    %3217 = vdwg.mxu0
    %3218 = vrot.lane.b32.xlu0 %v2317, 112
    %v3219 = vpop.permute.xlu0 %3218
    %3220 = vrot.lane.b32.xlu0 %v2317, 80
    %v3221 = vpop.permute.xlu0 %3220
    %v3222 = vsel %vm245, %v3219, 0
    %v3224 = vsel %vm245, %v3221, 0
    %3226 = vmatprep.subr.mxu0 0.0
    %3227 = vmatpush1.xpose.msra.mxu0 %v3224
    %3228 = vmatprep.subr.mxu0 0.0
    %3229 = vmatpush1.xpose.msra.mxu0 0.0
    %3230 = vmatprep.subr.mxu0 0.0
    %3231 = vmatpush1.xpose.msra.mxu0 0.0
    %3232 = vmatprep.subr.mxu0 0.0
    %3233 = vmatpush1.xpose.msra.mxu0 0.0
    %3234 = vmatprep.subr.mxu0 0.0
    %3235 = vmatpush1.xpose.msra.mxu0 0.0
    %3236 = vmatprep.subr.mxu0 0.0
    %3237 = vmatpush1.xpose.msra.mxu0 0.0
    %3238 = vmatprep.subr.mxu0 0.0
    %3239 = vmatpush1.xpose.msra.mxu0 0.0
    %3240 = vmatprep.subr.mxu0 0.0
    %3241 = vmatpush1.xpose.msra.mxu0 0.0
    %3242 = vmatprep.subr.mxu0 0.0
    %3243 = vmatpush1.xpose.msra.mxu0 0.0
    %3244 = vmatprep.subr.mxu0 0.0
    %3245 = vmatpush1.xpose.msra.mxu0 0.0
    %3246 = vmatprep.subr.mxu0 0.0
    %3247 = vmatpush1.xpose.msra.mxu0 0.0
    %3248 = vmatprep.subr.mxu0 0.0
    %3249 = vmatpush1.xpose.msra.mxu0 0.0
    %3250 = vmatprep.subr.mxu0 0.0
    %3251 = vmatpush1.xpose.msra.mxu0 0.0
    %3252 = vmatprep.subr.mxu0 0.0
    %3253 = vmatpush1.xpose.msra.mxu0 0.0
    %3254 = vmatprep.subr.mxu0 0.0
    %3255 = vmatpush1.xpose.msra.mxu0 0.0
    %3256 = vmatprep.subr.mxu0 0.0
    %3257 = vmatpush1.xpose.msra.mxu0 0.0
    %3258 = vmatprep.subr.mxu0 0.0
    %3259 = vmatpush1.xpose.msra.mxu0 0.0
    %3260 = vmatprep.subr.mxu0 0.0
    %3261 = vmatpush1.xpose.msra.mxu0 0.0
    %3262 = vmatprep.subr.mxu0 0.0
    %3263 = vmatpush1.xpose.msra.mxu0 0.0
    %3264 = vmatprep.subr.mxu0 0.0
    %3265 = vmatpush1.xpose.msra.mxu0 0.0
    %3266 = vmatprep.subr.mxu0 0.0
    %3267 = vmatpush1.xpose.msra.mxu0 0.0
    %3268 = vmatprep.subr.mxu0 0.0
    %3269 = vmatpush1.xpose.msra.mxu0 0.0
    %3270 = vmatprep.subr.mxu0 0.0
    %3271 = vmatpush1.xpose.msra.mxu0 0.0
    %3272 = vmatprep.subr.mxu0 0.0
    %3273 = vmatpush1.xpose.msra.mxu0 0.0
    %3274 = vmatprep.subr.mxu0 0.0
    %3275 = vmatpush1.xpose.msra.mxu0 0.0
    %3276 = vmatprep.subr.mxu0 0.0
    %3277 = vmatpush1.xpose.msra.mxu0 0.0
    %3278 = vmatprep.subr.mxu0 0.0
    %3279 = vmatpush1.xpose.msra.mxu0 0.0
    %3280 = vmatprep.subr.mxu0 0.0
    %3281 = vmatpush1.xpose.msra.mxu0 0.0
    %3282 = vmatprep.subr.mxu0 0.0
    %3283 = vmatpush1.xpose.msra.mxu0 0.0
    %3284 = vmatprep.subr.mxu0 0.0
    %3285 = vmatpush1.xpose.msra.mxu0 0.0
    %3286 = vmatprep.subr.mxu0 0.0
    %3287 = vmatpush1.xpose.msra.mxu0 0.0
    %3288 = vmatprep.subr.mxu0 0.0
    %3289 = vmatpush1.xpose.msra.mxu0 0.0
    %3290 = vmatprep.mubr.f32.mxu0 0.0
    %3291 = vmatmul.mubr.f32.gmra.mrb[0].mxu0 %v3222
    %v3292 = vpop.f32.mrb[0].mxu0
    %v3293 = vadd.f32 0.0, %v3292
    %v3294 = vpop.f32.mrb[0].mxu0
    %3295 = vdwg.mxu0
    %v3296 = vmul.f32 %v3059, 0.25
    %v3297 = vmul.f32 %v3137, 0.25
    %v3298 = vmul.f32 %v3215, 0.25
    %v3299 = vmul.f32 %v3293, 0.25
    %v3300 = vadd.f32 %v3296, %v562
    %v3301 = vadd.f32 %v3297, %v566
    %v3302 = vadd.f32 %v3298, %v570
    %v3303 = vadd.f32 %v3299, %v574
    %v3304 = vsel %vm583, %v3300, -inf
    %3305 = vmax.xlane.f32.xlu0 %v3304
    %v3306 = vpop.xlane.xlu0 %3305
    %v3307 = vsel %vm583, %v3301, -inf
    %3308 = vmax.xlane.f32.xlu0 %v3307
    %v3309 = vpop.xlane.xlu0 %3308
    %v3310 = vsel %vm583, %v3302, -inf
    %3311 = vmax.xlane.f32.xlu0 %v3310
    %v3312 = vpop.xlane.xlu0 %3311
    %v3313 = vsel %vm583, %v3303, -inf
    %3314 = vmax.xlane.f32.xlu0 %v3313
    %v3315 = vpop.xlane.xlu0 %3314
    %v3316 = vsub.f32 %v3300, %v3306
    %v3317 = vsub.f32 %v3301, %v3309
    %v3318 = vsub.f32 %v3302, %v3312
    %v3319 = vsub.f32 %v3303, %v3315
    %v3320 = vmul.f32 %v3316, 1.442695
    %v3321 = vpow.pop %v3320
    %v3322 = vmul.f32 %v3317, 1.442695
    %v3323 = vpow.pop %v3322
    %v3324 = vmul.f32 %v3318, 1.442695
    %v3325 = vpow.pop %v3324
    %v3326 = vmul.f32 %v3319, 1.442695
    %v3327 = vpow.pop %v3326
    %v3328 = vsel %vm583, %v3321, 0.0
    %3329 = vadd.xlane.f32.xlu0 %v3328
    %v3330 = vpop.xlane.xlu0 %3329
    %v3331 = vsel %vm583, %v3323, 0.0
    %3332 = vadd.xlane.f32.xlu0 %v3331
    %v3333 = vpop.xlane.xlu0 %3332
    %v3334 = vsel %vm583, %v3325, 0.0
    %3335 = vadd.xlane.f32.xlu0 %v3334
    %v3336 = vpop.xlane.xlu0 %3335
    %v3337 = vsel %vm583, %v3327, 0.0
    %3338 = vadd.xlane.f32.xlu0 %v3337
    %v3339 = vpop.xlane.xlu0 %3338
    %v3340 = vrcp.pop %v3330
    %v3341 = vrcp.pop %v3333
    %v3342 = vrcp.pop %v3336
    %v3343 = vrcp.pop %v3339
    %v3344 = vmul.f32 %v3321, %v3340
    %v3345 = vmul.f32 %v3323, %v3341
    %v3346 = vmul.f32 %v3325, %v3342
    %v3347 = vmul.f32 %v3327, %v3343
    %3348 = vrot.lane.b32.xlu0 %v2302, 48
    %v3349 = vpop.permute.xlu0 %3348
    %v3352 = vsel %vm583, %v3344, 0
    %3354 = vmatprep.subr.mxu0 0.0
    %3355 = vmatpush1.msra.mxu0 %v3349
    %3356 = vmatprep.subr.mxu0 0.0
    %3357 = vmatpush1.msra.mxu0 0.0
    %3358 = vmatprep.subr.mxu0 0.0
    %3359 = vmatpush1.msra.mxu0 0.0
    %3360 = vmatprep.subr.mxu0 0.0
    %3361 = vmatpush1.msra.mxu0 0.0
    %3362 = vmatprep.subr.mxu0 0.0
    %3363 = vmatpush1.msra.mxu0 0.0
    %3364 = vmatprep.subr.mxu0 0.0
    %3365 = vmatpush1.msra.mxu0 0.0
    %3366 = vmatprep.subr.mxu0 0.0
    %3367 = vmatpush1.msra.mxu0 0.0
    %3368 = vmatprep.subr.mxu0 0.0
    %3369 = vmatpush1.msra.mxu0 0.0
    %3370 = vmatprep.subr.mxu0 0.0
    %3371 = vmatpush1.msra.mxu0 0.0
    %3372 = vmatprep.subr.mxu0 0.0
    %3373 = vmatpush1.msra.mxu0 0.0
    %3374 = vmatprep.subr.mxu0 0.0
    %3375 = vmatpush1.msra.mxu0 0.0
    %3376 = vmatprep.subr.mxu0 0.0
    %3377 = vmatpush1.msra.mxu0 0.0
    %3378 = vmatprep.subr.mxu0 0.0
    %3379 = vmatpush1.msra.mxu0 0.0
    %3380 = vmatprep.subr.mxu0 0.0
    %3381 = vmatpush1.msra.mxu0 0.0
    %3382 = vmatprep.subr.mxu0 0.0
    %3383 = vmatpush1.msra.mxu0 0.0
    %3384 = vmatprep.subr.mxu0 0.0
    %3385 = vmatpush1.msra.mxu0 0.0
    %3386 = vmatprep.subr.mxu0 0.0
    %3387 = vmatpush1.msra.mxu0 0.0
    %3388 = vmatprep.subr.mxu0 0.0
    %3389 = vmatpush1.msra.mxu0 0.0
    %3390 = vmatprep.subr.mxu0 0.0
    %3391 = vmatpush1.msra.mxu0 0.0
    %3392 = vmatprep.subr.mxu0 0.0
    %3393 = vmatpush1.msra.mxu0 0.0
    %3394 = vmatprep.subr.mxu0 0.0
    %3395 = vmatpush1.msra.mxu0 0.0
    %3396 = vmatprep.subr.mxu0 0.0
    %3397 = vmatpush1.msra.mxu0 0.0
    %3398 = vmatprep.subr.mxu0 0.0
    %3399 = vmatpush1.msra.mxu0 0.0
    %3400 = vmatprep.subr.mxu0 0.0
    %3401 = vmatpush1.msra.mxu0 0.0
    %3402 = vmatprep.subr.mxu0 0.0
    %3403 = vmatpush1.msra.mxu0 0.0
    %3404 = vmatprep.subr.mxu0 0.0
    %3405 = vmatpush1.msra.mxu0 0.0
    %3406 = vmatprep.subr.mxu0 0.0
    %3407 = vmatpush1.msra.mxu0 0.0
    %3408 = vmatprep.subr.mxu0 0.0
    %3409 = vmatpush1.msra.mxu0 0.0
    %3410 = vmatprep.subr.mxu0 0.0
    %3411 = vmatpush1.msra.mxu0 0.0
    %3412 = vmatprep.subr.mxu0 0.0
    %3413 = vmatpush1.msra.mxu0 0.0
    %3414 = vmatprep.subr.mxu0 0.0
    %3415 = vmatpush1.msra.mxu0 0.0
    %3416 = vmatprep.subr.mxu0 0.0
    %3417 = vmatpush1.msra.mxu0 0.0
    %3418 = vmatprep.mubr.f32.mxu0 0.0
    %3419 = vmatmul.mubr.f32.gmra.mrb[0].mxu0 %v3352
    %v3420 = vpop.f32.mrb[0].mxu0
    %v3421 = vadd.f32 0.0, %v3420
    %v3422 = vpop.f32.mrb[0].mxu0
    %3423 = vdwg.mxu0
    %3424 = vrot.lane.b32.xlu0 %v2307, 48
    %v3425 = vpop.permute.xlu0 %3424
    %v3428 = vsel %vm583, %v3345, 0
    %3430 = vmatprep.subr.mxu0 0.0
    %3431 = vmatpush1.msra.mxu0 %v3425
    %3432 = vmatprep.subr.mxu0 0.0
    %3433 = vmatpush1.msra.mxu0 0.0
    %3434 = vmatprep.subr.mxu0 0.0
    %3435 = vmatpush1.msra.mxu0 0.0
    %3436 = vmatprep.subr.mxu0 0.0
    %3437 = vmatpush1.msra.mxu0 0.0
    %3438 = vmatprep.subr.mxu0 0.0
    %3439 = vmatpush1.msra.mxu0 0.0
    %3440 = vmatprep.subr.mxu0 0.0
    %3441 = vmatpush1.msra.mxu0 0.0
    %3442 = vmatprep.subr.mxu0 0.0
    %3443 = vmatpush1.msra.mxu0 0.0
    %3444 = vmatprep.subr.mxu0 0.0
    %3445 = vmatpush1.msra.mxu0 0.0
    %3446 = vmatprep.subr.mxu0 0.0
    %3447 = vmatpush1.msra.mxu0 0.0
    %3448 = vmatprep.subr.mxu0 0.0
    %3449 = vmatpush1.msra.mxu0 0.0
    %3450 = vmatprep.subr.mxu0 0.0
    %3451 = vmatpush1.msra.mxu0 0.0
    %3452 = vmatprep.subr.mxu0 0.0
    %3453 = vmatpush1.msra.mxu0 0.0
    %3454 = vmatprep.subr.mxu0 0.0
    %3455 = vmatpush1.msra.mxu0 0.0
    %3456 = vmatprep.subr.mxu0 0.0
    %3457 = vmatpush1.msra.mxu0 0.0
    %3458 = vmatprep.subr.mxu0 0.0
    %3459 = vmatpush1.msra.mxu0 0.0
    %3460 = vmatprep.subr.mxu0 0.0
    %3461 = vmatpush1.msra.mxu0 0.0
    %3462 = vmatprep.subr.mxu0 0.0
    %3463 = vmatpush1.msra.mxu0 0.0
    %3464 = vmatprep.subr.mxu0 0.0
    %3465 = vmatpush1.msra.mxu0 0.0
    %3466 = vmatprep.subr.mxu0 0.0
    %3467 = vmatpush1.msra.mxu0 0.0
    %3468 = vmatprep.subr.mxu0 0.0
    %3469 = vmatpush1.msra.mxu0 0.0
    %3470 = vmatprep.subr.mxu0 0.0
    %3471 = vmatpush1.msra.mxu0 0.0
    %3472 = vmatprep.subr.mxu0 0.0
    %3473 = vmatpush1.msra.mxu0 0.0
    %3474 = vmatprep.subr.mxu0 0.0
    %3475 = vmatpush1.msra.mxu0 0.0
    %3476 = vmatprep.subr.mxu0 0.0
    %3477 = vmatpush1.msra.mxu0 0.0
    %3478 = vmatprep.subr.mxu0 0.0
    %3479 = vmatpush1.msra.mxu0 0.0
    %3480 = vmatprep.subr.mxu0 0.0
    %3481 = vmatpush1.msra.mxu0 0.0
    %3482 = vmatprep.subr.mxu0 0.0
    %3483 = vmatpush1.msra.mxu0 0.0
    %3484 = vmatprep.subr.mxu0 0.0
    %3485 = vmatpush1.msra.mxu0 0.0
    %3486 = vmatprep.subr.mxu0 0.0
    %3487 = vmatpush1.msra.mxu0 0.0
    %3488 = vmatprep.subr.mxu0 0.0
    %3489 = vmatpush1.msra.mxu0 0.0
    %3490 = vmatprep.subr.mxu0 0.0
    %3491 = vmatpush1.msra.mxu0 0.0
    %3492 = vmatprep.subr.mxu0 0.0
    %3493 = vmatpush1.msra.mxu0 0.0
    %3494 = vmatprep.mubr.f32.mxu0 0.0
    %3495 = vmatmul.mubr.f32.gmra.mrb[0].mxu0 %v3428
    %v3496 = vpop.f32.mrb[0].mxu0
    %v3497 = vadd.f32 0.0, %v3496
    %v3498 = vpop.f32.mrb[0].mxu0
    %3499 = vdwg.mxu0
    %3500 = vrot.lane.b32.xlu0 %v2312, 48
    %v3501 = vpop.permute.xlu0 %3500
    %v3504 = vsel %vm583, %v3346, 0
    %3506 = vmatprep.subr.mxu0 0.0
    %3507 = vmatpush1.msra.mxu0 %v3501
    %3508 = vmatprep.subr.mxu0 0.0
    %3509 = vmatpush1.msra.mxu0 0.0
    %3510 = vmatprep.subr.mxu0 0.0
    %3511 = vmatpush1.msra.mxu0 0.0
    %3512 = vmatprep.subr.mxu0 0.0
    %3513 = vmatpush1.msra.mxu0 0.0
    %3514 = vmatprep.subr.mxu0 0.0
    %3515 = vmatpush1.msra.mxu0 0.0
    %3516 = vmatprep.subr.mxu0 0.0
    %3517 = vmatpush1.msra.mxu0 0.0
    %3518 = vmatprep.subr.mxu0 0.0
    %3519 = vmatpush1.msra.mxu0 0.0
    %3520 = vmatprep.subr.mxu0 0.0
    %3521 = vmatpush1.msra.mxu0 0.0
    %3522 = vmatprep.subr.mxu0 0.0
    %3523 = vmatpush1.msra.mxu0 0.0
    %3524 = vmatprep.subr.mxu0 0.0
    %3525 = vmatpush1.msra.mxu0 0.0
    %3526 = vmatprep.subr.mxu0 0.0
    %3527 = vmatpush1.msra.mxu0 0.0
    %3528 = vmatprep.subr.mxu0 0.0
    %3529 = vmatpush1.msra.mxu0 0.0
    %3530 = vmatprep.subr.mxu0 0.0
    %3531 = vmatpush1.msra.mxu0 0.0
    %3532 = vmatprep.subr.mxu0 0.0
    %3533 = vmatpush1.msra.mxu0 0.0
    %3534 = vmatprep.subr.mxu0 0.0
    %3535 = vmatpush1.msra.mxu0 0.0
    %3536 = vmatprep.subr.mxu0 0.0
    %3537 = vmatpush1.msra.mxu0 0.0
    %3538 = vmatprep.subr.mxu0 0.0
    %3539 = vmatpush1.msra.mxu0 0.0
    %3540 = vmatprep.subr.mxu0 0.0
    %3541 = vmatpush1.msra.mxu0 0.0
    %3542 = vmatprep.subr.mxu0 0.0
    %3543 = vmatpush1.msra.mxu0 0.0
    %3544 = vmatprep.subr.mxu0 0.0
    %3545 = vmatpush1.msra.mxu0 0.0
    %3546 = vmatprep.subr.mxu0 0.0
    %3547 = vmatpush1.msra.mxu0 0.0
    %3548 = vmatprep.subr.mxu0 0.0
    %3549 = vmatpush1.msra.mxu0 0.0
    %3550 = vmatprep.subr.mxu0 0.0
    %3551 = vmatpush1.msra.mxu0 0.0
    %3552 = vmatprep.subr.mxu0 0.0
    %3553 = vmatpush1.msra.mxu0 0.0
    %3554 = vmatprep.subr.mxu0 0.0
    %3555 = vmatpush1.msra.mxu0 0.0
    %3556 = vmatprep.subr.mxu0 0.0
    %3557 = vmatpush1.msra.mxu0 0.0
    %3558 = vmatprep.subr.mxu0 0.0
    %3559 = vmatpush1.msra.mxu0 0.0
    %3560 = vmatprep.subr.mxu0 0.0
    %3561 = vmatpush1.msra.mxu0 0.0
    %3562 = vmatprep.subr.mxu0 0.0
    %3563 = vmatpush1.msra.mxu0 0.0
    %3564 = vmatprep.subr.mxu0 0.0
    %3565 = vmatpush1.msra.mxu0 0.0
    %3566 = vmatprep.subr.mxu0 0.0
    %3567 = vmatpush1.msra.mxu0 0.0
    %3568 = vmatprep.subr.mxu0 0.0
    %3569 = vmatpush1.msra.mxu0 0.0
    %3570 = vmatprep.mubr.f32.mxu0 0.0
    %3571 = vmatmul.mubr.f32.gmra.mrb[0].mxu0 %v3504
    %v3572 = vpop.f32.mrb[0].mxu0
    %v3573 = vadd.f32 0.0, %v3572
    %v3574 = vpop.f32.mrb[0].mxu0
    %3575 = vdwg.mxu0
    %3576 = vrot.lane.b32.xlu0 %v2317, 48
    %v3577 = vpop.permute.xlu0 %3576
    %v3580 = vsel %vm583, %v3347, 0
    %3582 = vmatprep.subr.mxu0 0.0
    %3583 = vmatpush1.msra.mxu0 %v3577
    %3584 = vmatprep.subr.mxu0 0.0
    %3585 = vmatpush1.msra.mxu0 0.0
    %3586 = vmatprep.subr.mxu0 0.0
    %3587 = vmatpush1.msra.mxu0 0.0
    %3588 = vmatprep.subr.mxu0 0.0
    %3589 = vmatpush1.msra.mxu0 0.0
    %3590 = vmatprep.subr.mxu0 0.0
    %3591 = vmatpush1.msra.mxu0 0.0
    %3592 = vmatprep.subr.mxu0 0.0
    %3593 = vmatpush1.msra.mxu0 0.0
    %3594 = vmatprep.subr.mxu0 0.0
    %3595 = vmatpush1.msra.mxu0 0.0
    %3596 = vmatprep.subr.mxu0 0.0
    %3597 = vmatpush1.msra.mxu0 0.0
    %3598 = vmatprep.subr.mxu0 0.0
    %3599 = vmatpush1.msra.mxu0 0.0
    %3600 = vmatprep.subr.mxu0 0.0
    %3601 = vmatpush1.msra.mxu0 0.0
    %3602 = vmatprep.subr.mxu0 0.0
    %3603 = vmatpush1.msra.mxu0 0.0
    %3604 = vmatprep.subr.mxu0 0.0
    %3605 = vmatpush1.msra.mxu0 0.0
    %3606 = vmatprep.subr.mxu0 0.0
    %3607 = vmatpush1.msra.mxu0 0.0
    %3608 = vmatprep.subr.mxu0 0.0
    %3609 = vmatpush1.msra.mxu0 0.0
    %3610 = vmatprep.subr.mxu0 0.0
    %3611 = vmatpush1.msra.mxu0 0.0
    %3612 = vmatprep.subr.mxu0 0.0
    %3613 = vmatpush1.msra.mxu0 0.0
    %3614 = vmatprep.subr.mxu0 0.0
    %3615 = vmatpush1.msra.mxu0 0.0
    %3616 = vmatprep.subr.mxu0 0.0
    %3617 = vmatpush1.msra.mxu0 0.0
    %3618 = vmatprep.subr.mxu0 0.0
    %3619 = vmatpush1.msra.mxu0 0.0
    %3620 = vmatprep.subr.mxu0 0.0
    %3621 = vmatpush1.msra.mxu0 0.0
    %3622 = vmatprep.subr.mxu0 0.0
    %3623 = vmatpush1.msra.mxu0 0.0
    %3624 = vmatprep.subr.mxu0 0.0
    %3625 = vmatpush1.msra.mxu0 0.0
    %3626 = vmatprep.subr.mxu0 0.0
    %3627 = vmatpush1.msra.mxu0 0.0
    %3628 = vmatprep.subr.mxu0 0.0
    %3629 = vmatpush1.msra.mxu0 0.0
    %3630 = vmatprep.subr.mxu0 0.0
    %3631 = vmatpush1.msra.mxu0 0.0
    %3632 = vmatprep.subr.mxu0 0.0
    %3633 = vmatpush1.msra.mxu0 0.0
    %3634 = vmatprep.subr.mxu0 0.0
    %3635 = vmatpush1.msra.mxu0 0.0
    %3636 = vmatprep.subr.mxu0 0.0
    %3637 = vmatpush1.msra.mxu0 0.0
    %3638 = vmatprep.subr.mxu0 0.0
    %3639 = vmatpush1.msra.mxu0 0.0
    %3640 = vmatprep.subr.mxu0 0.0
    %3641 = vmatpush1.msra.mxu0 0.0
    %3642 = vmatprep.subr.mxu0 0.0
    %3643 = vmatpush1.msra.mxu0 0.0
    %3644 = vmatprep.subr.mxu0 0.0
    %3645 = vmatpush1.msra.mxu0 0.0
    %3646 = vmatprep.mubr.f32.mxu0 0.0
    %3647 = vmatmul.mubr.f32.gmra.mrb[0].mxu0 %v3580
    %v3648 = vpop.f32.mrb[0].mxu0
    %v3649 = vadd.f32 0.0, %v3648
    %v3650 = vpop.f32.mrb[0].mxu0
    %3651 = vdwg.mxu0
    %v3653 = vsel %vm245, %v3421, 0
    %v3656 = vsel %vm245, %v3497, 0
    %v3659 = vsel %vm245, %v3573, 0
    %v3662 = vsel %vm245, %v3649, 0
    %3664 = vmatprep.subr.mxu0 0.0
    %3665 = vmatpush1.msra.mxu0 %v2197
    %3666 = vmatprep.subr.mxu0 0.0
    %3667 = vmatpush1.msra.mxu0 %v2198
    %3668 = vmatprep.subr.mxu0 0.0
    %3669 = vmatpush1.msra.mxu0 0.0
    %3670 = vmatprep.subr.mxu0 0.0
    %3671 = vmatpush1.msra.mxu0 0.0
    %3672 = vmatprep.subr.mxu0 0.0
    %3673 = vmatpush1.msra.mxu0 0.0
    %3674 = vmatprep.subr.mxu0 0.0
    %3675 = vmatpush1.msra.mxu0 0.0
    %3676 = vmatprep.subr.mxu0 0.0
    %3677 = vmatpush1.msra.mxu0 0.0
    %3678 = vmatprep.subr.mxu0 0.0
    %3679 = vmatpush1.msra.mxu0 0.0
    %3680 = vmatprep.subr.mxu0 0.0
    %3681 = vmatpush1.msra.mxu0 0.0
    %3682 = vmatprep.subr.mxu0 0.0
    %3683 = vmatpush1.msra.mxu0 0.0
    %3684 = vmatprep.subr.mxu0 0.0
    %3685 = vmatpush1.msra.mxu0 0.0
    %3686 = vmatprep.subr.mxu0 0.0
    %3687 = vmatpush1.msra.mxu0 0.0
    %3688 = vmatprep.subr.mxu0 0.0
    %3689 = vmatpush1.msra.mxu0 0.0
    %3690 = vmatprep.subr.mxu0 0.0
    %3691 = vmatpush1.msra.mxu0 0.0
    %3692 = vmatprep.subr.mxu0 0.0
    %3693 = vmatpush1.msra.mxu0 0.0
    %3694 = vmatprep.subr.mxu0 0.0
    %3695 = vmatpush1.msra.mxu0 0.0
    %3696 = vmatprep.subr.mxu0 0.0
    %3697 = vmatpush1.msra.mxu0 0.0
    %3698 = vmatprep.subr.mxu0 0.0
    %3699 = vmatpush1.msra.mxu0 0.0
    %3700 = vmatprep.subr.mxu0 0.0
    %3701 = vmatpush1.msra.mxu0 0.0
    %3702 = vmatprep.subr.mxu0 0.0
    %3703 = vmatpush1.msra.mxu0 0.0
    %3704 = vmatprep.subr.mxu0 0.0
    %3705 = vmatpush1.msra.mxu0 0.0
    %3706 = vmatprep.subr.mxu0 0.0
    %3707 = vmatpush1.msra.mxu0 0.0
    %3708 = vmatprep.subr.mxu0 0.0
    %3709 = vmatpush1.msra.mxu0 0.0
    %3710 = vmatprep.subr.mxu0 0.0
    %3711 = vmatpush1.msra.mxu0 0.0
    %3712 = vmatprep.subr.mxu0 0.0
    %3713 = vmatpush1.msra.mxu0 0.0
    %3714 = vmatprep.subr.mxu0 0.0
    %3715 = vmatpush1.msra.mxu0 0.0
    %3716 = vmatprep.subr.mxu0 0.0
    %3717 = vmatpush1.msra.mxu0 0.0
    %3718 = vmatprep.subr.mxu0 0.0
    %3719 = vmatpush1.msra.mxu0 0.0
    %3720 = vmatprep.subr.mxu0 0.0
    %3721 = vmatpush1.msra.mxu0 0.0
    %3722 = vmatprep.subr.mxu0 0.0
    %3723 = vmatpush1.msra.mxu0 0.0
    %3724 = vmatprep.subr.mxu0 0.0
    %3725 = vmatpush1.msra.mxu0 0.0
    %3726 = vmatprep.subr.mxu0 0.0
    %3727 = vmatpush1.msra.mxu0 0.0
    %3728 = vmatprep.mubr.f32.mxu0 0.0
    %3729 = vmatmul.mubr.f32.gmra.mrb[0].mxu0 %v3653
    %v3730 = vpop.f32.mrb[0].mxu0
    %v3731 = vadd.f32 0.0, %v3730
    %v3732 = vpop.f32.mrb[0].mxu0
    %3733 = vmatprep.mubr.f32.mxu0 0.0
    %3734 = vmatmul.mubr.f32.gmra.mrb[0].mxu0 %v3656
    %v3735 = vpop.f32.mrb[0].mxu0
    %v3736 = vadd.f32 0.0, %v3735
    %v3737 = vpop.f32.mrb[0].mxu0
    %3738 = vmatprep.mubr.f32.mxu0 0.0
    %3739 = vmatmul.mubr.f32.gmra.mrb[0].mxu0 %v3659
    %v3740 = vpop.f32.mrb[0].mxu0
    %v3741 = vadd.f32 0.0, %v3740
    %v3742 = vpop.f32.mrb[0].mxu0
    %3743 = vmatprep.mubr.f32.mxu0 0.0
    %3744 = vmatmul.mubr.f32.gmra.mrb[0].mxu0 %v3662
    %v3745 = vpop.f32.mrb[0].mxu0
    %v3746 = vadd.f32 0.0, %v3745
    %v3747 = vpop.f32.mrb[0].mxu0
    %3748 = vdwg.mxu0
    %v3750 = vsel %vm245, %v2753, 0
    %v3753 = vsel %vm245, %v2829, 0
    %v3756 = vsel %vm245, %v2905, 0
    %v3759 = vsel %vm245, %v2981, 0
    %3761 = vmatprep.subr.mxu0 0.0
    %3762 = vmatpush1.msra.mxu0 %v2195
    %3763 = vmatprep.subr.mxu0 0.0
    %3764 = vmatpush1.msra.mxu0 %v2196
    %3765 = vmatprep.subr.mxu0 0.0
    %3766 = vmatpush1.msra.mxu0 0.0
    %3767 = vmatprep.subr.mxu0 0.0
    %3768 = vmatpush1.msra.mxu0 0.0
    %3769 = vmatprep.subr.mxu0 0.0
    %3770 = vmatpush1.msra.mxu0 0.0
    %3771 = vmatprep.subr.mxu0 0.0
    %3772 = vmatpush1.msra.mxu0 0.0
    %3773 = vmatprep.subr.mxu0 0.0
    %3774 = vmatpush1.msra.mxu0 0.0
    %3775 = vmatprep.subr.mxu0 0.0
    %3776 = vmatpush1.msra.mxu0 0.0
    %3777 = vmatprep.subr.mxu0 0.0
    %3778 = vmatpush1.msra.mxu0 0.0
    %3779 = vmatprep.subr.mxu0 0.0
    %3780 = vmatpush1.msra.mxu0 0.0
    %3781 = vmatprep.subr.mxu0 0.0
    %3782 = vmatpush1.msra.mxu0 0.0
    %3783 = vmatprep.subr.mxu0 0.0
    %3784 = vmatpush1.msra.mxu0 0.0
    %3785 = vmatprep.subr.mxu0 0.0
    %3786 = vmatpush1.msra.mxu0 0.0
    %3787 = vmatprep.subr.mxu0 0.0
    %3788 = vmatpush1.msra.mxu0 0.0
    %3789 = vmatprep.subr.mxu0 0.0
    %3790 = vmatpush1.msra.mxu0 0.0
    %3791 = vmatprep.subr.mxu0 0.0
    %3792 = vmatpush1.msra.mxu0 0.0
    %3793 = vmatprep.subr.mxu0 0.0
    %3794 = vmatpush1.msra.mxu0 0.0
    %3795 = vmatprep.subr.mxu0 0.0
    %3796 = vmatpush1.msra.mxu0 0.0
    %3797 = vmatprep.subr.mxu0 0.0
    %3798 = vmatpush1.msra.mxu0 0.0
    %3799 = vmatprep.subr.mxu0 0.0
    %3800 = vmatpush1.msra.mxu0 0.0
    %3801 = vmatprep.subr.mxu0 0.0
    %3802 = vmatpush1.msra.mxu0 0.0
    %3803 = vmatprep.subr.mxu0 0.0
    %3804 = vmatpush1.msra.mxu0 0.0
    %3805 = vmatprep.subr.mxu0 0.0
    %3806 = vmatpush1.msra.mxu0 0.0
    %3807 = vmatprep.subr.mxu0 0.0
    %3808 = vmatpush1.msra.mxu0 0.0
    %3809 = vmatprep.subr.mxu0 0.0
    %3810 = vmatpush1.msra.mxu0 0.0
    %3811 = vmatprep.subr.mxu0 0.0
    %3812 = vmatpush1.msra.mxu0 0.0
    %3813 = vmatprep.subr.mxu0 0.0
    %3814 = vmatpush1.msra.mxu0 0.0
    %3815 = vmatprep.subr.mxu0 0.0
    %3816 = vmatpush1.msra.mxu0 0.0
    %3817 = vmatprep.subr.mxu0 0.0
    %3818 = vmatpush1.msra.mxu0 0.0
    %3819 = vmatprep.subr.mxu0 0.0
    %3820 = vmatpush1.msra.mxu0 0.0
    %3821 = vmatprep.subr.mxu0 0.0
    %3822 = vmatpush1.msra.mxu0 0.0
    %3823 = vmatprep.subr.mxu0 0.0
    %3824 = vmatpush1.msra.mxu0 0.0
    %3825 = vmatprep.mubr.f32.mxu0 0.0
    %3826 = vmatmul.mubr.f32.gmra.mrb[0].mxu0 %v3750
    %v3827 = vpop.f32.mrb[0].mxu0
    %v3828 = vadd.f32 %v3731, %v3827
    %v3829 = vpop.f32.mrb[0].mxu0
    %3830 = vmatprep.mubr.f32.mxu0 0.0
    %3831 = vmatmul.mubr.f32.gmra.mrb[0].mxu0 %v3753
    %v3832 = vpop.f32.mrb[0].mxu0
    %v3833 = vadd.f32 %v3736, %v3832
    %v3834 = vpop.f32.mrb[0].mxu0
    %3835 = vmatprep.mubr.f32.mxu0 0.0
    %3836 = vmatmul.mubr.f32.gmra.mrb[0].mxu0 %v3756
    %v3837 = vpop.f32.mrb[0].mxu0
    %v3838 = vadd.f32 %v3741, %v3837
    %v3839 = vpop.f32.mrb[0].mxu0
    %3840 = vmatprep.mubr.f32.mxu0 0.0
    %3841 = vmatmul.mubr.f32.gmra.mrb[0].mxu0 %v3759
    %v3842 = vpop.f32.mrb[0].mxu0
    %v3843 = vadd.f32 %v3746, %v3842
    %v3844 = vpop.f32.mrb[0].mxu0
    %3845 = vdwg.mxu0
    %v3846 = vlaneseq
    %v3847 = vshrl.u32 %v3846, 7
    %v3848 = vsub.s32 0, %v3847
    %v3849 = vrot.slane %v2216, %v3848
    %v3850 = vadd.f32 %v3828, %v3849
    %v3851 = vadd.f32 %v3833, %v3849
    %v3852 = vadd.f32 %v3838, %v3849
    %v3853 = vadd.f32 %v3843, %v3849
    %v3854 = vadd.f32 %v2183, %v3850
    %v3855 = vadd.f32 %v2184, %v3851
    %v3856 = vadd.f32 %v2185, %v3852
    %v3857 = vadd.f32 %v2186, %v3853
    %v3858 = vsel %vm42, %v3854, 0.0
    %3859 = vadd.xlane.f32.xlu0 %v3858
    %v3860 = vpop.xlane.xlu0 %3859
    %v3861 = vsel %vm42, %v3855, 0.0
    %3862 = vadd.xlane.f32.xlu0 %v3861
    %v3863 = vpop.xlane.xlu0 %3862
    %v3864 = vsel %vm42, %v3856, 0.0
    %3865 = vadd.xlane.f32.xlu0 %v3864
    %v3866 = vpop.xlane.xlu0 %3865
    %v3867 = vsel %vm42, %v3857, 0.0
    %3868 = vadd.xlane.f32.xlu0 %v3867
    %v3869 = vpop.xlane.xlu0 %3868
    %v3870 = vmul.f32 %v3860, %v55
    %v3871 = vmul.f32 %v3863, %v55
    %v3872 = vmul.f32 %v3866, %v55
    %v3873 = vmul.f32 %v3869, %v55
    %v3874 = vsub.f32 %v3854, %v3870
    %v3875 = vsub.f32 %v3855, %v3871
    %v3876 = vsub.f32 %v3856, %v3872
    %v3877 = vsub.f32 %v3857, %v3873
    %v3878 = vmul.f32 %v3874, %v3874
    %v3879 = vmul.f32 %v3875, %v3875
    %v3880 = vmul.f32 %v3876, %v3876
    %v3881 = vmul.f32 %v3877, %v3877
    %v3882 = vsel %vm42, %v3878, 0.0
    %3883 = vadd.xlane.f32.xlu0 %v3882
    %v3884 = vpop.xlane.xlu0 %3883
    %v3885 = vsel %vm42, %v3879, 0.0
    %3886 = vadd.xlane.f32.xlu0 %v3885
    %v3887 = vpop.xlane.xlu0 %3886
    %v3888 = vsel %vm42, %v3880, 0.0
    %3889 = vadd.xlane.f32.xlu0 %v3888
    %v3890 = vpop.xlane.xlu0 %3889
    %v3891 = vsel %vm42, %v3881, 0.0
    %3892 = vadd.xlane.f32.xlu0 %v3891
    %v3893 = vpop.xlane.xlu0 %3892
    %v3894 = vmul.f32 %v3884, %v55
    %v3895 = vmul.f32 %v3887, %v55
    %v3896 = vmul.f32 %v3890, %v55
    %v3897 = vmul.f32 %v3893, %v55
    %v3898 = vadd.f32 %v3894, 1e-12
    %v3899 = vadd.f32 %v3895, 1e-12
    %v3900 = vadd.f32 %v3896, 1e-12
    %v3901 = vadd.f32 %v3897, 1e-12
    %v3902 = vrsqrt.pop %v3898
    %v3903 = vrsqrt.pop %v3899
    %v3904 = vrsqrt.pop %v3900
    %v3905 = vrsqrt.pop %v3901
    %v3906 = vmul.f32 %v3874, %v3902
    %v3907 = vmul.f32 %v3875, %v3903
    %v3908 = vmul.f32 %v3876, %v3904
    %v3909 = vmul.f32 %v3877, %v3905
    %v3910 = vlaneseq
    %v3911 = vshrl.u32 %v3910, 7
    %v3912 = vsub.s32 2, %v3911
    %v3913 = vrot.slane %v2216, %v3912
    %v3914 = vmul.f32 %v3906, %v3913
    %v3915 = vmul.f32 %v3907, %v3913
    %v3916 = vmul.f32 %v3908, %v3913
    %v3917 = vmul.f32 %v3909, %v3913
    %v3918 = vlaneseq
    %v3919 = vshrl.u32 %v3918, 7
    %v3920 = vsub.s32 3, %v3919
    %v3921 = vrot.slane %v2216, %v3920
    %v3922 = vadd.f32 %v3914, %v3921
    %v3923 = vadd.f32 %v3915, %v3921
    %v3924 = vadd.f32 %v3916, %v3921
    %v3925 = vadd.f32 %v3917, %v3921
    %v3927 = vlaneseq
    %v3928 = vshrl.u32 %v3927, 7
    %v3929 = vsub.s32 0, %v3928
    %v3930 = vrot.slane %v2205, %v3929
    %v3933 = vsel %vm42, %v3922, 0
    %v3936 = vsel %vm42, %v3923, 0
    %v3939 = vsel %vm42, %v3924, 0
    %v3942 = vsel %vm42, %v3925, 0
    %3944 = vmatprep.subr.mxu0 0.0
    %3945 = vmatpush1.msra.mxu0 %v2200
    %3946 = vmatprep.subr.mxu0 0.0
    %3947 = vmatpush1.msra.mxu0 %v2201
    %3948 = vmatprep.subr.mxu0 0.0
    %3949 = vmatpush1.msra.mxu0 %v2202
    %3950 = vmatprep.subr.mxu0 0.0
    %3951 = vmatpush1.msra.mxu0 %v2203
    %3952 = vmatprep.subr.mxu0 0.0
    %3953 = vmatpush1.msra.mxu0 0.0
    %3954 = vmatprep.subr.mxu0 0.0
    %3955 = vmatpush1.msra.mxu0 0.0
    %3956 = vmatprep.subr.mxu0 0.0
    %3957 = vmatpush1.msra.mxu0 0.0
    %3958 = vmatprep.subr.mxu0 0.0
    %3959 = vmatpush1.msra.mxu0 0.0
    %3960 = vmatprep.subr.mxu0 0.0
    %3961 = vmatpush1.msra.mxu0 0.0
    %3962 = vmatprep.subr.mxu0 0.0
    %3963 = vmatpush1.msra.mxu0 0.0
    %3964 = vmatprep.subr.mxu0 0.0
    %3965 = vmatpush1.msra.mxu0 0.0
    %3966 = vmatprep.subr.mxu0 0.0
    %3967 = vmatpush1.msra.mxu0 0.0
    %3968 = vmatprep.subr.mxu0 0.0
    %3969 = vmatpush1.msra.mxu0 0.0
    %3970 = vmatprep.subr.mxu0 0.0
    %3971 = vmatpush1.msra.mxu0 0.0
    %3972 = vmatprep.subr.mxu0 0.0
    %3973 = vmatpush1.msra.mxu0 0.0
    %3974 = vmatprep.subr.mxu0 0.0
    %3975 = vmatpush1.msra.mxu0 0.0
    %3976 = vmatprep.subr.mxu0 0.0
    %3977 = vmatpush1.msra.mxu0 0.0
    %3978 = vmatprep.subr.mxu0 0.0
    %3979 = vmatpush1.msra.mxu0 0.0
    %3980 = vmatprep.subr.mxu0 0.0
    %3981 = vmatpush1.msra.mxu0 0.0
    %3982 = vmatprep.subr.mxu0 0.0
    %3983 = vmatpush1.msra.mxu0 0.0
    %3984 = vmatprep.subr.mxu0 0.0
    %3985 = vmatpush1.msra.mxu0 0.0
    %3986 = vmatprep.subr.mxu0 0.0
    %3987 = vmatpush1.msra.mxu0 0.0
    %3988 = vmatprep.subr.mxu0 0.0
    %3989 = vmatpush1.msra.mxu0 0.0
    %3990 = vmatprep.subr.mxu0 0.0
    %3991 = vmatpush1.msra.mxu0 0.0
    %3992 = vmatprep.subr.mxu0 0.0
    %3993 = vmatpush1.msra.mxu0 0.0
    %3994 = vmatprep.subr.mxu0 0.0
    %3995 = vmatpush1.msra.mxu0 0.0
    %3996 = vmatprep.subr.mxu0 0.0
    %3997 = vmatpush1.msra.mxu0 0.0
    %3998 = vmatprep.subr.mxu0 0.0
    %3999 = vmatpush1.msra.mxu0 0.0
    %4000 = vmatprep.subr.mxu0 0.0
    %4001 = vmatpush1.msra.mxu0 0.0
    %4002 = vmatprep.subr.mxu0 0.0
    %4003 = vmatpush1.msra.mxu0 0.0
    %4004 = vmatprep.subr.mxu0 0.0
    %4005 = vmatpush1.msra.mxu0 0.0
    %4006 = vmatprep.subr.mxu0 0.0
    %4007 = vmatpush1.msra.mxu0 0.0
    %4008 = vmatprep.mubr.f32.mxu0 0.0
    %4009 = vmatmul.mubr.f32.gmra.mrb[0].mxu0 %v3933
    %v4010 = vpop.f32.mrb[0].mxu0
    %v4011 = vadd.f32 %v3930, %v4010
    %v4012 = vpop.f32.mrb[0].mxu0
    %4013 = vmatprep.mubr.f32.mxu0 0.0
    %4014 = vmatmul.mubr.f32.gmra.mrb[0].mxu0 %v3936
    %v4015 = vpop.f32.mrb[0].mxu0
    %v4016 = vadd.f32 %v3930, %v4015
    %v4017 = vpop.f32.mrb[0].mxu0
    %4018 = vmatprep.mubr.f32.mxu0 0.0
    %4019 = vmatmul.mubr.f32.gmra.mrb[0].mxu0 %v3939
    %v4020 = vpop.f32.mrb[0].mxu0
    %v4021 = vadd.f32 %v3930, %v4020
    %v4022 = vpop.f32.mrb[0].mxu0
    %4023 = vmatprep.mubr.f32.mxu0 0.0
    %4024 = vmatmul.mubr.f32.gmra.mrb[0].mxu0 %v3942
    %v4025 = vpop.f32.mrb[0].mxu0
    %v4026 = vadd.f32 %v3930, %v4025
    %v4027 = vpop.f32.mrb[0].mxu0
    %4028 = vdwg.mxu0
    %v4029 = vmul.f32 %v4011, %v4011
    %v4030 = vmul.f32 %v4016, %v4016
    %v4031 = vmul.f32 %v4021, %v4021
    %v4032 = vmul.f32 %v4026, %v4026
    %v4033 = vmul.f32 %v4011, %v4029
    %v4034 = vmul.f32 %v4016, %v4030
    %v4035 = vmul.f32 %v4021, %v4031
    %v4036 = vmul.f32 %v4026, %v4032
    %v4037 = vmul.f32 %v4033, 0.044715
    %v4038 = vmul.f32 %v4034, 0.044715
    %v4039 = vmul.f32 %v4035, 0.044715
    %v4040 = vmul.f32 %v4036, 0.044715
    %v4041 = vadd.f32 %v4011, %v4037
    %v4042 = vadd.f32 %v4016, %v4038
    %v4043 = vadd.f32 %v4021, %v4039
    %v4044 = vadd.f32 %v4026, %v4040
    %v4045 = vmul.f32 %v4041, 0.7978846
    %v4046 = vmul.f32 %v4042, 0.7978846
    %v4047 = vmul.f32 %v4043, 0.7978846
    %v4048 = vmul.f32 %v4044, 0.7978846
    %v4049 = vtanh.pop %v4045
    %v4050 = vtanh.pop %v4046
    %v4051 = vtanh.pop %v4047
    %v4052 = vtanh.pop %v4048
    %v4053 = vadd.f32 %v4049, 1.0
    %v4054 = vadd.f32 %v4050, 1.0
    %v4055 = vadd.f32 %v4051, 1.0
    %v4056 = vadd.f32 %v4052, 1.0
    %v4057 = vmul.f32 %v4053, 0.5
    %v4058 = vmul.f32 %v4054, 0.5
    %v4059 = vmul.f32 %v4055, 0.5
    %v4060 = vmul.f32 %v4056, 0.5
    %v4061 = vmul.f32 %v4011, %v4057
    %v4062 = vmul.f32 %v4016, %v4058
    %v4063 = vmul.f32 %v4021, %v4059
    %v4064 = vmul.f32 %v4026, %v4060
    %v4065 = vlaneseq
    %v4066 = vshrl.u32 %v4065, 7
    %v4067 = vsub.s32 1, %v4066
    %v4068 = vrot.slane %v2216, %v4067
    %v4070 = vsel %vm2017, %v4061, 0
    %v4073 = vsel %vm2017, %v4062, 0
    %v4076 = vsel %vm2017, %v4063, 0
    %v4079 = vsel %vm2017, %v4064, 0
    %4081 = vmatprep.subr.mxu0 0.0
    %4082 = vmatpush1.msra.mxu0 %v2207
    %4083 = vmatprep.subr.mxu0 0.0
    %4084 = vmatpush1.msra.mxu0 %v2208
    %4085 = vmatprep.subr.mxu0 0.0
    %4086 = vmatpush1.msra.mxu0 %v2209
    %4087 = vmatprep.subr.mxu0 0.0
    %4088 = vmatpush1.msra.mxu0 %v2210
    %4089 = vmatprep.subr.mxu0 0.0
    %4090 = vmatpush1.msra.mxu0 %v2211
    %4091 = vmatprep.subr.mxu0 0.0
    %4092 = vmatpush1.msra.mxu0 %v2212
    %4093 = vmatprep.subr.mxu0 0.0
    %4094 = vmatpush1.msra.mxu0 %v2213
    %4095 = vmatprep.subr.mxu0 0.0
    %4096 = vmatpush1.msra.mxu0 %v2214
    %4097 = vmatprep.subr.mxu0 0.0
    %4098 = vmatpush1.msra.mxu0 0.0
    %4099 = vmatprep.subr.mxu0 0.0
    %4100 = vmatpush1.msra.mxu0 0.0
    %4101 = vmatprep.subr.mxu0 0.0
    %4102 = vmatpush1.msra.mxu0 0.0
    %4103 = vmatprep.subr.mxu0 0.0
    %4104 = vmatpush1.msra.mxu0 0.0
    %4105 = vmatprep.subr.mxu0 0.0
    %4106 = vmatpush1.msra.mxu0 0.0
    %4107 = vmatprep.subr.mxu0 0.0
    %4108 = vmatpush1.msra.mxu0 0.0
    %4109 = vmatprep.subr.mxu0 0.0
    %4110 = vmatpush1.msra.mxu0 0.0
    %4111 = vmatprep.subr.mxu0 0.0
    %4112 = vmatpush1.msra.mxu0 0.0
    %4113 = vmatprep.subr.mxu0 0.0
    %4114 = vmatpush1.msra.mxu0 0.0
    %4115 = vmatprep.subr.mxu0 0.0
    %4116 = vmatpush1.msra.mxu0 0.0
    %4117 = vmatprep.subr.mxu0 0.0
    %4118 = vmatpush1.msra.mxu0 0.0
    %4119 = vmatprep.subr.mxu0 0.0
    %4120 = vmatpush1.msra.mxu0 0.0
    %4121 = vmatprep.subr.mxu0 0.0
    %4122 = vmatpush1.msra.mxu0 0.0
    %4123 = vmatprep.subr.mxu0 0.0
    %4124 = vmatpush1.msra.mxu0 0.0
    %4125 = vmatprep.subr.mxu0 0.0
    %4126 = vmatpush1.msra.mxu0 0.0
    %4127 = vmatprep.subr.mxu0 0.0
    %4128 = vmatpush1.msra.mxu0 0.0
    %4129 = vmatprep.subr.mxu0 0.0
    %4130 = vmatpush1.msra.mxu0 0.0
    %4131 = vmatprep.subr.mxu0 0.0
    %4132 = vmatpush1.msra.mxu0 0.0
    %4133 = vmatprep.subr.mxu0 0.0
    %4134 = vmatpush1.msra.mxu0 0.0
    %4135 = vmatprep.subr.mxu0 0.0
    %4136 = vmatpush1.msra.mxu0 0.0
    %4137 = vmatprep.subr.mxu0 0.0
    %4138 = vmatpush1.msra.mxu0 0.0
    %4139 = vmatprep.subr.mxu0 0.0
    %4140 = vmatpush1.msra.mxu0 0.0
    %4141 = vmatprep.subr.mxu0 0.0
    %4142 = vmatpush1.msra.mxu0 0.0
    %4143 = vmatprep.subr.mxu0 0.0
    %4144 = vmatpush1.msra.mxu0 0.0
    %4145 = vmatprep.mubr.f32.mxu0 0.0
    %4146 = vmatmul.mubr.f32.gmra.mrb[0].mxu0 %v4070
    %v4147 = vpop.f32.mrb[0].mxu0
    %v4148 = vadd.f32 %v4068, %v4147
    %v4149 = vpop.f32.mrb[0].mxu0
    %4150 = vmatprep.mubr.f32.mxu0 0.0
    %4151 = vmatmul.mubr.f32.gmra.mrb[0].mxu0 %v4073
    %v4152 = vpop.f32.mrb[0].mxu0
    %v4153 = vadd.f32 %v4068, %v4152
    %v4154 = vpop.f32.mrb[0].mxu0
    %4155 = vmatprep.mubr.f32.mxu0 0.0
    %4156 = vmatmul.mubr.f32.gmra.mrb[0].mxu0 %v4076
    %v4157 = vpop.f32.mrb[0].mxu0
    %v4158 = vadd.f32 %v4068, %v4157
    %v4159 = vpop.f32.mrb[0].mxu0
    %4160 = vmatprep.mubr.f32.mxu0 0.0
    %4161 = vmatmul.mubr.f32.gmra.mrb[0].mxu0 %v4079
    %v4162 = vpop.f32.mrb[0].mxu0
    %v4163 = vadd.f32 %v4068, %v4162
    %v4164 = vpop.f32.mrb[0].mxu0
    %4165 = vdwg.mxu0
    %v4166 = vadd.f32 %v3922, %v4148
    %v4167 = vadd.f32 %v3923, %v4153
    %v4168 = vadd.f32 %v3924, %v4158
    %v4169 = vadd.f32 %v3925, %v4163
    %v4170 = vsel %vm42, %v4166, 0.0
    %4171 = vadd.xlane.f32.xlu0 %v4170
    %v4172 = vpop.xlane.xlu0 %4171
    %v4173 = vsel %vm42, %v4167, 0.0
    %4174 = vadd.xlane.f32.xlu0 %v4173
    %v4175 = vpop.xlane.xlu0 %4174
    %v4176 = vsel %vm42, %v4168, 0.0
    %4177 = vadd.xlane.f32.xlu0 %v4176
    %v4178 = vpop.xlane.xlu0 %4177
    %v4179 = vsel %vm42, %v4169, 0.0
    %4180 = vadd.xlane.f32.xlu0 %v4179
    %v4181 = vpop.xlane.xlu0 %4180
    %v4182 = vmul.f32 %v4172, %v55
    %v4183 = vmul.f32 %v4175, %v55
    %v4184 = vmul.f32 %v4178, %v55
    %v4185 = vmul.f32 %v4181, %v55
    %v4186 = vsub.f32 %v4166, %v4182
    %v4187 = vsub.f32 %v4167, %v4183
    %v4188 = vsub.f32 %v4168, %v4184
    %v4189 = vsub.f32 %v4169, %v4185
    %v4190 = vmul.f32 %v4186, %v4186
    %v4191 = vmul.f32 %v4187, %v4187
    %v4192 = vmul.f32 %v4188, %v4188
    %v4193 = vmul.f32 %v4189, %v4189
    %v4194 = vsel %vm42, %v4190, 0.0
    %4195 = vadd.xlane.f32.xlu0 %v4194
    %v4196 = vpop.xlane.xlu0 %4195
    %v4197 = vsel %vm42, %v4191, 0.0
    %4198 = vadd.xlane.f32.xlu0 %v4197
    %v4199 = vpop.xlane.xlu0 %4198
    %v4200 = vsel %vm42, %v4192, 0.0
    %4201 = vadd.xlane.f32.xlu0 %v4200
    %v4202 = vpop.xlane.xlu0 %4201
    %v4203 = vsel %vm42, %v4193, 0.0
    %4204 = vadd.xlane.f32.xlu0 %v4203
    %v4205 = vpop.xlane.xlu0 %4204
    %v4206 = vmul.f32 %v4196, %v55
    %v4207 = vmul.f32 %v4199, %v55
    %v4208 = vmul.f32 %v4202, %v55
    %v4209 = vmul.f32 %v4205, %v55
    %v4210 = vadd.f32 %v4206, 1e-12
    %v4211 = vadd.f32 %v4207, 1e-12
    %v4212 = vadd.f32 %v4208, 1e-12
    %v4213 = vadd.f32 %v4209, 1e-12
    %v4214 = vrsqrt.pop %v4210
    %v4215 = vrsqrt.pop %v4211
    %v4216 = vrsqrt.pop %v4212
    %v4217 = vrsqrt.pop %v4213
    %v4218 = vmul.f32 %v4186, %v4214
    %v4219 = vmul.f32 %v4187, %v4215
    %v4220 = vmul.f32 %v4188, %v4216
    %v4221 = vmul.f32 %v4189, %v4217
    %v4222 = vlaneseq
    %v4223 = vshrl.u32 %v4222, 7
    %v4224 = vsub.s32 4, %v4223
    %v4225 = vrot.slane %v2216, %v4224
    %v4226 = vmul.f32 %v4218, %v4225
    %v4227 = vmul.f32 %v4219, %v4225
    %v4228 = vmul.f32 %v4220, %v4225
    %v4229 = vmul.f32 %v4221, %v4225
    %v4230 = vlaneseq
    %v4231 = vshrl.u32 %v4230, 7
    %v4232 = vsub.s32 5, %v4231
    %v4233 = vrot.slane %v2216, %v4232
    %v4234 = vadd.f32 %v4226, %v4233
    %v4235 = vadd.f32 %v4227, %v4233
    %v4236 = vadd.f32 %v4228, %v4233
    %v4237 = vadd.f32 %v4229, %v4233
    %v4242 = vrot.slane %v4235, 7
    %vm4243 = vcmask 1041409
    %v4244 = vsel %vm4243, %v4242, %v4234
    %v4245 = vrot.slane %v4236, 6
    %vm4246 = vcmask 1042434
    %v4247 = vsel %vm4246, %v4245, %v4244
    %v4248 = vrot.slane %v4237, 5
    %vm4249 = vcmask 1043459
    %v4250 = vsel %vm4249, %v4248, %v4247
    %vm4252 = vcmask 257024
    %4253 = vst.msk [vmem:[#allocation2] sm:$0xf] %vm4252, %v4250
    // Predicated region
    $region42: #{dual_encoder_forward.3} parent=1 // pred_check
      _
    $region43: #{dual_encoder_forward.3} parent=1 // pred_check_branch
      %4255 = sbr.rel (0) target = $region45
    $region44: #{dual_encoder_forward.3} parent=1 // pred_region
      %s4257 = ssub.s32 64, 64
      %4258 = vsyncadd [#allocation3], %s4257
      %s4260 = sshll.u32 [#allocation2], 4
      %s4261 = int_to_ptr.vmem [resolvable:$true] %s4260
      %4263 = dma.vmem_to_hbm [thread:$0]  %s4261, 64, %s10, [#allocation3]
    $region45: #{dual_encoder_forward.3} parent=1 // pred_fallthru
      _
    // Predicated region
    $region46: #{dual_encoder_forward.3} parent=1 // pred_check
      _
    $region47: #{dual_encoder_forward.3} parent=1 // pred_check_branch
      %4265 = sbr.rel (0) target = $region49
    $region48: #{dual_encoder_forward.3} parent=1 // pred_region
      %4266 = dma.done [#allocation3], 64
    $region49: #{dual_encoder_forward.3} parent=1 // pred_fallthru
      _
    %4267 = vsyncpa [#allocation3], 1

</llo_original>
